<compile_context>
chip_gen: v6e
topology: v6e:2x2x1
jax: 0.10.0
libtpu: 0.0.40
codegen_flags: <defaults>
</compile_context>

<pallas_src>
import functools

import numpy as np
import jax
import jax.numpy as jnp
from jax.experimental import pallas as pl
from jax.experimental.pallas import tpu as pltpu

VMEM = pl.BlockSpec(memory_space=pltpu.MemorySpace.VMEM)


# ----------------------------------------------------------------------------
# Deterministic parameter helpers (mirror DCT_mat / generate_filter)
# ----------------------------------------------------------------------------
def dct_mat(size):
    m = np.zeros((size, size), np.float32)
    for i in range(size):
        c = np.sqrt(1.0 / size) if i == 0 else np.sqrt(2.0 / size)
        for j in range(size):
            m[i, j] = c * np.cos((j + 0.5) * np.pi * i / size)
    return m


def gen_filter(start, end, size):
    return np.array(
        [[0.0 if (i + j > end or i + j <= start) else 1.0 for j in range(size)]
         for i in range(size)], np.float32)


# ----------------------------------------------------------------------------
# Pallas kernels
# ----------------------------------------------------------------------------
def fad_kernel(x_ref, kt_ref, k_ref, filt_ref, o_ref):
    """FAD head for all (n, c) planes in one call.

    x_ref    : (BCp, H*W)   planes as rows (lane-dense, H*W=256)        [bf16]
    kt_ref   : (H*W, H*W)   kron(D, D)^T  -> forward 2-D DCT            [bf16]
    k_ref    : (H*W, H*W)   kron(D, D)    -> inverse 2-D DCT            [bf16]
    filt_ref : (4, H*W)     base + (2*sigmoid(learnable) - 1)           [f32]
    o_ref    : (4*BCp, H*W) the 4 filtered bands stacked along rows     [f32]
    """
    bcp, hw = x_ref.shape
    xf = jnp.dot(x_ref[...], kt_ref[...], preferred_element_type=jnp.float32)
    xf = jnp.where(jnp.isnan(xf), 0.0, xf)          # torch.nan_to_num(nan=0.0)
    filt = filt_ref[...]
    # Apply the 4 band filters and fold the inverse DCT of all bands into one
    # stacked (4*BCp, H*W) @ (H*W, H*W) matmul.  BCp is 8-aligned so the
    # reshape is a pure tile re-stack (no sublane shuffling).
    xp = (xf[None, :, :] * filt[:, None, :]).reshape(4 * bcp, hw)
    y = jnp.dot(xp.astype(jnp.bfloat16), k_ref[...],
                preferred_element_type=jnp.float32)
    o_ref[...] = jnp.where(jnp.isnan(y), 0.0, y)


def lfs_kernel(p_ref, k_ref, mask_ref, o_ref):
    """One tile of patches: patch DCT -> log10|.| -> M band sums (one matmul).

    p_ref    : (S*S, TP)  patch columns (row-major flattened patches)   [bf16]
    k_ref    : (S*S, S*S) kron(D_patch, D_patch)                        [bf16]
    mask_ref : (M, S*S)   (base + 2*sigmoid(learnable) - 1) / ft_num    [bf16]
    o_ref    : (M, TP)                                                  [f32]
    """
    xd = jnp.dot(k_ref[...], p_ref[...], preferred_element_type=jnp.float32)
    la = jnp.log10(jnp.abs(xd) + 1e-15)
    o_ref[...] = jnp.dot(mask_ref[...], la.astype(jnp.bfloat16),
                         preferred_element_type=jnp.float32)


def matmul_bias_relu_kernel(x_ref, w_ref, b_ref, o_ref):
    """Fused 1x1 conv (as matmul) + bias + ReLU:  o = relu(X @ W + b)."""
    y = jnp.dot(x_ref[...], w_ref[...], preferred_element_type=jnp.float32)
    o_ref[...] = jnp.maximum(y + b_ref[...], 0.0)


def mix_kernel(xf_ref, xl_ref, wf_ref, bf_ref, wl_ref, bl_ref, coef_ref,
               *out_refs, with_pool):
    """Fused MixBlock (NHWC): stacked q/k projections + cross attention +
    folded depthwise-conv/BN residual; optional fused ReLU + global avg pool."""
    B, W, _, C = xf_ref.shape
    xf = xf_ref[...]
    xl = xl_ref[...]
    xf2 = xf.reshape(B * W * W, C).astype(jnp.bfloat16)
    xl2 = xl.reshape(B * W * W, C).astype(jnp.bfloat16)
    # [q | k] computed in a single matmul per stream (weights stacked on Cout).
    pf = jnp.dot(xf2, wf_ref[...], preferred_element_type=jnp.float32) + bf_ref[...]
    pv = jnp.dot(xl2, wl_ref[...], preferred_element_type=jnp.float32) + bl_ref[...]
    qf = pf[:, :C].reshape(B, W, W, C)
    kf = pf[:, C:].reshape(B, W, W, C)
    ql = pv[:, :C].reshape(B, W, W, C)
    kl = pv[:, C:].reshape(B, W, W, C)
    # energy[b,i,j,c] = sum_h q[b,i,h,c] * k[b,j,h,c]
    # (torch.cat on the contracted dim == sum of FAD and LFS contributions).
    energy = (jnp.sum(qf[:, :, None, :, :] * kf[:, None, :, :, :], axis=3)
              + jnp.sum(ql[:, :, None, :, :] * kl[:, None, :, :, :], axis=3))
    energy = energy - jnp.max(energy, axis=2, keepdims=True)
    e = jnp.exp(energy)
    att = e * pl.reciprocal(jnp.sum(e, axis=2, keepdims=True), approx=True)
    coef = coef_ref[...]                                   # (4, C) float32
    # gamma, depthwise 1x1 conv and eval-mode BatchNorm folded into a single
    # per-channel scale + shift pair (precomputed in the wrapper).
    yf = xf + (xl * att) * coef[0:1] + coef[1:2]
    yl = xl + (xf * att) * coef[2:3] + coef[3:4]
    out_refs[0][...] = yf
    out_refs[1][...] = yl
    if with_pool:
        # Classifier _norm_feature fused here: ReLU + global average pool.
        out_refs[2][...] = jnp.mean(jnp.maximum(yf, 0.0), axis=(1, 2))
        out_refs[3][...] = jnp.mean(jnp.maximum(yl, 0.0), axis=(1, 2))


# ----------------------------------------------------------------------------
# Wrappers around pallas_call
# ----------------------------------------------------------------------------
def fad_head_forward(x, p):
    """FAD_Head: 2-D DCT -> 4 band filters -> inverse DCT.  Output NHWC."""
    N, C, H, W = x.shape
    BC, HW = N * C, H * W
    BCp = ((BC + 7) // 8) * 8                      # sublane-align plane rows
    x_flat = x.reshape(BC, HW)
    if BCp != BC:
        x_flat = jnp.pad(x_flat, ((0, BCp - BC), (0, 0)))
    filt = (p['fad_base'] + 2.0 * jax.nn.sigmoid(p['fad_learn']) - 1.0
            ).reshape(4, HW)
    out = pl.pallas_call(
        fad_kernel,
        out_shape=jax.ShapeDtypeStruct((4 * BCp, HW), jnp.float32),
        in_specs=[VMEM] * 4,
        out_specs=VMEM,
    )(x_flat.astype(jnp.bfloat16),
      p['fad_kron_T'].astype(jnp.bfloat16),
      p['fad_kron'].astype(jnp.bfloat16),
      filt.astype(jnp.float32))
    out = out.reshape(4, BCp, H, W)[:, :BC].reshape(4, N, C, H, W)
    # torch.cat(y_list, dim=1) -> NHWC channels ordered (band, original chan)
    return out.transpose(1, 3, 4, 0, 2).reshape(N, H, W, 4 * C)


def lfs_head_forward(x, p, *, S=10, M=6):
    """LFS_Head: sliding-window DCT log-spectrum.  Output (N, sa, sa, M)."""
    N = x.shape[0]
    gray = 0.299 * x[:, 0] + 0.587 * x[:, 1] + 0.114 * x[:, 2]
    xg = (gray + 1.0) * 122.5                                    # (N, H, W)
    # nn.Unfold(kernel=S, stride=2, padding=4) as a single patch-extraction op.
    patches = jax.lax.conv_general_dilated_patches(
        xg[:, None, :, :], (S, S), (2, 2), ((4, 4), (4, 4)),
        precision=jax.lax.Precision.HIGHEST)                     # (N, S*S, sa, sa)
    sa = patches.shape[-1]
    # TODO(synk): original asserts size_after == 149 (img 299); demo uses sa=8.
    P = N * sa * sa
    pc = patches.reshape(N, S * S, sa * sa).transpose(1, 0, 2).reshape(S * S, P)
    TP = 128                                   # lane-aligned patch tile
    P_pad = ((P + TP - 1) // TP) * TP
    if P_pad != P:
        pc = jnp.pad(pc, ((0, 0), (0, P_pad - P)))
    mask = ((p['lfs_base'] + 2.0 * jax.nn.sigmoid(p['lfs_learn']) - 1.0)
            * p['lfs_invft']).reshape(M, S * S)
    out = pl.pallas_call(
        lfs_kernel,
        out_shape=jax.ShapeDtypeStruct((M, P_pad), jnp.float32),
        grid=(P_pad // TP,),
        in_specs=[pl.BlockSpec((S * S, TP), lambda i: (0, i)),
                  pl.BlockSpec((S * S, S * S), lambda i: (0, 0)),
                  pl.BlockSpec((M, S * S), lambda i: (0, 0))],
        out_specs=pl.BlockSpec((M, TP), lambda i: (0, i)),
        compiler_params=pltpu.CompilerParams(
            dimension_semantics=("parallel",)),   # tiles independent (v7x megacore)
    )(pc.astype(jnp.bfloat16), p['lfs_kron'].astype(jnp.bfloat16),
      mask.astype(jnp.bfloat16))
    return out[:, :P].reshape(M, N, sa, sa).transpose(1, 2, 3, 0)   # NHWC


def conv1x1_relu(x, w, b):
    """Pointwise conv + bias + ReLU as one Pallas matmul.  x: NHWC, w: (Cout, Cin)."""
    B, H, W, Cin = x.shape
    Cout = w.shape[0]
    y = pl.pallas_call(
        matmul_bias_relu_kernel,
        out_shape=jax.ShapeDtypeStruct((B * H * W, Cout), jnp.float32),
        in_specs=[VMEM] * 3,
        out_specs=VMEM,
    )(x.reshape(B * H * W, Cin).astype(jnp.bfloat16),
      w.T.astype(jnp.bfloat16),
      b.reshape(1, Cout).astype(jnp.float32))
    return y.reshape(B, H, W, Cout)


def mix_block(x_fad, x_lfs, mp, *, with_pool=False):
    B, W, H, C = x_fad.shape
    assert W == H, 'Width and Height must be equal.'
    wf = jnp.concatenate([mp['wq_f'], mp['wk_f']], axis=0).T.astype(jnp.bfloat16)
    bf = jnp.concatenate([mp['bq_f'], mp['bk_f']]).reshape(1, 2 * C)
    wl = jnp.concatenate([mp['wq_l'], mp['wk_l']], axis=0).T.astype(jnp.bfloat16)
    bl = jnp.concatenate([mp['bq_l'], mp['bk_l']]).reshape(1, 2 * C)
    g_fad = 2.0 * jax.nn.sigmoid(mp['fad_gamma']) - 1.0
    g_lfs = 2.0 * jax.nn.sigmoid(mp['lfs_gamma']) - 1.0
    # Fold gamma, depthwise 1x1 conv and eval-mode BN into per-channel
    # scale/shift pairs:  y = x + (other * att) * scale + shift.
    coef = jnp.stack([g_lfs * mp['dw_w_f'] * mp['bn_s_f'],
                      mp['dw_b_f'] * mp['bn_s_f'] + mp['bn_b_f'],
                      g_fad * mp['dw_w_l'] * mp['bn_s_l'],
                      mp['dw_b_l'] * mp['bn_s_l'] + mp['bn_b_l']], axis=0)
    out_shape = [jax.ShapeDtypeStruct((B, W, W, C), jnp.float32)] * 2
    if with_pool:
        out_shape += [jax.ShapeDtypeStruct((B, C), jnp.float32)] * 2
    return pl.pallas_call(
        functools.partial(mix_kernel, with_pool=with_pool),
        out_shape=tuple(out_shape),
        in_specs=[VMEM] * 7,
        out_specs=tuple([VMEM] * len(out_shape)),
    )(x_fad, x_lfs, wf, bf.astype(jnp.float32), wl, bl.astype(jnp.float32),
      coef.astype(jnp.float32))


def avgpool2(x):
    B, H, W, C = x.shape
    return x.reshape(B, H // 2, 2, W // 2, 2, C).mean(axis=(2, 4))


def f3net_forward(x, p):
    fad_in = fad_head_forward(x, p)                    # (N, 16, 16, 12)
    lfs_in = lfs_head_forward(x, p)                    # (N,  8,  8,  6)
    # TODO(synk): stand-in for the pretrained Xception trunks (see header note).
    xa = conv1x1_relu(avgpool2(fad_in), p['projA_fad_w'], p['projA_fad_b'])
    xl = conv1x1_relu(lfs_in, p['projA_lfs_w'], p['projA_lfs_b'])
    xa, xl = mix_block(xa, xl, p['mixA'])                         # ~ mix_block7
    xa = conv1x1_relu(avgpool2(xa), p['projB_fad_w'], p['projB_fad_b'])
    xl = conv1x1_relu(avgpool2(xl), p['projB_lfs_w'], p['projB_lfs_b'])
    _, _, pool_fad, pool_lfs = mix_block(xa, xl, p['mixB'], with_pool=True)
    # ReLU + global average pool are fused into the mixB kernel above.
    feat = jnp.concatenate([pool_fad, pool_lfs], axis=1)
    # TODO(synk): Dropout(p=0.2) is identity in eval mode.
    return feat @ p['fc_w'].T + p['fc_b']              # tiny final Linear in XLA


# ----------------------------------------------------------------------------
# Parameter construction (deterministic)
# ----------------------------------------------------------------------------
def build_params(key, img_size=16, lfs_S=10, lfs_M=6, c1=16, c2=32, num_classes=2):
    ks = iter(jax.random.split(key, 64))

    def rnd(shape, scale=0.1):
        return (scale * jax.random.normal(next(ks), shape)).astype(jnp.float32)

    p = {}
    D = dct_mat(img_size)
    # Kronecker form of the separable 2-D DCT: vec_r(D X D^T) = kron(D, D) vec_r(X)
    K = np.kron(D, D).astype(np.float32)
    p['fad_kron'] = jnp.asarray(K)
    p['fad_kron_T'] = jnp.asarray(K.T)
    bands = [(0, img_size // 16), (img_size // 16, img_size // 8),
             (img_size // 8, img_size), (0, img_size * 2)]
    p['fad_base'] = jnp.stack([jnp.asarray(gen_filter(s, e, img_size)) for s, e in bands])
    p['fad_learn'] = rnd((4, img_size, img_size))

    Dp = dct_mat(lfs_S)
    p['lfs_kron'] = jnp.asarray(np.kron(Dp, Dp).astype(np.float32))
    lbands = [(lfs_S * 2.0 / lfs_M * i, lfs_S * 2.0 / lfs_M * (i + 1)) for i in range(lfs_M)]
    lbase = jnp.stack([jnp.asarray(gen_filter(s, e, lfs_S)) for s, e in lbands])
    p['lfs_base'] = lbase
    p['lfs_learn'] = rnd((lfs_M, lfs_S, lfs_S))
    p['lfs_invft'] = (1.0 / jnp.sum(lbase, axis=(1, 2))).reshape(lfs_M, 1, 1)

    p['projA_fad_w'], p['projA_fad_b'] = rnd((c1, 12)), rnd((c1,))
    p['projA_lfs_w'], p['projA_lfs_b'] = rnd((c1, lfs_M)), rnd((c1,))
    p['projB_fad_w'], p['projB_fad_b'] = rnd((c2, c1)), rnd((c2,))
    p['projB_lfs_w'], p['projB_lfs_b'] = rnd((c2, c1)), rnd((c2,))

    def mix_params(C):
        mp = {}
        for name in ['q_f', 'q_l', 'k_f', 'k_l']:
            mp['w' + name] = rnd((C, C))
            mp['b' + name] = rnd((C,))
        mp['fad_gamma'] = jnp.zeros((), jnp.float32)      # torch init: zeros
        mp['lfs_gamma'] = jnp.zeros((), jnp.float32)
        for side in ['f', 'l']:
            mp['dw_w_' + side] = rnd((C,))
            mp['dw_b_' + side] = rnd((C,))
            # BatchNorm2d, eval mode, fresh stats: scale = 1/sqrt(var+eps), shift = 0
            mp['bn_s_' + side] = jnp.full((C,), 1.0 / np.sqrt(1.0 + 1e-5), jnp.float32)
            mp['bn_b_' + side] = jnp.zeros((C,), jnp.float32)
        return mp

    p['mixA'] = mix_params(c1)
    p['mixB'] = mix_params(c2)
    p['fc_w'] = rnd((num_classes, 2 * c2), 0.05)
    p['fc_b'] = jnp.zeros((num_classes,), jnp.float32)
    return p


# ----------------------------------------------------------------------------
if __name__ == "__main__":
    key = jax.random.PRNGKey(0)
    k_x, k_p = jax.random.split(key)
    N, IMG = 2, 16
    x = jax.random.normal(k_x, (N, 3, IMG, IMG), jnp.float32)
    params = build_params(k_p, img_size=IMG, lfs_S=10, lfs_M=6,
                          c1=16, c2=32, num_classes=2)
    logits = jax.jit(f3net_forward)(x, params)
    jax.block_until_ready(logits)
    assert logits.shape == (N, 2) and bool(jnp.all(jnp.isfinite(logits)))
    print("KERNEL_OK")
</pallas_src>

<mosaic_0001>
module attributes {stable_mosaic.version = 11 : i64} {
  func.func @fad_kernel(%arg0: memref<8x256xbf16, #tpu.memory_space<vmem>>, %arg1: memref<256x256xbf16, #tpu.memory_space<vmem>>, %arg2: memref<256x256xbf16, #tpu.memory_space<vmem>>, %arg3: memref<4x256xf32, #tpu.memory_space<vmem>>, %arg4: memref<32x256xf32, #tpu.memory_space<vmem>>) attributes {dimension_semantics = [], scalar_prefetch = 0 : i64, scratch_operands = 0 : i64, tpu.core_type = #tpu.core_type<tc>} {
    %c0 = arith.constant 0 : index
    %c0_0 = arith.constant 0 : index
    %0 = vector.load %arg0[%c0, %c0_0] : memref<8x256xbf16, #tpu.memory_space<vmem>>, vector<8x256xbf16>
    %c0_1 = arith.constant 0 : index
    %c0_2 = arith.constant 0 : index
    %1 = vector.load %arg1[%c0_1, %c0_2] : memref<256x256xbf16, #tpu.memory_space<vmem>>, vector<256x256xbf16>
    %cst = arith.constant dense<0.000000e+00> : vector<8x256xf32>
    %2 = tpu.matmul %0, %1, %cst {dimension_numbers = #tpu.dot_dimension_numbers<[1], [0], [0], [1], [0, 0, 1, 1], [], []>} : vector<8x256xbf16>, vector<256x256xbf16>, vector<8x256xf32> -> vector<8x256xf32>
    %3 = arith.cmpf one, %2, %2 : vector<8x256xf32>
    %cst_3 = arith.constant 0.000000e+00 : f32
    %4 = vector.broadcast %cst_3 : f32 to vector<8x256xf32>
    %5 = arith.select %3, %4, %2 : vector<8x256xi1>, vector<8x256xf32>
    %c0_4 = arith.constant 0 : index
    %c0_5 = arith.constant 0 : index
    %6 = vector.load %arg3[%c0_4, %c0_5] : memref<4x256xf32, #tpu.memory_space<vmem>>, vector<4x256xf32>
    %7 = vector.shape_cast %5 : vector<8x256xf32> to vector<1x8x256xf32>
    %8 = vector.shape_cast %6 : vector<4x256xf32> to vector<4x1x256xf32>
    %9 = vector.broadcast %7 : vector<1x8x256xf32> to vector<4x8x256xf32>
    %10 = vector.broadcast %8 : vector<4x1x256xf32> to vector<4x8x256xf32>
    %11 = arith.mulf %9, %10 : vector<4x8x256xf32>
    %12 = vector.shape_cast %11 : vector<4x8x256xf32> to vector<32x256xf32>
    %13 = arith.truncf %12 : vector<32x256xf32> to vector<32x256xbf16>
    %c0_6 = arith.constant 0 : index
    %c0_7 = arith.constant 0 : index
    %14 = vector.load %arg2[%c0_6, %c0_7] : memref<256x256xbf16, #tpu.memory_space<vmem>>, vector<256x256xbf16>
    %cst_8 = arith.constant dense<0.000000e+00> : vector<32x256xf32>
    %15 = tpu.matmul %13, %14, %cst_8 {dimension_numbers = #tpu.dot_dimension_numbers<[1], [0], [0], [1], [0, 0, 1, 1], [], []>} : vector<32x256xbf16>, vector<256x256xbf16>, vector<32x256xf32> -> vector<32x256xf32>
    %16 = arith.cmpf one, %15, %15 : vector<32x256xf32>
    %cst_9 = arith.constant 0.000000e+00 : f32
    %17 = vector.broadcast %cst_9 : f32 to vector<32x256xf32>
    %18 = arith.select %16, %17, %15 : vector<32x256xi1>, vector<32x256xf32>
    %c0_10 = arith.constant 0 : index
    %c0_11 = arith.constant 0 : index
    %19 = vector.load %arg4[%c0_10, %c0_11] : memref<32x256xf32, #tpu.memory_space<vmem>>, vector<32x256xf32>
    tpu.vector_store %arg4[%c0_10, %c0_11], %18 {strides = array<i32>} : memref<32x256xf32, #tpu.memory_space<vmem>>, vector<32x256xf32>,
    return
  }
}

module attributes {stable_mosaic.version = 11 : i64} {
  func.func @matmul_bias_relu_kernel(%arg0: memref<128x12xbf16, #tpu.memory_space<vmem>>, %arg1: memref<12x16xbf16, #tpu.memory_space<vmem>>, %arg2: memref<1x16xf32, #tpu.memory_space<vmem>>, %arg3: memref<128x16xf32, #tpu.memory_space<vmem>>) attributes {dimension_semantics = [], scalar_prefetch = 0 : i64, scratch_operands = 0 : i64, tpu.core_type = #tpu.core_type<tc>} {
    %c0 = arith.constant 0 : index
    %c0_0 = arith.constant 0 : index
    %0 = vector.load %arg0[%c0, %c0_0] : memref<128x12xbf16, #tpu.memory_space<vmem>>, vector<128x12xbf16>
    %c0_1 = arith.constant 0 : index
    %c0_2 = arith.constant 0 : index
    %1 = vector.load %arg1[%c0_1, %c0_2] : memref<12x16xbf16, #tpu.memory_space<vmem>>, vector<12x16xbf16>
    %cst = arith.constant dense<0.000000e+00> : vector<128x16xf32>
    %2 = tpu.matmul %0, %1, %cst {dimension_numbers = #tpu.dot_dimension_numbers<[1], [0], [0], [1], [0, 0, 1, 1], [], []>} : vector<128x12xbf16>, vector<12x16xbf16>, vector<128x16xf32> -> vector<128x16xf32>
    %c0_3 = arith.constant 0 : index
    %c0_4 = arith.constant 0 : index
    %3 = vector.load %arg2[%c0_3, %c0_4] : memref<1x16xf32, #tpu.memory_space<vmem>>, vector<1x16xf32>
    %4 = vector.broadcast %3 : vector<1x16xf32> to vector<128x16xf32>
    %5 = arith.addf %2, %4 : vector<128x16xf32>
    %cst_5 = arith.constant 0.000000e+00 : f32
    %6 = vector.broadcast %cst_5 : f32 to vector<128x16xf32>
    %7 = arith.maximumf %5, %6 : vector<128x16xf32>
    %c0_6 = arith.constant 0 : index
    %c0_7 = arith.constant 0 : index
    %8 = vector.load %arg3[%c0_6, %c0_7] : memref<128x16xf32, #tpu.memory_space<vmem>>, vector<128x16xf32>
    tpu.vector_store %arg3[%c0_6, %c0_7], %7 {strides = array<i32>} : memref<128x16xf32, #tpu.memory_space<vmem>>, vector<128x16xf32>,
    return
  }
}

module attributes {stable_mosaic.version = 11 : i64} {
  func.func @lfs_kernel(%arg0: i32, %arg1: memref<100x128xbf16, #tpu.memory_space<vmem>>, %arg2: memref<100x100xbf16, #tpu.memory_space<vmem>>, %arg3: memref<6x100xbf16, #tpu.memory_space<vmem>>, %arg4: memref<6x128xf32, #tpu.memory_space<vmem>>) attributes {dimension_semantics = [#tpu.dimension_semantics<parallel>], iteration_bounds = array<i64: 1>, scalar_prefetch = 0 : i64, scratch_operands = 0 : i64, tpu.core_type = #tpu.core_type<tc>, window_params = [{transform_indices = @transform_0, window_bounds = array<i64: 100, 128>}, {pipeline_mode = #tpu.pipeline_mode<synchronous>, transform_indices = @transform_1, window_bounds = array<i64: 100, 100>}, {pipeline_mode = #tpu.pipeline_mode<synchronous>, transform_indices = @transform_2, window_bounds = array<i64: 6, 100>}, {transform_indices = @transform_3, window_bounds = array<i64: 6, 128>}]} {
    %c0 = arith.constant 0 : index
    %c0_0 = arith.constant 0 : index
    %0 = vector.load %arg2[%c0, %c0_0] : memref<100x100xbf16, #tpu.memory_space<vmem>>, vector<100x100xbf16>
    %c0_1 = arith.constant 0 : index
    %c0_2 = arith.constant 0 : index
    %1 = vector.load %arg1[%c0_1, %c0_2] : memref<100x128xbf16, #tpu.memory_space<vmem>>, vector<100x128xbf16>
    %cst = arith.constant dense<0.000000e+00> : vector<100x128xf32>
    %2 = tpu.matmul %0, %1, %cst {dimension_numbers = #tpu.dot_dimension_numbers<[1], [0], [0], [1], [0, 0, 1, 1], [], []>} : vector<100x100xbf16>, vector<100x128xbf16>, vector<100x128xf32> -> vector<100x128xf32>
    %3 = math.absf %2 : vector<100x128xf32>
    %cst_3 = arith.constant 1.000000e-15 : f32
    %4 = vector.broadcast %cst_3 : f32 to vector<100x128xf32>
    %5 = arith.addf %3, %4 : vector<100x128xf32>
    %6 = math.log %5 : vector<100x128xf32>
    %cst_4 = arith.constant 0.434294492 : f32
    %7 = vector.broadcast %cst_4 : f32 to vector<100x128xf32>
    %8 = arith.mulf %6, %7 : vector<100x128xf32>
    %c0_5 = arith.constant 0 : index
    %c0_6 = arith.constant 0 : index
    %9 = vector.load %arg3[%c0_5, %c0_6] : memref<6x100xbf16, #tpu.memory_space<vmem>>, vector<6x100xbf16>
    %10 = arith.truncf %8 : vector<100x128xf32> to vector<100x128xbf16>
    %cst_7 = arith.constant dense<0.000000e+00> : vector<6x128xf32>
    %11 = tpu.matmul %9, %10, %cst_7 {dimension_numbers = #tpu.dot_dimension_numbers<[1], [0], [0], [1], [0, 0, 1, 1], [], []>} : vector<6x100xbf16>, vector<100x128xbf16>, vector<6x128xf32> -> vector<6x128xf32>
    %c0_8 = arith.constant 0 : index
    %c0_9 = arith.constant 0 : index
    %12 = vector.load %arg4[%c0_8, %c0_9] : memref<6x128xf32, #tpu.memory_space<vmem>>, vector<6x128xf32>
    tpu.vector_store %arg4[%c0_8, %c0_9], %11 {strides = array<i32>} : memref<6x128xf32, #tpu.memory_space<vmem>>, vector<6x128xf32>,
    return
  }
  func.func @transform_0(%arg0: i32) -> (i32, i32) {
    %c0_i32 = arith.constant 0 : i32
    %c0_i32_0 = arith.constant 0 : i32
    return %c0_i32, %arg0 : i32, i32
  }
  func.func @transform_1(%arg0: i32) -> (i32, i32) {
    %c0_i32 = arith.constant 0 : i32
    %c0_i32_0 = arith.constant 0 : i32
    %c0_i32_1 = arith.constant 0 : i32
    return %c0_i32, %c0_i32_0 : i32, i32
  }
  func.func @transform_2(%arg0: i32) -> (i32, i32) {
    %c0_i32 = arith.constant 0 : i32
    %c0_i32_0 = arith.constant 0 : i32
    %c0_i32_1 = arith.constant 0 : i32
    return %c0_i32, %c0_i32_0 : i32, i32
  }
  func.func @transform_3(%arg0: i32) -> (i32, i32) {
    %c0_i32 = arith.constant 0 : i32
    %c0_i32_0 = arith.constant 0 : i32
    return %c0_i32, %arg0 : i32, i32
  }
}

module attributes {stable_mosaic.version = 11 : i64} {
  func.func @matmul_bias_relu_kernel(%arg0: memref<128x6xbf16, #tpu.memory_space<vmem>>, %arg1: memref<6x16xbf16, #tpu.memory_space<vmem>>, %arg2: memref<1x16xf32, #tpu.memory_space<vmem>>, %arg3: memref<128x16xf32, #tpu.memory_space<vmem>>) attributes {dimension_semantics = [], scalar_prefetch = 0 : i64, scratch_operands = 0 : i64, tpu.core_type = #tpu.core_type<tc>} {
    %c0 = arith.constant 0 : index
    %c0_0 = arith.constant 0 : index
    %0 = vector.load %arg0[%c0, %c0_0] : memref<128x6xbf16, #tpu.memory_space<vmem>>, vector<128x6xbf16>
    %c0_1 = arith.constant 0 : index
    %c0_2 = arith.constant 0 : index
    %1 = vector.load %arg1[%c0_1, %c0_2] : memref<6x16xbf16, #tpu.memory_space<vmem>>, vector<6x16xbf16>
    %cst = arith.constant dense<0.000000e+00> : vector<128x16xf32>
    %2 = tpu.matmul %0, %1, %cst {dimension_numbers = #tpu.dot_dimension_numbers<[1], [0], [0], [1], [0, 0, 1, 1], [], []>} : vector<128x6xbf16>, vector<6x16xbf16>, vector<128x16xf32> -> vector<128x16xf32>
    %c0_3 = arith.constant 0 : index
    %c0_4 = arith.constant 0 : index
    %3 = vector.load %arg2[%c0_3, %c0_4] : memref<1x16xf32, #tpu.memory_space<vmem>>, vector<1x16xf32>
    %4 = vector.broadcast %3 : vector<1x16xf32> to vector<128x16xf32>
    %5 = arith.addf %2, %4 : vector<128x16xf32>
    %cst_5 = arith.constant 0.000000e+00 : f32
    %6 = vector.broadcast %cst_5 : f32 to vector<128x16xf32>
    %7 = arith.maximumf %5, %6 : vector<128x16xf32>
    %c0_6 = arith.constant 0 : index
    %c0_7 = arith.constant 0 : index
    %8 = vector.load %arg3[%c0_6, %c0_7] : memref<128x16xf32, #tpu.memory_space<vmem>>, vector<128x16xf32>
    tpu.vector_store %arg3[%c0_6, %c0_7], %7 {strides = array<i32>} : memref<128x16xf32, #tpu.memory_space<vmem>>, vector<128x16xf32>,
    return
  }
}

module attributes {stable_mosaic.version = 11 : i64} {
  func.func @mix_kernel(%arg0: memref<2x8x8x16xf32, #tpu.memory_space<vmem>>, %arg1: memref<2x8x8x16xf32, #tpu.memory_space<vmem>>, %arg2: memref<16x32xbf16, #tpu.memory_space<vmem>>, %arg3: memref<1x32xf32, #tpu.memory_space<vmem>>, %arg4: memref<16x32xbf16, #tpu.memory_space<vmem>>, %arg5: memref<1x32xf32, #tpu.memory_space<vmem>>, %arg6: memref<4x16xf32, #tpu.memory_space<vmem>>, %arg7: memref<2x8x8x16xf32, #tpu.memory_space<vmem>>, %arg8: memref<2x8x8x16xf32, #tpu.memory_space<vmem>>) attributes {dimension_semantics = [], scalar_prefetch = 0 : i64, scratch_operands = 0 : i64, tpu.core_type = #tpu.core_type<tc>} {
    %c0 = arith.constant 0 : index
    %c0_0 = arith.constant 0 : index
    %c0_1 = arith.constant 0 : index
    %c0_2 = arith.constant 0 : index
    %0 = vector.load %arg0[%c0, %c0_0, %c0_1, %c0_2] : memref<2x8x8x16xf32, #tpu.memory_space<vmem>>, vector<2x8x8x16xf32>
    %c0_3 = arith.constant 0 : index
    %c0_4 = arith.constant 0 : index
    %c0_5 = arith.constant 0 : index
    %c0_6 = arith.constant 0 : index
    %1 = vector.load %arg1[%c0_3, %c0_4, %c0_5, %c0_6] : memref<2x8x8x16xf32, #tpu.memory_space<vmem>>, vector<2x8x8x16xf32>
    %2 = vector.shape_cast %0 : vector<2x8x8x16xf32> to vector<128x16xf32>
    %3 = arith.truncf %2 : vector<128x16xf32> to vector<128x16xbf16>
    %4 = vector.shape_cast %1 : vector<2x8x8x16xf32> to vector<128x16xf32>
    %5 = arith.truncf %4 : vector<128x16xf32> to vector<128x16xbf16>
    %c0_7 = arith.constant 0 : index
    %c0_8 = arith.constant 0 : index
    %6 = vector.load %arg2[%c0_7, %c0_8] : memref<16x32xbf16, #tpu.memory_space<vmem>>, vector<16x32xbf16>
    %cst = arith.constant dense<0.000000e+00> : vector<128x32xf32>
    %7 = tpu.matmul %3, %6, %cst {dimension_numbers = #tpu.dot_dimension_numbers<[1], [0], [0], [1], [0, 0, 1, 1], [], []>} : vector<128x16xbf16>, vector<16x32xbf16>, vector<128x32xf32> -> vector<128x32xf32>
    %c0_9 = arith.constant 0 : index
    %c0_10 = arith.constant 0 : index
    %8 = vector.load %arg3[%c0_9, %c0_10] : memref<1x32xf32, #tpu.memory_space<vmem>>, vector<1x32xf32>
    %9 = vector.broadcast %8 : vector<1x32xf32> to vector<128x32xf32>
    %10 = arith.addf %7, %9 : vector<128x32xf32>
    %c0_11 = arith.constant 0 : index
    %c0_12 = arith.constant 0 : index
    %11 = vector.load %arg4[%c0_11, %c0_12] : memref<16x32xbf16, #tpu.memory_space<vmem>>, vector<16x32xbf16>
    %cst_13 = arith.constant dense<0.000000e+00> : vector<128x32xf32>
    %12 = tpu.matmul %5, %11, %cst_13 {dimension_numbers = #tpu.dot_dimension_numbers<[1], [0], [0], [1], [0, 0, 1, 1], [], []>} : vector<128x16xbf16>, vector<16x32xbf16>, vector<128x32xf32> -> vector<128x32xf32>
    %c0_14 = arith.constant 0 : index
    %c0_15 = arith.constant 0 : index
    %13 = vector.load %arg5[%c0_14, %c0_15] : memref<1x32xf32, #tpu.memory_space<vmem>>, vector<1x32xf32>
    %14 = vector.broadcast %13 : vector<1x32xf32> to vector<128x32xf32>
    %15 = arith.addf %12, %14 : vector<128x32xf32>
    %16 = vector.extract_strided_slice %10 {offsets = [0, 0], sizes = [128, 16], strides = [1, 1]} : vector<128x32xf32> to vector<128x16xf32>
    %17 = vector.shape_cast %16 : vector<128x16xf32> to vector<2x8x8x16xf32>
    %18 = vector.extract_strided_slice %10 {offsets = [0, 16], sizes = [128, 16], strides = [1, 1]} : vector<128x32xf32> to vector<128x16xf32>
    %19 = vector.shape_cast %18 : vector<128x16xf32> to vector<2x8x8x16xf32>
    %20 = vector.extract_strided_slice %15 {offsets = [0, 0], sizes = [128, 16], strides = [1, 1]} : vector<128x32xf32> to vector<128x16xf32>
    %21 = vector.shape_cast %20 : vector<128x16xf32> to vector<2x8x8x16xf32>
    %22 = vector.extract_strided_slice %15 {offsets = [0, 16], sizes = [128, 16], strides = [1, 1]} : vector<128x32xf32> to vector<128x16xf32>
    %23 = vector.shape_cast %22 : vector<128x16xf32> to vector<2x8x8x16xf32>
    %24 = vector.shape_cast %17 : vector<2x8x8x16xf32> to vector<2x8x1x8x16xf32>
    %25 = vector.shape_cast %19 : vector<2x8x8x16xf32> to vector<2x1x8x8x16xf32>
    %26 = vector.broadcast %24 : vector<2x8x1x8x16xf32> to vector<2x8x8x8x16xf32>
    %27 = vector.broadcast %25 : vector<2x1x8x8x16xf32> to vector<2x8x8x8x16xf32>
    %28 = arith.mulf %26, %27 : vector<2x8x8x8x16xf32>
    %cst_16 = arith.constant dense<0.000000e+00> : vector<2x8x8x16xf32>
    %29 = vector.multi_reduction <add>, %28, %cst_16 [3] : vector<2x8x8x8x16xf32> to vector<2x8x8x16xf32>
    %30 = vector.shape_cast %21 : vector<2x8x8x16xf32> to vector<2x8x1x8x16xf32>
    %31 = vector.shape_cast %23 : vector<2x8x8x16xf32> to vector<2x1x8x8x16xf32>
    %32 = vector.broadcast %30 : vector<2x8x1x8x16xf32> to vector<2x8x8x8x16xf32>
    %33 = vector.broadcast %31 : vector<2x1x8x8x16xf32> to vector<2x8x8x8x16xf32>
    %34 = arith.mulf %32, %33 : vector<2x8x8x8x16xf32>
    %cst_17 = arith.constant dense<0.000000e+00> : vector<2x8x8x16xf32>
    %35 = vector.multi_reduction <add>, %34, %cst_17 [3] : vector<2x8x8x8x16xf32> to vector<2x8x8x16xf32>
    %36 = arith.addf %29, %35 : vector<2x8x8x16xf32>
    %cst_18 = arith.constant dense<0xFF800000> : vector<2x8x16xf32>
    %37 = vector.multi_reduction <maximumf>, %36, %cst_18 [2] : vector<2x8x8x16xf32> to vector<2x8x16xf32>
    %38 = vector.shape_cast %37 : vector<2x8x16xf32> to vector<2x8x1x16xf32>
    %39 = vector.broadcast %38 : vector<2x8x1x16xf32> to vector<2x8x8x16xf32>
    %40 = arith.subf %36, %39 : vector<2x8x8x16xf32>
    %41 = math.exp %40 : vector<2x8x8x16xf32>
    %cst_19 = arith.constant dense<0.000000e+00> : vector<2x8x16xf32>
    %42 = vector.multi_reduction <add>, %41, %cst_19 [2] : vector<2x8x8x16xf32> to vector<2x8x16xf32>
    %43 = vector.shape_cast %42 : vector<2x8x16xf32> to vector<2x8x1x16xf32>
    %44 = tpu.reciprocal %43 {approx = true} : vector<2x8x1x16xf32> -> vector<2x8x1x16xf32>
    %45 = vector.broadcast %44 : vector<2x8x1x16xf32> to vector<2x8x8x16xf32>
    %46 = arith.mulf %41, %45 : vector<2x8x8x16xf32>
    %c0_20 = arith.constant 0 : index
    %c0_21 = arith.constant 0 : index
    %47 = vector.load %arg6[%c0_20, %c0_21] : memref<4x16xf32, #tpu.memory_space<vmem>>, vector<4x16xf32>
    %48 = arith.mulf %1, %46 : vector<2x8x8x16xf32>
    %49 = vector.extract_strided_slice %47 {offsets = [0, 0], sizes = [1, 16], strides = [1, 1]} : vector<4x16xf32> to vector<1x16xf32>
    %50 = vector.shape_cast %49 : vector<1x16xf32> to vector<1x1x1x16xf32>
    %51 = vector.broadcast %50 : vector<1x1x1x16xf32> to vector<2x8x8x16xf32>
    %52 = arith.mulf %48, %51 : vector<2x8x8x16xf32>
    %53 = arith.addf %0, %52 : vector<2x8x8x16xf32>
    %54 = vector.extract_strided_slice %47 {offsets = [1, 0], sizes = [1, 16], strides = [1, 1]} : vector<4x16xf32> to vector<1x16xf32>
    %55 = vector.shape_cast %54 : vector<1x16xf32> to vector<1x1x1x16xf32>
    %56 = vector.broadcast %55 : vector<1x1x1x16xf32> to vector<2x8x8x16xf32>
    %57 = arith.addf %53, %56 : vector<2x8x8x16xf32>
    %58 = arith.mulf %0, %46 : vector<2x8x8x16xf32>
    %59 = vector.extract_strided_slice %47 {offsets = [2, 0], sizes = [1, 16], strides = [1, 1]} : vector<4x16xf32> to vector<1x16xf32>
    %60 = vector.shape_cast %59 : vector<1x16xf32> to vector<1x1x1x16xf32>
    %61 = vector.broadcast %60 : vector<1x1x1x16xf32> to vector<2x8x8x16xf32>
    %62 = arith.mulf %58, %61 : vector<2x8x8x16xf32>
    %63 = arith.addf %1, %62 : vector<2x8x8x16xf32>
    %64 = vector.extract_strided_slice %47 {offsets = [3, 0], sizes = [1, 16], strides = [1, 1]} : vector<4x16xf32> to vector<1x16xf32>
    %65 = vector.shape_cast %64 : vector<1x16xf32> to vector<1x1x1x16xf32>
    %66 = vector.broadcast %65 : vector<1x1x1x16xf32> to vector<2x8x8x16xf32>
    %67 = arith.addf %63, %66 : vector<2x8x8x16xf32>
    %c0_22 = arith.constant 0 : index
    %c0_23 = arith.constant 0 : index
    %c0_24 = arith.constant 0 : index
    %c0_25 = arith.constant 0 : index
    %68 = vector.load %arg7[%c0_22, %c0_23, %c0_24, %c0_25] : memref<2x8x8x16xf32, #tpu.memory_space<vmem>>, vector<2x8x8x16xf32>
    tpu.vector_store %arg7[%c0_22, %c0_23, %c0_24, %c0_25], %57 {strides = array<i32>} : memref<2x8x8x16xf32, #tpu.memory_space<vmem>>, vector<2x8x8x16xf32>,
    %c0_26 = arith.constant 0 : index
    %c0_27 = arith.constant 0 : index
    %c0_28 = arith.constant 0 : index
    %c0_29 = arith.constant 0 : index
    %69 = vector.load %arg8[%c0_26, %c0_27, %c0_28, %c0_29] : memref<2x8x8x16xf32, #tpu.memory_space<vmem>>, vector<2x8x8x16xf32>
    tpu.vector_store %arg8[%c0_26, %c0_27, %c0_28, %c0_29], %67 {strides = array<i32>} : memref<2x8x8x16xf32, #tpu.memory_space<vmem>>, vector<2x8x8x16xf32>,
    return
  }
}

module attributes {stable_mosaic.version = 11 : i64} {
  func.func @matmul_bias_relu_kernel(%arg0: memref<32x16xbf16, #tpu.memory_space<vmem>>, %arg1: memref<16x32xbf16, #tpu.memory_space<vmem>>, %arg2: memref<1x32xf32, #tpu.memory_space<vmem>>, %arg3: memref<32x32xf32, #tpu.memory_space<vmem>>) attributes {dimension_semantics = [], scalar_prefetch = 0 : i64, scratch_operands = 0 : i64, tpu.core_type = #tpu.core_type<tc>} {
    %c0 = arith.constant 0 : index
    %c0_0 = arith.constant 0 : index
    %0 = vector.load %arg0[%c0, %c0_0] : memref<32x16xbf16, #tpu.memory_space<vmem>>, vector<32x16xbf16>
    %c0_1 = arith.constant 0 : index
    %c0_2 = arith.constant 0 : index
    %1 = vector.load %arg1[%c0_1, %c0_2] : memref<16x32xbf16, #tpu.memory_space<vmem>>, vector<16x32xbf16>
    %cst = arith.constant dense<0.000000e+00> : vector<32x32xf32>
    %2 = tpu.matmul %0, %1, %cst {dimension_numbers = #tpu.dot_dimension_numbers<[1], [0], [0], [1], [0, 0, 1, 1], [], []>} : vector<32x16xbf16>, vector<16x32xbf16>, vector<32x32xf32> -> vector<32x32xf32>
    %c0_3 = arith.constant 0 : index
    %c0_4 = arith.constant 0 : index
    %3 = vector.load %arg2[%c0_3, %c0_4] : memref<1x32xf32, #tpu.memory_space<vmem>>, vector<1x32xf32>
    %4 = vector.broadcast %3 : vector<1x32xf32> to vector<32x32xf32>
    %5 = arith.addf %2, %4 : vector<32x32xf32>
    %cst_5 = arith.constant 0.000000e+00 : f32
    %6 = vector.broadcast %cst_5 : f32 to vector<32x32xf32>
    %7 = arith.maximumf %5, %6 : vector<32x32xf32>
    %c0_6 = arith.constant 0 : index
    %c0_7 = arith.constant 0 : index
    %8 = vector.load %arg3[%c0_6, %c0_7] : memref<32x32xf32, #tpu.memory_space<vmem>>, vector<32x32xf32>
    tpu.vector_store %arg3[%c0_6, %c0_7], %7 {strides = array<i32>} : memref<32x32xf32, #tpu.memory_space<vmem>>, vector<32x32xf32>,
    return
  }
}

module attributes {stable_mosaic.version = 11 : i64} {
  func.func @mix_kernel(%arg0: memref<2x4x4x32xf32, #tpu.memory_space<vmem>>, %arg1: memref<2x4x4x32xf32, #tpu.memory_space<vmem>>, %arg2: memref<32x64xbf16, #tpu.memory_space<vmem>>, %arg3: memref<1x64xf32, #tpu.memory_space<vmem>>, %arg4: memref<32x64xbf16, #tpu.memory_space<vmem>>, %arg5: memref<1x64xf32, #tpu.memory_space<vmem>>, %arg6: memref<4x32xf32, #tpu.memory_space<vmem>>, %arg7: memref<2x4x4x32xf32, #tpu.memory_space<vmem>>, %arg8: memref<2x4x4x32xf32, #tpu.memory_space<vmem>>, %arg9: memref<2x32xf32, #tpu.memory_space<vmem>>, %arg10: memref<2x32xf32, #tpu.memory_space<vmem>>) attributes {dimension_semantics = [], scalar_prefetch = 0 : i64, scratch_operands = 0 : i64, tpu.core_type = #tpu.core_type<tc>} {
    %c0 = arith.constant 0 : index
    %c0_0 = arith.constant 0 : index
    %c0_1 = arith.constant 0 : index
    %c0_2 = arith.constant 0 : index
    %0 = vector.load %arg0[%c0, %c0_0, %c0_1, %c0_2] : memref<2x4x4x32xf32, #tpu.memory_space<vmem>>, vector<2x4x4x32xf32>
    %c0_3 = arith.constant 0 : index
    %c0_4 = arith.constant 0 : index
    %c0_5 = arith.constant 0 : index
    %c0_6 = arith.constant 0 : index
    %1 = vector.load %arg1[%c0_3, %c0_4, %c0_5, %c0_6] : memref<2x4x4x32xf32, #tpu.memory_space<vmem>>, vector<2x4x4x32xf32>
    %2 = vector.shape_cast %0 : vector<2x4x4x32xf32> to vector<32x32xf32>
    %3 = arith.truncf %2 : vector<32x32xf32> to vector<32x32xbf16>
    %4 = vector.shape_cast %1 : vector<2x4x4x32xf32> to vector<32x32xf32>
    %5 = arith.truncf %4 : vector<32x32xf32> to vector<32x32xbf16>
    %c0_7 = arith.constant 0 : index
    %c0_8 = arith.constant 0 : index
    %6 = vector.load %arg2[%c0_7, %c0_8] : memref<32x64xbf16, #tpu.memory_space<vmem>>, vector<32x64xbf16>
    %cst = arith.constant dense<0.000000e+00> : vector<32x64xf32>
    %7 = tpu.matmul %3, %6, %cst {dimension_numbers = #tpu.dot_dimension_numbers<[1], [0], [0], [1], [0, 0, 1, 1], [], []>} : vector<32x32xbf16>, vector<32x64xbf16>, vector<32x64xf32> -> vector<32x64xf32>
    %c0_9 = arith.constant 0 : index
    %c0_10 = arith.constant 0 : index
    %8 = vector.load %arg3[%c0_9, %c0_10] : memref<1x64xf32, #tpu.memory_space<vmem>>, vector<1x64xf32>
    %9 = vector.broadcast %8 : vector<1x64xf32> to vector<32x64xf32>
    %10 = arith.addf %7, %9 : vector<32x64xf32>
    %c0_11 = arith.constant 0 : index
    %c0_12 = arith.constant 0 : index
    %11 = vector.load %arg4[%c0_11, %c0_12] : memref<32x64xbf16, #tpu.memory_space<vmem>>, vector<32x64xbf16>
    %cst_13 = arith.constant dense<0.000000e+00> : vector<32x64xf32>
    %12 = tpu.matmul %5, %11, %cst_13 {dimension_numbers = #tpu.dot_dimension_numbers<[1], [0], [0], [1], [0, 0, 1, 1], [], []>} : vector<32x32xbf16>, vector<32x64xbf16>, vector<32x64xf32> -> vector<32x64xf32>
    %c0_14 = arith.constant 0 : index
    %c0_15 = arith.constant 0 : index
    %13 = vector.load %arg5[%c0_14, %c0_15] : memref<1x64xf32, #tpu.memory_space<vmem>>, vector<1x64xf32>
    %14 = vector.broadcast %13 : vector<1x64xf32> to vector<32x64xf32>
    %15 = arith.addf %12, %14 : vector<32x64xf32>
    %16 = vector.extract_strided_slice %10 {offsets = [0, 0], sizes = [32, 32], strides = [1, 1]} : vector<32x64xf32> to vector<32x32xf32>
    %17 = vector.shape_cast %16 : vector<32x32xf32> to vector<2x4x4x32xf32>
    %18 = vector.extract_strided_slice %10 {offsets = [0, 32], sizes = [32, 32], strides = [1, 1]} : vector<32x64xf32> to vector<32x32xf32>
    %19 = vector.shape_cast %18 : vector<32x32xf32> to vector<2x4x4x32xf32>
    %20 = vector.extract_strided_slice %15 {offsets = [0, 0], sizes = [32, 32], strides = [1, 1]} : vector<32x64xf32> to vector<32x32xf32>
    %21 = vector.shape_cast %20 : vector<32x32xf32> to vector<2x4x4x32xf32>
    %22 = vector.extract_strided_slice %15 {offsets = [0, 32], sizes = [32, 32], strides = [1, 1]} : vector<32x64xf32> to vector<32x32xf32>
    %23 = vector.shape_cast %22 : vector<32x32xf32> to vector<2x4x4x32xf32>
    %24 = vector.shape_cast %17 : vector<2x4x4x32xf32> to vector<2x4x1x4x32xf32>
    %25 = vector.shape_cast %19 : vector<2x4x4x32xf32> to vector<2x1x4x4x32xf32>
    %26 = vector.broadcast %24 : vector<2x4x1x4x32xf32> to vector<2x4x4x4x32xf32>
    %27 = vector.broadcast %25 : vector<2x1x4x4x32xf32> to vector<2x4x4x4x32xf32>
    %28 = arith.mulf %26, %27 : vector<2x4x4x4x32xf32>
    %cst_16 = arith.constant dense<0.000000e+00> : vector<2x4x4x32xf32>
    %29 = vector.multi_reduction <add>, %28, %cst_16 [3] : vector<2x4x4x4x32xf32> to vector<2x4x4x32xf32>
    %30 = vector.shape_cast %21 : vector<2x4x4x32xf32> to vector<2x4x1x4x32xf32>
    %31 = vector.shape_cast %23 : vector<2x4x4x32xf32> to vector<2x1x4x4x32xf32>
    %32 = vector.broadcast %30 : vector<2x4x1x4x32xf32> to vector<2x4x4x4x32xf32>
    %33 = vector.broadcast %31 : vector<2x1x4x4x32xf32> to vector<2x4x4x4x32xf32>
    %34 = arith.mulf %32, %33 : vector<2x4x4x4x32xf32>
    %cst_17 = arith.constant dense<0.000000e+00> : vector<2x4x4x32xf32>
    %35 = vector.multi_reduction <add>, %34, %cst_17 [3] : vector<2x4x4x4x32xf32> to vector<2x4x4x32xf32>
    %36 = arith.addf %29, %35 : vector<2x4x4x32xf32>
    %cst_18 = arith.constant dense<0xFF800000> : vector<2x4x32xf32>
    %37 = vector.multi_reduction <maximumf>, %36, %cst_18 [2] : vector<2x4x4x32xf32> to vector<2x4x32xf32>
    %38 = vector.shape_cast %37 : vector<2x4x32xf32> to vector<2x4x1x32xf32>
    %39 = vector.broadcast %38 : vector<2x4x1x32xf32> to vector<2x4x4x32xf32>
    %40 = arith.subf %36, %39 : vector<2x4x4x32xf32>
    %41 = math.exp %40 : vector<2x4x4x32xf32>
    %cst_19 = arith.constant dense<0.000000e+00> : vector<2x4x32xf32>
    %42 = vector.multi_reduction <add>, %41, %cst_19 [2] : vector<2x4x4x32xf32> to vector<2x4x32xf32>
    %43 = vector.shape_cast %42 : vector<2x4x32xf32> to vector<2x4x1x32xf32>
    %44 = tpu.reciprocal %43 {approx = true} : vector<2x4x1x32xf32> -> vector<2x4x1x32xf32>
    %45 = vector.broadcast %44 : vector<2x4x1x32xf32> to vector<2x4x4x32xf32>
    %46 = arith.mulf %41, %45 : vector<2x4x4x32xf32>
    %c0_20 = arith.constant 0 : index
    %c0_21 = arith.constant 0 : index
    %47 = vector.load %arg6[%c0_20, %c0_21] : memref<4x32xf32, #tpu.memory_space<vmem>>, vector<4x32xf32>
    %48 = arith.mulf %1, %46 : vector<2x4x4x32xf32>
    %49 = vector.extract_strided_slice %47 {offsets = [0, 0], sizes = [1, 32], strides = [1, 1]} : vector<4x32xf32> to vector<1x32xf32>
    %50 = vector.shape_cast %49 : vector<1x32xf32> to vector<1x1x1x32xf32>
    %51 = vector.broadcast %50 : vector<1x1x1x32xf32> to vector<2x4x4x32xf32>
    %52 = arith.mulf %48, %51 : vector<2x4x4x32xf32>
    %53 = arith.addf %0, %52 : vector<2x4x4x32xf32>
    %54 = vector.extract_strided_slice %47 {offsets = [1, 0], sizes = [1, 32], strides = [1, 1]} : vector<4x32xf32> to vector<1x32xf32>
    %55 = vector.shape_cast %54 : vector<1x32xf32> to vector<1x1x1x32xf32>
    %56 = vector.broadcast %55 : vector<1x1x1x32xf32> to vector<2x4x4x32xf32>
    %57 = arith.addf %53, %56 : vector<2x4x4x32xf32>
    %58 = arith.mulf %0, %46 : vector<2x4x4x32xf32>
    %59 = vector.extract_strided_slice %47 {offsets = [2, 0], sizes = [1, 32], strides = [1, 1]} : vector<4x32xf32> to vector<1x32xf32>
    %60 = vector.shape_cast %59 : vector<1x32xf32> to vector<1x1x1x32xf32>
    %61 = vector.broadcast %60 : vector<1x1x1x32xf32> to vector<2x4x4x32xf32>
    %62 = arith.mulf %58, %61 : vector<2x4x4x32xf32>
    %63 = arith.addf %1, %62 : vector<2x4x4x32xf32>
    %64 = vector.extract_strided_slice %47 {offsets = [3, 0], sizes = [1, 32], strides = [1, 1]} : vector<4x32xf32> to vector<1x32xf32>
    %65 = vector.shape_cast %64 : vector<1x32xf32> to vector<1x1x1x32xf32>
    %66 = vector.broadcast %65 : vector<1x1x1x32xf32> to vector<2x4x4x32xf32>
    %67 = arith.addf %63, %66 : vector<2x4x4x32xf32>
    %c0_22 = arith.constant 0 : index
    %c0_23 = arith.constant 0 : index
    %c0_24 = arith.constant 0 : index
    %c0_25 = arith.constant 0 : index
    %68 = vector.load %arg7[%c0_22, %c0_23, %c0_24, %c0_25] : memref<2x4x4x32xf32, #tpu.memory_space<vmem>>, vector<2x4x4x32xf32>
    tpu.vector_store %arg7[%c0_22, %c0_23, %c0_24, %c0_25], %57 {strides = array<i32>} : memref<2x4x4x32xf32, #tpu.memory_space<vmem>>, vector<2x4x4x32xf32>,
    %c0_26 = arith.constant 0 : index
    %c0_27 = arith.constant 0 : index
    %c0_28 = arith.constant 0 : index
    %c0_29 = arith.constant 0 : index
    %69 = vector.load %arg8[%c0_26, %c0_27, %c0_28, %c0_29] : memref<2x4x4x32xf32, #tpu.memory_space<vmem>>, vector<2x4x4x32xf32>
    tpu.vector_store %arg8[%c0_26, %c0_27, %c0_28, %c0_29], %67 {strides = array<i32>} : memref<2x4x4x32xf32, #tpu.memory_space<vmem>>, vector<2x4x4x32xf32>,
    %cst_30 = arith.constant 0.000000e+00 : f32
    %70 = vector.broadcast %cst_30 : f32 to vector<2x4x4x32xf32>
    %71 = arith.maximumf %57, %70 : vector<2x4x4x32xf32>
    %cst_31 = arith.constant dense<0.000000e+00> : vector<2x32xf32>
    %72 = vector.multi_reduction <add>, %71, %cst_31 [1, 2] : vector<2x4x4x32xf32> to vector<2x32xf32>
    %cst_32 = arith.constant 1.600000e+01 : f32
    %73 = vector.broadcast %cst_32 : f32 to vector<2x32xf32>
    %74 = arith.divf %72, %73 : vector<2x32xf32>
    %c0_33 = arith.constant 0 : index
    %c0_34 = arith.constant 0 : index
    %75 = vector.load %arg9[%c0_33, %c0_34] : memref<2x32xf32, #tpu.memory_space<vmem>>, vector<2x32xf32>
    tpu.vector_store %arg9[%c0_33, %c0_34], %74 {strides = array<i32>} : memref<2x32xf32, #tpu.memory_space<vmem>>, vector<2x32xf32>,
    %cst_35 = arith.constant 0.000000e+00 : f32
    %76 = vector.broadcast %cst_35 : f32 to vector<2x4x4x32xf32>
    %77 = arith.maximumf %67, %76 : vector<2x4x4x32xf32>
    %cst_36 = arith.constant dense<0.000000e+00> : vector<2x32xf32>
    %78 = vector.multi_reduction <add>, %77, %cst_36 [1, 2] : vector<2x4x4x32xf32> to vector<2x32xf32>
    %cst_37 = arith.constant 1.600000e+01 : f32
    %79 = vector.broadcast %cst_37 : f32 to vector<2x32xf32>
    %80 = arith.divf %78, %79 : vector<2x32xf32>
    %c0_38 = arith.constant 0 : index
    %c0_39 = arith.constant 0 : index
    %81 = vector.load %arg10[%c0_38, %c0_39] : memref<2x32xf32, #tpu.memory_space<vmem>>, vector<2x32xf32>
    tpu.vector_store %arg10[%c0_38, %c0_39], %80 {strides = array<i32>} : memref<2x32xf32, #tpu.memory_space<vmem>>, vector<2x32xf32>,
    return
  }
}

</mosaic_0001>

<llo_original>
// kernel: f3net_forward.8
$region0: #{f3net_forward.8}
  #allocation0 [shape = 'u32[]', space=smem, size = 0x4, offset = 0x4, fixed_abs, tag = 'smem constant byte address 0x4 - core index']
  #allocation1 [shape = 'u32[144,128]{1,0:T(1,128)}', space=vmem, size = 0x12000, scoped, tag = 'internal scratch']
  %s0 = inlined_call_operand.vmem [shape: bf16[8,256], index: 0, kind: input, shape index: {}]
  %s1 = inlined_call_operand.vmem [shape: bf16[256,256], index: 1, kind: input, shape index: {}]
  %s2 = inlined_call_operand.vmem [shape: bf16[256,256], index: 2, kind: input, shape index: {}]
  %s3 = inlined_call_operand.vmem [shape: f32[4,256], index: 3, kind: input, shape index: {}]
  %s4 = inlined_call_operand.vmem [shape: f32[32,256], index: 4, kind: output, shape index: {}]
  %s5 = sld [smem:[#allocation0]]
  $region26: #{f3net_forward.8} parent=0
    _
  %s7 = ssub.s32 1, %s5
  %s8 = scalar_select 0, %s7, %s5
  // Predicated region
  $region2: #{f3net_forward.8} parent=0 // pred_check
    _
  $region3: #{f3net_forward.8} parent=0 // pred_check_branch
    %10 = sbr.rel (0) target = $region5
  $region4: #{f3net_forward.8} parent=0 // pred_region
    _
  $region5: #{f3net_forward.8} parent=0 // pred_fallthru
    _
  // Predicated region
  $region6: #{f3net_forward.8} parent=0 // pred_check
    _
  $region7: #{f3net_forward.8} parent=0 // pred_check_branch
    %12 = sbr.rel (0) target = $region9
  $region8: #{f3net_forward.8} parent=0 // pred_region
    _
  $region9: #{f3net_forward.8} parent=0 // pred_fallthru
    _
  // Predicated region
  $region10: #{f3net_forward.8} parent=0 // pred_check
    _
  $region11: #{f3net_forward.8} parent=0 // pred_check_branch
    %14 = sbr.rel (0) target = $region13
  $region12: #{f3net_forward.8} parent=0 // pred_region
    _
  $region13: #{f3net_forward.8} parent=0 // pred_fallthru
    _
  // Predicated region
  $region14: #{f3net_forward.8} parent=0 // pred_check
    _
  $region15: #{f3net_forward.8} parent=0 // pred_check_branch
    %16 = sbr.rel (0) target = $region17
  $region16: #{f3net_forward.8} parent=0 // pred_region
    _
  $region17: #{f3net_forward.8} parent=0 // pred_fallthru
    _
  %v17 = vld [vmem:[%s0] sm:$0xff]
  %v18 = vld [vmem:[%s1] sm:$0xff]
  %v19 = vld [vmem:[%s1 + $0x8] sm:$0xff]
  %v20 = vld [vmem:[%s1 + $0x10] sm:$0xff]
  %v21 = vld [vmem:[%s1 + $0x18] sm:$0xff]
  %v22 = vld [vmem:[%s1 + $0x20] sm:$0xff]
  %v23 = vld [vmem:[%s1 + $0x28] sm:$0xff]
  %v24 = vld [vmem:[%s1 + $0x30] sm:$0xff]
  %v25 = vld [vmem:[%s1 + $0x38] sm:$0xff]
  %v26 = vld [vmem:[%s1 + $0x40] sm:$0xff]
  %v27 = vld [vmem:[%s1 + $0x48] sm:$0xff]
  %v28 = vld [vmem:[%s1 + $0x50] sm:$0xff]
  %v29 = vld [vmem:[%s1 + $0x58] sm:$0xff]
  %v30 = vld [vmem:[%s1 + $0x60] sm:$0xff]
  %v31 = vld [vmem:[%s1 + $0x68] sm:$0xff]
  %v32 = vld [vmem:[%s1 + $0x70] sm:$0xff]
  %v33 = vld [vmem:[%s1 + $0x78] sm:$0xff]
  %v34 = vld [vmem:[%s1 + $0x80] sm:$0xff]
  %v35 = vld [vmem:[%s1 + $0x88] sm:$0xff]
  %v36 = vld [vmem:[%s1 + $0x90] sm:$0xff]
  %v37 = vld [vmem:[%s1 + $0x98] sm:$0xff]
  %v38 = vld [vmem:[%s1 + $0xa0] sm:$0xff]
  %v39 = vld [vmem:[%s1 + $0xa8] sm:$0xff]
  %v40 = vld [vmem:[%s1 + $0xb0] sm:$0xff]
  %v41 = vld [vmem:[%s1 + $0xb8] sm:$0xff]
  %v42 = vld [vmem:[%s1 + $0xc0] sm:$0xff]
  %v43 = vld [vmem:[%s1 + $0xc8] sm:$0xff]
  %v44 = vld [vmem:[%s1 + $0xd0] sm:$0xff]
  %v45 = vld [vmem:[%s1 + $0xd8] sm:$0xff]
  %v46 = vld [vmem:[%s1 + $0xe0] sm:$0xff]
  %v47 = vld [vmem:[%s1 + $0xe8] sm:$0xff]
  %v48 = vld [vmem:[%s1 + $0xf0] sm:$0xff]
  %v49 = vld [vmem:[%s1 + $0xf8] sm:$0xff]
  %v51 = vunpack.c.l.b16 %v17
  %v52 = vunpack.c.h.b16 %v17
  %v53 = vpack.c.b16 %v51, %v51
  %v54 = vpack.c.b16 %v52, %v52
  %v89 = vunpack.c.l.b16 %v18
  %v90 = vunpack.c.h.b16 %v18
  %v91 = vunpack.c.l.b16 %v19
  %v92 = vunpack.c.h.b16 %v19
  %v93 = vunpack.c.l.b16 %v20
  %v94 = vunpack.c.h.b16 %v20
  %v95 = vunpack.c.l.b16 %v21
  %v96 = vunpack.c.h.b16 %v21
  %v97 = vunpack.c.l.b16 %v22
  %v98 = vunpack.c.h.b16 %v22
  %v99 = vunpack.c.l.b16 %v23
  %v100 = vunpack.c.h.b16 %v23
  %v101 = vunpack.c.l.b16 %v24
  %v102 = vunpack.c.h.b16 %v24
  %v103 = vunpack.c.l.b16 %v25
  %v104 = vunpack.c.h.b16 %v25
  %v105 = vunpack.c.l.b16 %v26
  %v106 = vunpack.c.h.b16 %v26
  %v107 = vunpack.c.l.b16 %v27
  %v108 = vunpack.c.h.b16 %v27
  %v109 = vunpack.c.l.b16 %v28
  %v110 = vunpack.c.h.b16 %v28
  %v111 = vunpack.c.l.b16 %v29
  %v112 = vunpack.c.h.b16 %v29
  %v113 = vunpack.c.l.b16 %v30
  %v114 = vunpack.c.h.b16 %v30
  %v115 = vunpack.c.l.b16 %v31
  %v116 = vunpack.c.h.b16 %v31
  %v117 = vunpack.c.l.b16 %v32
  %v118 = vunpack.c.h.b16 %v32
  %v119 = vunpack.c.l.b16 %v33
  %v120 = vunpack.c.h.b16 %v33
  %v121 = vunpack.c.l.b16 %v34
  %v122 = vunpack.c.h.b16 %v34
  %v123 = vunpack.c.l.b16 %v35
  %v124 = vunpack.c.h.b16 %v35
  %v125 = vunpack.c.l.b16 %v36
  %v126 = vunpack.c.h.b16 %v36
  %v127 = vunpack.c.l.b16 %v37
  %v128 = vunpack.c.h.b16 %v37
  %v129 = vunpack.c.l.b16 %v38
  %v130 = vunpack.c.h.b16 %v38
  %v131 = vunpack.c.l.b16 %v39
  %v132 = vunpack.c.h.b16 %v39
  %v133 = vunpack.c.l.b16 %v40
  %v134 = vunpack.c.h.b16 %v40
  %v135 = vunpack.c.l.b16 %v41
  %v136 = vunpack.c.h.b16 %v41
  %v137 = vunpack.c.l.b16 %v42
  %v138 = vunpack.c.h.b16 %v42
  %v139 = vunpack.c.l.b16 %v43
  %v140 = vunpack.c.h.b16 %v43
  %v141 = vunpack.c.l.b16 %v44
  %v142 = vunpack.c.h.b16 %v44
  %v143 = vunpack.c.l.b16 %v45
  %v144 = vunpack.c.h.b16 %v45
  %v145 = vunpack.c.l.b16 %v46
  %v146 = vunpack.c.h.b16 %v46
  %v147 = vunpack.c.l.b16 %v47
  %v148 = vunpack.c.h.b16 %v47
  %v149 = vunpack.c.l.b16 %v48
  %v150 = vunpack.c.h.b16 %v48
  %v151 = vunpack.c.l.b16 %v49
  %v152 = vunpack.c.h.b16 %v49
  %v153 = vpack.c.b16 %v91, %v89
  %v154 = vpack.c.b16 %v92, %v90
  %v155 = vpack.c.b16 %v95, %v93
  %v156 = vpack.c.b16 %v96, %v94
  %v157 = vpack.c.b16 %v99, %v97
  %v158 = vpack.c.b16 %v100, %v98
  %v159 = vpack.c.b16 %v103, %v101
  %v160 = vpack.c.b16 %v104, %v102
  %v161 = vpack.c.b16 %v107, %v105
  %v162 = vpack.c.b16 %v108, %v106
  %v163 = vpack.c.b16 %v111, %v109
  %v164 = vpack.c.b16 %v112, %v110
  %v165 = vpack.c.b16 %v115, %v113
  %v166 = vpack.c.b16 %v116, %v114
  %v167 = vpack.c.b16 %v119, %v117
  %v168 = vpack.c.b16 %v120, %v118
  %v169 = vpack.c.b16 %v123, %v121
  %v170 = vpack.c.b16 %v124, %v122
  %v171 = vpack.c.b16 %v127, %v125
  %v172 = vpack.c.b16 %v128, %v126
  %v173 = vpack.c.b16 %v131, %v129
  %v174 = vpack.c.b16 %v132, %v130
  %v175 = vpack.c.b16 %v135, %v133
  %v176 = vpack.c.b16 %v136, %v134
  %v177 = vpack.c.b16 %v139, %v137
  %v178 = vpack.c.b16 %v140, %v138
  %v179 = vpack.c.b16 %v143, %v141
  %v180 = vpack.c.b16 %v144, %v142
  %v181 = vpack.c.b16 %v147, %v145
  %v182 = vpack.c.b16 %v148, %v146
  %v183 = vpack.c.b16 %v151, %v149
  %v184 = vpack.c.b16 %v152, %v150
  %217 = vmatprep.subr.bf16.mxu0 %v168
  %218 = vmatpush1.bf16.msra.mxu0 %v167
  %219 = vmatprep.subr.bf16.mxu0 %v166
  %220 = vmatpush1.bf16.msra.mxu0 %v165
  %221 = vmatprep.subr.bf16.mxu0 %v164
  %222 = vmatpush1.bf16.msra.mxu0 %v163
  %223 = vmatprep.subr.bf16.mxu0 %v162
  %224 = vmatpush1.bf16.msra.mxu0 %v161
  %225 = vmatprep.subr.bf16.mxu0 %v160
  %226 = vmatpush1.bf16.msra.mxu0 %v159
  %227 = vmatprep.subr.bf16.mxu0 %v158
  %228 = vmatpush1.bf16.msra.mxu0 %v157
  %229 = vmatprep.subr.bf16.mxu0 %v156
  %230 = vmatpush1.bf16.msra.mxu0 %v155
  %231 = vmatprep.subr.bf16.mxu0 %v154
  %232 = vmatpush1.bf16.msra.mxu0 %v153
  %233 = vmatprep.subr.bf16.mxu0 %v184
  %234 = vmatpush2.bf16.msra.mxu0 %v183
  %235 = vmatprep.subr.bf16.mxu0 %v182
  %236 = vmatpush2.bf16.msra.mxu0 %v181
  %237 = vmatprep.subr.bf16.mxu0 %v180
  %238 = vmatpush2.bf16.msra.mxu0 %v179
  %239 = vmatprep.subr.bf16.mxu0 %v178
  %240 = vmatpush2.bf16.msra.mxu0 %v177
  %241 = vmatprep.subr.bf16.mxu0 %v176
  %242 = vmatpush2.bf16.msra.mxu0 %v175
  %243 = vmatprep.subr.bf16.mxu0 %v174
  %244 = vmatpush2.bf16.msra.mxu0 %v173
  %245 = vmatprep.subr.bf16.mxu0 %v172
  %246 = vmatpush2.bf16.msra.mxu0 %v171
  %247 = vmatprep.subr.bf16.mxu0 %v170
  %248 = vmatpush2.bf16.msra.mxu0 %v169
  %249 = vmatprep.mubr.bf16.mxu0 %v54
  %250 = vmatmul.mubr.bf16.gmra.mxu0 %v53
  %v251 = vpop.f32.mrf.mxu0
  %v252 = vadd.f32 0.0, %v251
  %v253 = vpop.f32.mrf.mxu0
  %v254 = vadd.f32 0.0, %v253
  %v255 = vpop.f32.mrf.mxu0
  %v256 = vpop.f32.mrf.mxu0
  %257 = vdwg.mxu0
  %vm258 = vcmp.ne.f32.partialorder %v252, %v252
  %vm259 = vcmp.ne.f32.partialorder %v254, %v254
  %v260 = vsel %vm258, 0.0, %v252
  %v261 = vsel %vm259, 0.0, %v254
  %v262 = vld [vmem:[%s3] sm:$0xff]
  %v265 = vunpack.c.l.s4 1966171168
  %v266 = vunpack.c.0.s8 %v265
  %v267 = vlaneseq
  %v268 = vshrl.u32 %v267, 7
  %v269 = vsub.s32 %v266, %v268
  %v270 = vrot.slane %v262, %v269
  %v271 = vcombine.high %v270, %v270
  %v273 = vunpack.c.l.s4 1966171168
  %v274 = vunpack.c.0.s8 %v273
  %v275 = vlaneseq
  %v276 = vshrl.u32 %v275, 7
  %v277 = vsub.s32 %v274, %v276
  %v278 = vrot.slane %v270, %v277
  %v280 = vunpack.c.l.s4 1966171168
  %v281 = vunpack.c.0.s8 %v280
  %v282 = vlaneseq
  %v283 = vshrl.u32 %v282, 7
  %v284 = vsub.s32 %v281, %v283
  %v285 = vrot.slane %v271, %v284
  %v286 = vcombine.high %v278, %v278
  %v287 = vcombine.high %v285, %v285
  %v288 = vlaneseq
  %v289 = vshrl.u32 %v288, 7
  %v290 = vsub.s32 0, %v289
  %v291 = vrot.slane %v278, %v290
  %v292 = vlaneseq
  %v293 = vshrl.u32 %v292, 7
  %v294 = vsub.s32 1, %v293
  %v295 = vrot.slane %v278, %v294
  %v296 = vlaneseq
  %v297 = vshrl.u32 %v296, 7
  %v298 = vsub.s32 0, %v297
  %v299 = vrot.slane %v285, %v298
  %v300 = vlaneseq
  %v301 = vshrl.u32 %v300, 7
  %v302 = vsub.s32 1, %v301
  %v303 = vrot.slane %v285, %v302
  %v304 = vlaneseq
  %v305 = vshrl.u32 %v304, 7
  %v306 = vsub.s32 0, %v305
  %v307 = vrot.slane %v286, %v306
  %v308 = vlaneseq
  %v309 = vshrl.u32 %v308, 7
  %v310 = vsub.s32 1, %v309
  %v311 = vrot.slane %v286, %v310
  %v312 = vlaneseq
  %v313 = vshrl.u32 %v312, 7
  %v314 = vsub.s32 0, %v313
  %v315 = vrot.slane %v287, %v314
  %v316 = vlaneseq
  %v317 = vshrl.u32 %v316, 7
  %v318 = vsub.s32 1, %v317
  %v319 = vrot.slane %v287, %v318
  %v328 = vmul.f32 %v260, %v291
  %v329 = vmul.f32 %v261, %v295
  %v330 = vmul.f32 %v260, %v299
  %v331 = vmul.f32 %v261, %v303
  %v332 = vmul.f32 %v260, %v307
  %v333 = vmul.f32 %v261, %v311
  %v334 = vmul.f32 %v260, %v315
  %v335 = vmul.f32 %v261, %v319
  %v336 = vpack.c.bf16 %v330, %v328
  %v337 = vpack.c.bf16 %v331, %v329
  %v338 = vpack.c.bf16 %v334, %v332
  %v339 = vpack.c.bf16 %v335, %v333
  %v340 = vld [vmem:[%s2] sm:$0xff]
  %v341 = vld [vmem:[%s2 + $0x8] sm:$0xff]
  %v342 = vld [vmem:[%s2 + $0x10] sm:$0xff]
  %v343 = vld [vmem:[%s2 + $0x18] sm:$0xff]
  %v344 = vld [vmem:[%s2 + $0x20] sm:$0xff]
  %v345 = vld [vmem:[%s2 + $0x28] sm:$0xff]
  %v346 = vld [vmem:[%s2 + $0x30] sm:$0xff]
  %v347 = vld [vmem:[%s2 + $0x38] sm:$0xff]
  %v348 = vld [vmem:[%s2 + $0x40] sm:$0xff]
  %v349 = vld [vmem:[%s2 + $0x48] sm:$0xff]
  %v350 = vld [vmem:[%s2 + $0x50] sm:$0xff]
  %v351 = vld [vmem:[%s2 + $0x58] sm:$0xff]
  %v352 = vld [vmem:[%s2 + $0x60] sm:$0xff]
  %v353 = vld [vmem:[%s2 + $0x68] sm:$0xff]
  %v354 = vld [vmem:[%s2 + $0x70] sm:$0xff]
  %v355 = vld [vmem:[%s2 + $0x78] sm:$0xff]
  %v356 = vld [vmem:[%s2 + $0x80] sm:$0xff]
  %v357 = vld [vmem:[%s2 + $0x88] sm:$0xff]
  %v358 = vld [vmem:[%s2 + $0x90] sm:$0xff]
  %v359 = vld [vmem:[%s2 + $0x98] sm:$0xff]
  %v360 = vld [vmem:[%s2 + $0xa0] sm:$0xff]
  %v361 = vld [vmem:[%s2 + $0xa8] sm:$0xff]
  %v362 = vld [vmem:[%s2 + $0xb0] sm:$0xff]
  %v363 = vld [vmem:[%s2 + $0xb8] sm:$0xff]
  %v364 = vld [vmem:[%s2 + $0xc0] sm:$0xff]
  %v365 = vld [vmem:[%s2 + $0xc8] sm:$0xff]
  %v366 = vld [vmem:[%s2 + $0xd0] sm:$0xff]
  %v367 = vld [vmem:[%s2 + $0xd8] sm:$0xff]
  %v368 = vld [vmem:[%s2 + $0xe0] sm:$0xff]
  %v369 = vld [vmem:[%s2 + $0xe8] sm:$0xff]
  %v370 = vld [vmem:[%s2 + $0xf0] sm:$0xff]
  %v371 = vld [vmem:[%s2 + $0xf8] sm:$0xff]
  %v404 = vunpack.c.l.b16 %v340
  %v405 = vunpack.c.h.b16 %v340
  %v406 = vunpack.c.l.b16 %v341
  %v407 = vunpack.c.h.b16 %v341
  %v408 = vunpack.c.l.b16 %v342
  %v409 = vunpack.c.h.b16 %v342
  %v410 = vunpack.c.l.b16 %v343
  %v411 = vunpack.c.h.b16 %v343
  %v412 = vunpack.c.l.b16 %v344
  %v413 = vunpack.c.h.b16 %v344
  %v414 = vunpack.c.l.b16 %v345
  %v415 = vunpack.c.h.b16 %v345
  %v416 = vunpack.c.l.b16 %v346
  %v417 = vunpack.c.h.b16 %v346
  %v418 = vunpack.c.l.b16 %v347
  %v419 = vunpack.c.h.b16 %v347
  %v420 = vunpack.c.l.b16 %v348
  %v421 = vunpack.c.h.b16 %v348
  %v422 = vunpack.c.l.b16 %v349
  %v423 = vunpack.c.h.b16 %v349
  %v424 = vunpack.c.l.b16 %v350
  %v425 = vunpack.c.h.b16 %v350
  %v426 = vunpack.c.l.b16 %v351
  %v427 = vunpack.c.h.b16 %v351
  %v428 = vunpack.c.l.b16 %v352
  %v429 = vunpack.c.h.b16 %v352
  %v430 = vunpack.c.l.b16 %v353
  %v431 = vunpack.c.h.b16 %v353
  %v432 = vunpack.c.l.b16 %v354
  %v433 = vunpack.c.h.b16 %v354
  %v434 = vunpack.c.l.b16 %v355
  %v435 = vunpack.c.h.b16 %v355
  %v436 = vunpack.c.l.b16 %v356
  %v437 = vunpack.c.h.b16 %v356
  %v438 = vunpack.c.l.b16 %v357
  %v439 = vunpack.c.h.b16 %v357
  %v440 = vunpack.c.l.b16 %v358
  %v441 = vunpack.c.h.b16 %v358
  %v442 = vunpack.c.l.b16 %v359
  %v443 = vunpack.c.h.b16 %v359
  %v444 = vunpack.c.l.b16 %v360
  %v445 = vunpack.c.h.b16 %v360
  %v446 = vunpack.c.l.b16 %v361
  %v447 = vunpack.c.h.b16 %v361
  %v448 = vunpack.c.l.b16 %v362
  %v449 = vunpack.c.h.b16 %v362
  %v450 = vunpack.c.l.b16 %v363
  %v451 = vunpack.c.h.b16 %v363
  %v452 = vunpack.c.l.b16 %v364
  %v453 = vunpack.c.h.b16 %v364
  %v454 = vunpack.c.l.b16 %v365
  %v455 = vunpack.c.h.b16 %v365
  %v456 = vunpack.c.l.b16 %v366
  %v457 = vunpack.c.h.b16 %v366
  %v458 = vunpack.c.l.b16 %v367
  %v459 = vunpack.c.h.b16 %v367
  %v460 = vunpack.c.l.b16 %v368
  %v461 = vunpack.c.h.b16 %v368
  %v462 = vunpack.c.l.b16 %v369
  %v463 = vunpack.c.h.b16 %v369
  %v464 = vunpack.c.l.b16 %v370
  %v465 = vunpack.c.h.b16 %v370
  %v466 = vunpack.c.l.b16 %v371
  %v467 = vunpack.c.h.b16 %v371
  %v468 = vpack.c.b16 %v406, %v404
  %v469 = vpack.c.b16 %v407, %v405
  %v470 = vpack.c.b16 %v410, %v408
  %v471 = vpack.c.b16 %v411, %v409
  %v472 = vpack.c.b16 %v414, %v412
  %v473 = vpack.c.b16 %v415, %v413
  %v474 = vpack.c.b16 %v418, %v416
  %v475 = vpack.c.b16 %v419, %v417
  %v476 = vpack.c.b16 %v422, %v420
  %v477 = vpack.c.b16 %v423, %v421
  %v478 = vpack.c.b16 %v426, %v424
  %v479 = vpack.c.b16 %v427, %v425
  %v480 = vpack.c.b16 %v430, %v428
  %v481 = vpack.c.b16 %v431, %v429
  %v482 = vpack.c.b16 %v434, %v432
  %v483 = vpack.c.b16 %v435, %v433
  %v484 = vpack.c.b16 %v438, %v436
  %v485 = vpack.c.b16 %v439, %v437
  %v486 = vpack.c.b16 %v442, %v440
  %v487 = vpack.c.b16 %v443, %v441
  %v488 = vpack.c.b16 %v446, %v444
  %v489 = vpack.c.b16 %v447, %v445
  %v490 = vpack.c.b16 %v450, %v448
  %v491 = vpack.c.b16 %v451, %v449
  %v492 = vpack.c.b16 %v454, %v452
  %v493 = vpack.c.b16 %v455, %v453
  %v494 = vpack.c.b16 %v458, %v456
  %v495 = vpack.c.b16 %v459, %v457
  %v496 = vpack.c.b16 %v462, %v460
  %v497 = vpack.c.b16 %v463, %v461
  %v498 = vpack.c.b16 %v466, %v464
  %v499 = vpack.c.b16 %v467, %v465
  %532 = vmatprep.subr.bf16.mxu0 %v483
  %533 = vmatpush1.bf16.msra.mxu0 %v482
  %534 = vmatprep.subr.bf16.mxu0 %v481
  %535 = vmatpush1.bf16.msra.mxu0 %v480
  %536 = vmatprep.subr.bf16.mxu0 %v479
  %537 = vmatpush1.bf16.msra.mxu0 %v478
  %538 = vmatprep.subr.bf16.mxu0 %v477
  %539 = vmatpush1.bf16.msra.mxu0 %v476
  %540 = vmatprep.subr.bf16.mxu0 %v475
  %541 = vmatpush1.bf16.msra.mxu0 %v474
  %542 = vmatprep.subr.bf16.mxu0 %v473
  %543 = vmatpush1.bf16.msra.mxu0 %v472
  %544 = vmatprep.subr.bf16.mxu0 %v471
  %545 = vmatpush1.bf16.msra.mxu0 %v470
  %546 = vmatprep.subr.bf16.mxu0 %v469
  %547 = vmatpush1.bf16.msra.mxu0 %v468
  %548 = vmatprep.subr.bf16.mxu0 %v499
  %549 = vmatpush2.bf16.msra.mxu0 %v498
  %550 = vmatprep.subr.bf16.mxu0 %v497
  %551 = vmatpush2.bf16.msra.mxu0 %v496
  %552 = vmatprep.subr.bf16.mxu0 %v495
  %553 = vmatpush2.bf16.msra.mxu0 %v494
  %554 = vmatprep.subr.bf16.mxu0 %v493
  %555 = vmatpush2.bf16.msra.mxu0 %v492
  %556 = vmatprep.subr.bf16.mxu0 %v491
  %557 = vmatpush2.bf16.msra.mxu0 %v490
  %558 = vmatprep.subr.bf16.mxu0 %v489
  %559 = vmatpush2.bf16.msra.mxu0 %v488
  %560 = vmatprep.subr.bf16.mxu0 %v487
  %561 = vmatpush2.bf16.msra.mxu0 %v486
  %562 = vmatprep.subr.bf16.mxu0 %v485
  %563 = vmatpush2.bf16.msra.mxu0 %v484
  %564 = vmatprep.mubr.bf16.mxu0 %v337
  %565 = vmatmul.mubr.bf16.gmra.mxu0 %v336
  %v566 = vpop.f32.mrf.mxu0
  %v567 = vadd.f32 0.0, %v566
  %v568 = vpop.f32.mrf.mxu0
  %v569 = vadd.f32 0.0, %v568
  %v570 = vpop.f32.mrf.mxu0
  %v571 = vadd.f32 0.0, %v570
  %v572 = vpop.f32.mrf.mxu0
  %v573 = vadd.f32 0.0, %v572
  %574 = vmatprep.mubr.bf16.mxu0 %v339
  %575 = vmatmul.mubr.bf16.gmra.mxu0 %v338
  %v576 = vpop.f32.mrf.mxu0
  %v577 = vadd.f32 0.0, %v576
  %v578 = vpop.f32.mrf.mxu0
  %v579 = vadd.f32 0.0, %v578
  %v580 = vpop.f32.mrf.mxu0
  %v581 = vadd.f32 0.0, %v580
  %v582 = vpop.f32.mrf.mxu0
  %v583 = vadd.f32 0.0, %v582
  %584 = vdwg.mxu0
  %vm585 = vcmp.ne.f32.partialorder %v567, %v567
  %vm586 = vcmp.ne.f32.partialorder %v569, %v569
  %vm587 = vcmp.ne.f32.partialorder %v571, %v571
  %vm588 = vcmp.ne.f32.partialorder %v573, %v573
  %vm589 = vcmp.ne.f32.partialorder %v577, %v577
  %vm590 = vcmp.ne.f32.partialorder %v579, %v579
  %vm591 = vcmp.ne.f32.partialorder %v581, %v581
  %vm592 = vcmp.ne.f32.partialorder %v583, %v583
  %v593 = vsel %vm585, 0.0, %v567
  %v594 = vsel %vm586, 0.0, %v569
  %v595 = vsel %vm587, 0.0, %v571
  %v596 = vsel %vm588, 0.0, %v573
  %v597 = vsel %vm589, 0.0, %v577
  %v598 = vsel %vm590, 0.0, %v579
  %v599 = vsel %vm591, 0.0, %v581
  %v600 = vsel %vm592, 0.0, %v583
  %601 = vst [vmem:[%s4] sm:$0xff] %v593
  %602 = vst [vmem:[%s4 + $0x8] sm:$0xff] %v594
  %603 = vst [vmem:[%s4 + $0x10] sm:$0xff] %v595
  %604 = vst [vmem:[%s4 + $0x18] sm:$0xff] %v596
  %605 = vst [vmem:[%s4 + $0x20] sm:$0xff] %v597
  %606 = vst [vmem:[%s4 + $0x28] sm:$0xff] %v598
  %607 = vst [vmem:[%s4 + $0x30] sm:$0xff] %v599
  %608 = vst [vmem:[%s4 + $0x38] sm:$0xff] %v600
  // Predicated region
  $region18: #{f3net_forward.8} parent=0 // pred_check
    _
  $region19: #{f3net_forward.8} parent=0 // pred_check_branch
    %610 = sbr.rel (0) target = $region21
  $region20: #{f3net_forward.8} parent=0 // pred_region
    _
  $region21: #{f3net_forward.8} parent=0 // pred_fallthru
    _
  // Predicated region
  $region22: #{f3net_forward.8} parent=0 // pred_check
    _
  $region23: #{f3net_forward.8} parent=0 // pred_check_branch
    %612 = sbr.rel (0) target = $region25
  $region24: #{f3net_forward.8} parent=0 // pred_region
    _
  $region25: #{f3net_forward.8} parent=0 // pred_fallthru
    _

// kernel: f3net_forward.10
$region0: #{f3net_forward.10}
  #allocation0 [shape = 'u32[]', space=smem, size = 0x4, offset = 0x4, fixed_abs, tag = 'smem constant byte address 0x4 - core index']
  #allocation1 [shape = 'u32[144,128]{1,0:T(1,128)}', space=vmem, size = 0x12000, scoped, tag = 'internal scratch']
  %s0 = inlined_call_operand.vmem [shape: bf16[128,12], index: 0, kind: input, shape index: {}]
  %s1 = inlined_call_operand.vmem [shape: bf16[12,16], index: 1, kind: input, shape index: {}]
  %s2 = inlined_call_operand.vmem [shape: f32[1,16], index: 2, kind: input, shape index: {}]
  %s3 = inlined_call_operand.vmem [shape: f32[128,16], index: 3, kind: output, shape index: {}]
  %s4 = sld [smem:[#allocation0]]
  $region22: #{f3net_forward.10} parent=0
    _
  %s6 = ssub.s32 1, %s4
  %s7 = scalar_select 0, %s6, %s4
  // Predicated region
  $region2: #{f3net_forward.10} parent=0 // pred_check
    _
  $region3: #{f3net_forward.10} parent=0 // pred_check_branch
    %9 = sbr.rel (0) target = $region5
  $region4: #{f3net_forward.10} parent=0 // pred_region
    _
  $region5: #{f3net_forward.10} parent=0 // pred_fallthru
    _
  // Predicated region
  $region6: #{f3net_forward.10} parent=0 // pred_check
    _
  $region7: #{f3net_forward.10} parent=0 // pred_check_branch
    %11 = sbr.rel (0) target = $region9
  $region8: #{f3net_forward.10} parent=0 // pred_region
    _
  $region9: #{f3net_forward.10} parent=0 // pred_fallthru
    _
  // Predicated region
  $region10: #{f3net_forward.10} parent=0 // pred_check
    _
  $region11: #{f3net_forward.10} parent=0 // pred_check_branch
    %13 = sbr.rel (0) target = $region13
  $region12: #{f3net_forward.10} parent=0 // pred_region
    _
  $region13: #{f3net_forward.10} parent=0 // pred_fallthru
    _
  %v15 = vld [vmem:[%s0] sm:$0xf]
  %v16 = vld [vmem:[%s0 + $0x4] sm:$0xf]
  %v17 = vld [vmem:[%s0 + $0x8] sm:$0xf]
  %v18 = vld [vmem:[%s0 + $0xc] sm:$0xf]
  %v19 = vld [vmem:[%s0 + $0x10] sm:$0xf]
  %v20 = vld [vmem:[%s0 + $0x14] sm:$0xf]
  %v21 = vld [vmem:[%s0 + $0x18] sm:$0xf]
  %v22 = vld [vmem:[%s0 + $0x1c] sm:$0xf]
  %v23 = vld [vmem:[%s0 + $0x20] sm:$0xf]
  %v24 = vld [vmem:[%s0 + $0x24] sm:$0xf]
  %v25 = vld [vmem:[%s0 + $0x28] sm:$0xf]
  %v26 = vld [vmem:[%s0 + $0x2c] sm:$0xf]
  %v27 = vld [vmem:[%s0 + $0x30] sm:$0xf]
  %v28 = vld [vmem:[%s0 + $0x34] sm:$0xf]
  %v29 = vld [vmem:[%s0 + $0x38] sm:$0xf]
  %v30 = vld [vmem:[%s0 + $0x3c] sm:$0xf]
  %v31 = vld [vmem:[%s1] sm:$0xf]
  %v32 = vld [vmem:[%s1 + $0x4] sm:$0x3]
  %v33 = vld [vmem:[%s2] sm:$0x1]
  %v35 = vlaneseq
  %v36 = vshrl.u32 %v35, 7
  %v37 = vsub.s32 0, %v36
  %v38 = vrot.slane %v33, %v37
  %v56 = vunpack.c.l.b16 %v15
  %v57 = vunpack.c.l.b16 %v16
  %v58 = vunpack.c.l.b16 %v17
  %v59 = vunpack.c.l.b16 %v18
  %v60 = vunpack.c.l.b16 %v19
  %v61 = vunpack.c.l.b16 %v20
  %v62 = vunpack.c.l.b16 %v21
  %v63 = vunpack.c.l.b16 %v22
  %v64 = vunpack.c.l.b16 %v23
  %v65 = vunpack.c.l.b16 %v24
  %v66 = vunpack.c.l.b16 %v25
  %v67 = vunpack.c.l.b16 %v26
  %v68 = vunpack.c.l.b16 %v27
  %v69 = vunpack.c.l.b16 %v28
  %v70 = vunpack.c.l.b16 %v29
  %v71 = vunpack.c.l.b16 %v30
  %v72 = vpack.c.b16 %v57, %v56
  %v73 = vpack.c.b16 %v59, %v58
  %v74 = vpack.c.b16 %v61, %v60
  %v75 = vpack.c.b16 %v63, %v62
  %v76 = vpack.c.b16 %v65, %v64
  %v77 = vpack.c.b16 %v67, %v66
  %v78 = vpack.c.b16 %v69, %v68
  %v79 = vpack.c.b16 %v71, %v70
  %v82 = vunpack.c.l.b16 %v31
  %v83 = vunpack.c.l.b16 %v32
  %v84 = vpack.c.b16 %v83, %v82
  %vm85 = vcmask 97280
  %v87 = vsel %vm85, %v72, 0
  %v90 = vsel %vm85, %v73, 0
  %v93 = vsel %vm85, %v74, 0
  %v96 = vsel %vm85, %v75, 0
  %v99 = vsel %vm85, %v76, 0
  %v102 = vsel %vm85, %v77, 0
  %v105 = vsel %vm85, %v78, 0
  %v108 = vsel %vm85, %v79, 0
  %vm110 = vcmask 1045504
  %v112 = vsel %vm110, %v84, 0
  %114 = vmatprep.subr.bf16.mxu0 0
  %115 = vmatpush1.bf16.msra.mxu0 0
  %116 = vmatprep.subr.bf16.mxu0 0
  %117 = vmatpush1.bf16.msra.mxu0 0
  %118 = vmatprep.subr.bf16.mxu0 0
  %119 = vmatpush1.bf16.msra.mxu0 0
  %120 = vmatprep.subr.bf16.mxu0 0
  %121 = vmatpush1.bf16.msra.mxu0 0
  %122 = vmatprep.subr.bf16.mxu0 0
  %123 = vmatpush1.bf16.msra.mxu0 0
  %124 = vmatprep.subr.bf16.mxu0 0
  %125 = vmatpush1.bf16.msra.mxu0 0
  %126 = vmatprep.subr.bf16.mxu0 0
  %127 = vmatpush1.bf16.msra.mxu0 0
  %128 = vmatprep.subr.bf16.mxu0 0
  %129 = vmatpush1.bf16.msra.mxu0 %v112
  %130 = vmatprep.subr.bf16.mxu0 0
  %131 = vmatpush2.bf16.msra.mxu0 0
  %132 = vmatprep.subr.bf16.mxu0 0
  %133 = vmatpush2.bf16.msra.mxu0 0
  %134 = vmatprep.subr.bf16.mxu0 0
  %135 = vmatpush2.bf16.msra.mxu0 0
  %136 = vmatprep.subr.bf16.mxu0 0
  %137 = vmatpush2.bf16.msra.mxu0 0
  %138 = vmatprep.subr.bf16.mxu0 0
  %139 = vmatpush2.bf16.msra.mxu0 0
  %140 = vmatprep.subr.bf16.mxu0 0
  %141 = vmatpush2.bf16.msra.mxu0 0
  %142 = vmatprep.subr.bf16.mxu0 0
  %143 = vmatpush2.bf16.msra.mxu0 0
  %144 = vmatprep.subr.bf16.mxu0 0
  %145 = vmatpush2.bf16.msra.mxu0 0
  %146 = vmatprep.mubr.bf16.mxu0 0
  %147 = vmatmul.mubr.bf16.gmra.mxu0 %v87
  %v148 = vpop.f32.mrf.mxu0
  %v149 = vadd.f32 %v38, %v148
  %v150 = vpop.f32.mrf.mxu0
  %v151 = vpop.f32.mrf.mxu0
  %v152 = vadd.f32 %v38, %v151
  %v153 = vpop.f32.mrf.mxu0
  %154 = vmatprep.mubr.bf16.mxu0 0
  %155 = vmatmul.mubr.bf16.gmra.mxu0 %v90
  %v156 = vpop.f32.mrf.mxu0
  %v157 = vadd.f32 %v38, %v156
  %v158 = vpop.f32.mrf.mxu0
  %v159 = vpop.f32.mrf.mxu0
  %v160 = vadd.f32 %v38, %v159
  %v161 = vpop.f32.mrf.mxu0
  %162 = vmatprep.mubr.bf16.mxu0 0
  %163 = vmatmul.mubr.bf16.gmra.mxu0 %v93
  %v164 = vpop.f32.mrf.mxu0
  %v165 = vadd.f32 %v38, %v164
  %v166 = vpop.f32.mrf.mxu0
  %v167 = vpop.f32.mrf.mxu0
  %v168 = vadd.f32 %v38, %v167
  %v169 = vpop.f32.mrf.mxu0
  %170 = vmatprep.mubr.bf16.mxu0 0
  %171 = vmatmul.mubr.bf16.gmra.mxu0 %v96
  %v172 = vpop.f32.mrf.mxu0
  %v173 = vadd.f32 %v38, %v172
  %v174 = vpop.f32.mrf.mxu0
  %v175 = vpop.f32.mrf.mxu0
  %v176 = vadd.f32 %v38, %v175
  %v177 = vpop.f32.mrf.mxu0
  %178 = vmatprep.mubr.bf16.mxu0 0
  %179 = vmatmul.mubr.bf16.gmra.mxu0 %v99
  %v180 = vpop.f32.mrf.mxu0
  %v181 = vadd.f32 %v38, %v180
  %v182 = vpop.f32.mrf.mxu0
  %v183 = vpop.f32.mrf.mxu0
  %v184 = vadd.f32 %v38, %v183
  %v185 = vpop.f32.mrf.mxu0
  %186 = vmatprep.mubr.bf16.mxu0 0
  %187 = vmatmul.mubr.bf16.gmra.mxu0 %v102
  %v188 = vpop.f32.mrf.mxu0
  %v189 = vadd.f32 %v38, %v188
  %v190 = vpop.f32.mrf.mxu0
  %v191 = vpop.f32.mrf.mxu0
  %v192 = vadd.f32 %v38, %v191
  %v193 = vpop.f32.mrf.mxu0
  %194 = vmatprep.mubr.bf16.mxu0 0
  %195 = vmatmul.mubr.bf16.gmra.mxu0 %v105
  %v196 = vpop.f32.mrf.mxu0
  %v197 = vadd.f32 %v38, %v196
  %v198 = vpop.f32.mrf.mxu0
  %v199 = vpop.f32.mrf.mxu0
  %v200 = vadd.f32 %v38, %v199
  %v201 = vpop.f32.mrf.mxu0
  %202 = vmatprep.mubr.bf16.mxu0 0
  %203 = vmatmul.mubr.bf16.gmra.mxu0 %v108
  %v204 = vpop.f32.mrf.mxu0
  %v205 = vadd.f32 %v38, %v204
  %v206 = vpop.f32.mrf.mxu0
  %v207 = vpop.f32.mrf.mxu0
  %v208 = vadd.f32 %v38, %v207
  %v209 = vpop.f32.mrf.mxu0
  %210 = vdwg.mxu0
  %v211 = vmax.f32 %v149, 0.0
  %v212 = vmax.f32 %v152, 0.0
  %v213 = vmax.f32 %v157, 0.0
  %v214 = vmax.f32 %v160, 0.0
  %v215 = vmax.f32 %v165, 0.0
  %v216 = vmax.f32 %v168, 0.0
  %v217 = vmax.f32 %v173, 0.0
  %v218 = vmax.f32 %v176, 0.0
  %v219 = vmax.f32 %v181, 0.0
  %v220 = vmax.f32 %v184, 0.0
  %v221 = vmax.f32 %v189, 0.0
  %v222 = vmax.f32 %v192, 0.0
  %v223 = vmax.f32 %v197, 0.0
  %v224 = vmax.f32 %v200, 0.0
  %v225 = vmax.f32 %v205, 0.0
  %v226 = vmax.f32 %v208, 0.0
  %vm227 = vcmask 130048
  %228 = vst.msk [vmem:[%s3] sm:$0xff] %vm227, %v211
  %229 = vst.msk [vmem:[%s3 + $0x8] sm:$0xff] %vm227, %v212
  %230 = vst.msk [vmem:[%s3 + $0x10] sm:$0xff] %vm227, %v213
  %231 = vst.msk [vmem:[%s3 + $0x18] sm:$0xff] %vm227, %v214
  %232 = vst.msk [vmem:[%s3 + $0x20] sm:$0xff] %vm227, %v215
  %233 = vst.msk [vmem:[%s3 + $0x28] sm:$0xff] %vm227, %v216
  %234 = vst.msk [vmem:[%s3 + $0x30] sm:$0xff] %vm227, %v217
  %235 = vst.msk [vmem:[%s3 + $0x38] sm:$0xff] %vm227, %v218
  %236 = vst.msk [vmem:[%s3 + $0x40] sm:$0xff] %vm227, %v219
  %237 = vst.msk [vmem:[%s3 + $0x48] sm:$0xff] %vm227, %v220
  %238 = vst.msk [vmem:[%s3 + $0x50] sm:$0xff] %vm227, %v221
  %239 = vst.msk [vmem:[%s3 + $0x58] sm:$0xff] %vm227, %v222
  %240 = vst.msk [vmem:[%s3 + $0x60] sm:$0xff] %vm227, %v223
  %241 = vst.msk [vmem:[%s3 + $0x68] sm:$0xff] %vm227, %v224
  %242 = vst.msk [vmem:[%s3 + $0x70] sm:$0xff] %vm227, %v225
  %243 = vst.msk [vmem:[%s3 + $0x78] sm:$0xff] %vm227, %v226
  // Predicated region
  $region14: #{f3net_forward.10} parent=0 // pred_check
    _
  $region15: #{f3net_forward.10} parent=0 // pred_check_branch
    %245 = sbr.rel (0) target = $region17
  $region16: #{f3net_forward.10} parent=0 // pred_region
    _
  $region17: #{f3net_forward.10} parent=0 // pred_fallthru
    _
  // Predicated region
  $region18: #{f3net_forward.10} parent=0 // pred_check
    _
  $region19: #{f3net_forward.10} parent=0 // pred_check_branch
    %247 = sbr.rel (0) target = $region21
  $region20: #{f3net_forward.10} parent=0 // pred_region
    _
  $region21: #{f3net_forward.10} parent=0 // pred_fallthru
    _

// kernel: f3net_forward.11
$region0: #{f3net_forward.11}
  #allocation0 [shape = 'u32[]', space=smem, size = 0x4, offset = 0x4, fixed_abs, tag = 'smem constant byte address 0x4 - core index']
  #allocation1 [shape = 'u32[144,128]{1,0:T(1,128)}', space=vmem, size = 0x12000, scoped, tag = 'internal scratch']
  %s0 = inlined_call_operand.vmem [shape: bf16[128,6], index: 0, kind: input, shape index: {}]
  %s1 = inlined_call_operand.vmem [shape: bf16[6,16], index: 1, kind: input, shape index: {}]
  %s2 = inlined_call_operand.vmem [shape: f32[1,16], index: 2, kind: input, shape index: {}]
  %s3 = inlined_call_operand.vmem [shape: f32[128,16], index: 3, kind: output, shape index: {}]
  %s4 = sld [smem:[#allocation0]]
  $region22: #{f3net_forward.11} parent=0
    _
  %s6 = ssub.s32 1, %s4
  %s7 = scalar_select 0, %s6, %s4
  // Predicated region
  $region2: #{f3net_forward.11} parent=0 // pred_check
    _
  $region3: #{f3net_forward.11} parent=0 // pred_check_branch
    %9 = sbr.rel (0) target = $region5
  $region4: #{f3net_forward.11} parent=0 // pred_region
    _
  $region5: #{f3net_forward.11} parent=0 // pred_fallthru
    _
  // Predicated region
  $region6: #{f3net_forward.11} parent=0 // pred_check
    _
  $region7: #{f3net_forward.11} parent=0 // pred_check_branch
    %11 = sbr.rel (0) target = $region9
  $region8: #{f3net_forward.11} parent=0 // pred_region
    _
  $region9: #{f3net_forward.11} parent=0 // pred_fallthru
    _
  // Predicated region
  $region10: #{f3net_forward.11} parent=0 // pred_check
    _
  $region11: #{f3net_forward.11} parent=0 // pred_check_branch
    %13 = sbr.rel (0) target = $region13
  $region12: #{f3net_forward.11} parent=0 // pred_region
    _
  $region13: #{f3net_forward.11} parent=0 // pred_fallthru
    _
  %v15 = vld [vmem:[%s0] sm:$0xf]
  %v16 = vld [vmem:[%s0 + $0x4] sm:$0xf]
  %v17 = vld [vmem:[%s0 + $0x8] sm:$0xf]
  %v18 = vld [vmem:[%s0 + $0xc] sm:$0xf]
  %v19 = vld [vmem:[%s0 + $0x10] sm:$0xf]
  %v20 = vld [vmem:[%s0 + $0x14] sm:$0xf]
  %v21 = vld [vmem:[%s0 + $0x18] sm:$0xf]
  %v22 = vld [vmem:[%s0 + $0x1c] sm:$0xf]
  %v23 = vld [vmem:[%s0 + $0x20] sm:$0xf]
  %v24 = vld [vmem:[%s0 + $0x24] sm:$0xf]
  %v25 = vld [vmem:[%s0 + $0x28] sm:$0xf]
  %v26 = vld [vmem:[%s0 + $0x2c] sm:$0xf]
  %v27 = vld [vmem:[%s0 + $0x30] sm:$0xf]
  %v28 = vld [vmem:[%s0 + $0x34] sm:$0xf]
  %v29 = vld [vmem:[%s0 + $0x38] sm:$0xf]
  %v30 = vld [vmem:[%s0 + $0x3c] sm:$0xf]
  %v31 = vld [vmem:[%s1] sm:$0x7]
  %v32 = vld [vmem:[%s2] sm:$0x1]
  %v34 = vlaneseq
  %v35 = vshrl.u32 %v34, 7
  %v36 = vsub.s32 0, %v35
  %v37 = vrot.slane %v32, %v36
  %v55 = vunpack.c.l.b16 %v15
  %v56 = vunpack.c.l.b16 %v16
  %v57 = vunpack.c.l.b16 %v17
  %v58 = vunpack.c.l.b16 %v18
  %v59 = vunpack.c.l.b16 %v19
  %v60 = vunpack.c.l.b16 %v20
  %v61 = vunpack.c.l.b16 %v21
  %v62 = vunpack.c.l.b16 %v22
  %v63 = vunpack.c.l.b16 %v23
  %v64 = vunpack.c.l.b16 %v24
  %v65 = vunpack.c.l.b16 %v25
  %v66 = vunpack.c.l.b16 %v26
  %v67 = vunpack.c.l.b16 %v27
  %v68 = vunpack.c.l.b16 %v28
  %v69 = vunpack.c.l.b16 %v29
  %v70 = vunpack.c.l.b16 %v30
  %v71 = vpack.c.b16 %v56, %v55
  %v72 = vpack.c.b16 %v58, %v57
  %v73 = vpack.c.b16 %v60, %v59
  %v74 = vpack.c.b16 %v62, %v61
  %v75 = vpack.c.b16 %v64, %v63
  %v76 = vpack.c.b16 %v66, %v65
  %v77 = vpack.c.b16 %v68, %v67
  %v78 = vpack.c.b16 %v70, %v69
  %vm79 = vcmask 48128
  %v81 = vsel %vm79, %v71, 0
  %v84 = vsel %vm79, %v72, 0
  %v87 = vsel %vm79, %v73, 0
  %v90 = vsel %vm79, %v74, 0
  %v93 = vsel %vm79, %v75, 0
  %v96 = vsel %vm79, %v76, 0
  %v99 = vsel %vm79, %v77, 0
  %v102 = vsel %vm79, %v78, 0
  %vm104 = vcmask 1042432
  %v106 = vsel %vm104, %v31, 0
  %108 = vmatprep.subr.bf16.mxu0 0
  %109 = vmatpush1.bf16.msra.mxu0 0
  %110 = vmatprep.subr.bf16.mxu0 0
  %111 = vmatpush1.bf16.msra.mxu0 0
  %112 = vmatprep.subr.bf16.mxu0 0
  %113 = vmatpush1.bf16.msra.mxu0 0
  %114 = vmatprep.subr.bf16.mxu0 0
  %115 = vmatpush1.bf16.msra.mxu0 0
  %116 = vmatprep.subr.bf16.mxu0 0
  %117 = vmatpush1.bf16.msra.mxu0 0
  %118 = vmatprep.subr.bf16.mxu0 0
  %119 = vmatpush1.bf16.msra.mxu0 0
  %120 = vmatprep.subr.bf16.mxu0 0
  %121 = vmatpush1.bf16.msra.mxu0 0
  %122 = vmatprep.subr.bf16.mxu0 0
  %123 = vmatpush1.bf16.msra.mxu0 %v106
  %124 = vmatprep.subr.bf16.mxu0 0
  %125 = vmatpush2.bf16.msra.mxu0 0
  %126 = vmatprep.subr.bf16.mxu0 0
  %127 = vmatpush2.bf16.msra.mxu0 0
  %128 = vmatprep.subr.bf16.mxu0 0
  %129 = vmatpush2.bf16.msra.mxu0 0
  %130 = vmatprep.subr.bf16.mxu0 0
  %131 = vmatpush2.bf16.msra.mxu0 0
  %132 = vmatprep.subr.bf16.mxu0 0
  %133 = vmatpush2.bf16.msra.mxu0 0
  %134 = vmatprep.subr.bf16.mxu0 0
  %135 = vmatpush2.bf16.msra.mxu0 0
  %136 = vmatprep.subr.bf16.mxu0 0
  %137 = vmatpush2.bf16.msra.mxu0 0
  %138 = vmatprep.subr.bf16.mxu0 0
  %139 = vmatpush2.bf16.msra.mxu0 0
  %140 = vmatprep.mubr.bf16.mxu0 0
  %141 = vmatmul.mubr.bf16.gmra.mxu0 %v81
  %v142 = vpop.f32.mrf.mxu0
  %v143 = vadd.f32 %v37, %v142
  %v144 = vpop.f32.mrf.mxu0
  %v145 = vpop.f32.mrf.mxu0
  %v146 = vadd.f32 %v37, %v145
  %v147 = vpop.f32.mrf.mxu0
  %148 = vmatprep.mubr.bf16.mxu0 0
  %149 = vmatmul.mubr.bf16.gmra.mxu0 %v84
  %v150 = vpop.f32.mrf.mxu0
  %v151 = vadd.f32 %v37, %v150
  %v152 = vpop.f32.mrf.mxu0
  %v153 = vpop.f32.mrf.mxu0
  %v154 = vadd.f32 %v37, %v153
  %v155 = vpop.f32.mrf.mxu0
  %156 = vmatprep.mubr.bf16.mxu0 0
  %157 = vmatmul.mubr.bf16.gmra.mxu0 %v87
  %v158 = vpop.f32.mrf.mxu0
  %v159 = vadd.f32 %v37, %v158
  %v160 = vpop.f32.mrf.mxu0
  %v161 = vpop.f32.mrf.mxu0
  %v162 = vadd.f32 %v37, %v161
  %v163 = vpop.f32.mrf.mxu0
  %164 = vmatprep.mubr.bf16.mxu0 0
  %165 = vmatmul.mubr.bf16.gmra.mxu0 %v90
  %v166 = vpop.f32.mrf.mxu0
  %v167 = vadd.f32 %v37, %v166
  %v168 = vpop.f32.mrf.mxu0
  %v169 = vpop.f32.mrf.mxu0
  %v170 = vadd.f32 %v37, %v169
  %v171 = vpop.f32.mrf.mxu0
  %172 = vmatprep.mubr.bf16.mxu0 0
  %173 = vmatmul.mubr.bf16.gmra.mxu0 %v93
  %v174 = vpop.f32.mrf.mxu0
  %v175 = vadd.f32 %v37, %v174
  %v176 = vpop.f32.mrf.mxu0
  %v177 = vpop.f32.mrf.mxu0
  %v178 = vadd.f32 %v37, %v177
  %v179 = vpop.f32.mrf.mxu0
  %180 = vmatprep.mubr.bf16.mxu0 0
  %181 = vmatmul.mubr.bf16.gmra.mxu0 %v96
  %v182 = vpop.f32.mrf.mxu0
  %v183 = vadd.f32 %v37, %v182
  %v184 = vpop.f32.mrf.mxu0
  %v185 = vpop.f32.mrf.mxu0
  %v186 = vadd.f32 %v37, %v185
  %v187 = vpop.f32.mrf.mxu0
  %188 = vmatprep.mubr.bf16.mxu0 0
  %189 = vmatmul.mubr.bf16.gmra.mxu0 %v99
  %v190 = vpop.f32.mrf.mxu0
  %v191 = vadd.f32 %v37, %v190
  %v192 = vpop.f32.mrf.mxu0
  %v193 = vpop.f32.mrf.mxu0
  %v194 = vadd.f32 %v37, %v193
  %v195 = vpop.f32.mrf.mxu0
  %196 = vmatprep.mubr.bf16.mxu0 0
  %197 = vmatmul.mubr.bf16.gmra.mxu0 %v102
  %v198 = vpop.f32.mrf.mxu0
  %v199 = vadd.f32 %v37, %v198
  %v200 = vpop.f32.mrf.mxu0
  %v201 = vpop.f32.mrf.mxu0
  %v202 = vadd.f32 %v37, %v201
  %v203 = vpop.f32.mrf.mxu0
  %204 = vdwg.mxu0
  %v205 = vmax.f32 %v143, 0.0
  %v206 = vmax.f32 %v146, 0.0
  %v207 = vmax.f32 %v151, 0.0
  %v208 = vmax.f32 %v154, 0.0
  %v209 = vmax.f32 %v159, 0.0
  %v210 = vmax.f32 %v162, 0.0
  %v211 = vmax.f32 %v167, 0.0
  %v212 = vmax.f32 %v170, 0.0
  %v213 = vmax.f32 %v175, 0.0
  %v214 = vmax.f32 %v178, 0.0
  %v215 = vmax.f32 %v183, 0.0
  %v216 = vmax.f32 %v186, 0.0
  %v217 = vmax.f32 %v191, 0.0
  %v218 = vmax.f32 %v194, 0.0
  %v219 = vmax.f32 %v199, 0.0
  %v220 = vmax.f32 %v202, 0.0
  %vm221 = vcmask 130048
  %222 = vst.msk [vmem:[%s3] sm:$0xff] %vm221, %v205
  %223 = vst.msk [vmem:[%s3 + $0x8] sm:$0xff] %vm221, %v206
  %224 = vst.msk [vmem:[%s3 + $0x10] sm:$0xff] %vm221, %v207
  %225 = vst.msk [vmem:[%s3 + $0x18] sm:$0xff] %vm221, %v208
  %226 = vst.msk [vmem:[%s3 + $0x20] sm:$0xff] %vm221, %v209
  %227 = vst.msk [vmem:[%s3 + $0x28] sm:$0xff] %vm221, %v210
  %228 = vst.msk [vmem:[%s3 + $0x30] sm:$0xff] %vm221, %v211
  %229 = vst.msk [vmem:[%s3 + $0x38] sm:$0xff] %vm221, %v212
  %230 = vst.msk [vmem:[%s3 + $0x40] sm:$0xff] %vm221, %v213
  %231 = vst.msk [vmem:[%s3 + $0x48] sm:$0xff] %vm221, %v214
  %232 = vst.msk [vmem:[%s3 + $0x50] sm:$0xff] %vm221, %v215
  %233 = vst.msk [vmem:[%s3 + $0x58] sm:$0xff] %vm221, %v216
  %234 = vst.msk [vmem:[%s3 + $0x60] sm:$0xff] %vm221, %v217
  %235 = vst.msk [vmem:[%s3 + $0x68] sm:$0xff] %vm221, %v218
  %236 = vst.msk [vmem:[%s3 + $0x70] sm:$0xff] %vm221, %v219
  %237 = vst.msk [vmem:[%s3 + $0x78] sm:$0xff] %vm221, %v220
  // Predicated region
  $region14: #{f3net_forward.11} parent=0 // pred_check
    _
  $region15: #{f3net_forward.11} parent=0 // pred_check_branch
    %239 = sbr.rel (0) target = $region17
  $region16: #{f3net_forward.11} parent=0 // pred_region
    _
  $region17: #{f3net_forward.11} parent=0 // pred_fallthru
    _
  // Predicated region
  $region18: #{f3net_forward.11} parent=0 // pred_check
    _
  $region19: #{f3net_forward.11} parent=0 // pred_check_branch
    %241 = sbr.rel (0) target = $region21
  $region20: #{f3net_forward.11} parent=0 // pred_region
    _
  $region21: #{f3net_forward.11} parent=0 // pred_fallthru
    _

// kernel: f3net_forward.9
$region0: #{f3net_forward.9}
  #allocation0 [shape = 'u32[]', space=smem, size = 0x4, offset = 0x4, fixed_abs, tag = 'smem constant byte address 0x4 - core index']
  #allocation1 [shape = 'u32[144,128]{1,0:T(1,128)}', space=vmem, size = 0x12000, scoped, tag = 'internal scratch']
  %s0 = inlined_call_operand.vmem [shape: bf16[100,128], index: 0, kind: input, shape index: {}]
  %s1 = inlined_call_operand.vmem [shape: bf16[100,100], index: 1, kind: input, shape index: {}]
  %s2 = inlined_call_operand.vmem [shape: bf16[6,100], index: 2, kind: input, shape index: {}]
  %s3 = inlined_call_operand.vmem [shape: f32[6,128], index: 3, kind: output, shape index: {}]
  %s4 = sld [smem:[#allocation0]]
  $region22: #{f3net_forward.9} parent=0
    _
  %s6 = ssub.s32 1, %s4
  %s7 = scalar_select 0, %s6, %s4
  // Predicated region
  $region2: #{f3net_forward.9} parent=0 // pred_check
    _
  $region3: #{f3net_forward.9} parent=0 // pred_check_branch
    %9 = sbr.rel (0) target = $region5
  $region4: #{f3net_forward.9} parent=0 // pred_region
    _
  $region5: #{f3net_forward.9} parent=0 // pred_fallthru
    _
  // Predicated region
  $region6: #{f3net_forward.9} parent=0 // pred_check
    _
  $region7: #{f3net_forward.9} parent=0 // pred_check_branch
    %11 = sbr.rel (0) target = $region9
  $region8: #{f3net_forward.9} parent=0 // pred_region
    _
  $region9: #{f3net_forward.9} parent=0 // pred_fallthru
    _
  // Predicated region
  $region10: #{f3net_forward.9} parent=0 // pred_check
    _
  $region11: #{f3net_forward.9} parent=0 // pred_check_branch
    %13 = sbr.rel (0) target = $region13
  $region12: #{f3net_forward.9} parent=0 // pred_region
    _
  $region13: #{f3net_forward.9} parent=0 // pred_fallthru
    _
  %v15 = vld [vmem:[%s1] sm:$0xf]
  %v16 = vld [vmem:[%s1 + $0x4] sm:$0xf]
  %v17 = vld [vmem:[%s1 + $0x8] sm:$0xf]
  %v18 = vld [vmem:[%s1 + $0xc] sm:$0xf]
  %v19 = vld [vmem:[%s1 + $0x10] sm:$0xf]
  %v20 = vld [vmem:[%s1 + $0x14] sm:$0xf]
  %v21 = vld [vmem:[%s1 + $0x18] sm:$0xf]
  %v22 = vld [vmem:[%s1 + $0x1c] sm:$0xf]
  %v23 = vld [vmem:[%s1 + $0x20] sm:$0xf]
  %v24 = vld [vmem:[%s1 + $0x24] sm:$0xf]
  %v25 = vld [vmem:[%s1 + $0x28] sm:$0xf]
  %v26 = vld [vmem:[%s1 + $0x2c] sm:$0xf]
  %v27 = vld [vmem:[%s1 + $0x30] sm:$0x3]
  %v28 = vld [vmem:[%s0] sm:$0xf]
  %v29 = vld [vmem:[%s0 + $0x4] sm:$0xf]
  %v30 = vld [vmem:[%s0 + $0x8] sm:$0xf]
  %v31 = vld [vmem:[%s0 + $0xc] sm:$0xf]
  %v32 = vld [vmem:[%s0 + $0x10] sm:$0xf]
  %v33 = vld [vmem:[%s0 + $0x14] sm:$0xf]
  %v34 = vld [vmem:[%s0 + $0x18] sm:$0xf]
  %v35 = vld [vmem:[%s0 + $0x1c] sm:$0xf]
  %v36 = vld [vmem:[%s0 + $0x20] sm:$0xf]
  %v37 = vld [vmem:[%s0 + $0x24] sm:$0xf]
  %v38 = vld [vmem:[%s0 + $0x28] sm:$0xf]
  %v39 = vld [vmem:[%s0 + $0x2c] sm:$0xf]
  %v40 = vld [vmem:[%s0 + $0x30] sm:$0x3]
  %v54 = vunpack.c.l.b16 %v15
  %v55 = vunpack.c.l.b16 %v16
  %v56 = vunpack.c.l.b16 %v17
  %v57 = vunpack.c.l.b16 %v18
  %v58 = vunpack.c.l.b16 %v19
  %v59 = vunpack.c.l.b16 %v20
  %v60 = vunpack.c.l.b16 %v21
  %v61 = vunpack.c.l.b16 %v22
  %v62 = vunpack.c.l.b16 %v23
  %v63 = vunpack.c.l.b16 %v24
  %v64 = vunpack.c.l.b16 %v25
  %v65 = vunpack.c.l.b16 %v26
  %v66 = vunpack.c.l.b16 %v27
  %v67 = vpack.c.b16 %v55, %v54
  %v68 = vpack.c.b16 %v57, %v56
  %v69 = vpack.c.b16 %v59, %v58
  %v70 = vpack.c.b16 %v61, %v60
  %v71 = vpack.c.b16 %v63, %v62
  %v72 = vpack.c.b16 %v65, %v64
  %v73 = vpack.c.b16 %v66, %v66
  %v87 = vunpack.c.l.b16 %v28
  %v88 = vunpack.c.l.b16 %v29
  %v89 = vunpack.c.l.b16 %v30
  %v90 = vunpack.c.l.b16 %v31
  %v91 = vunpack.c.l.b16 %v32
  %v92 = vunpack.c.l.b16 %v33
  %v93 = vunpack.c.l.b16 %v34
  %v94 = vunpack.c.l.b16 %v35
  %v95 = vunpack.c.l.b16 %v36
  %v96 = vunpack.c.l.b16 %v37
  %v97 = vunpack.c.l.b16 %v38
  %v98 = vunpack.c.l.b16 %v39
  %v99 = vunpack.c.l.b16 %v40
  %v100 = vpack.c.b16 %v88, %v87
  %v101 = vpack.c.b16 %v90, %v89
  %v102 = vpack.c.b16 %v92, %v91
  %v103 = vpack.c.b16 %v94, %v93
  %v104 = vpack.c.b16 %v96, %v95
  %v105 = vpack.c.b16 %v98, %v97
  %v106 = vpack.c.b16 %v99, %v99
  %vm113 = vcmask 818176
  %v115 = vsel %vm113, %v67, 0
  %v118 = vsel %vm113, %v68, 0
  %v121 = vsel %vm113, %v69, 0
  %v124 = vsel %vm113, %v70, 0
  %v127 = vsel %vm113, %v71, 0
  %v130 = vsel %vm113, %v72, 0
  %v133 = vsel %vm113, %v73, 0
  %vm135 = vcmask 1041408
  %v137 = vsel %vm135, %v106, 0
  %139 = vmatprep.subr.bf16.mxu0 0
  %140 = vmatpush1.bf16.msra.mxu0 0
  %141 = vmatprep.subr.bf16.mxu0 0
  %142 = vmatpush1.bf16.msra.mxu0 %v137
  %143 = vmatprep.subr.bf16.mxu0 0
  %144 = vmatpush1.bf16.msra.mxu0 %v105
  %145 = vmatprep.subr.bf16.mxu0 0
  %146 = vmatpush1.bf16.msra.mxu0 %v104
  %147 = vmatprep.subr.bf16.mxu0 0
  %148 = vmatpush1.bf16.msra.mxu0 %v103
  %149 = vmatprep.subr.bf16.mxu0 0
  %150 = vmatpush1.bf16.msra.mxu0 %v102
  %151 = vmatprep.subr.bf16.mxu0 0
  %152 = vmatpush1.bf16.msra.mxu0 %v101
  %153 = vmatprep.subr.bf16.mxu0 0
  %154 = vmatpush1.bf16.msra.mxu0 %v100
  %155 = vmatprep.subr.bf16.mxu0 0
  %156 = vmatpush2.bf16.msra.mxu0 0
  %157 = vmatprep.subr.bf16.mxu0 0
  %158 = vmatpush2.bf16.msra.mxu0 0
  %159 = vmatprep.subr.bf16.mxu0 0
  %160 = vmatpush2.bf16.msra.mxu0 0
  %161 = vmatprep.subr.bf16.mxu0 0
  %162 = vmatpush2.bf16.msra.mxu0 0
  %163 = vmatprep.subr.bf16.mxu0 0
  %164 = vmatpush2.bf16.msra.mxu0 0
  %165 = vmatprep.subr.bf16.mxu0 0
  %166 = vmatpush2.bf16.msra.mxu0 0
  %167 = vmatprep.subr.bf16.mxu0 0
  %168 = vmatpush2.bf16.msra.mxu0 0
  %169 = vmatprep.subr.bf16.mxu0 0
  %170 = vmatpush2.bf16.msra.mxu0 0
  %171 = vmatprep.mubr.bf16.mxu0 0
  %172 = vmatmul.mubr.bf16.gmra.mxu0 %v115
  %v173 = vpop.f32.mrf.mxu0
  %v174 = vadd.f32 0.0, %v173
  %v175 = vpop.f32.mrf.mxu0
  %v176 = vpop.f32.mrf.mxu0
  %v177 = vadd.f32 0.0, %v176
  %v178 = vpop.f32.mrf.mxu0
  %179 = vmatprep.mubr.bf16.mxu0 0
  %180 = vmatmul.mubr.bf16.gmra.mxu0 %v118
  %v181 = vpop.f32.mrf.mxu0
  %v182 = vadd.f32 0.0, %v181
  %v183 = vpop.f32.mrf.mxu0
  %v184 = vpop.f32.mrf.mxu0
  %v185 = vadd.f32 0.0, %v184
  %v186 = vpop.f32.mrf.mxu0
  %187 = vmatprep.mubr.bf16.mxu0 0
  %188 = vmatmul.mubr.bf16.gmra.mxu0 %v121
  %v189 = vpop.f32.mrf.mxu0
  %v190 = vadd.f32 0.0, %v189
  %v191 = vpop.f32.mrf.mxu0
  %v192 = vpop.f32.mrf.mxu0
  %v193 = vadd.f32 0.0, %v192
  %v194 = vpop.f32.mrf.mxu0
  %195 = vmatprep.mubr.bf16.mxu0 0
  %196 = vmatmul.mubr.bf16.gmra.mxu0 %v124
  %v197 = vpop.f32.mrf.mxu0
  %v198 = vadd.f32 0.0, %v197
  %v199 = vpop.f32.mrf.mxu0
  %v200 = vpop.f32.mrf.mxu0
  %v201 = vadd.f32 0.0, %v200
  %v202 = vpop.f32.mrf.mxu0
  %203 = vmatprep.mubr.bf16.mxu0 0
  %204 = vmatmul.mubr.bf16.gmra.mxu0 %v127
  %v205 = vpop.f32.mrf.mxu0
  %v206 = vadd.f32 0.0, %v205
  %v207 = vpop.f32.mrf.mxu0
  %v208 = vpop.f32.mrf.mxu0
  %v209 = vadd.f32 0.0, %v208
  %v210 = vpop.f32.mrf.mxu0
  %211 = vmatprep.mubr.bf16.mxu0 0
  %212 = vmatmul.mubr.bf16.gmra.mxu0 %v130
  %v213 = vpop.f32.mrf.mxu0
  %v214 = vadd.f32 0.0, %v213
  %v215 = vpop.f32.mrf.mxu0
  %v216 = vpop.f32.mrf.mxu0
  %v217 = vadd.f32 0.0, %v216
  %v218 = vpop.f32.mrf.mxu0
  %219 = vmatprep.mubr.bf16.mxu0 0
  %220 = vmatmul.mubr.bf16.gmra.mxu0 %v133
  %v221 = vpop.f32.mrf.mxu0
  %v222 = vadd.f32 0.0, %v221
  %v223 = vpop.f32.mrf.mxu0
  %v224 = vpop.f32.mrf.mxu0
  %v225 = vpop.f32.mrf.mxu0
  %226 = vdwg.mxu0
  %v227 = vand.u32 2147483647, %v174
  %v228 = vand.u32 2147483647, %v177
  %v229 = vand.u32 2147483647, %v182
  %v230 = vand.u32 2147483647, %v185
  %v231 = vand.u32 2147483647, %v190
  %v232 = vand.u32 2147483647, %v193
  %v233 = vand.u32 2147483647, %v198
  %v234 = vand.u32 2147483647, %v201
  %v235 = vand.u32 2147483647, %v206
  %v236 = vand.u32 2147483647, %v209
  %v237 = vand.u32 2147483647, %v214
  %v238 = vand.u32 2147483647, %v217
  %v239 = vand.u32 2147483647, %v222
  %v240 = vadd.f32 %v227, 1e-15
  %v241 = vadd.f32 %v228, 1e-15
  %v242 = vadd.f32 %v229, 1e-15
  %v243 = vadd.f32 %v230, 1e-15
  %v244 = vadd.f32 %v231, 1e-15
  %v245 = vadd.f32 %v232, 1e-15
  %v246 = vadd.f32 %v233, 1e-15
  %v247 = vadd.f32 %v234, 1e-15
  %v248 = vadd.f32 %v235, 1e-15
  %v249 = vadd.f32 %v236, 1e-15
  %v250 = vadd.f32 %v237, 1e-15
  %v251 = vadd.f32 %v238, 1e-15
  %v252 = vadd.f32 %v239, 1e-15
  %v253 = vlog2.pop %v240
  %v254 = vmul.f32 %v253, 0.6931472
  %v255 = vlog2.pop %v241
  %v256 = vmul.f32 %v255, 0.6931472
  %v257 = vlog2.pop %v242
  %v258 = vmul.f32 %v257, 0.6931472
  %v259 = vlog2.pop %v243
  %v260 = vmul.f32 %v259, 0.6931472
  %v261 = vlog2.pop %v244
  %v262 = vmul.f32 %v261, 0.6931472
  %v263 = vlog2.pop %v245
  %v264 = vmul.f32 %v263, 0.6931472
  %v265 = vlog2.pop %v246
  %v266 = vmul.f32 %v265, 0.6931472
  %v267 = vlog2.pop %v247
  %v268 = vmul.f32 %v267, 0.6931472
  %v269 = vlog2.pop %v248
  %v270 = vmul.f32 %v269, 0.6931472
  %v271 = vlog2.pop %v249
  %v272 = vmul.f32 %v271, 0.6931472
  %v273 = vlog2.pop %v250
  %v274 = vmul.f32 %v273, 0.6931472
  %v275 = vlog2.pop %v251
  %v276 = vmul.f32 %v275, 0.6931472
  %v277 = vlog2.pop %v252
  %v278 = vmul.f32 %v277, 0.6931472
  %v279 = vmul.f32 %v254, 0.4342945
  %v280 = vmul.f32 %v256, 0.4342945
  %v281 = vmul.f32 %v258, 0.4342945
  %v282 = vmul.f32 %v260, 0.4342945
  %v283 = vmul.f32 %v262, 0.4342945
  %v284 = vmul.f32 %v264, 0.4342945
  %v285 = vmul.f32 %v266, 0.4342945
  %v286 = vmul.f32 %v268, 0.4342945
  %v287 = vmul.f32 %v270, 0.4342945
  %v288 = vmul.f32 %v272, 0.4342945
  %v289 = vmul.f32 %v274, 0.4342945
  %v290 = vmul.f32 %v276, 0.4342945
  %v291 = vmul.f32 %v278, 0.4342945
  %v292 = vld [vmem:[%s2] sm:$0x7]
  %v293 = vpack.c.bf16 %v280, %v279
  %v294 = vpack.c.bf16 %v282, %v281
  %v295 = vpack.c.bf16 %v284, %v283
  %v296 = vpack.c.bf16 %v286, %v285
  %v297 = vpack.c.bf16 %v288, %v287
  %v298 = vpack.c.bf16 %v290, %v289
  %v299 = vpack.c.bf16 %v291, %v291
  %v301 = vsel %vm113, %v292, 0
  %v304 = vsel %vm135, %v299, 0
  %306 = vmatprep.subr.bf16.mxu0 0
  %307 = vmatpush1.bf16.msra.mxu0 0
  %308 = vmatprep.subr.bf16.mxu0 0
  %309 = vmatpush1.bf16.msra.mxu0 %v304
  %310 = vmatprep.subr.bf16.mxu0 0
  %311 = vmatpush1.bf16.msra.mxu0 %v298
  %312 = vmatprep.subr.bf16.mxu0 0
  %313 = vmatpush1.bf16.msra.mxu0 %v297
  %314 = vmatprep.subr.bf16.mxu0 0
  %315 = vmatpush1.bf16.msra.mxu0 %v296
  %316 = vmatprep.subr.bf16.mxu0 0
  %317 = vmatpush1.bf16.msra.mxu0 %v295
  %318 = vmatprep.subr.bf16.mxu0 0
  %319 = vmatpush1.bf16.msra.mxu0 %v294
  %320 = vmatprep.subr.bf16.mxu0 0
  %321 = vmatpush1.bf16.msra.mxu0 %v293
  %322 = vmatprep.subr.bf16.mxu0 0
  %323 = vmatpush2.bf16.msra.mxu0 0
  %324 = vmatprep.subr.bf16.mxu0 0
  %325 = vmatpush2.bf16.msra.mxu0 0
  %326 = vmatprep.subr.bf16.mxu0 0
  %327 = vmatpush2.bf16.msra.mxu0 0
  %328 = vmatprep.subr.bf16.mxu0 0
  %329 = vmatpush2.bf16.msra.mxu0 0
  %330 = vmatprep.subr.bf16.mxu0 0
  %331 = vmatpush2.bf16.msra.mxu0 0
  %332 = vmatprep.subr.bf16.mxu0 0
  %333 = vmatpush2.bf16.msra.mxu0 0
  %334 = vmatprep.subr.bf16.mxu0 0
  %335 = vmatpush2.bf16.msra.mxu0 0
  %336 = vmatprep.subr.bf16.mxu0 0
  %337 = vmatpush2.bf16.msra.mxu0 0
  %338 = vmatprep.mubr.bf16.mxu0 0
  %339 = vmatmul.mubr.bf16.gmra.mxu0 %v301
  %v340 = vpop.f32.mrf.mxu0
  %v341 = vadd.f32 0.0, %v340
  %v342 = vpop.f32.mrf.mxu0
  %v343 = vpop.f32.mrf.mxu0
  %v344 = vpop.f32.mrf.mxu0
  %345 = vdwg.mxu0
  %346 = vst [vmem:[%s3] sm:$0x3f] %v341
  // Predicated region
  $region14: #{f3net_forward.9} parent=0 // pred_check
    _
  $region15: #{f3net_forward.9} parent=0 // pred_check_branch
    %348 = sbr.rel (0) target = $region17
  $region16: #{f3net_forward.9} parent=0 // pred_region
    _
  $region17: #{f3net_forward.9} parent=0 // pred_fallthru
    _
  // Predicated region
  $region18: #{f3net_forward.9} parent=0 // pred_check
    _
  $region19: #{f3net_forward.9} parent=0 // pred_check_branch
    %350 = sbr.rel (0) target = $region21
  $region20: #{f3net_forward.9} parent=0 // pred_region
    _
  $region21: #{f3net_forward.9} parent=0 // pred_fallthru
    _

// kernel: f3net_forward.13
$region0: #{f3net_forward.13}
  #allocation0 [shape = 'u32[]', space=smem, size = 0x4, offset = 0x4, fixed_abs, tag = 'smem constant byte address 0x4 - core index']
  #allocation1 [shape = 'u32[144,128]{1,0:T(1,128)}', space=vmem, size = 0x12000, scoped, tag = 'internal scratch']
  %s0 = inlined_call_operand.vmem [shape: bf16[32,16], index: 0, kind: input, shape index: {}]
  %s1 = inlined_call_operand.vmem [shape: bf16[16,32], index: 1, kind: input, shape index: {}]
  %s2 = inlined_call_operand.vmem [shape: f32[1,32], index: 2, kind: input, shape index: {}]
  %s3 = inlined_call_operand.vmem [shape: f32[32,32], index: 3, kind: output, shape index: {}]
  %s4 = sld [smem:[#allocation0]]
  $region22: #{f3net_forward.13} parent=0
    _
  %s6 = ssub.s32 1, %s4
  %s7 = scalar_select 0, %s6, %s4
  // Predicated region
  $region2: #{f3net_forward.13} parent=0 // pred_check
    _
  $region3: #{f3net_forward.13} parent=0 // pred_check_branch
    %9 = sbr.rel (0) target = $region5
  $region4: #{f3net_forward.13} parent=0 // pred_region
    _
  $region5: #{f3net_forward.13} parent=0 // pred_fallthru
    _
  // Predicated region
  $region6: #{f3net_forward.13} parent=0 // pred_check
    _
  $region7: #{f3net_forward.13} parent=0 // pred_check_branch
    %11 = sbr.rel (0) target = $region9
  $region8: #{f3net_forward.13} parent=0 // pred_region
    _
  $region9: #{f3net_forward.13} parent=0 // pred_fallthru
    _
  // Predicated region
  $region10: #{f3net_forward.13} parent=0 // pred_check
    _
  $region11: #{f3net_forward.13} parent=0 // pred_check_branch
    %13 = sbr.rel (0) target = $region13
  $region12: #{f3net_forward.13} parent=0 // pred_region
    _
  $region13: #{f3net_forward.13} parent=0 // pred_fallthru
    _
  %v15 = vld [vmem:[%s0] sm:$0xf]
  %v16 = vld [vmem:[%s0 + $0x4] sm:$0xf]
  %v17 = vld [vmem:[%s0 + $0x8] sm:$0xf]
  %v18 = vld [vmem:[%s0 + $0xc] sm:$0xf]
  %v19 = vld [vmem:[%s1] sm:$0xf]
  %v20 = vld [vmem:[%s1 + $0x4] sm:$0xf]
  %v21 = vld [vmem:[%s2] sm:$0x1]
  %v23 = vlaneseq
  %v24 = vshrl.u32 %v23, 7
  %v25 = vsub.s32 0, %v24
  %v26 = vrot.slane %v21, %v25
  %v32 = vunpack.c.l.b16 %v15
  %v33 = vunpack.c.l.b16 %v16
  %v34 = vunpack.c.l.b16 %v17
  %v35 = vunpack.c.l.b16 %v18
  %v36 = vpack.c.b16 %v33, %v32
  %v37 = vpack.c.b16 %v35, %v34
  %v40 = vunpack.c.l.b16 %v19
  %v41 = vunpack.c.l.b16 %v20
  %v42 = vpack.c.b16 %v41, %v40
  %vm44 = vcmask 130048
  %v46 = vsel %vm44, %v36, 0
  %v49 = vsel %vm44, %v37, 0
  %51 = vmatprep.subr.bf16.mxu0 0
  %52 = vmatpush1.bf16.msra.mxu0 0
  %53 = vmatprep.subr.bf16.mxu0 0
  %54 = vmatpush1.bf16.msra.mxu0 0
  %55 = vmatprep.subr.bf16.mxu0 0
  %56 = vmatpush1.bf16.msra.mxu0 0
  %57 = vmatprep.subr.bf16.mxu0 0
  %58 = vmatpush1.bf16.msra.mxu0 0
  %59 = vmatprep.subr.bf16.mxu0 0
  %60 = vmatpush1.bf16.msra.mxu0 0
  %61 = vmatprep.subr.bf16.mxu0 0
  %62 = vmatpush1.bf16.msra.mxu0 0
  %63 = vmatprep.subr.bf16.mxu0 0
  %64 = vmatpush1.bf16.msra.mxu0 0
  %65 = vmatprep.subr.bf16.mxu0 0
  %66 = vmatpush1.bf16.msra.mxu0 %v42
  %67 = vmatprep.subr.bf16.mxu0 0
  %68 = vmatpush2.bf16.msra.mxu0 0
  %69 = vmatprep.subr.bf16.mxu0 0
  %70 = vmatpush2.bf16.msra.mxu0 0
  %71 = vmatprep.subr.bf16.mxu0 0
  %72 = vmatpush2.bf16.msra.mxu0 0
  %73 = vmatprep.subr.bf16.mxu0 0
  %74 = vmatpush2.bf16.msra.mxu0 0
  %75 = vmatprep.subr.bf16.mxu0 0
  %76 = vmatpush2.bf16.msra.mxu0 0
  %77 = vmatprep.subr.bf16.mxu0 0
  %78 = vmatpush2.bf16.msra.mxu0 0
  %79 = vmatprep.subr.bf16.mxu0 0
  %80 = vmatpush2.bf16.msra.mxu0 0
  %81 = vmatprep.subr.bf16.mxu0 0
  %82 = vmatpush2.bf16.msra.mxu0 0
  %83 = vmatprep.mubr.bf16.mxu0 0
  %84 = vmatmul.mubr.bf16.gmra.mxu0 %v46
  %v85 = vpop.f32.mrf.mxu0
  %v86 = vadd.f32 %v26, %v85
  %v87 = vpop.f32.mrf.mxu0
  %v88 = vpop.f32.mrf.mxu0
  %v89 = vadd.f32 %v26, %v88
  %v90 = vpop.f32.mrf.mxu0
  %91 = vmatprep.mubr.bf16.mxu0 0
  %92 = vmatmul.mubr.bf16.gmra.mxu0 %v49
  %v93 = vpop.f32.mrf.mxu0
  %v94 = vadd.f32 %v26, %v93
  %v95 = vpop.f32.mrf.mxu0
  %v96 = vpop.f32.mrf.mxu0
  %v97 = vadd.f32 %v26, %v96
  %v98 = vpop.f32.mrf.mxu0
  %99 = vdwg.mxu0
  %v100 = vmax.f32 %v86, 0.0
  %v101 = vmax.f32 %v89, 0.0
  %v102 = vmax.f32 %v94, 0.0
  %v103 = vmax.f32 %v97, 0.0
  %vm104 = vcmask 261120
  %105 = vst.msk [vmem:[%s3] sm:$0xff] %vm104, %v100
  %106 = vst.msk [vmem:[%s3 + $0x8] sm:$0xff] %vm104, %v101
  %107 = vst.msk [vmem:[%s3 + $0x10] sm:$0xff] %vm104, %v102
  %108 = vst.msk [vmem:[%s3 + $0x18] sm:$0xff] %vm104, %v103
  // Predicated region
  $region14: #{f3net_forward.13} parent=0 // pred_check
    _
  $region15: #{f3net_forward.13} parent=0 // pred_check_branch
    %110 = sbr.rel (0) target = $region17
  $region16: #{f3net_forward.13} parent=0 // pred_region
    _
  $region17: #{f3net_forward.13} parent=0 // pred_fallthru
    _
  // Predicated region
  $region18: #{f3net_forward.13} parent=0 // pred_check
    _
  $region19: #{f3net_forward.13} parent=0 // pred_check_branch
    %112 = sbr.rel (0) target = $region21
  $region20: #{f3net_forward.13} parent=0 // pred_region
    _
  $region21: #{f3net_forward.13} parent=0 // pred_fallthru
    _

// kernel: f3net_forward.15
$region0: #{f3net_forward.15}
  #allocation0 [shape = 'u32[]', space=smem, size = 0x4, offset = 0x4, fixed_abs, tag = 'smem constant byte address 0x4 - core index']
  #allocation1 [shape = 'u32[144,128]{1,0:T(1,128)}', space=vmem, size = 0x12000, scoped, tag = 'internal scratch']
  %s0 = inlined_call_operand.vmem [shape: f32[2,4,4,32], index: 0, kind: input, shape index: {}]
  %s1 = inlined_call_operand.vmem [shape: f32[2,4,4,32], index: 1, kind: input, shape index: {}]
  %s2 = inlined_call_operand.vmem [shape: bf16[32,64], index: 2, kind: input, shape index: {}]
  %s3 = inlined_call_operand.vmem [shape: f32[1,64], index: 3, kind: input, shape index: {}]
  %s4 = inlined_call_operand.vmem [shape: bf16[32,64], index: 4, kind: input, shape index: {}]
  %s5 = inlined_call_operand.vmem [shape: f32[1,64], index: 5, kind: input, shape index: {}]
  %s6 = inlined_call_operand.vmem [shape: f32[4,32], index: 6, kind: input, shape index: {}]
  %s7 = inlined_call_operand.hbm [shape: f32[2,4,4,32], index: 7, kind: output, shape index: {0}]
  %s8 = inlined_call_operand.hbm [shape: f32[2,4,4,32], index: 8, kind: output, shape index: {1}]
  %s9 = inlined_call_operand.vmem [shape: f32[2,32], index: 9, kind: output, shape index: {2}]
  %s10 = inlined_call_operand.vmem [shape: f32[2,32], index: 10, kind: output, shape index: {3}]
  %11 = xla_tuple %s7, %s8, %s9, %s10
  %s12 = sld [smem:[#allocation0]]
  $region62: #{f3net_forward.15} parent=0
    _
  %s14 = ssub.s32 1, %s12
  %s15 = scalar_select 0, %s14, %s12
  $region1: #{f3net_forward.15} parent=0
    #allocation2 [shape = 'u8[16384]{0}', space=vmem, size = 0x4000, scoped, tag = 'output window, operand 0, single buffered']
    #allocation3 [shape = 's32[1]{0}', space=sflag, size = 0x4, scoped, tag = 'scoped memory for f3net_forward.15']
    #allocation4 [shape = 'u8[16384]{0}', space=vmem, size = 0x4000, scoped, tag = 'output window, operand 1, single buffered']
    #allocation5 [shape = 's32[1]{0}', space=sflag, size = 0x4, scoped, tag = 'scoped memory for f3net_forward.15']
    %16 = vsyncpa [#allocation3], 0
    %17 = vsyncpa [#allocation5], 0
    // Predicated region
    $region2: #{f3net_forward.15} parent=1 // pred_check
      _
    $region3: #{f3net_forward.15} parent=1 // pred_check_branch
      %19 = sbr.rel (0) target = $region5
    $region4: #{f3net_forward.15} parent=1 // pred_region
      _
    $region5: #{f3net_forward.15} parent=1 // pred_fallthru
      _
    // Predicated region
    $region6: #{f3net_forward.15} parent=1 // pred_check
      _
    $region7: #{f3net_forward.15} parent=1 // pred_check_branch
      %21 = sbr.rel (0) target = $region9
    $region8: #{f3net_forward.15} parent=1 // pred_region
      _
    $region9: #{f3net_forward.15} parent=1 // pred_fallthru
      _
    // Predicated region
    $region10: #{f3net_forward.15} parent=1 // pred_check
      _
    $region11: #{f3net_forward.15} parent=1 // pred_check_branch
      %23 = sbr.rel (0) target = $region13
    $region12: #{f3net_forward.15} parent=1 // pred_region
      _
    $region13: #{f3net_forward.15} parent=1 // pred_fallthru
      _
    // Predicated region
    $region14: #{f3net_forward.15} parent=1 // pred_check
      _
    $region15: #{f3net_forward.15} parent=1 // pred_check_branch
      %25 = sbr.rel (0) target = $region17
    $region16: #{f3net_forward.15} parent=1 // pred_region
      _
    $region17: #{f3net_forward.15} parent=1 // pred_fallthru
      _
    // Predicated region
    $region18: #{f3net_forward.15} parent=1 // pred_check
      _
    $region19: #{f3net_forward.15} parent=1 // pred_check_branch
      %27 = sbr.rel (0) target = $region21
    $region20: #{f3net_forward.15} parent=1 // pred_region
      _
    $region21: #{f3net_forward.15} parent=1 // pred_fallthru
      _
    // Predicated region
    $region22: #{f3net_forward.15} parent=1 // pred_check
      _
    $region23: #{f3net_forward.15} parent=1 // pred_check_branch
      %29 = sbr.rel (0) target = $region25
    $region24: #{f3net_forward.15} parent=1 // pred_region
      _
    $region25: #{f3net_forward.15} parent=1 // pred_fallthru
      _
    // Predicated region
    $region26: #{f3net_forward.15} parent=1 // pred_check
      _
    $region27: #{f3net_forward.15} parent=1 // pred_check_branch
      %31 = sbr.rel (0) target = $region29
    $region28: #{f3net_forward.15} parent=1 // pred_region
      _
    $region29: #{f3net_forward.15} parent=1 // pred_fallthru
      _
    %v33 = vld [vmem:[%s0] sm:$0xf]
    %v34 = vld [vmem:[%s0 + $0x4] sm:$0xf]
    %v35 = vld [vmem:[%s0 + $0x8] sm:$0xf]
    %v36 = vld [vmem:[%s0 + $0xc] sm:$0xf]
    %v37 = vld [vmem:[%s0 + $0x10] sm:$0xf]
    %v38 = vld [vmem:[%s0 + $0x14] sm:$0xf]
    %v39 = vld [vmem:[%s0 + $0x18] sm:$0xf]
    %v40 = vld [vmem:[%s0 + $0x1c] sm:$0xf]
    %v41 = vld [vmem:[%s1] sm:$0xf]
    %v42 = vld [vmem:[%s1 + $0x4] sm:$0xf]
    %v43 = vld [vmem:[%s1 + $0x8] sm:$0xf]
    %v44 = vld [vmem:[%s1 + $0xc] sm:$0xf]
    %v45 = vld [vmem:[%s1 + $0x10] sm:$0xf]
    %v46 = vld [vmem:[%s1 + $0x14] sm:$0xf]
    %v47 = vld [vmem:[%s1 + $0x18] sm:$0xf]
    %v48 = vld [vmem:[%s1 + $0x1c] sm:$0xf]
    %v57 = vcombine.low %v33, %v34
    %v58 = vcombine.low %v35, %v36
    %v59 = vcombine.low %v37, %v38
    %v60 = vcombine.low %v39, %v40
    %v65 = vpack.c.bf16 %v58, %v57
    %v66 = vpack.c.bf16 %v60, %v59
    %v75 = vcombine.low %v41, %v42
    %v76 = vcombine.low %v43, %v44
    %v77 = vcombine.low %v45, %v46
    %v78 = vcombine.low %v47, %v48
    %v83 = vpack.c.bf16 %v76, %v75
    %v84 = vpack.c.bf16 %v78, %v77
    %v85 = vld [vmem:[%s2] sm:$0xf]
    %v86 = vld [vmem:[%s2 + $0x4] sm:$0xf]
    %v87 = vld [vmem:[%s2 + $0x8] sm:$0xf]
    %v88 = vld [vmem:[%s2 + $0xc] sm:$0xf]
    %v89 = vld [vmem:[%s3] sm:$0x1]
    %v91 = vlaneseq
    %v92 = vshrl.u32 %v91, 7
    %v93 = vsub.s32 0, %v92
    %v94 = vrot.slane %v89, %v93
    %v100 = vunpack.c.l.b16 %v85
    %v101 = vunpack.c.l.b16 %v86
    %v102 = vunpack.c.l.b16 %v87
    %v103 = vunpack.c.l.b16 %v88
    %v104 = vpack.c.b16 %v101, %v100
    %v105 = vpack.c.b16 %v103, %v102
    %vm108 = vcmask 261120
    %v110 = vsel %vm108, %v65, 0
    %v113 = vsel %vm108, %v66, 0
    %115 = vmatprep.subr.bf16.mxu0 0
    %116 = vmatpush1.bf16.msra.mxu0 0
    %117 = vmatprep.subr.bf16.mxu0 0
    %118 = vmatpush1.bf16.msra.mxu0 0
    %119 = vmatprep.subr.bf16.mxu0 0
    %120 = vmatpush1.bf16.msra.mxu0 0
    %121 = vmatprep.subr.bf16.mxu0 0
    %122 = vmatpush1.bf16.msra.mxu0 0
    %123 = vmatprep.subr.bf16.mxu0 0
    %124 = vmatpush1.bf16.msra.mxu0 0
    %125 = vmatprep.subr.bf16.mxu0 0
    %126 = vmatpush1.bf16.msra.mxu0 0
    %127 = vmatprep.subr.bf16.mxu0 0
    %128 = vmatpush1.bf16.msra.mxu0 %v105
    %129 = vmatprep.subr.bf16.mxu0 0
    %130 = vmatpush1.bf16.msra.mxu0 %v104
    %131 = vmatprep.subr.bf16.mxu0 0
    %132 = vmatpush2.bf16.msra.mxu0 0
    %133 = vmatprep.subr.bf16.mxu0 0
    %134 = vmatpush2.bf16.msra.mxu0 0
    %135 = vmatprep.subr.bf16.mxu0 0
    %136 = vmatpush2.bf16.msra.mxu0 0
    %137 = vmatprep.subr.bf16.mxu0 0
    %138 = vmatpush2.bf16.msra.mxu0 0
    %139 = vmatprep.subr.bf16.mxu0 0
    %140 = vmatpush2.bf16.msra.mxu0 0
    %141 = vmatprep.subr.bf16.mxu0 0
    %142 = vmatpush2.bf16.msra.mxu0 0
    %143 = vmatprep.subr.bf16.mxu0 0
    %144 = vmatpush2.bf16.msra.mxu0 0
    %145 = vmatprep.subr.bf16.mxu0 0
    %146 = vmatpush2.bf16.msra.mxu0 0
    %147 = vmatprep.mubr.bf16.mxu0 0
    %148 = vmatmul.mubr.bf16.gmra.mxu0 %v110
    %v149 = vpop.f32.mrf.mxu0
    %v150 = vadd.f32 %v94, %v149
    %v151 = vpop.f32.mrf.mxu0
    %v152 = vpop.f32.mrf.mxu0
    %v153 = vadd.f32 %v94, %v152
    %v154 = vpop.f32.mrf.mxu0
    %155 = vmatprep.mubr.bf16.mxu0 0
    %156 = vmatmul.mubr.bf16.gmra.mxu0 %v113
    %v157 = vpop.f32.mrf.mxu0
    %v158 = vadd.f32 %v94, %v157
    %v159 = vpop.f32.mrf.mxu0
    %v160 = vpop.f32.mrf.mxu0
    %v161 = vadd.f32 %v94, %v160
    %v162 = vpop.f32.mrf.mxu0
    %163 = vdwg.mxu0
    %v164 = vld [vmem:[%s4] sm:$0xf]
    %v165 = vld [vmem:[%s4 + $0x4] sm:$0xf]
    %v166 = vld [vmem:[%s4 + $0x8] sm:$0xf]
    %v167 = vld [vmem:[%s4 + $0xc] sm:$0xf]
    %v168 = vld [vmem:[%s5] sm:$0x1]
    %v170 = vlaneseq
    %v171 = vshrl.u32 %v170, 7
    %v172 = vsub.s32 0, %v171
    %v173 = vrot.slane %v168, %v172
    %v179 = vunpack.c.l.b16 %v164
    %v180 = vunpack.c.l.b16 %v165
    %v181 = vunpack.c.l.b16 %v166
    %v182 = vunpack.c.l.b16 %v167
    %v183 = vpack.c.b16 %v180, %v179
    %v184 = vpack.c.b16 %v182, %v181
    %v188 = vsel %vm108, %v83, 0
    %v191 = vsel %vm108, %v84, 0
    %193 = vmatprep.subr.bf16.mxu0 0
    %194 = vmatpush1.bf16.msra.mxu0 0
    %195 = vmatprep.subr.bf16.mxu0 0
    %196 = vmatpush1.bf16.msra.mxu0 0
    %197 = vmatprep.subr.bf16.mxu0 0
    %198 = vmatpush1.bf16.msra.mxu0 0
    %199 = vmatprep.subr.bf16.mxu0 0
    %200 = vmatpush1.bf16.msra.mxu0 0
    %201 = vmatprep.subr.bf16.mxu0 0
    %202 = vmatpush1.bf16.msra.mxu0 0
    %203 = vmatprep.subr.bf16.mxu0 0
    %204 = vmatpush1.bf16.msra.mxu0 0
    %205 = vmatprep.subr.bf16.mxu0 0
    %206 = vmatpush1.bf16.msra.mxu0 %v184
    %207 = vmatprep.subr.bf16.mxu0 0
    %208 = vmatpush1.bf16.msra.mxu0 %v183
    %209 = vmatprep.subr.bf16.mxu0 0
    %210 = vmatpush2.bf16.msra.mxu0 0
    %211 = vmatprep.subr.bf16.mxu0 0
    %212 = vmatpush2.bf16.msra.mxu0 0
    %213 = vmatprep.subr.bf16.mxu0 0
    %214 = vmatpush2.bf16.msra.mxu0 0
    %215 = vmatprep.subr.bf16.mxu0 0
    %216 = vmatpush2.bf16.msra.mxu0 0
    %217 = vmatprep.subr.bf16.mxu0 0
    %218 = vmatpush2.bf16.msra.mxu0 0
    %219 = vmatprep.subr.bf16.mxu0 0
    %220 = vmatpush2.bf16.msra.mxu0 0
    %221 = vmatprep.subr.bf16.mxu0 0
    %222 = vmatpush2.bf16.msra.mxu0 0
    %223 = vmatprep.subr.bf16.mxu0 0
    %224 = vmatpush2.bf16.msra.mxu0 0
    %225 = vmatprep.mubr.bf16.mxu0 0
    %226 = vmatmul.mubr.bf16.gmra.mxu0 %v188
    %v227 = vpop.f32.mrf.mxu0
    %v228 = vadd.f32 %v173, %v227
    %v229 = vpop.f32.mrf.mxu0
    %v230 = vpop.f32.mrf.mxu0
    %v231 = vadd.f32 %v173, %v230
    %v232 = vpop.f32.mrf.mxu0
    %233 = vmatprep.mubr.bf16.mxu0 0
    %234 = vmatmul.mubr.bf16.gmra.mxu0 %v191
    %v235 = vpop.f32.mrf.mxu0
    %v236 = vadd.f32 %v173, %v235
    %v237 = vpop.f32.mrf.mxu0
    %v238 = vpop.f32.mrf.mxu0
    %v239 = vadd.f32 %v173, %v238
    %v240 = vpop.f32.mrf.mxu0
    %241 = vdwg.mxu0
    %v246 = vcombine.high %v150, %v150
    %v247 = vcombine.high %v153, %v153
    %v248 = vcombine.high %v158, %v158
    %v249 = vcombine.high %v161, %v161
    %254 = vrot.lane.b32.xlu0 %v150, 96
    %v255 = vpop.permute.xlu0 %254
    %256 = vrot.lane.b32.xlu0 %v246, 96
    %v257 = vpop.permute.xlu0 %256
    %258 = vrot.lane.b32.xlu0 %v153, 96
    %v259 = vpop.permute.xlu0 %258
    %260 = vrot.lane.b32.xlu0 %v247, 96
    %v261 = vpop.permute.xlu0 %260
    %262 = vrot.lane.b32.xlu0 %v158, 96
    %v263 = vpop.permute.xlu0 %262
    %264 = vrot.lane.b32.xlu0 %v248, 96
    %v265 = vpop.permute.xlu0 %264
    %266 = vrot.lane.b32.xlu0 %v161, 96
    %v267 = vpop.permute.xlu0 %266
    %268 = vrot.lane.b32.xlu0 %v249, 96
    %v269 = vpop.permute.xlu0 %268
    %v278 = vmul.f32 %v150, %v255
    %v279 = vmul.f32 %v150, %v257
    %v280 = vmul.f32 %v150, %v259
    %v281 = vmul.f32 %v150, %v261
    %v282 = vmul.f32 %v246, %v255
    %v283 = vmul.f32 %v246, %v257
    %v284 = vmul.f32 %v246, %v259
    %v285 = vmul.f32 %v246, %v261
    %v286 = vmul.f32 %v153, %v255
    %v287 = vmul.f32 %v153, %v257
    %v288 = vmul.f32 %v153, %v259
    %v289 = vmul.f32 %v153, %v261
    %v290 = vmul.f32 %v247, %v255
    %v291 = vmul.f32 %v247, %v257
    %v292 = vmul.f32 %v247, %v259
    %v293 = vmul.f32 %v247, %v261
    %v294 = vmul.f32 %v158, %v263
    %v295 = vmul.f32 %v158, %v265
    %v296 = vmul.f32 %v158, %v267
    %v297 = vmul.f32 %v158, %v269
    %v298 = vmul.f32 %v248, %v263
    %v299 = vmul.f32 %v248, %v265
    %v300 = vmul.f32 %v248, %v267
    %v301 = vmul.f32 %v248, %v269
    %v302 = vmul.f32 %v161, %v263
    %v303 = vmul.f32 %v161, %v265
    %v304 = vmul.f32 %v161, %v267
    %v305 = vmul.f32 %v161, %v269
    %v306 = vmul.f32 %v249, %v263
    %v307 = vmul.f32 %v249, %v265
    %v308 = vmul.f32 %v249, %v267
    %v309 = vmul.f32 %v249, %v269
    %vm310 = vcmask 257024
    %v311 = vsel %vm310, %v278, 0.0
    %v312 = vrot.slane %v311, 4
    %v313 = vadd.f32 %v311, %v312
    %v314 = vrot.slane %v313, 2
    %v315 = vadd.f32 %v313, %v314
    %v316 = vrot.slane %v315, 1
    %v317 = vadd.f32 %v315, %v316
    %v318 = vsel %vm310, %v279, 0.0
    %v319 = vrot.slane %v318, 4
    %v320 = vadd.f32 %v318, %v319
    %v321 = vrot.slane %v320, 2
    %v322 = vadd.f32 %v320, %v321
    %v323 = vrot.slane %v322, 1
    %v324 = vadd.f32 %v322, %v323
    %v325 = vsel %vm310, %v280, 0.0
    %v326 = vrot.slane %v325, 4
    %v327 = vadd.f32 %v325, %v326
    %v328 = vrot.slane %v327, 2
    %v329 = vadd.f32 %v327, %v328
    %v330 = vrot.slane %v329, 1
    %v331 = vadd.f32 %v329, %v330
    %v332 = vsel %vm310, %v281, 0.0
    %v333 = vrot.slane %v332, 4
    %v334 = vadd.f32 %v332, %v333
    %v335 = vrot.slane %v334, 2
    %v336 = vadd.f32 %v334, %v335
    %v337 = vrot.slane %v336, 1
    %v338 = vadd.f32 %v336, %v337
    %v339 = vsel %vm310, %v282, 0.0
    %v340 = vrot.slane %v339, 4
    %v341 = vadd.f32 %v339, %v340
    %v342 = vrot.slane %v341, 2
    %v343 = vadd.f32 %v341, %v342
    %v344 = vrot.slane %v343, 1
    %v345 = vadd.f32 %v343, %v344
    %v346 = vsel %vm310, %v283, 0.0
    %v347 = vrot.slane %v346, 4
    %v348 = vadd.f32 %v346, %v347
    %v349 = vrot.slane %v348, 2
    %v350 = vadd.f32 %v348, %v349
    %v351 = vrot.slane %v350, 1
    %v352 = vadd.f32 %v350, %v351
    %v353 = vsel %vm310, %v284, 0.0
    %v354 = vrot.slane %v353, 4
    %v355 = vadd.f32 %v353, %v354
    %v356 = vrot.slane %v355, 2
    %v357 = vadd.f32 %v355, %v356
    %v358 = vrot.slane %v357, 1
    %v359 = vadd.f32 %v357, %v358
    %v360 = vsel %vm310, %v285, 0.0
    %v361 = vrot.slane %v360, 4
    %v362 = vadd.f32 %v360, %v361
    %v363 = vrot.slane %v362, 2
    %v364 = vadd.f32 %v362, %v363
    %v365 = vrot.slane %v364, 1
    %v366 = vadd.f32 %v364, %v365
    %v367 = vsel %vm310, %v286, 0.0
    %v368 = vrot.slane %v367, 4
    %v369 = vadd.f32 %v367, %v368
    %v370 = vrot.slane %v369, 2
    %v371 = vadd.f32 %v369, %v370
    %v372 = vrot.slane %v371, 1
    %v373 = vadd.f32 %v371, %v372
    %v374 = vsel %vm310, %v287, 0.0
    %v375 = vrot.slane %v374, 4
    %v376 = vadd.f32 %v374, %v375
    %v377 = vrot.slane %v376, 2
    %v378 = vadd.f32 %v376, %v377
    %v379 = vrot.slane %v378, 1
    %v380 = vadd.f32 %v378, %v379
    %v381 = vsel %vm310, %v288, 0.0
    %v382 = vrot.slane %v381, 4
    %v383 = vadd.f32 %v381, %v382
    %v384 = vrot.slane %v383, 2
    %v385 = vadd.f32 %v383, %v384
    %v386 = vrot.slane %v385, 1
    %v387 = vadd.f32 %v385, %v386
    %v388 = vsel %vm310, %v289, 0.0
    %v389 = vrot.slane %v388, 4
    %v390 = vadd.f32 %v388, %v389
    %v391 = vrot.slane %v390, 2
    %v392 = vadd.f32 %v390, %v391
    %v393 = vrot.slane %v392, 1
    %v394 = vadd.f32 %v392, %v393
    %v395 = vsel %vm310, %v290, 0.0
    %v396 = vrot.slane %v395, 4
    %v397 = vadd.f32 %v395, %v396
    %v398 = vrot.slane %v397, 2
    %v399 = vadd.f32 %v397, %v398
    %v400 = vrot.slane %v399, 1
    %v401 = vadd.f32 %v399, %v400
    %v402 = vsel %vm310, %v291, 0.0
    %v403 = vrot.slane %v402, 4
    %v404 = vadd.f32 %v402, %v403
    %v405 = vrot.slane %v404, 2
    %v406 = vadd.f32 %v404, %v405
    %v407 = vrot.slane %v406, 1
    %v408 = vadd.f32 %v406, %v407
    %v409 = vsel %vm310, %v292, 0.0
    %v410 = vrot.slane %v409, 4
    %v411 = vadd.f32 %v409, %v410
    %v412 = vrot.slane %v411, 2
    %v413 = vadd.f32 %v411, %v412
    %v414 = vrot.slane %v413, 1
    %v415 = vadd.f32 %v413, %v414
    %v416 = vsel %vm310, %v293, 0.0
    %v417 = vrot.slane %v416, 4
    %v418 = vadd.f32 %v416, %v417
    %v419 = vrot.slane %v418, 2
    %v420 = vadd.f32 %v418, %v419
    %v421 = vrot.slane %v420, 1
    %v422 = vadd.f32 %v420, %v421
    %v423 = vsel %vm310, %v294, 0.0
    %v424 = vrot.slane %v423, 4
    %v425 = vadd.f32 %v423, %v424
    %v426 = vrot.slane %v425, 2
    %v427 = vadd.f32 %v425, %v426
    %v428 = vrot.slane %v427, 1
    %v429 = vadd.f32 %v427, %v428
    %v430 = vsel %vm310, %v295, 0.0
    %v431 = vrot.slane %v430, 4
    %v432 = vadd.f32 %v430, %v431
    %v433 = vrot.slane %v432, 2
    %v434 = vadd.f32 %v432, %v433
    %v435 = vrot.slane %v434, 1
    %v436 = vadd.f32 %v434, %v435
    %v437 = vsel %vm310, %v296, 0.0
    %v438 = vrot.slane %v437, 4
    %v439 = vadd.f32 %v437, %v438
    %v440 = vrot.slane %v439, 2
    %v441 = vadd.f32 %v439, %v440
    %v442 = vrot.slane %v441, 1
    %v443 = vadd.f32 %v441, %v442
    %v444 = vsel %vm310, %v297, 0.0
    %v445 = vrot.slane %v444, 4
    %v446 = vadd.f32 %v444, %v445
    %v447 = vrot.slane %v446, 2
    %v448 = vadd.f32 %v446, %v447
    %v449 = vrot.slane %v448, 1
    %v450 = vadd.f32 %v448, %v449
    %v451 = vsel %vm310, %v298, 0.0
    %v452 = vrot.slane %v451, 4
    %v453 = vadd.f32 %v451, %v452
    %v454 = vrot.slane %v453, 2
    %v455 = vadd.f32 %v453, %v454
    %v456 = vrot.slane %v455, 1
    %v457 = vadd.f32 %v455, %v456
    %v458 = vsel %vm310, %v299, 0.0
    %v459 = vrot.slane %v458, 4
    %v460 = vadd.f32 %v458, %v459
    %v461 = vrot.slane %v460, 2
    %v462 = vadd.f32 %v460, %v461
    %v463 = vrot.slane %v462, 1
    %v464 = vadd.f32 %v462, %v463
    %v465 = vsel %vm310, %v300, 0.0
    %v466 = vrot.slane %v465, 4
    %v467 = vadd.f32 %v465, %v466
    %v468 = vrot.slane %v467, 2
    %v469 = vadd.f32 %v467, %v468
    %v470 = vrot.slane %v469, 1
    %v471 = vadd.f32 %v469, %v470
    %v472 = vsel %vm310, %v301, 0.0
    %v473 = vrot.slane %v472, 4
    %v474 = vadd.f32 %v472, %v473
    %v475 = vrot.slane %v474, 2
    %v476 = vadd.f32 %v474, %v475
    %v477 = vrot.slane %v476, 1
    %v478 = vadd.f32 %v476, %v477
    %v479 = vsel %vm310, %v302, 0.0
    %v480 = vrot.slane %v479, 4
    %v481 = vadd.f32 %v479, %v480
    %v482 = vrot.slane %v481, 2
    %v483 = vadd.f32 %v481, %v482
    %v484 = vrot.slane %v483, 1
    %v485 = vadd.f32 %v483, %v484
    %v486 = vsel %vm310, %v303, 0.0
    %v487 = vrot.slane %v486, 4
    %v488 = vadd.f32 %v486, %v487
    %v489 = vrot.slane %v488, 2
    %v490 = vadd.f32 %v488, %v489
    %v491 = vrot.slane %v490, 1
    %v492 = vadd.f32 %v490, %v491
    %v493 = vsel %vm310, %v304, 0.0
    %v494 = vrot.slane %v493, 4
    %v495 = vadd.f32 %v493, %v494
    %v496 = vrot.slane %v495, 2
    %v497 = vadd.f32 %v495, %v496
    %v498 = vrot.slane %v497, 1
    %v499 = vadd.f32 %v497, %v498
    %v500 = vsel %vm310, %v305, 0.0
    %v501 = vrot.slane %v500, 4
    %v502 = vadd.f32 %v500, %v501
    %v503 = vrot.slane %v502, 2
    %v504 = vadd.f32 %v502, %v503
    %v505 = vrot.slane %v504, 1
    %v506 = vadd.f32 %v504, %v505
    %v507 = vsel %vm310, %v306, 0.0
    %v508 = vrot.slane %v507, 4
    %v509 = vadd.f32 %v507, %v508
    %v510 = vrot.slane %v509, 2
    %v511 = vadd.f32 %v509, %v510
    %v512 = vrot.slane %v511, 1
    %v513 = vadd.f32 %v511, %v512
    %v514 = vsel %vm310, %v307, 0.0
    %v515 = vrot.slane %v514, 4
    %v516 = vadd.f32 %v514, %v515
    %v517 = vrot.slane %v516, 2
    %v518 = vadd.f32 %v516, %v517
    %v519 = vrot.slane %v518, 1
    %v520 = vadd.f32 %v518, %v519
    %v521 = vsel %vm310, %v308, 0.0
    %v522 = vrot.slane %v521, 4
    %v523 = vadd.f32 %v521, %v522
    %v524 = vrot.slane %v523, 2
    %v525 = vadd.f32 %v523, %v524
    %v526 = vrot.slane %v525, 1
    %v527 = vadd.f32 %v525, %v526
    %v528 = vsel %vm310, %v309, 0.0
    %v529 = vrot.slane %v528, 4
    %v530 = vadd.f32 %v528, %v529
    %v531 = vrot.slane %v530, 2
    %v532 = vadd.f32 %v530, %v531
    %v533 = vrot.slane %v532, 1
    %v534 = vadd.f32 %v532, %v533
    %v539 = vcombine.high %v228, %v228
    %v540 = vcombine.high %v231, %v231
    %v541 = vcombine.high %v236, %v236
    %v542 = vcombine.high %v239, %v239
    %547 = vrot.lane.b32.xlu0 %v228, 96
    %v548 = vpop.permute.xlu0 %547
    %549 = vrot.lane.b32.xlu0 %v539, 96
    %v550 = vpop.permute.xlu0 %549
    %551 = vrot.lane.b32.xlu0 %v231, 96
    %v552 = vpop.permute.xlu0 %551
    %553 = vrot.lane.b32.xlu0 %v540, 96
    %v554 = vpop.permute.xlu0 %553
    %555 = vrot.lane.b32.xlu0 %v236, 96
    %v556 = vpop.permute.xlu0 %555
    %557 = vrot.lane.b32.xlu0 %v541, 96
    %v558 = vpop.permute.xlu0 %557
    %559 = vrot.lane.b32.xlu0 %v239, 96
    %v560 = vpop.permute.xlu0 %559
    %561 = vrot.lane.b32.xlu0 %v542, 96
    %v562 = vpop.permute.xlu0 %561
    %v571 = vmul.f32 %v228, %v548
    %v572 = vmul.f32 %v228, %v550
    %v573 = vmul.f32 %v228, %v552
    %v574 = vmul.f32 %v228, %v554
    %v575 = vmul.f32 %v539, %v548
    %v576 = vmul.f32 %v539, %v550
    %v577 = vmul.f32 %v539, %v552
    %v578 = vmul.f32 %v539, %v554
    %v579 = vmul.f32 %v231, %v548
    %v580 = vmul.f32 %v231, %v550
    %v581 = vmul.f32 %v231, %v552
    %v582 = vmul.f32 %v231, %v554
    %v583 = vmul.f32 %v540, %v548
    %v584 = vmul.f32 %v540, %v550
    %v585 = vmul.f32 %v540, %v552
    %v586 = vmul.f32 %v540, %v554
    %v587 = vmul.f32 %v236, %v556
    %v588 = vmul.f32 %v236, %v558
    %v589 = vmul.f32 %v236, %v560
    %v590 = vmul.f32 %v236, %v562
    %v591 = vmul.f32 %v541, %v556
    %v592 = vmul.f32 %v541, %v558
    %v593 = vmul.f32 %v541, %v560
    %v594 = vmul.f32 %v541, %v562
    %v595 = vmul.f32 %v239, %v556
    %v596 = vmul.f32 %v239, %v558
    %v597 = vmul.f32 %v239, %v560
    %v598 = vmul.f32 %v239, %v562
    %v599 = vmul.f32 %v542, %v556
    %v600 = vmul.f32 %v542, %v558
    %v601 = vmul.f32 %v542, %v560
    %v602 = vmul.f32 %v542, %v562
    %v603 = vsel %vm310, %v571, 0.0
    %v604 = vrot.slane %v603, 4
    %v605 = vadd.f32 %v603, %v604
    %v606 = vrot.slane %v605, 2
    %v607 = vadd.f32 %v605, %v606
    %v608 = vrot.slane %v607, 1
    %v609 = vadd.f32 %v607, %v608
    %v610 = vsel %vm310, %v572, 0.0
    %v611 = vrot.slane %v610, 4
    %v612 = vadd.f32 %v610, %v611
    %v613 = vrot.slane %v612, 2
    %v614 = vadd.f32 %v612, %v613
    %v615 = vrot.slane %v614, 1
    %v616 = vadd.f32 %v614, %v615
    %v617 = vsel %vm310, %v573, 0.0
    %v618 = vrot.slane %v617, 4
    %v619 = vadd.f32 %v617, %v618
    %v620 = vrot.slane %v619, 2
    %v621 = vadd.f32 %v619, %v620
    %v622 = vrot.slane %v621, 1
    %v623 = vadd.f32 %v621, %v622
    %v624 = vsel %vm310, %v574, 0.0
    %v625 = vrot.slane %v624, 4
    %v626 = vadd.f32 %v624, %v625
    %v627 = vrot.slane %v626, 2
    %v628 = vadd.f32 %v626, %v627
    %v629 = vrot.slane %v628, 1
    %v630 = vadd.f32 %v628, %v629
    %v631 = vsel %vm310, %v575, 0.0
    %v632 = vrot.slane %v631, 4
    %v633 = vadd.f32 %v631, %v632
    %v634 = vrot.slane %v633, 2
    %v635 = vadd.f32 %v633, %v634
    %v636 = vrot.slane %v635, 1
    %v637 = vadd.f32 %v635, %v636
    %v638 = vsel %vm310, %v576, 0.0
    %v639 = vrot.slane %v638, 4
    %v640 = vadd.f32 %v638, %v639
    %v641 = vrot.slane %v640, 2
    %v642 = vadd.f32 %v640, %v641
    %v643 = vrot.slane %v642, 1
    %v644 = vadd.f32 %v642, %v643
    %v645 = vsel %vm310, %v577, 0.0
    %v646 = vrot.slane %v645, 4
    %v647 = vadd.f32 %v645, %v646
    %v648 = vrot.slane %v647, 2
    %v649 = vadd.f32 %v647, %v648
    %v650 = vrot.slane %v649, 1
    %v651 = vadd.f32 %v649, %v650
    %v652 = vsel %vm310, %v578, 0.0
    %v653 = vrot.slane %v652, 4
    %v654 = vadd.f32 %v652, %v653
    %v655 = vrot.slane %v654, 2
    %v656 = vadd.f32 %v654, %v655
    %v657 = vrot.slane %v656, 1
    %v658 = vadd.f32 %v656, %v657
    %v659 = vsel %vm310, %v579, 0.0
    %v660 = vrot.slane %v659, 4
    %v661 = vadd.f32 %v659, %v660
    %v662 = vrot.slane %v661, 2
    %v663 = vadd.f32 %v661, %v662
    %v664 = vrot.slane %v663, 1
    %v665 = vadd.f32 %v663, %v664
    %v666 = vsel %vm310, %v580, 0.0
    %v667 = vrot.slane %v666, 4
    %v668 = vadd.f32 %v666, %v667
    %v669 = vrot.slane %v668, 2
    %v670 = vadd.f32 %v668, %v669
    %v671 = vrot.slane %v670, 1
    %v672 = vadd.f32 %v670, %v671
    %v673 = vsel %vm310, %v581, 0.0
    %v674 = vrot.slane %v673, 4
    %v675 = vadd.f32 %v673, %v674
    %v676 = vrot.slane %v675, 2
    %v677 = vadd.f32 %v675, %v676
    %v678 = vrot.slane %v677, 1
    %v679 = vadd.f32 %v677, %v678
    %v680 = vsel %vm310, %v582, 0.0
    %v681 = vrot.slane %v680, 4
    %v682 = vadd.f32 %v680, %v681
    %v683 = vrot.slane %v682, 2
    %v684 = vadd.f32 %v682, %v683
    %v685 = vrot.slane %v684, 1
    %v686 = vadd.f32 %v684, %v685
    %v687 = vsel %vm310, %v583, 0.0
    %v688 = vrot.slane %v687, 4
    %v689 = vadd.f32 %v687, %v688
    %v690 = vrot.slane %v689, 2
    %v691 = vadd.f32 %v689, %v690
    %v692 = vrot.slane %v691, 1
    %v693 = vadd.f32 %v691, %v692
    %v694 = vsel %vm310, %v584, 0.0
    %v695 = vrot.slane %v694, 4
    %v696 = vadd.f32 %v694, %v695
    %v697 = vrot.slane %v696, 2
    %v698 = vadd.f32 %v696, %v697
    %v699 = vrot.slane %v698, 1
    %v700 = vadd.f32 %v698, %v699
    %v701 = vsel %vm310, %v585, 0.0
    %v702 = vrot.slane %v701, 4
    %v703 = vadd.f32 %v701, %v702
    %v704 = vrot.slane %v703, 2
    %v705 = vadd.f32 %v703, %v704
    %v706 = vrot.slane %v705, 1
    %v707 = vadd.f32 %v705, %v706
    %v708 = vsel %vm310, %v586, 0.0
    %v709 = vrot.slane %v708, 4
    %v710 = vadd.f32 %v708, %v709
    %v711 = vrot.slane %v710, 2
    %v712 = vadd.f32 %v710, %v711
    %v713 = vrot.slane %v712, 1
    %v714 = vadd.f32 %v712, %v713
    %v715 = vsel %vm310, %v587, 0.0
    %v716 = vrot.slane %v715, 4
    %v717 = vadd.f32 %v715, %v716
    %v718 = vrot.slane %v717, 2
    %v719 = vadd.f32 %v717, %v718
    %v720 = vrot.slane %v719, 1
    %v721 = vadd.f32 %v719, %v720
    %v722 = vsel %vm310, %v588, 0.0
    %v723 = vrot.slane %v722, 4
    %v724 = vadd.f32 %v722, %v723
    %v725 = vrot.slane %v724, 2
    %v726 = vadd.f32 %v724, %v725
    %v727 = vrot.slane %v726, 1
    %v728 = vadd.f32 %v726, %v727
    %v729 = vsel %vm310, %v589, 0.0
    %v730 = vrot.slane %v729, 4
    %v731 = vadd.f32 %v729, %v730
    %v732 = vrot.slane %v731, 2
    %v733 = vadd.f32 %v731, %v732
    %v734 = vrot.slane %v733, 1
    %v735 = vadd.f32 %v733, %v734
    %v736 = vsel %vm310, %v590, 0.0
    %v737 = vrot.slane %v736, 4
    %v738 = vadd.f32 %v736, %v737
    %v739 = vrot.slane %v738, 2
    %v740 = vadd.f32 %v738, %v739
    %v741 = vrot.slane %v740, 1
    %v742 = vadd.f32 %v740, %v741
    %v743 = vsel %vm310, %v591, 0.0
    %v744 = vrot.slane %v743, 4
    %v745 = vadd.f32 %v743, %v744
    %v746 = vrot.slane %v745, 2
    %v747 = vadd.f32 %v745, %v746
    %v748 = vrot.slane %v747, 1
    %v749 = vadd.f32 %v747, %v748
    %v750 = vsel %vm310, %v592, 0.0
    %v751 = vrot.slane %v750, 4
    %v752 = vadd.f32 %v750, %v751
    %v753 = vrot.slane %v752, 2
    %v754 = vadd.f32 %v752, %v753
    %v755 = vrot.slane %v754, 1
    %v756 = vadd.f32 %v754, %v755
    %v757 = vsel %vm310, %v593, 0.0
    %v758 = vrot.slane %v757, 4
    %v759 = vadd.f32 %v757, %v758
    %v760 = vrot.slane %v759, 2
    %v761 = vadd.f32 %v759, %v760
    %v762 = vrot.slane %v761, 1
    %v763 = vadd.f32 %v761, %v762
    %v764 = vsel %vm310, %v594, 0.0
    %v765 = vrot.slane %v764, 4
    %v766 = vadd.f32 %v764, %v765
    %v767 = vrot.slane %v766, 2
    %v768 = vadd.f32 %v766, %v767
    %v769 = vrot.slane %v768, 1
    %v770 = vadd.f32 %v768, %v769
    %v771 = vsel %vm310, %v595, 0.0
    %v772 = vrot.slane %v771, 4
    %v773 = vadd.f32 %v771, %v772
    %v774 = vrot.slane %v773, 2
    %v775 = vadd.f32 %v773, %v774
    %v776 = vrot.slane %v775, 1
    %v777 = vadd.f32 %v775, %v776
    %v778 = vsel %vm310, %v596, 0.0
    %v779 = vrot.slane %v778, 4
    %v780 = vadd.f32 %v778, %v779
    %v781 = vrot.slane %v780, 2
    %v782 = vadd.f32 %v780, %v781
    %v783 = vrot.slane %v782, 1
    %v784 = vadd.f32 %v782, %v783
    %v785 = vsel %vm310, %v597, 0.0
    %v786 = vrot.slane %v785, 4
    %v787 = vadd.f32 %v785, %v786
    %v788 = vrot.slane %v787, 2
    %v789 = vadd.f32 %v787, %v788
    %v790 = vrot.slane %v789, 1
    %v791 = vadd.f32 %v789, %v790
    %v792 = vsel %vm310, %v598, 0.0
    %v793 = vrot.slane %v792, 4
    %v794 = vadd.f32 %v792, %v793
    %v795 = vrot.slane %v794, 2
    %v796 = vadd.f32 %v794, %v795
    %v797 = vrot.slane %v796, 1
    %v798 = vadd.f32 %v796, %v797
    %v799 = vsel %vm310, %v599, 0.0
    %v800 = vrot.slane %v799, 4
    %v801 = vadd.f32 %v799, %v800
    %v802 = vrot.slane %v801, 2
    %v803 = vadd.f32 %v801, %v802
    %v804 = vrot.slane %v803, 1
    %v805 = vadd.f32 %v803, %v804
    %v806 = vsel %vm310, %v600, 0.0
    %v807 = vrot.slane %v806, 4
    %v808 = vadd.f32 %v806, %v807
    %v809 = vrot.slane %v808, 2
    %v810 = vadd.f32 %v808, %v809
    %v811 = vrot.slane %v810, 1
    %v812 = vadd.f32 %v810, %v811
    %v813 = vsel %vm310, %v601, 0.0
    %v814 = vrot.slane %v813, 4
    %v815 = vadd.f32 %v813, %v814
    %v816 = vrot.slane %v815, 2
    %v817 = vadd.f32 %v815, %v816
    %v818 = vrot.slane %v817, 1
    %v819 = vadd.f32 %v817, %v818
    %v820 = vsel %vm310, %v602, 0.0
    %v821 = vrot.slane %v820, 4
    %v822 = vadd.f32 %v820, %v821
    %v823 = vrot.slane %v822, 2
    %v824 = vadd.f32 %v822, %v823
    %v825 = vrot.slane %v824, 1
    %v826 = vadd.f32 %v824, %v825
    %v827 = vadd.f32 %v317, %v609
    %v828 = vadd.f32 %v324, %v616
    %v829 = vadd.f32 %v331, %v623
    %v830 = vadd.f32 %v338, %v630
    %v831 = vadd.f32 %v345, %v637
    %v832 = vadd.f32 %v352, %v644
    %v833 = vadd.f32 %v359, %v651
    %v834 = vadd.f32 %v366, %v658
    %v835 = vadd.f32 %v373, %v665
    %v836 = vadd.f32 %v380, %v672
    %v837 = vadd.f32 %v387, %v679
    %v838 = vadd.f32 %v394, %v686
    %v839 = vadd.f32 %v401, %v693
    %v840 = vadd.f32 %v408, %v700
    %v841 = vadd.f32 %v415, %v707
    %v842 = vadd.f32 %v422, %v714
    %v843 = vadd.f32 %v429, %v721
    %v844 = vadd.f32 %v436, %v728
    %v845 = vadd.f32 %v443, %v735
    %v846 = vadd.f32 %v450, %v742
    %v847 = vadd.f32 %v457, %v749
    %v848 = vadd.f32 %v464, %v756
    %v849 = vadd.f32 %v471, %v763
    %v850 = vadd.f32 %v478, %v770
    %v851 = vadd.f32 %v485, %v777
    %v852 = vadd.f32 %v492, %v784
    %v853 = vadd.f32 %v499, %v791
    %v854 = vadd.f32 %v506, %v798
    %v855 = vadd.f32 %v513, %v805
    %v856 = vadd.f32 %v520, %v812
    %v857 = vadd.f32 %v527, %v819
    %v858 = vadd.f32 %v534, %v826
    %v859 = vsel %vm108, %v827, -inf
    %v860 = vsel %vm108, %v828, -inf
    %v861 = vmax.f32 %v859, %v860
    %v862 = vsel %vm108, %v829, -inf
    %v863 = vmax.f32 %v861, %v862
    %v864 = vsel %vm108, %v830, -inf
    %v865 = vmax.f32 %v863, %v864
    %v866 = vsel %vm108, %v831, -inf
    %v867 = vsel %vm108, %v832, -inf
    %v868 = vmax.f32 %v866, %v867
    %v869 = vsel %vm108, %v833, -inf
    %v870 = vmax.f32 %v868, %v869
    %v871 = vsel %vm108, %v834, -inf
    %v872 = vmax.f32 %v870, %v871
    %v873 = vsel %vm108, %v835, -inf
    %v874 = vsel %vm108, %v836, -inf
    %v875 = vmax.f32 %v873, %v874
    %v876 = vsel %vm108, %v837, -inf
    %v877 = vmax.f32 %v875, %v876
    %v878 = vsel %vm108, %v838, -inf
    %v879 = vmax.f32 %v877, %v878
    %v880 = vsel %vm108, %v839, -inf
    %v881 = vsel %vm108, %v840, -inf
    %v882 = vmax.f32 %v880, %v881
    %v883 = vsel %vm108, %v841, -inf
    %v884 = vmax.f32 %v882, %v883
    %v885 = vsel %vm108, %v842, -inf
    %v886 = vmax.f32 %v884, %v885
    %v887 = vsel %vm108, %v843, -inf
    %v888 = vsel %vm108, %v844, -inf
    %v889 = vmax.f32 %v887, %v888
    %v890 = vsel %vm108, %v845, -inf
    %v891 = vmax.f32 %v889, %v890
    %v892 = vsel %vm108, %v846, -inf
    %v893 = vmax.f32 %v891, %v892
    %v894 = vsel %vm108, %v847, -inf
    %v895 = vsel %vm108, %v848, -inf
    %v896 = vmax.f32 %v894, %v895
    %v897 = vsel %vm108, %v849, -inf
    %v898 = vmax.f32 %v896, %v897
    %v899 = vsel %vm108, %v850, -inf
    %v900 = vmax.f32 %v898, %v899
    %v901 = vsel %vm108, %v851, -inf
    %v902 = vsel %vm108, %v852, -inf
    %v903 = vmax.f32 %v901, %v902
    %v904 = vsel %vm108, %v853, -inf
    %v905 = vmax.f32 %v903, %v904
    %v906 = vsel %vm108, %v854, -inf
    %v907 = vmax.f32 %v905, %v906
    %v908 = vsel %vm108, %v855, -inf
    %v909 = vsel %vm108, %v856, -inf
    %v910 = vmax.f32 %v908, %v909
    %v911 = vsel %vm108, %v857, -inf
    %v912 = vmax.f32 %v910, %v911
    %v913 = vsel %vm108, %v858, -inf
    %v914 = vmax.f32 %v912, %v913
    %v915 = vsub.f32 %v827, %v865
    %v916 = vsub.f32 %v828, %v865
    %v917 = vsub.f32 %v829, %v865
    %v918 = vsub.f32 %v830, %v865
    %v919 = vsub.f32 %v831, %v872
    %v920 = vsub.f32 %v832, %v872
    %v921 = vsub.f32 %v833, %v872
    %v922 = vsub.f32 %v834, %v872
    %v923 = vsub.f32 %v835, %v879
    %v924 = vsub.f32 %v836, %v879
    %v925 = vsub.f32 %v837, %v879
    %v926 = vsub.f32 %v838, %v879
    %v927 = vsub.f32 %v839, %v886
    %v928 = vsub.f32 %v840, %v886
    %v929 = vsub.f32 %v841, %v886
    %v930 = vsub.f32 %v842, %v886
    %v931 = vsub.f32 %v843, %v893
    %v932 = vsub.f32 %v844, %v893
    %v933 = vsub.f32 %v845, %v893
    %v934 = vsub.f32 %v846, %v893
    %v935 = vsub.f32 %v847, %v900
    %v936 = vsub.f32 %v848, %v900
    %v937 = vsub.f32 %v849, %v900
    %v938 = vsub.f32 %v850, %v900
    %v939 = vsub.f32 %v851, %v907
    %v940 = vsub.f32 %v852, %v907
    %v941 = vsub.f32 %v853, %v907
    %v942 = vsub.f32 %v854, %v907
    %v943 = vsub.f32 %v855, %v914
    %v944 = vsub.f32 %v856, %v914
    %v945 = vsub.f32 %v857, %v914
    %v946 = vsub.f32 %v858, %v914
    %v947 = vmul.f32 %v915, 1.442695
    %v948 = vpow.pop %v947
    %v949 = vmul.f32 %v916, 1.442695
    %v950 = vpow.pop %v949
    %v951 = vmul.f32 %v917, 1.442695
    %v952 = vpow.pop %v951
    %v953 = vmul.f32 %v918, 1.442695
    %v954 = vpow.pop %v953
    %v955 = vmul.f32 %v919, 1.442695
    %v956 = vpow.pop %v955
    %v957 = vmul.f32 %v920, 1.442695
    %v958 = vpow.pop %v957
    %v959 = vmul.f32 %v921, 1.442695
    %v960 = vpow.pop %v959
    %v961 = vmul.f32 %v922, 1.442695
    %v962 = vpow.pop %v961
    %v963 = vmul.f32 %v923, 1.442695
    %v964 = vpow.pop %v963
    %v965 = vmul.f32 %v924, 1.442695
    %v966 = vpow.pop %v965
    %v967 = vmul.f32 %v925, 1.442695
    %v968 = vpow.pop %v967
    %v969 = vmul.f32 %v926, 1.442695
    %v970 = vpow.pop %v969
    %v971 = vmul.f32 %v927, 1.442695
    %v972 = vpow.pop %v971
    %v973 = vmul.f32 %v928, 1.442695
    %v974 = vpow.pop %v973
    %v975 = vmul.f32 %v929, 1.442695
    %v976 = vpow.pop %v975
    %v977 = vmul.f32 %v930, 1.442695
    %v978 = vpow.pop %v977
    %v979 = vmul.f32 %v931, 1.442695
    %v980 = vpow.pop %v979
    %v981 = vmul.f32 %v932, 1.442695
    %v982 = vpow.pop %v981
    %v983 = vmul.f32 %v933, 1.442695
    %v984 = vpow.pop %v983
    %v985 = vmul.f32 %v934, 1.442695
    %v986 = vpow.pop %v985
    %v987 = vmul.f32 %v935, 1.442695
    %v988 = vpow.pop %v987
    %v989 = vmul.f32 %v936, 1.442695
    %v990 = vpow.pop %v989
    %v991 = vmul.f32 %v937, 1.442695
    %v992 = vpow.pop %v991
    %v993 = vmul.f32 %v938, 1.442695
    %v994 = vpow.pop %v993
    %v995 = vmul.f32 %v939, 1.442695
    %v996 = vpow.pop %v995
    %v997 = vmul.f32 %v940, 1.442695
    %v998 = vpow.pop %v997
    %v999 = vmul.f32 %v941, 1.442695
    %v1000 = vpow.pop %v999
    %v1001 = vmul.f32 %v942, 1.442695
    %v1002 = vpow.pop %v1001
    %v1003 = vmul.f32 %v943, 1.442695
    %v1004 = vpow.pop %v1003
    %v1005 = vmul.f32 %v944, 1.442695
    %v1006 = vpow.pop %v1005
    %v1007 = vmul.f32 %v945, 1.442695
    %v1008 = vpow.pop %v1007
    %v1009 = vmul.f32 %v946, 1.442695
    %v1010 = vpow.pop %v1009
    %v1043 = vrot.slane %v950, 7
    %vm1044 = vcmask 1041409
    %v1045 = vsel %vm1044, %v1043, %v948
    %v1046 = vrot.slane %v952, 6
    %vm1047 = vcmask 1042434
    %v1048 = vsel %vm1047, %v1046, %v1045
    %v1049 = vrot.slane %v954, 5
    %vm1050 = vcmask 1043459
    %v1051 = vsel %vm1050, %v1049, %v1048
    %v1052 = vrot.slane %v958, 7
    %v1053 = vsel %vm1044, %v1052, %v956
    %v1054 = vrot.slane %v960, 6
    %v1055 = vsel %vm1047, %v1054, %v1053
    %v1056 = vrot.slane %v962, 5
    %v1057 = vsel %vm1050, %v1056, %v1055
    %v1058 = vrot.slane %v966, 7
    %v1059 = vsel %vm1044, %v1058, %v964
    %v1060 = vrot.slane %v968, 6
    %v1061 = vsel %vm1047, %v1060, %v1059
    %v1062 = vrot.slane %v970, 5
    %v1063 = vsel %vm1050, %v1062, %v1061
    %v1064 = vrot.slane %v974, 7
    %v1065 = vsel %vm1044, %v1064, %v972
    %v1066 = vrot.slane %v976, 6
    %v1067 = vsel %vm1047, %v1066, %v1065
    %v1068 = vrot.slane %v978, 5
    %v1069 = vsel %vm1050, %v1068, %v1067
    %v1070 = vrot.slane %v982, 7
    %v1071 = vsel %vm1044, %v1070, %v980
    %v1072 = vrot.slane %v984, 6
    %v1073 = vsel %vm1047, %v1072, %v1071
    %v1074 = vrot.slane %v986, 5
    %v1075 = vsel %vm1050, %v1074, %v1073
    %v1076 = vrot.slane %v990, 7
    %v1077 = vsel %vm1044, %v1076, %v988
    %v1078 = vrot.slane %v992, 6
    %v1079 = vsel %vm1047, %v1078, %v1077
    %v1080 = vrot.slane %v994, 5
    %v1081 = vsel %vm1050, %v1080, %v1079
    %v1082 = vrot.slane %v998, 7
    %v1083 = vsel %vm1044, %v1082, %v996
    %v1084 = vrot.slane %v1000, 6
    %v1085 = vsel %vm1047, %v1084, %v1083
    %v1086 = vrot.slane %v1002, 5
    %v1087 = vsel %vm1050, %v1086, %v1085
    %v1088 = vrot.slane %v1006, 7
    %v1089 = vsel %vm1044, %v1088, %v1004
    %v1090 = vrot.slane %v1008, 6
    %v1091 = vsel %vm1047, %v1090, %v1089
    %v1092 = vrot.slane %v1010, 5
    %v1093 = vsel %vm1050, %v1092, %v1091
    %v1102 = vsel %vm310, %v1051, 0.0
    %v1103 = vrot.slane %v1102, 4
    %v1104 = vadd.f32 %v1102, %v1103
    %v1105 = vrot.slane %v1104, 2
    %v1106 = vadd.f32 %v1104, %v1105
    %v1107 = vrot.slane %v1106, 1
    %v1108 = vadd.f32 %v1106, %v1107
    %v1109 = vsel %vm310, %v1057, 0.0
    %v1110 = vrot.slane %v1109, 4
    %v1111 = vadd.f32 %v1109, %v1110
    %v1112 = vrot.slane %v1111, 2
    %v1113 = vadd.f32 %v1111, %v1112
    %v1114 = vrot.slane %v1113, 1
    %v1115 = vadd.f32 %v1113, %v1114
    %v1116 = vsel %vm310, %v1063, 0.0
    %v1117 = vrot.slane %v1116, 4
    %v1118 = vadd.f32 %v1116, %v1117
    %v1119 = vrot.slane %v1118, 2
    %v1120 = vadd.f32 %v1118, %v1119
    %v1121 = vrot.slane %v1120, 1
    %v1122 = vadd.f32 %v1120, %v1121
    %v1123 = vsel %vm310, %v1069, 0.0
    %v1124 = vrot.slane %v1123, 4
    %v1125 = vadd.f32 %v1123, %v1124
    %v1126 = vrot.slane %v1125, 2
    %v1127 = vadd.f32 %v1125, %v1126
    %v1128 = vrot.slane %v1127, 1
    %v1129 = vadd.f32 %v1127, %v1128
    %v1130 = vsel %vm310, %v1075, 0.0
    %v1131 = vrot.slane %v1130, 4
    %v1132 = vadd.f32 %v1130, %v1131
    %v1133 = vrot.slane %v1132, 2
    %v1134 = vadd.f32 %v1132, %v1133
    %v1135 = vrot.slane %v1134, 1
    %v1136 = vadd.f32 %v1134, %v1135
    %v1137 = vsel %vm310, %v1081, 0.0
    %v1138 = vrot.slane %v1137, 4
    %v1139 = vadd.f32 %v1137, %v1138
    %v1140 = vrot.slane %v1139, 2
    %v1141 = vadd.f32 %v1139, %v1140
    %v1142 = vrot.slane %v1141, 1
    %v1143 = vadd.f32 %v1141, %v1142
    %v1144 = vsel %vm310, %v1087, 0.0
    %v1145 = vrot.slane %v1144, 4
    %v1146 = vadd.f32 %v1144, %v1145
    %v1147 = vrot.slane %v1146, 2
    %v1148 = vadd.f32 %v1146, %v1147
    %v1149 = vrot.slane %v1148, 1
    %v1150 = vadd.f32 %v1148, %v1149
    %v1151 = vsel %vm310, %v1093, 0.0
    %v1152 = vrot.slane %v1151, 4
    %v1153 = vadd.f32 %v1151, %v1152
    %v1154 = vrot.slane %v1153, 2
    %v1155 = vadd.f32 %v1153, %v1154
    %v1156 = vrot.slane %v1155, 1
    %v1157 = vadd.f32 %v1155, %v1156
    %v1158 = vrcp.pop %v1108
    %v1159 = vrcp.pop %v1115
    %v1160 = vrcp.pop %v1122
    %v1161 = vrcp.pop %v1129
    %v1162 = vrcp.pop %v1136
    %v1163 = vrcp.pop %v1143
    %v1164 = vrcp.pop %v1150
    %v1165 = vrcp.pop %v1157
    %v1166 = vlaneseq
    %v1167 = vshrl.u32 %v1166, 7
    %v1168 = vsub.s32 0, %v1167
    %v1169 = vrot.slane %v1158, %v1168
    %v1170 = vlaneseq
    %v1171 = vshrl.u32 %v1170, 7
    %v1172 = vsub.s32 0, %v1171
    %v1173 = vrot.slane %v1159, %v1172
    %v1174 = vlaneseq
    %v1175 = vshrl.u32 %v1174, 7
    %v1176 = vsub.s32 0, %v1175
    %v1177 = vrot.slane %v1160, %v1176
    %v1178 = vlaneseq
    %v1179 = vshrl.u32 %v1178, 7
    %v1180 = vsub.s32 0, %v1179
    %v1181 = vrot.slane %v1161, %v1180
    %v1182 = vlaneseq
    %v1183 = vshrl.u32 %v1182, 7
    %v1184 = vsub.s32 0, %v1183
    %v1185 = vrot.slane %v1162, %v1184
    %v1186 = vlaneseq
    %v1187 = vshrl.u32 %v1186, 7
    %v1188 = vsub.s32 0, %v1187
    %v1189 = vrot.slane %v1163, %v1188
    %v1190 = vlaneseq
    %v1191 = vshrl.u32 %v1190, 7
    %v1192 = vsub.s32 0, %v1191
    %v1193 = vrot.slane %v1164, %v1192
    %v1194 = vlaneseq
    %v1195 = vshrl.u32 %v1194, 7
    %v1196 = vsub.s32 0, %v1195
    %v1197 = vrot.slane %v1165, %v1196
    %v1198 = vmul.f32 %v948, %v1169
    %v1199 = vmul.f32 %v950, %v1169
    %v1200 = vmul.f32 %v952, %v1169
    %v1201 = vmul.f32 %v954, %v1169
    %v1202 = vmul.f32 %v956, %v1173
    %v1203 = vmul.f32 %v958, %v1173
    %v1204 = vmul.f32 %v960, %v1173
    %v1205 = vmul.f32 %v962, %v1173
    %v1206 = vmul.f32 %v964, %v1177
    %v1207 = vmul.f32 %v966, %v1177
    %v1208 = vmul.f32 %v968, %v1177
    %v1209 = vmul.f32 %v970, %v1177
    %v1210 = vmul.f32 %v972, %v1181
    %v1211 = vmul.f32 %v974, %v1181
    %v1212 = vmul.f32 %v976, %v1181
    %v1213 = vmul.f32 %v978, %v1181
    %v1214 = vmul.f32 %v980, %v1185
    %v1215 = vmul.f32 %v982, %v1185
    %v1216 = vmul.f32 %v984, %v1185
    %v1217 = vmul.f32 %v986, %v1185
    %v1218 = vmul.f32 %v988, %v1189
    %v1219 = vmul.f32 %v990, %v1189
    %v1220 = vmul.f32 %v992, %v1189
    %v1221 = vmul.f32 %v994, %v1189
    %v1222 = vmul.f32 %v996, %v1193
    %v1223 = vmul.f32 %v998, %v1193
    %v1224 = vmul.f32 %v1000, %v1193
    %v1225 = vmul.f32 %v1002, %v1193
    %v1226 = vmul.f32 %v1004, %v1197
    %v1227 = vmul.f32 %v1006, %v1197
    %v1228 = vmul.f32 %v1008, %v1197
    %v1229 = vmul.f32 %v1010, %v1197
    %v1230 = vld [vmem:[%s6] sm:$0xf]
    %v1263 = vrot.slane %v1199, 7
    %v1264 = vsel %vm1044, %v1263, %v1198
    %v1265 = vrot.slane %v1200, 6
    %v1266 = vsel %vm1047, %v1265, %v1264
    %v1267 = vrot.slane %v1201, 5
    %v1268 = vsel %vm1050, %v1267, %v1266
    %v1269 = vrot.slane %v1203, 7
    %v1270 = vsel %vm1044, %v1269, %v1202
    %v1271 = vrot.slane %v1204, 6
    %v1272 = vsel %vm1047, %v1271, %v1270
    %v1273 = vrot.slane %v1205, 5
    %v1274 = vsel %vm1050, %v1273, %v1272
    %v1275 = vrot.slane %v1207, 7
    %v1276 = vsel %vm1044, %v1275, %v1206
    %v1277 = vrot.slane %v1208, 6
    %v1278 = vsel %vm1047, %v1277, %v1276
    %v1279 = vrot.slane %v1209, 5
    %v1280 = vsel %vm1050, %v1279, %v1278
    %v1281 = vrot.slane %v1211, 7
    %v1282 = vsel %vm1044, %v1281, %v1210
    %v1283 = vrot.slane %v1212, 6
    %v1284 = vsel %vm1047, %v1283, %v1282
    %v1285 = vrot.slane %v1213, 5
    %v1286 = vsel %vm1050, %v1285, %v1284
    %v1287 = vrot.slane %v1215, 7
    %v1288 = vsel %vm1044, %v1287, %v1214
    %v1289 = vrot.slane %v1216, 6
    %v1290 = vsel %vm1047, %v1289, %v1288
    %v1291 = vrot.slane %v1217, 5
    %v1292 = vsel %vm1050, %v1291, %v1290
    %v1293 = vrot.slane %v1219, 7
    %v1294 = vsel %vm1044, %v1293, %v1218
    %v1295 = vrot.slane %v1220, 6
    %v1296 = vsel %vm1047, %v1295, %v1294
    %v1297 = vrot.slane %v1221, 5
    %v1298 = vsel %vm1050, %v1297, %v1296
    %v1299 = vrot.slane %v1223, 7
    %v1300 = vsel %vm1044, %v1299, %v1222
    %v1301 = vrot.slane %v1224, 6
    %v1302 = vsel %vm1047, %v1301, %v1300
    %v1303 = vrot.slane %v1225, 5
    %v1304 = vsel %vm1050, %v1303, %v1302
    %v1305 = vrot.slane %v1227, 7
    %v1306 = vsel %vm1044, %v1305, %v1226
    %v1307 = vrot.slane %v1228, 6
    %v1308 = vsel %vm1047, %v1307, %v1306
    %v1309 = vrot.slane %v1229, 5
    %v1310 = vsel %vm1050, %v1309, %v1308
    %v1319 = vmul.f32 %v41, %v1268
    %v1320 = vmul.f32 %v42, %v1274
    %v1321 = vmul.f32 %v43, %v1280
    %v1322 = vmul.f32 %v44, %v1286
    %v1323 = vmul.f32 %v45, %v1292
    %v1324 = vmul.f32 %v46, %v1298
    %v1325 = vmul.f32 %v47, %v1304
    %v1326 = vmul.f32 %v48, %v1310
    %v1327 = vlaneseq
    %v1328 = vshrl.u32 %v1327, 7
    %v1329 = vsub.s32 0, %v1328
    %v1330 = vrot.slane %v1230, %v1329
    %v1331 = vmul.f32 %v1319, %v1330
    %v1332 = vmul.f32 %v1320, %v1330
    %v1333 = vmul.f32 %v1321, %v1330
    %v1334 = vmul.f32 %v1322, %v1330
    %v1335 = vmul.f32 %v1323, %v1330
    %v1336 = vmul.f32 %v1324, %v1330
    %v1337 = vmul.f32 %v1325, %v1330
    %v1338 = vmul.f32 %v1326, %v1330
    %v1339 = vadd.f32 %v33, %v1331
    %v1340 = vadd.f32 %v34, %v1332
    %v1341 = vadd.f32 %v35, %v1333
    %v1342 = vadd.f32 %v36, %v1334
    %v1343 = vadd.f32 %v37, %v1335
    %v1344 = vadd.f32 %v38, %v1336
    %v1345 = vadd.f32 %v39, %v1337
    %v1346 = vadd.f32 %v40, %v1338
    %v1347 = vlaneseq
    %v1348 = vshrl.u32 %v1347, 7
    %v1349 = vsub.s32 1, %v1348
    %v1350 = vrot.slane %v1230, %v1349
    %v1351 = vadd.f32 %v1339, %v1350
    %v1352 = vadd.f32 %v1340, %v1350
    %v1353 = vadd.f32 %v1341, %v1350
    %v1354 = vadd.f32 %v1342, %v1350
    %v1355 = vadd.f32 %v1343, %v1350
    %v1356 = vadd.f32 %v1344, %v1350
    %v1357 = vadd.f32 %v1345, %v1350
    %v1358 = vadd.f32 %v1346, %v1350
    %v1359 = vmul.f32 %v33, %v1268
    %v1360 = vmul.f32 %v34, %v1274
    %v1361 = vmul.f32 %v35, %v1280
    %v1362 = vmul.f32 %v36, %v1286
    %v1363 = vmul.f32 %v37, %v1292
    %v1364 = vmul.f32 %v38, %v1298
    %v1365 = vmul.f32 %v39, %v1304
    %v1366 = vmul.f32 %v40, %v1310
    %v1367 = vlaneseq
    %v1368 = vshrl.u32 %v1367, 7
    %v1369 = vsub.s32 2, %v1368
    %v1370 = vrot.slane %v1230, %v1369
    %v1371 = vmul.f32 %v1359, %v1370
    %v1372 = vmul.f32 %v1360, %v1370
    %v1373 = vmul.f32 %v1361, %v1370
    %v1374 = vmul.f32 %v1362, %v1370
    %v1375 = vmul.f32 %v1363, %v1370
    %v1376 = vmul.f32 %v1364, %v1370
    %v1377 = vmul.f32 %v1365, %v1370
    %v1378 = vmul.f32 %v1366, %v1370
    %v1379 = vadd.f32 %v41, %v1371
    %v1380 = vadd.f32 %v42, %v1372
    %v1381 = vadd.f32 %v43, %v1373
    %v1382 = vadd.f32 %v44, %v1374
    %v1383 = vadd.f32 %v45, %v1375
    %v1384 = vadd.f32 %v46, %v1376
    %v1385 = vadd.f32 %v47, %v1377
    %v1386 = vadd.f32 %v48, %v1378
    %v1387 = vlaneseq
    %v1388 = vshrl.u32 %v1387, 7
    %v1389 = vsub.s32 3, %v1388
    %v1390 = vrot.slane %v1230, %v1389
    %v1391 = vadd.f32 %v1379, %v1390
    %v1392 = vadd.f32 %v1380, %v1390
    %v1393 = vadd.f32 %v1381, %v1390
    %v1394 = vadd.f32 %v1382, %v1390
    %v1395 = vadd.f32 %v1383, %v1390
    %v1396 = vadd.f32 %v1384, %v1390
    %v1397 = vadd.f32 %v1385, %v1390
    %v1398 = vadd.f32 %v1386, %v1390
    %1399 = vst.msk [vmem:[#allocation2] sm:$0xf] %vm310, %v1351
    %1400 = vst.msk [vmem:[#allocation2 + $0x4] sm:$0xf] %vm310, %v1352
    %1401 = vst.msk [vmem:[#allocation2 + $0x8] sm:$0xf] %vm310, %v1353
    %1402 = vst.msk [vmem:[#allocation2 + $0xc] sm:$0xf] %vm310, %v1354
    %1403 = vst.msk [vmem:[#allocation2 + $0x10] sm:$0xf] %vm310, %v1355
    %1404 = vst.msk [vmem:[#allocation2 + $0x14] sm:$0xf] %vm310, %v1356
    %1405 = vst.msk [vmem:[#allocation2 + $0x18] sm:$0xf] %vm310, %v1357
    %1406 = vst.msk [vmem:[#allocation2 + $0x1c] sm:$0xf] %vm310, %v1358
    %1407 = vst.msk [vmem:[#allocation4] sm:$0xf] %vm310, %v1391
    %1408 = vst.msk [vmem:[#allocation4 + $0x4] sm:$0xf] %vm310, %v1392
    %1409 = vst.msk [vmem:[#allocation4 + $0x8] sm:$0xf] %vm310, %v1393
    %1410 = vst.msk [vmem:[#allocation4 + $0xc] sm:$0xf] %vm310, %v1394
    %1411 = vst.msk [vmem:[#allocation4 + $0x10] sm:$0xf] %vm310, %v1395
    %1412 = vst.msk [vmem:[#allocation4 + $0x14] sm:$0xf] %vm310, %v1396
    %1413 = vst.msk [vmem:[#allocation4 + $0x18] sm:$0xf] %vm310, %v1397
    %1414 = vst.msk [vmem:[#allocation4 + $0x1c] sm:$0xf] %vm310, %v1398
    %v1415 = vmax.f32 %v1351, 0.0
    %v1416 = vmax.f32 %v1352, 0.0
    %v1417 = vmax.f32 %v1353, 0.0
    %v1418 = vmax.f32 %v1354, 0.0
    %v1419 = vmax.f32 %v1355, 0.0
    %v1420 = vmax.f32 %v1356, 0.0
    %v1421 = vmax.f32 %v1357, 0.0
    %v1422 = vmax.f32 %v1358, 0.0
    %v1423 = vsel %vm310, %v1415, 0.0
    %v1424 = vsel %vm310, %v1416, 0.0
    %v1425 = vadd.f32 %v1423, %v1424
    %v1426 = vsel %vm310, %v1417, 0.0
    %v1427 = vadd.f32 %v1425, %v1426
    %v1428 = vsel %vm310, %v1418, 0.0
    %v1429 = vadd.f32 %v1427, %v1428
    %v1430 = vrot.slane %v1429, 4
    %v1431 = vadd.f32 %v1429, %v1430
    %v1432 = vrot.slane %v1431, 2
    %v1433 = vadd.f32 %v1431, %v1432
    %v1434 = vrot.slane %v1433, 1
    %v1435 = vadd.f32 %v1433, %v1434
    %v1436 = vsel %vm310, %v1419, 0.0
    %v1437 = vsel %vm310, %v1420, 0.0
    %v1438 = vadd.f32 %v1436, %v1437
    %v1439 = vsel %vm310, %v1421, 0.0
    %v1440 = vadd.f32 %v1438, %v1439
    %v1441 = vsel %vm310, %v1422, 0.0
    %v1442 = vadd.f32 %v1440, %v1441
    %v1443 = vrot.slane %v1442, 4
    %v1444 = vadd.f32 %v1442, %v1443
    %v1445 = vrot.slane %v1444, 2
    %v1446 = vadd.f32 %v1444, %v1445
    %v1447 = vrot.slane %v1446, 1
    %v1448 = vadd.f32 %v1446, %v1447
    %v1449 = vrcp.pop 16.0
    %v1450 = vmul.f32 %v1435, %v1449
    %v1451 = vmul.f32 %v1448, %v1449
    %v1454 = vsel %vm1044, %v1451, %v1450
    %vm1456 = vcmask 254976
    %1457 = vst.msk [vmem:[%s9] sm:$0x3] %vm1456, %v1454
    %v1458 = vmax.f32 %v1391, 0.0
    %v1459 = vmax.f32 %v1392, 0.0
    %v1460 = vmax.f32 %v1393, 0.0
    %v1461 = vmax.f32 %v1394, 0.0
    %v1462 = vmax.f32 %v1395, 0.0
    %v1463 = vmax.f32 %v1396, 0.0
    %v1464 = vmax.f32 %v1397, 0.0
    %v1465 = vmax.f32 %v1398, 0.0
    %v1466 = vsel %vm310, %v1458, 0.0
    %v1467 = vsel %vm310, %v1459, 0.0
    %v1468 = vadd.f32 %v1466, %v1467
    %v1469 = vsel %vm310, %v1460, 0.0
    %v1470 = vadd.f32 %v1468, %v1469
    %v1471 = vsel %vm310, %v1461, 0.0
    %v1472 = vadd.f32 %v1470, %v1471
    %v1473 = vrot.slane %v1472, 4
    %v1474 = vadd.f32 %v1472, %v1473
    %v1475 = vrot.slane %v1474, 2
    %v1476 = vadd.f32 %v1474, %v1475
    %v1477 = vrot.slane %v1476, 1
    %v1478 = vadd.f32 %v1476, %v1477
    %v1479 = vsel %vm310, %v1462, 0.0
    %v1480 = vsel %vm310, %v1463, 0.0
    %v1481 = vadd.f32 %v1479, %v1480
    %v1482 = vsel %vm310, %v1464, 0.0
    %v1483 = vadd.f32 %v1481, %v1482
    %v1484 = vsel %vm310, %v1465, 0.0
    %v1485 = vadd.f32 %v1483, %v1484
    %v1486 = vrot.slane %v1485, 4
    %v1487 = vadd.f32 %v1485, %v1486
    %v1488 = vrot.slane %v1487, 2
    %v1489 = vadd.f32 %v1487, %v1488
    %v1490 = vrot.slane %v1489, 1
    %v1491 = vadd.f32 %v1489, %v1490
    %v1492 = vmul.f32 %v1478, %v1449
    %v1493 = vmul.f32 %v1491, %v1449
    %v1496 = vsel %vm1044, %v1493, %v1492
    %1498 = vst.msk [vmem:[%s10] sm:$0x3] %vm1456, %v1496
    // Predicated region
    $region30: #{f3net_forward.15} parent=1 // pred_check
      _
    $region31: #{f3net_forward.15} parent=1 // pred_check_branch
      %1500 = sbr.rel (0) target = $region33
    $region32: #{f3net_forward.15} parent=1 // pred_region
      %s1502 = ssub.s32 512, 512
      %1503 = vsyncadd [#allocation3], %s1502
      %s1504 = sshll.u32 [#allocation2], 4
      %s1505 = int_to_ptr.vmem [resolvable:$true] %s1504
      %1510 = dma.vmem_to_hbm [thread:$0]  %s1505, 512, %s7, [#allocation3], 64, 64, 4
    $region33: #{f3net_forward.15} parent=1 // pred_fallthru
      _
    // Predicated region
    $region34: #{f3net_forward.15} parent=1 // pred_check
      _
    $region35: #{f3net_forward.15} parent=1 // pred_check_branch
      %1512 = sbr.rel (0) target = $region37
    $region36: #{f3net_forward.15} parent=1 // pred_region
      %s1514 = ssub.s32 512, 512
      %1515 = vsyncadd [#allocation5], %s1514
      %s1516 = sshll.u32 [#allocation4], 4
      %s1517 = int_to_ptr.vmem [resolvable:$true] %s1516
      %1522 = dma.vmem_to_hbm [thread:$0]  %s1517, 512, %s8, [#allocation5], 64, 64, 4
    $region37: #{f3net_forward.15} parent=1 // pred_fallthru
      _
    // Predicated region
    $region38: #{f3net_forward.15} parent=1 // pred_check
      _
    $region39: #{f3net_forward.15} parent=1 // pred_check_branch
      %1524 = sbr.rel (0) target = $region41
    $region40: #{f3net_forward.15} parent=1 // pred_region
      _
    $region41: #{f3net_forward.15} parent=1 // pred_fallthru
      _
    // Predicated region
    $region42: #{f3net_forward.15} parent=1 // pred_check
      _
    $region43: #{f3net_forward.15} parent=1 // pred_check_branch
      %1526 = sbr.rel (0) target = $region45
    $region44: #{f3net_forward.15} parent=1 // pred_region
      _
    $region45: #{f3net_forward.15} parent=1 // pred_fallthru
      _
    // Predicated region
    $region46: #{f3net_forward.15} parent=1 // pred_check
      _
    $region47: #{f3net_forward.15} parent=1 // pred_check_branch
      %1528 = sbr.rel (0) target = $region49
    $region48: #{f3net_forward.15} parent=1 // pred_region
      %1529 = dma.done [#allocation3], 512
    $region49: #{f3net_forward.15} parent=1 // pred_fallthru
      _
    // Predicated region
    $region50: #{f3net_forward.15} parent=1 // pred_check
      _
    $region51: #{f3net_forward.15} parent=1 // pred_check_branch
      %1531 = sbr.rel (0) target = $region53
    $region52: #{f3net_forward.15} parent=1 // pred_region
      %1532 = dma.done [#allocation5], 512
    $region53: #{f3net_forward.15} parent=1 // pred_fallthru
      _
    // Predicated region
    $region54: #{f3net_forward.15} parent=1 // pred_check
      _
    $region55: #{f3net_forward.15} parent=1 // pred_check_branch
      %1534 = sbr.rel (0) target = $region57
    $region56: #{f3net_forward.15} parent=1 // pred_region
      _
    $region57: #{f3net_forward.15} parent=1 // pred_fallthru
      _
    // Predicated region
    $region58: #{f3net_forward.15} parent=1 // pred_check
      _
    $region59: #{f3net_forward.15} parent=1 // pred_check_branch
      %1536 = sbr.rel (0) target = $region61
    $region60: #{f3net_forward.15} parent=1 // pred_region
      _
    $region61: #{f3net_forward.15} parent=1 // pred_fallthru
      _
    %1537 = vsyncpa [#allocation3], 1
    %1538 = vsyncpa [#allocation5], 1

// kernel: f3net_forward.12
$region0: #{f3net_forward.12}
  #allocation0 [shape = 'u32[]', space=smem, size = 0x4, offset = 0x4, fixed_abs, tag = 'smem constant byte address 0x4 - core index']
  #allocation1 [shape = 'u32[144,128]{1,0:T(1,128)}', space=vmem, size = 0x12000, scoped, tag = 'internal scratch']
  %s0 = inlined_call_operand.vmem [shape: f32[2,8,8,16], index: 0, kind: input, shape index: {}]
  %s1 = inlined_call_operand.vmem [shape: f32[2,8,8,16], index: 1, kind: input, shape index: {}]
  %s2 = inlined_call_operand.vmem [shape: bf16[16,32], index: 2, kind: input, shape index: {}]
  %s3 = inlined_call_operand.vmem [shape: f32[1,32], index: 3, kind: input, shape index: {}]
  %s4 = inlined_call_operand.vmem [shape: bf16[16,32], index: 4, kind: input, shape index: {}]
  %s5 = inlined_call_operand.vmem [shape: f32[1,32], index: 5, kind: input, shape index: {}]
  %s6 = inlined_call_operand.vmem [shape: f32[4,16], index: 6, kind: input, shape index: {}]
  %s7 = inlined_call_operand.vmem [shape: f32[2,8,8,16], index: 7, kind: output, shape index: {0}]
  %s8 = inlined_call_operand.vmem [shape: f32[2,8,8,16], index: 8, kind: output, shape index: {1}]
  %9 = xla_tuple %s7, %s8
  %s10 = sld [smem:[#allocation0]]
  $region46: #{f3net_forward.12} parent=0
    _
  %s12 = ssub.s32 1, %s10
  %s13 = scalar_select 0, %s12, %s10
  // Predicated region
  $region2: #{f3net_forward.12} parent=0 // pred_check
    _
  $region3: #{f3net_forward.12} parent=0 // pred_check_branch
    %15 = sbr.rel (0) target = $region5
  $region4: #{f3net_forward.12} parent=0 // pred_region
    _
  $region5: #{f3net_forward.12} parent=0 // pred_fallthru
    _
  // Predicated region
  $region6: #{f3net_forward.12} parent=0 // pred_check
    _
  $region7: #{f3net_forward.12} parent=0 // pred_check_branch
    %17 = sbr.rel (0) target = $region9
  $region8: #{f3net_forward.12} parent=0 // pred_region
    _
  $region9: #{f3net_forward.12} parent=0 // pred_fallthru
    _
  // Predicated region
  $region10: #{f3net_forward.12} parent=0 // pred_check
    _
  $region11: #{f3net_forward.12} parent=0 // pred_check_branch
    %19 = sbr.rel (0) target = $region13
  $region12: #{f3net_forward.12} parent=0 // pred_region
    _
  $region13: #{f3net_forward.12} parent=0 // pred_fallthru
    _
  // Predicated region
  $region14: #{f3net_forward.12} parent=0 // pred_check
    _
  $region15: #{f3net_forward.12} parent=0 // pred_check_branch
    %21 = sbr.rel (0) target = $region17
  $region16: #{f3net_forward.12} parent=0 // pred_region
    _
  $region17: #{f3net_forward.12} parent=0 // pred_fallthru
    _
  // Predicated region
  $region18: #{f3net_forward.12} parent=0 // pred_check
    _
  $region19: #{f3net_forward.12} parent=0 // pred_check_branch
    %23 = sbr.rel (0) target = $region21
  $region20: #{f3net_forward.12} parent=0 // pred_region
    _
  $region21: #{f3net_forward.12} parent=0 // pred_fallthru
    _
  // Predicated region
  $region22: #{f3net_forward.12} parent=0 // pred_check
    _
  $region23: #{f3net_forward.12} parent=0 // pred_check_branch
    %25 = sbr.rel (0) target = $region25
  $region24: #{f3net_forward.12} parent=0 // pred_region
    _
  $region25: #{f3net_forward.12} parent=0 // pred_fallthru
    _
  // Predicated region
  $region26: #{f3net_forward.12} parent=0 // pred_check
    _
  $region27: #{f3net_forward.12} parent=0 // pred_check_branch
    %27 = sbr.rel (0) target = $region29
  $region28: #{f3net_forward.12} parent=0 // pred_region
    _
  $region29: #{f3net_forward.12} parent=0 // pred_fallthru
    _
  %v29 = vld [vmem:[%s0] sm:$0xff]
  %v30 = vld [vmem:[%s0 + $0x8] sm:$0xff]
  %v31 = vld [vmem:[%s0 + $0x10] sm:$0xff]
  %v32 = vld [vmem:[%s0 + $0x18] sm:$0xff]
  %v33 = vld [vmem:[%s0 + $0x20] sm:$0xff]
  %v34 = vld [vmem:[%s0 + $0x28] sm:$0xff]
  %v35 = vld [vmem:[%s0 + $0x30] sm:$0xff]
  %v36 = vld [vmem:[%s0 + $0x38] sm:$0xff]
  %v37 = vld [vmem:[%s0 + $0x40] sm:$0xff]
  %v38 = vld [vmem:[%s0 + $0x48] sm:$0xff]
  %v39 = vld [vmem:[%s0 + $0x50] sm:$0xff]
  %v40 = vld [vmem:[%s0 + $0x58] sm:$0xff]
  %v41 = vld [vmem:[%s0 + $0x60] sm:$0xff]
  %v42 = vld [vmem:[%s0 + $0x68] sm:$0xff]
  %v43 = vld [vmem:[%s0 + $0x70] sm:$0xff]
  %v44 = vld [vmem:[%s0 + $0x78] sm:$0xff]
  %v45 = vld [vmem:[%s1] sm:$0xff]
  %v46 = vld [vmem:[%s1 + $0x8] sm:$0xff]
  %v47 = vld [vmem:[%s1 + $0x10] sm:$0xff]
  %v48 = vld [vmem:[%s1 + $0x18] sm:$0xff]
  %v49 = vld [vmem:[%s1 + $0x20] sm:$0xff]
  %v50 = vld [vmem:[%s1 + $0x28] sm:$0xff]
  %v51 = vld [vmem:[%s1 + $0x30] sm:$0xff]
  %v52 = vld [vmem:[%s1 + $0x38] sm:$0xff]
  %v53 = vld [vmem:[%s1 + $0x40] sm:$0xff]
  %v54 = vld [vmem:[%s1 + $0x48] sm:$0xff]
  %v55 = vld [vmem:[%s1 + $0x50] sm:$0xff]
  %v56 = vld [vmem:[%s1 + $0x58] sm:$0xff]
  %v57 = vld [vmem:[%s1 + $0x60] sm:$0xff]
  %v58 = vld [vmem:[%s1 + $0x68] sm:$0xff]
  %v59 = vld [vmem:[%s1 + $0x70] sm:$0xff]
  %v60 = vld [vmem:[%s1 + $0x78] sm:$0xff]
  %v61 = vpack.c.bf16 %v30, %v29
  %v62 = vpack.c.bf16 %v32, %v31
  %v63 = vpack.c.bf16 %v34, %v33
  %v64 = vpack.c.bf16 %v36, %v35
  %v65 = vpack.c.bf16 %v38, %v37
  %v66 = vpack.c.bf16 %v40, %v39
  %v67 = vpack.c.bf16 %v42, %v41
  %v68 = vpack.c.bf16 %v44, %v43
  %v69 = vpack.c.bf16 %v46, %v45
  %v70 = vpack.c.bf16 %v48, %v47
  %v71 = vpack.c.bf16 %v50, %v49
  %v72 = vpack.c.bf16 %v52, %v51
  %v73 = vpack.c.bf16 %v54, %v53
  %v74 = vpack.c.bf16 %v56, %v55
  %v75 = vpack.c.bf16 %v58, %v57
  %v76 = vpack.c.bf16 %v60, %v59
  %v77 = vld [vmem:[%s2] sm:$0xf]
  %v78 = vld [vmem:[%s2 + $0x4] sm:$0xf]
  %v79 = vld [vmem:[%s3] sm:$0x1]
  %v81 = vlaneseq
  %v82 = vshrl.u32 %v81, 7
  %v83 = vsub.s32 0, %v82
  %v84 = vrot.slane %v79, %v83
  %v88 = vunpack.c.l.b16 %v77
  %v89 = vunpack.c.l.b16 %v78
  %v90 = vpack.c.b16 %v89, %v88
  %vm92 = vcmask 130048
  %v94 = vsel %vm92, %v61, 0
  %v97 = vsel %vm92, %v62, 0
  %v100 = vsel %vm92, %v63, 0
  %v103 = vsel %vm92, %v64, 0
  %v106 = vsel %vm92, %v65, 0
  %v109 = vsel %vm92, %v66, 0
  %v112 = vsel %vm92, %v67, 0
  %v115 = vsel %vm92, %v68, 0
  %117 = vmatprep.subr.bf16.mxu0 0
  %118 = vmatpush1.bf16.msra.mxu0 0
  %119 = vmatprep.subr.bf16.mxu0 0
  %120 = vmatpush1.bf16.msra.mxu0 0
  %121 = vmatprep.subr.bf16.mxu0 0
  %122 = vmatpush1.bf16.msra.mxu0 0
  %123 = vmatprep.subr.bf16.mxu0 0
  %124 = vmatpush1.bf16.msra.mxu0 0
  %125 = vmatprep.subr.bf16.mxu0 0
  %126 = vmatpush1.bf16.msra.mxu0 0
  %127 = vmatprep.subr.bf16.mxu0 0
  %128 = vmatpush1.bf16.msra.mxu0 0
  %129 = vmatprep.subr.bf16.mxu0 0
  %130 = vmatpush1.bf16.msra.mxu0 0
  %131 = vmatprep.subr.bf16.mxu0 0
  %132 = vmatpush1.bf16.msra.mxu0 %v90
  %133 = vmatprep.subr.bf16.mxu0 0
  %134 = vmatpush2.bf16.msra.mxu0 0
  %135 = vmatprep.subr.bf16.mxu0 0
  %136 = vmatpush2.bf16.msra.mxu0 0
  %137 = vmatprep.subr.bf16.mxu0 0
  %138 = vmatpush2.bf16.msra.mxu0 0
  %139 = vmatprep.subr.bf16.mxu0 0
  %140 = vmatpush2.bf16.msra.mxu0 0
  %141 = vmatprep.subr.bf16.mxu0 0
  %142 = vmatpush2.bf16.msra.mxu0 0
  %143 = vmatprep.subr.bf16.mxu0 0
  %144 = vmatpush2.bf16.msra.mxu0 0
  %145 = vmatprep.subr.bf16.mxu0 0
  %146 = vmatpush2.bf16.msra.mxu0 0
  %147 = vmatprep.subr.bf16.mxu0 0
  %148 = vmatpush2.bf16.msra.mxu0 0
  %149 = vmatprep.mubr.bf16.mxu0 0
  %150 = vmatmul.mubr.bf16.gmra.mxu0 %v94
  %v151 = vpop.f32.mrf.mxu0
  %v152 = vadd.f32 %v84, %v151
  %v153 = vpop.f32.mrf.mxu0
  %v154 = vpop.f32.mrf.mxu0
  %v155 = vadd.f32 %v84, %v154
  %v156 = vpop.f32.mrf.mxu0
  %157 = vmatprep.mubr.bf16.mxu0 0
  %158 = vmatmul.mubr.bf16.gmra.mxu0 %v97
  %v159 = vpop.f32.mrf.mxu0
  %v160 = vadd.f32 %v84, %v159
  %v161 = vpop.f32.mrf.mxu0
  %v162 = vpop.f32.mrf.mxu0
  %v163 = vadd.f32 %v84, %v162
  %v164 = vpop.f32.mrf.mxu0
  %165 = vmatprep.mubr.bf16.mxu0 0
  %166 = vmatmul.mubr.bf16.gmra.mxu0 %v100
  %v167 = vpop.f32.mrf.mxu0
  %v168 = vadd.f32 %v84, %v167
  %v169 = vpop.f32.mrf.mxu0
  %v170 = vpop.f32.mrf.mxu0
  %v171 = vadd.f32 %v84, %v170
  %v172 = vpop.f32.mrf.mxu0
  %173 = vmatprep.mubr.bf16.mxu0 0
  %174 = vmatmul.mubr.bf16.gmra.mxu0 %v103
  %v175 = vpop.f32.mrf.mxu0
  %v176 = vadd.f32 %v84, %v175
  %v177 = vpop.f32.mrf.mxu0
  %v178 = vpop.f32.mrf.mxu0
  %v179 = vadd.f32 %v84, %v178
  %v180 = vpop.f32.mrf.mxu0
  %181 = vmatprep.mubr.bf16.mxu0 0
  %182 = vmatmul.mubr.bf16.gmra.mxu0 %v106
  %v183 = vpop.f32.mrf.mxu0
  %v184 = vadd.f32 %v84, %v183
  %v185 = vpop.f32.mrf.mxu0
  %v186 = vpop.f32.mrf.mxu0
  %v187 = vadd.f32 %v84, %v186
  %v188 = vpop.f32.mrf.mxu0
  %189 = vmatprep.mubr.bf16.mxu0 0
  %190 = vmatmul.mubr.bf16.gmra.mxu0 %v109
  %v191 = vpop.f32.mrf.mxu0
  %v192 = vadd.f32 %v84, %v191
  %v193 = vpop.f32.mrf.mxu0
  %v194 = vpop.f32.mrf.mxu0
  %v195 = vadd.f32 %v84, %v194
  %v196 = vpop.f32.mrf.mxu0
  %197 = vmatprep.mubr.bf16.mxu0 0
  %198 = vmatmul.mubr.bf16.gmra.mxu0 %v112
  %v199 = vpop.f32.mrf.mxu0
  %v200 = vadd.f32 %v84, %v199
  %v201 = vpop.f32.mrf.mxu0
  %v202 = vpop.f32.mrf.mxu0
  %v203 = vadd.f32 %v84, %v202
  %v204 = vpop.f32.mrf.mxu0
  %205 = vmatprep.mubr.bf16.mxu0 0
  %206 = vmatmul.mubr.bf16.gmra.mxu0 %v115
  %v207 = vpop.f32.mrf.mxu0
  %v208 = vadd.f32 %v84, %v207
  %v209 = vpop.f32.mrf.mxu0
  %v210 = vpop.f32.mrf.mxu0
  %v211 = vadd.f32 %v84, %v210
  %v212 = vpop.f32.mrf.mxu0
  %213 = vdwg.mxu0
  %v214 = vld [vmem:[%s4] sm:$0xf]
  %v215 = vld [vmem:[%s4 + $0x4] sm:$0xf]
  %v216 = vld [vmem:[%s5] sm:$0x1]
  %v218 = vlaneseq
  %v219 = vshrl.u32 %v218, 7
  %v220 = vsub.s32 0, %v219
  %v221 = vrot.slane %v216, %v220
  %v225 = vunpack.c.l.b16 %v214
  %v226 = vunpack.c.l.b16 %v215
  %v227 = vpack.c.b16 %v226, %v225
  %v230 = vsel %vm92, %v69, 0
  %v233 = vsel %vm92, %v70, 0
  %v236 = vsel %vm92, %v71, 0
  %v239 = vsel %vm92, %v72, 0
  %v242 = vsel %vm92, %v73, 0
  %v245 = vsel %vm92, %v74, 0
  %v248 = vsel %vm92, %v75, 0
  %v251 = vsel %vm92, %v76, 0
  %253 = vmatprep.subr.bf16.mxu0 0
  %254 = vmatpush1.bf16.msra.mxu0 0
  %255 = vmatprep.subr.bf16.mxu0 0
  %256 = vmatpush1.bf16.msra.mxu0 0
  %257 = vmatprep.subr.bf16.mxu0 0
  %258 = vmatpush1.bf16.msra.mxu0 0
  %259 = vmatprep.subr.bf16.mxu0 0
  %260 = vmatpush1.bf16.msra.mxu0 0
  %261 = vmatprep.subr.bf16.mxu0 0
  %262 = vmatpush1.bf16.msra.mxu0 0
  %263 = vmatprep.subr.bf16.mxu0 0
  %264 = vmatpush1.bf16.msra.mxu0 0
  %265 = vmatprep.subr.bf16.mxu0 0
  %266 = vmatpush1.bf16.msra.mxu0 0
  %267 = vmatprep.subr.bf16.mxu0 0
  %268 = vmatpush1.bf16.msra.mxu0 %v227
  %269 = vmatprep.subr.bf16.mxu0 0
  %270 = vmatpush2.bf16.msra.mxu0 0
  %271 = vmatprep.subr.bf16.mxu0 0
  %272 = vmatpush2.bf16.msra.mxu0 0
  %273 = vmatprep.subr.bf16.mxu0 0
  %274 = vmatpush2.bf16.msra.mxu0 0
  %275 = vmatprep.subr.bf16.mxu0 0
  %276 = vmatpush2.bf16.msra.mxu0 0
  %277 = vmatprep.subr.bf16.mxu0 0
  %278 = vmatpush2.bf16.msra.mxu0 0
  %279 = vmatprep.subr.bf16.mxu0 0
  %280 = vmatpush2.bf16.msra.mxu0 0
  %281 = vmatprep.subr.bf16.mxu0 0
  %282 = vmatpush2.bf16.msra.mxu0 0
  %283 = vmatprep.subr.bf16.mxu0 0
  %284 = vmatpush2.bf16.msra.mxu0 0
  %285 = vmatprep.mubr.bf16.mxu0 0
  %286 = vmatmul.mubr.bf16.gmra.mxu0 %v230
  %v287 = vpop.f32.mrf.mxu0
  %v288 = vadd.f32 %v221, %v287
  %v289 = vpop.f32.mrf.mxu0
  %v290 = vpop.f32.mrf.mxu0
  %v291 = vadd.f32 %v221, %v290
  %v292 = vpop.f32.mrf.mxu0
  %293 = vmatprep.mubr.bf16.mxu0 0
  %294 = vmatmul.mubr.bf16.gmra.mxu0 %v233
  %v295 = vpop.f32.mrf.mxu0
  %v296 = vadd.f32 %v221, %v295
  %v297 = vpop.f32.mrf.mxu0
  %v298 = vpop.f32.mrf.mxu0
  %v299 = vadd.f32 %v221, %v298
  %v300 = vpop.f32.mrf.mxu0
  %301 = vmatprep.mubr.bf16.mxu0 0
  %302 = vmatmul.mubr.bf16.gmra.mxu0 %v236
  %v303 = vpop.f32.mrf.mxu0
  %v304 = vadd.f32 %v221, %v303
  %v305 = vpop.f32.mrf.mxu0
  %v306 = vpop.f32.mrf.mxu0
  %v307 = vadd.f32 %v221, %v306
  %v308 = vpop.f32.mrf.mxu0
  %309 = vmatprep.mubr.bf16.mxu0 0
  %310 = vmatmul.mubr.bf16.gmra.mxu0 %v239
  %v311 = vpop.f32.mrf.mxu0
  %v312 = vadd.f32 %v221, %v311
  %v313 = vpop.f32.mrf.mxu0
  %v314 = vpop.f32.mrf.mxu0
  %v315 = vadd.f32 %v221, %v314
  %v316 = vpop.f32.mrf.mxu0
  %317 = vmatprep.mubr.bf16.mxu0 0
  %318 = vmatmul.mubr.bf16.gmra.mxu0 %v242
  %v319 = vpop.f32.mrf.mxu0
  %v320 = vadd.f32 %v221, %v319
  %v321 = vpop.f32.mrf.mxu0
  %v322 = vpop.f32.mrf.mxu0
  %v323 = vadd.f32 %v221, %v322
  %v324 = vpop.f32.mrf.mxu0
  %325 = vmatprep.mubr.bf16.mxu0 0
  %326 = vmatmul.mubr.bf16.gmra.mxu0 %v245
  %v327 = vpop.f32.mrf.mxu0
  %v328 = vadd.f32 %v221, %v327
  %v329 = vpop.f32.mrf.mxu0
  %v330 = vpop.f32.mrf.mxu0
  %v331 = vadd.f32 %v221, %v330
  %v332 = vpop.f32.mrf.mxu0
  %333 = vmatprep.mubr.bf16.mxu0 0
  %334 = vmatmul.mubr.bf16.gmra.mxu0 %v248
  %v335 = vpop.f32.mrf.mxu0
  %v336 = vadd.f32 %v221, %v335
  %v337 = vpop.f32.mrf.mxu0
  %v338 = vpop.f32.mrf.mxu0
  %v339 = vadd.f32 %v221, %v338
  %v340 = vpop.f32.mrf.mxu0
  %341 = vmatprep.mubr.bf16.mxu0 0
  %342 = vmatmul.mubr.bf16.gmra.mxu0 %v251
  %v343 = vpop.f32.mrf.mxu0
  %v344 = vadd.f32 %v221, %v343
  %v345 = vpop.f32.mrf.mxu0
  %v346 = vpop.f32.mrf.mxu0
  %v347 = vadd.f32 %v221, %v346
  %v348 = vpop.f32.mrf.mxu0
  %349 = vdwg.mxu0
  %366 = vrot.lane.b32.xlu0 %v152, 112
  %v367 = vpop.permute.xlu0 %366
  %368 = vrot.lane.b32.xlu0 %v155, 112
  %v369 = vpop.permute.xlu0 %368
  %370 = vrot.lane.b32.xlu0 %v160, 112
  %v371 = vpop.permute.xlu0 %370
  %372 = vrot.lane.b32.xlu0 %v163, 112
  %v373 = vpop.permute.xlu0 %372
  %374 = vrot.lane.b32.xlu0 %v168, 112
  %v375 = vpop.permute.xlu0 %374
  %376 = vrot.lane.b32.xlu0 %v171, 112
  %v377 = vpop.permute.xlu0 %376
  %378 = vrot.lane.b32.xlu0 %v176, 112
  %v379 = vpop.permute.xlu0 %378
  %380 = vrot.lane.b32.xlu0 %v179, 112
  %v381 = vpop.permute.xlu0 %380
  %382 = vrot.lane.b32.xlu0 %v184, 112
  %v383 = vpop.permute.xlu0 %382
  %384 = vrot.lane.b32.xlu0 %v187, 112
  %v385 = vpop.permute.xlu0 %384
  %386 = vrot.lane.b32.xlu0 %v192, 112
  %v387 = vpop.permute.xlu0 %386
  %388 = vrot.lane.b32.xlu0 %v195, 112
  %v389 = vpop.permute.xlu0 %388
  %390 = vrot.lane.b32.xlu0 %v200, 112
  %v391 = vpop.permute.xlu0 %390
  %392 = vrot.lane.b32.xlu0 %v203, 112
  %v393 = vpop.permute.xlu0 %392
  %394 = vrot.lane.b32.xlu0 %v208, 112
  %v395 = vpop.permute.xlu0 %394
  %396 = vrot.lane.b32.xlu0 %v211, 112
  %v397 = vpop.permute.xlu0 %396
  %v414 = vmul.f32 %v152, %v367
  %v415 = vmul.f32 %v152, %v369
  %v416 = vmul.f32 %v152, %v371
  %v417 = vmul.f32 %v152, %v373
  %v418 = vmul.f32 %v152, %v375
  %v419 = vmul.f32 %v152, %v377
  %v420 = vmul.f32 %v152, %v379
  %v421 = vmul.f32 %v152, %v381
  %v422 = vmul.f32 %v155, %v367
  %v423 = vmul.f32 %v155, %v369
  %v424 = vmul.f32 %v155, %v371
  %v425 = vmul.f32 %v155, %v373
  %v426 = vmul.f32 %v155, %v375
  %v427 = vmul.f32 %v155, %v377
  %v428 = vmul.f32 %v155, %v379
  %v429 = vmul.f32 %v155, %v381
  %v430 = vmul.f32 %v160, %v367
  %v431 = vmul.f32 %v160, %v369
  %v432 = vmul.f32 %v160, %v371
  %v433 = vmul.f32 %v160, %v373
  %v434 = vmul.f32 %v160, %v375
  %v435 = vmul.f32 %v160, %v377
  %v436 = vmul.f32 %v160, %v379
  %v437 = vmul.f32 %v160, %v381
  %v438 = vmul.f32 %v163, %v367
  %v439 = vmul.f32 %v163, %v369
  %v440 = vmul.f32 %v163, %v371
  %v441 = vmul.f32 %v163, %v373
  %v442 = vmul.f32 %v163, %v375
  %v443 = vmul.f32 %v163, %v377
  %v444 = vmul.f32 %v163, %v379
  %v445 = vmul.f32 %v163, %v381
  %v446 = vmul.f32 %v168, %v367
  %v447 = vmul.f32 %v168, %v369
  %v448 = vmul.f32 %v168, %v371
  %v449 = vmul.f32 %v168, %v373
  %v450 = vmul.f32 %v168, %v375
  %v451 = vmul.f32 %v168, %v377
  %v452 = vmul.f32 %v168, %v379
  %v453 = vmul.f32 %v168, %v381
  %v454 = vmul.f32 %v171, %v367
  %v455 = vmul.f32 %v171, %v369
  %v456 = vmul.f32 %v171, %v371
  %v457 = vmul.f32 %v171, %v373
  %v458 = vmul.f32 %v171, %v375
  %v459 = vmul.f32 %v171, %v377
  %v460 = vmul.f32 %v171, %v379
  %v461 = vmul.f32 %v171, %v381
  %v462 = vmul.f32 %v176, %v367
  %v463 = vmul.f32 %v176, %v369
  %v464 = vmul.f32 %v176, %v371
  %v465 = vmul.f32 %v176, %v373
  %v466 = vmul.f32 %v176, %v375
  %v467 = vmul.f32 %v176, %v377
  %v468 = vmul.f32 %v176, %v379
  %v469 = vmul.f32 %v176, %v381
  %v470 = vmul.f32 %v179, %v367
  %v471 = vmul.f32 %v179, %v369
  %v472 = vmul.f32 %v179, %v371
  %v473 = vmul.f32 %v179, %v373
  %v474 = vmul.f32 %v179, %v375
  %v475 = vmul.f32 %v179, %v377
  %v476 = vmul.f32 %v179, %v379
  %v477 = vmul.f32 %v179, %v381
  %v478 = vmul.f32 %v184, %v383
  %v479 = vmul.f32 %v184, %v385
  %v480 = vmul.f32 %v184, %v387
  %v481 = vmul.f32 %v184, %v389
  %v482 = vmul.f32 %v184, %v391
  %v483 = vmul.f32 %v184, %v393
  %v484 = vmul.f32 %v184, %v395
  %v485 = vmul.f32 %v184, %v397
  %v486 = vmul.f32 %v187, %v383
  %v487 = vmul.f32 %v187, %v385
  %v488 = vmul.f32 %v187, %v387
  %v489 = vmul.f32 %v187, %v389
  %v490 = vmul.f32 %v187, %v391
  %v491 = vmul.f32 %v187, %v393
  %v492 = vmul.f32 %v187, %v395
  %v493 = vmul.f32 %v187, %v397
  %v494 = vmul.f32 %v192, %v383
  %v495 = vmul.f32 %v192, %v385
  %v496 = vmul.f32 %v192, %v387
  %v497 = vmul.f32 %v192, %v389
  %v498 = vmul.f32 %v192, %v391
  %v499 = vmul.f32 %v192, %v393
  %v500 = vmul.f32 %v192, %v395
  %v501 = vmul.f32 %v192, %v397
  %v502 = vmul.f32 %v195, %v383
  %v503 = vmul.f32 %v195, %v385
  %v504 = vmul.f32 %v195, %v387
  %v505 = vmul.f32 %v195, %v389
  %v506 = vmul.f32 %v195, %v391
  %v507 = vmul.f32 %v195, %v393
  %v508 = vmul.f32 %v195, %v395
  %v509 = vmul.f32 %v195, %v397
  %v510 = vmul.f32 %v200, %v383
  %v511 = vmul.f32 %v200, %v385
  %v512 = vmul.f32 %v200, %v387
  %v513 = vmul.f32 %v200, %v389
  %v514 = vmul.f32 %v200, %v391
  %v515 = vmul.f32 %v200, %v393
  %v516 = vmul.f32 %v200, %v395
  %v517 = vmul.f32 %v200, %v397
  %v518 = vmul.f32 %v203, %v383
  %v519 = vmul.f32 %v203, %v385
  %v520 = vmul.f32 %v203, %v387
  %v521 = vmul.f32 %v203, %v389
  %v522 = vmul.f32 %v203, %v391
  %v523 = vmul.f32 %v203, %v393
  %v524 = vmul.f32 %v203, %v395
  %v525 = vmul.f32 %v203, %v397
  %v526 = vmul.f32 %v208, %v383
  %v527 = vmul.f32 %v208, %v385
  %v528 = vmul.f32 %v208, %v387
  %v529 = vmul.f32 %v208, %v389
  %v530 = vmul.f32 %v208, %v391
  %v531 = vmul.f32 %v208, %v393
  %v532 = vmul.f32 %v208, %v395
  %v533 = vmul.f32 %v208, %v397
  %v534 = vmul.f32 %v211, %v383
  %v535 = vmul.f32 %v211, %v385
  %v536 = vmul.f32 %v211, %v387
  %v537 = vmul.f32 %v211, %v389
  %v538 = vmul.f32 %v211, %v391
  %v539 = vmul.f32 %v211, %v393
  %v540 = vmul.f32 %v211, %v395
  %v541 = vmul.f32 %v211, %v397
  %v542 = vsel %vm92, %v414, 0.0
  %v543 = vrot.slane %v542, 4
  %v544 = vadd.f32 %v542, %v543
  %v545 = vrot.slane %v544, 2
  %v546 = vadd.f32 %v544, %v545
  %v547 = vrot.slane %v546, 1
  %v548 = vadd.f32 %v546, %v547
  %v549 = vsel %vm92, %v415, 0.0
  %v550 = vrot.slane %v549, 4
  %v551 = vadd.f32 %v549, %v550
  %v552 = vrot.slane %v551, 2
  %v553 = vadd.f32 %v551, %v552
  %v554 = vrot.slane %v553, 1
  %v555 = vadd.f32 %v553, %v554
  %v556 = vsel %vm92, %v416, 0.0
  %v557 = vrot.slane %v556, 4
  %v558 = vadd.f32 %v556, %v557
  %v559 = vrot.slane %v558, 2
  %v560 = vadd.f32 %v558, %v559
  %v561 = vrot.slane %v560, 1
  %v562 = vadd.f32 %v560, %v561
  %v563 = vsel %vm92, %v417, 0.0
  %v564 = vrot.slane %v563, 4
  %v565 = vadd.f32 %v563, %v564
  %v566 = vrot.slane %v565, 2
  %v567 = vadd.f32 %v565, %v566
  %v568 = vrot.slane %v567, 1
  %v569 = vadd.f32 %v567, %v568
  %v570 = vsel %vm92, %v418, 0.0
  %v571 = vrot.slane %v570, 4
  %v572 = vadd.f32 %v570, %v571
  %v573 = vrot.slane %v572, 2
  %v574 = vadd.f32 %v572, %v573
  %v575 = vrot.slane %v574, 1
  %v576 = vadd.f32 %v574, %v575
  %v577 = vsel %vm92, %v419, 0.0
  %v578 = vrot.slane %v577, 4
  %v579 = vadd.f32 %v577, %v578
  %v580 = vrot.slane %v579, 2
  %v581 = vadd.f32 %v579, %v580
  %v582 = vrot.slane %v581, 1
  %v583 = vadd.f32 %v581, %v582
  %v584 = vsel %vm92, %v420, 0.0
  %v585 = vrot.slane %v584, 4
  %v586 = vadd.f32 %v584, %v585
  %v587 = vrot.slane %v586, 2
  %v588 = vadd.f32 %v586, %v587
  %v589 = vrot.slane %v588, 1
  %v590 = vadd.f32 %v588, %v589
  %v591 = vsel %vm92, %v421, 0.0
  %v592 = vrot.slane %v591, 4
  %v593 = vadd.f32 %v591, %v592
  %v594 = vrot.slane %v593, 2
  %v595 = vadd.f32 %v593, %v594
  %v596 = vrot.slane %v595, 1
  %v597 = vadd.f32 %v595, %v596
  %v598 = vsel %vm92, %v422, 0.0
  %v599 = vrot.slane %v598, 4
  %v600 = vadd.f32 %v598, %v599
  %v601 = vrot.slane %v600, 2
  %v602 = vadd.f32 %v600, %v601
  %v603 = vrot.slane %v602, 1
  %v604 = vadd.f32 %v602, %v603
  %v605 = vsel %vm92, %v423, 0.0
  %v606 = vrot.slane %v605, 4
  %v607 = vadd.f32 %v605, %v606
  %v608 = vrot.slane %v607, 2
  %v609 = vadd.f32 %v607, %v608
  %v610 = vrot.slane %v609, 1
  %v611 = vadd.f32 %v609, %v610
  %v612 = vsel %vm92, %v424, 0.0
  %v613 = vrot.slane %v612, 4
  %v614 = vadd.f32 %v612, %v613
  %v615 = vrot.slane %v614, 2
  %v616 = vadd.f32 %v614, %v615
  %v617 = vrot.slane %v616, 1
  %v618 = vadd.f32 %v616, %v617
  %v619 = vsel %vm92, %v425, 0.0
  %v620 = vrot.slane %v619, 4
  %v621 = vadd.f32 %v619, %v620
  %v622 = vrot.slane %v621, 2
  %v623 = vadd.f32 %v621, %v622
  %v624 = vrot.slane %v623, 1
  %v625 = vadd.f32 %v623, %v624
  %v626 = vsel %vm92, %v426, 0.0
  %v627 = vrot.slane %v626, 4
  %v628 = vadd.f32 %v626, %v627
  %v629 = vrot.slane %v628, 2
  %v630 = vadd.f32 %v628, %v629
  %v631 = vrot.slane %v630, 1
  %v632 = vadd.f32 %v630, %v631
  %v633 = vsel %vm92, %v427, 0.0
  %v634 = vrot.slane %v633, 4
  %v635 = vadd.f32 %v633, %v634
  %v636 = vrot.slane %v635, 2
  %v637 = vadd.f32 %v635, %v636
  %v638 = vrot.slane %v637, 1
  %v639 = vadd.f32 %v637, %v638
  %v640 = vsel %vm92, %v428, 0.0
  %v641 = vrot.slane %v640, 4
  %v642 = vadd.f32 %v640, %v641
  %v643 = vrot.slane %v642, 2
  %v644 = vadd.f32 %v642, %v643
  %v645 = vrot.slane %v644, 1
  %v646 = vadd.f32 %v644, %v645
  %v647 = vsel %vm92, %v429, 0.0
  %v648 = vrot.slane %v647, 4
  %v649 = vadd.f32 %v647, %v648
  %v650 = vrot.slane %v649, 2
  %v651 = vadd.f32 %v649, %v650
  %v652 = vrot.slane %v651, 1
  %v653 = vadd.f32 %v651, %v652
  %v654 = vsel %vm92, %v430, 0.0
  %v655 = vrot.slane %v654, 4
  %v656 = vadd.f32 %v654, %v655
  %v657 = vrot.slane %v656, 2
  %v658 = vadd.f32 %v656, %v657
  %v659 = vrot.slane %v658, 1
  %v660 = vadd.f32 %v658, %v659
  %v661 = vsel %vm92, %v431, 0.0
  %v662 = vrot.slane %v661, 4
  %v663 = vadd.f32 %v661, %v662
  %v664 = vrot.slane %v663, 2
  %v665 = vadd.f32 %v663, %v664
  %v666 = vrot.slane %v665, 1
  %v667 = vadd.f32 %v665, %v666
  %v668 = vsel %vm92, %v432, 0.0
  %v669 = vrot.slane %v668, 4
  %v670 = vadd.f32 %v668, %v669
  %v671 = vrot.slane %v670, 2
  %v672 = vadd.f32 %v670, %v671
  %v673 = vrot.slane %v672, 1
  %v674 = vadd.f32 %v672, %v673
  %v675 = vsel %vm92, %v433, 0.0
  %v676 = vrot.slane %v675, 4
  %v677 = vadd.f32 %v675, %v676
  %v678 = vrot.slane %v677, 2
  %v679 = vadd.f32 %v677, %v678
  %v680 = vrot.slane %v679, 1
  %v681 = vadd.f32 %v679, %v680
  %v682 = vsel %vm92, %v434, 0.0
  %v683 = vrot.slane %v682, 4
  %v684 = vadd.f32 %v682, %v683
  %v685 = vrot.slane %v684, 2
  %v686 = vadd.f32 %v684, %v685
  %v687 = vrot.slane %v686, 1
  %v688 = vadd.f32 %v686, %v687
  %v689 = vsel %vm92, %v435, 0.0
  %v690 = vrot.slane %v689, 4
  %v691 = vadd.f32 %v689, %v690
  %v692 = vrot.slane %v691, 2
  %v693 = vadd.f32 %v691, %v692
  %v694 = vrot.slane %v693, 1
  %v695 = vadd.f32 %v693, %v694
  %v696 = vsel %vm92, %v436, 0.0
  %v697 = vrot.slane %v696, 4
  %v698 = vadd.f32 %v696, %v697
  %v699 = vrot.slane %v698, 2
  %v700 = vadd.f32 %v698, %v699
  %v701 = vrot.slane %v700, 1
  %v702 = vadd.f32 %v700, %v701
  %v703 = vsel %vm92, %v437, 0.0
  %v704 = vrot.slane %v703, 4
  %v705 = vadd.f32 %v703, %v704
  %v706 = vrot.slane %v705, 2
  %v707 = vadd.f32 %v705, %v706
  %v708 = vrot.slane %v707, 1
  %v709 = vadd.f32 %v707, %v708
  %v710 = vsel %vm92, %v438, 0.0
  %v711 = vrot.slane %v710, 4
  %v712 = vadd.f32 %v710, %v711
  %v713 = vrot.slane %v712, 2
  %v714 = vadd.f32 %v712, %v713
  %v715 = vrot.slane %v714, 1
  %v716 = vadd.f32 %v714, %v715
  %v717 = vsel %vm92, %v439, 0.0
  %v718 = vrot.slane %v717, 4
  %v719 = vadd.f32 %v717, %v718
  %v720 = vrot.slane %v719, 2
  %v721 = vadd.f32 %v719, %v720
  %v722 = vrot.slane %v721, 1
  %v723 = vadd.f32 %v721, %v722
  %v724 = vsel %vm92, %v440, 0.0
  %v725 = vrot.slane %v724, 4
  %v726 = vadd.f32 %v724, %v725
  %v727 = vrot.slane %v726, 2
  %v728 = vadd.f32 %v726, %v727
  %v729 = vrot.slane %v728, 1
  %v730 = vadd.f32 %v728, %v729
  %v731 = vsel %vm92, %v441, 0.0
  %v732 = vrot.slane %v731, 4
  %v733 = vadd.f32 %v731, %v732
  %v734 = vrot.slane %v733, 2
  %v735 = vadd.f32 %v733, %v734
  %v736 = vrot.slane %v735, 1
  %v737 = vadd.f32 %v735, %v736
  %v738 = vsel %vm92, %v442, 0.0
  %v739 = vrot.slane %v738, 4
  %v740 = vadd.f32 %v738, %v739
  %v741 = vrot.slane %v740, 2
  %v742 = vadd.f32 %v740, %v741
  %v743 = vrot.slane %v742, 1
  %v744 = vadd.f32 %v742, %v743
  %v745 = vsel %vm92, %v443, 0.0
  %v746 = vrot.slane %v745, 4
  %v747 = vadd.f32 %v745, %v746
  %v748 = vrot.slane %v747, 2
  %v749 = vadd.f32 %v747, %v748
  %v750 = vrot.slane %v749, 1
  %v751 = vadd.f32 %v749, %v750
  %v752 = vsel %vm92, %v444, 0.0
  %v753 = vrot.slane %v752, 4
  %v754 = vadd.f32 %v752, %v753
  %v755 = vrot.slane %v754, 2
  %v756 = vadd.f32 %v754, %v755
  %v757 = vrot.slane %v756, 1
  %v758 = vadd.f32 %v756, %v757
  %v759 = vsel %vm92, %v445, 0.0
  %v760 = vrot.slane %v759, 4
  %v761 = vadd.f32 %v759, %v760
  %v762 = vrot.slane %v761, 2
  %v763 = vadd.f32 %v761, %v762
  %v764 = vrot.slane %v763, 1
  %v765 = vadd.f32 %v763, %v764
  %v766 = vsel %vm92, %v446, 0.0
  %v767 = vrot.slane %v766, 4
  %v768 = vadd.f32 %v766, %v767
  %v769 = vrot.slane %v768, 2
  %v770 = vadd.f32 %v768, %v769
  %v771 = vrot.slane %v770, 1
  %v772 = vadd.f32 %v770, %v771
  %v773 = vsel %vm92, %v447, 0.0
  %v774 = vrot.slane %v773, 4
  %v775 = vadd.f32 %v773, %v774
  %v776 = vrot.slane %v775, 2
  %v777 = vadd.f32 %v775, %v776
  %v778 = vrot.slane %v777, 1
  %v779 = vadd.f32 %v777, %v778
  %v780 = vsel %vm92, %v448, 0.0
  %v781 = vrot.slane %v780, 4
  %v782 = vadd.f32 %v780, %v781
  %v783 = vrot.slane %v782, 2
  %v784 = vadd.f32 %v782, %v783
  %v785 = vrot.slane %v784, 1
  %v786 = vadd.f32 %v784, %v785
  %v787 = vsel %vm92, %v449, 0.0
  %v788 = vrot.slane %v787, 4
  %v789 = vadd.f32 %v787, %v788
  %v790 = vrot.slane %v789, 2
  %v791 = vadd.f32 %v789, %v790
  %v792 = vrot.slane %v791, 1
  %v793 = vadd.f32 %v791, %v792
  %v794 = vsel %vm92, %v450, 0.0
  %v795 = vrot.slane %v794, 4
  %v796 = vadd.f32 %v794, %v795
  %v797 = vrot.slane %v796, 2
  %v798 = vadd.f32 %v796, %v797
  %v799 = vrot.slane %v798, 1
  %v800 = vadd.f32 %v798, %v799
  %v801 = vsel %vm92, %v451, 0.0
  %v802 = vrot.slane %v801, 4
  %v803 = vadd.f32 %v801, %v802
  %v804 = vrot.slane %v803, 2
  %v805 = vadd.f32 %v803, %v804
  %v806 = vrot.slane %v805, 1
  %v807 = vadd.f32 %v805, %v806
  %v808 = vsel %vm92, %v452, 0.0
  %v809 = vrot.slane %v808, 4
  %v810 = vadd.f32 %v808, %v809
  %v811 = vrot.slane %v810, 2
  %v812 = vadd.f32 %v810, %v811
  %v813 = vrot.slane %v812, 1
  %v814 = vadd.f32 %v812, %v813
  %v815 = vsel %vm92, %v453, 0.0
  %v816 = vrot.slane %v815, 4
  %v817 = vadd.f32 %v815, %v816
  %v818 = vrot.slane %v817, 2
  %v819 = vadd.f32 %v817, %v818
  %v820 = vrot.slane %v819, 1
  %v821 = vadd.f32 %v819, %v820
  %v822 = vsel %vm92, %v454, 0.0
  %v823 = vrot.slane %v822, 4
  %v824 = vadd.f32 %v822, %v823
  %v825 = vrot.slane %v824, 2
  %v826 = vadd.f32 %v824, %v825
  %v827 = vrot.slane %v826, 1
  %v828 = vadd.f32 %v826, %v827
  %v829 = vsel %vm92, %v455, 0.0
  %v830 = vrot.slane %v829, 4
  %v831 = vadd.f32 %v829, %v830
  %v832 = vrot.slane %v831, 2
  %v833 = vadd.f32 %v831, %v832
  %v834 = vrot.slane %v833, 1
  %v835 = vadd.f32 %v833, %v834
  %v836 = vsel %vm92, %v456, 0.0
  %v837 = vrot.slane %v836, 4
  %v838 = vadd.f32 %v836, %v837
  %v839 = vrot.slane %v838, 2
  %v840 = vadd.f32 %v838, %v839
  %v841 = vrot.slane %v840, 1
  %v842 = vadd.f32 %v840, %v841
  %v843 = vsel %vm92, %v457, 0.0
  %v844 = vrot.slane %v843, 4
  %v845 = vadd.f32 %v843, %v844
  %v846 = vrot.slane %v845, 2
  %v847 = vadd.f32 %v845, %v846
  %v848 = vrot.slane %v847, 1
  %v849 = vadd.f32 %v847, %v848
  %v850 = vsel %vm92, %v458, 0.0
  %v851 = vrot.slane %v850, 4
  %v852 = vadd.f32 %v850, %v851
  %v853 = vrot.slane %v852, 2
  %v854 = vadd.f32 %v852, %v853
  %v855 = vrot.slane %v854, 1
  %v856 = vadd.f32 %v854, %v855
  %v857 = vsel %vm92, %v459, 0.0
  %v858 = vrot.slane %v857, 4
  %v859 = vadd.f32 %v857, %v858
  %v860 = vrot.slane %v859, 2
  %v861 = vadd.f32 %v859, %v860
  %v862 = vrot.slane %v861, 1
  %v863 = vadd.f32 %v861, %v862
  %v864 = vsel %vm92, %v460, 0.0
  %v865 = vrot.slane %v864, 4
  %v866 = vadd.f32 %v864, %v865
  %v867 = vrot.slane %v866, 2
  %v868 = vadd.f32 %v866, %v867
  %v869 = vrot.slane %v868, 1
  %v870 = vadd.f32 %v868, %v869
  %v871 = vsel %vm92, %v461, 0.0
  %v872 = vrot.slane %v871, 4
  %v873 = vadd.f32 %v871, %v872
  %v874 = vrot.slane %v873, 2
  %v875 = vadd.f32 %v873, %v874
  %v876 = vrot.slane %v875, 1
  %v877 = vadd.f32 %v875, %v876
  %v878 = vsel %vm92, %v462, 0.0
  %v879 = vrot.slane %v878, 4
  %v880 = vadd.f32 %v878, %v879
  %v881 = vrot.slane %v880, 2
  %v882 = vadd.f32 %v880, %v881
  %v883 = vrot.slane %v882, 1
  %v884 = vadd.f32 %v882, %v883
  %v885 = vsel %vm92, %v463, 0.0
  %v886 = vrot.slane %v885, 4
  %v887 = vadd.f32 %v885, %v886
  %v888 = vrot.slane %v887, 2
  %v889 = vadd.f32 %v887, %v888
  %v890 = vrot.slane %v889, 1
  %v891 = vadd.f32 %v889, %v890
  %v892 = vsel %vm92, %v464, 0.0
  %v893 = vrot.slane %v892, 4
  %v894 = vadd.f32 %v892, %v893
  %v895 = vrot.slane %v894, 2
  %v896 = vadd.f32 %v894, %v895
  %v897 = vrot.slane %v896, 1
  %v898 = vadd.f32 %v896, %v897
  %v899 = vsel %vm92, %v465, 0.0
  %v900 = vrot.slane %v899, 4
  %v901 = vadd.f32 %v899, %v900
  %v902 = vrot.slane %v901, 2
  %v903 = vadd.f32 %v901, %v902
  %v904 = vrot.slane %v903, 1
  %v905 = vadd.f32 %v903, %v904
  %v906 = vsel %vm92, %v466, 0.0
  %v907 = vrot.slane %v906, 4
  %v908 = vadd.f32 %v906, %v907
  %v909 = vrot.slane %v908, 2
  %v910 = vadd.f32 %v908, %v909
  %v911 = vrot.slane %v910, 1
  %v912 = vadd.f32 %v910, %v911
  %v913 = vsel %vm92, %v467, 0.0
  %v914 = vrot.slane %v913, 4
  %v915 = vadd.f32 %v913, %v914
  %v916 = vrot.slane %v915, 2
  %v917 = vadd.f32 %v915, %v916
  %v918 = vrot.slane %v917, 1
  %v919 = vadd.f32 %v917, %v918
  %v920 = vsel %vm92, %v468, 0.0
  %v921 = vrot.slane %v920, 4
  %v922 = vadd.f32 %v920, %v921
  %v923 = vrot.slane %v922, 2
  %v924 = vadd.f32 %v922, %v923
  %v925 = vrot.slane %v924, 1
  %v926 = vadd.f32 %v924, %v925
  %v927 = vsel %vm92, %v469, 0.0
  %v928 = vrot.slane %v927, 4
  %v929 = vadd.f32 %v927, %v928
  %v930 = vrot.slane %v929, 2
  %v931 = vadd.f32 %v929, %v930
  %v932 = vrot.slane %v931, 1
  %v933 = vadd.f32 %v931, %v932
  %v934 = vsel %vm92, %v470, 0.0
  %v935 = vrot.slane %v934, 4
  %v936 = vadd.f32 %v934, %v935
  %v937 = vrot.slane %v936, 2
  %v938 = vadd.f32 %v936, %v937
  %v939 = vrot.slane %v938, 1
  %v940 = vadd.f32 %v938, %v939
  %v941 = vsel %vm92, %v471, 0.0
  %v942 = vrot.slane %v941, 4
  %v943 = vadd.f32 %v941, %v942
  %v944 = vrot.slane %v943, 2
  %v945 = vadd.f32 %v943, %v944
  %v946 = vrot.slane %v945, 1
  %v947 = vadd.f32 %v945, %v946
  %v948 = vsel %vm92, %v472, 0.0
  %v949 = vrot.slane %v948, 4
  %v950 = vadd.f32 %v948, %v949
  %v951 = vrot.slane %v950, 2
  %v952 = vadd.f32 %v950, %v951
  %v953 = vrot.slane %v952, 1
  %v954 = vadd.f32 %v952, %v953
  %v955 = vsel %vm92, %v473, 0.0
  %v956 = vrot.slane %v955, 4
  %v957 = vadd.f32 %v955, %v956
  %v958 = vrot.slane %v957, 2
  %v959 = vadd.f32 %v957, %v958
  %v960 = vrot.slane %v959, 1
  %v961 = vadd.f32 %v959, %v960
  %v962 = vsel %vm92, %v474, 0.0
  %v963 = vrot.slane %v962, 4
  %v964 = vadd.f32 %v962, %v963
  %v965 = vrot.slane %v964, 2
  %v966 = vadd.f32 %v964, %v965
  %v967 = vrot.slane %v966, 1
  %v968 = vadd.f32 %v966, %v967
  %v969 = vsel %vm92, %v475, 0.0
  %v970 = vrot.slane %v969, 4
  %v971 = vadd.f32 %v969, %v970
  %v972 = vrot.slane %v971, 2
  %v973 = vadd.f32 %v971, %v972
  %v974 = vrot.slane %v973, 1
  %v975 = vadd.f32 %v973, %v974
  %v976 = vsel %vm92, %v476, 0.0
  %v977 = vrot.slane %v976, 4
  %v978 = vadd.f32 %v976, %v977
  %v979 = vrot.slane %v978, 2
  %v980 = vadd.f32 %v978, %v979
  %v981 = vrot.slane %v980, 1
  %v982 = vadd.f32 %v980, %v981
  %v983 = vsel %vm92, %v477, 0.0
  %v984 = vrot.slane %v983, 4
  %v985 = vadd.f32 %v983, %v984
  %v986 = vrot.slane %v985, 2
  %v987 = vadd.f32 %v985, %v986
  %v988 = vrot.slane %v987, 1
  %v989 = vadd.f32 %v987, %v988
  %v990 = vsel %vm92, %v478, 0.0
  %v991 = vrot.slane %v990, 4
  %v992 = vadd.f32 %v990, %v991
  %v993 = vrot.slane %v992, 2
  %v994 = vadd.f32 %v992, %v993
  %v995 = vrot.slane %v994, 1
  %v996 = vadd.f32 %v994, %v995
  %v997 = vsel %vm92, %v479, 0.0
  %v998 = vrot.slane %v997, 4
  %v999 = vadd.f32 %v997, %v998
  %v1000 = vrot.slane %v999, 2
  %v1001 = vadd.f32 %v999, %v1000
  %v1002 = vrot.slane %v1001, 1
  %v1003 = vadd.f32 %v1001, %v1002
  %v1004 = vsel %vm92, %v480, 0.0
  %v1005 = vrot.slane %v1004, 4
  %v1006 = vadd.f32 %v1004, %v1005
  %v1007 = vrot.slane %v1006, 2
  %v1008 = vadd.f32 %v1006, %v1007
  %v1009 = vrot.slane %v1008, 1
  %v1010 = vadd.f32 %v1008, %v1009
  %v1011 = vsel %vm92, %v481, 0.0
  %v1012 = vrot.slane %v1011, 4
  %v1013 = vadd.f32 %v1011, %v1012
  %v1014 = vrot.slane %v1013, 2
  %v1015 = vadd.f32 %v1013, %v1014
  %v1016 = vrot.slane %v1015, 1
  %v1017 = vadd.f32 %v1015, %v1016
  %v1018 = vsel %vm92, %v482, 0.0
  %v1019 = vrot.slane %v1018, 4
  %v1020 = vadd.f32 %v1018, %v1019
  %v1021 = vrot.slane %v1020, 2
  %v1022 = vadd.f32 %v1020, %v1021
  %v1023 = vrot.slane %v1022, 1
  %v1024 = vadd.f32 %v1022, %v1023
  %v1025 = vsel %vm92, %v483, 0.0
  %v1026 = vrot.slane %v1025, 4
  %v1027 = vadd.f32 %v1025, %v1026
  %v1028 = vrot.slane %v1027, 2
  %v1029 = vadd.f32 %v1027, %v1028
  %v1030 = vrot.slane %v1029, 1
  %v1031 = vadd.f32 %v1029, %v1030
  %v1032 = vsel %vm92, %v484, 0.0
  %v1033 = vrot.slane %v1032, 4
  %v1034 = vadd.f32 %v1032, %v1033
  %v1035 = vrot.slane %v1034, 2
  %v1036 = vadd.f32 %v1034, %v1035
  %v1037 = vrot.slane %v1036, 1
  %v1038 = vadd.f32 %v1036, %v1037
  %v1039 = vsel %vm92, %v485, 0.0
  %v1040 = vrot.slane %v1039, 4
  %v1041 = vadd.f32 %v1039, %v1040
  %v1042 = vrot.slane %v1041, 2
  %v1043 = vadd.f32 %v1041, %v1042
  %v1044 = vrot.slane %v1043, 1
  %v1045 = vadd.f32 %v1043, %v1044
  %v1046 = vsel %vm92, %v486, 0.0
  %v1047 = vrot.slane %v1046, 4
  %v1048 = vadd.f32 %v1046, %v1047
  %v1049 = vrot.slane %v1048, 2
  %v1050 = vadd.f32 %v1048, %v1049
  %v1051 = vrot.slane %v1050, 1
  %v1052 = vadd.f32 %v1050, %v1051
  %v1053 = vsel %vm92, %v487, 0.0
  %v1054 = vrot.slane %v1053, 4
  %v1055 = vadd.f32 %v1053, %v1054
  %v1056 = vrot.slane %v1055, 2
  %v1057 = vadd.f32 %v1055, %v1056
  %v1058 = vrot.slane %v1057, 1
  %v1059 = vadd.f32 %v1057, %v1058
  %v1060 = vsel %vm92, %v488, 0.0
  %v1061 = vrot.slane %v1060, 4
  %v1062 = vadd.f32 %v1060, %v1061
  %v1063 = vrot.slane %v1062, 2
  %v1064 = vadd.f32 %v1062, %v1063
  %v1065 = vrot.slane %v1064, 1
  %v1066 = vadd.f32 %v1064, %v1065
  %v1067 = vsel %vm92, %v489, 0.0
  %v1068 = vrot.slane %v1067, 4
  %v1069 = vadd.f32 %v1067, %v1068
  %v1070 = vrot.slane %v1069, 2
  %v1071 = vadd.f32 %v1069, %v1070
  %v1072 = vrot.slane %v1071, 1
  %v1073 = vadd.f32 %v1071, %v1072
  %v1074 = vsel %vm92, %v490, 0.0
  %v1075 = vrot.slane %v1074, 4
  %v1076 = vadd.f32 %v1074, %v1075
  %v1077 = vrot.slane %v1076, 2
  %v1078 = vadd.f32 %v1076, %v1077
  %v1079 = vrot.slane %v1078, 1
  %v1080 = vadd.f32 %v1078, %v1079
  %v1081 = vsel %vm92, %v491, 0.0
  %v1082 = vrot.slane %v1081, 4
  %v1083 = vadd.f32 %v1081, %v1082
  %v1084 = vrot.slane %v1083, 2
  %v1085 = vadd.f32 %v1083, %v1084
  %v1086 = vrot.slane %v1085, 1
  %v1087 = vadd.f32 %v1085, %v1086
  %v1088 = vsel %vm92, %v492, 0.0
  %v1089 = vrot.slane %v1088, 4
  %v1090 = vadd.f32 %v1088, %v1089
  %v1091 = vrot.slane %v1090, 2
  %v1092 = vadd.f32 %v1090, %v1091
  %v1093 = vrot.slane %v1092, 1
  %v1094 = vadd.f32 %v1092, %v1093
  %v1095 = vsel %vm92, %v493, 0.0
  %v1096 = vrot.slane %v1095, 4
  %v1097 = vadd.f32 %v1095, %v1096
  %v1098 = vrot.slane %v1097, 2
  %v1099 = vadd.f32 %v1097, %v1098
  %v1100 = vrot.slane %v1099, 1
  %v1101 = vadd.f32 %v1099, %v1100
  %v1102 = vsel %vm92, %v494, 0.0
  %v1103 = vrot.slane %v1102, 4
  %v1104 = vadd.f32 %v1102, %v1103
  %v1105 = vrot.slane %v1104, 2
  %v1106 = vadd.f32 %v1104, %v1105
  %v1107 = vrot.slane %v1106, 1
  %v1108 = vadd.f32 %v1106, %v1107
  %v1109 = vsel %vm92, %v495, 0.0
  %v1110 = vrot.slane %v1109, 4
  %v1111 = vadd.f32 %v1109, %v1110
  %v1112 = vrot.slane %v1111, 2
  %v1113 = vadd.f32 %v1111, %v1112
  %v1114 = vrot.slane %v1113, 1
  %v1115 = vadd.f32 %v1113, %v1114
  %v1116 = vsel %vm92, %v496, 0.0
  %v1117 = vrot.slane %v1116, 4
  %v1118 = vadd.f32 %v1116, %v1117
  %v1119 = vrot.slane %v1118, 2
  %v1120 = vadd.f32 %v1118, %v1119
  %v1121 = vrot.slane %v1120, 1
  %v1122 = vadd.f32 %v1120, %v1121
  %v1123 = vsel %vm92, %v497, 0.0
  %v1124 = vrot.slane %v1123, 4
  %v1125 = vadd.f32 %v1123, %v1124
  %v1126 = vrot.slane %v1125, 2
  %v1127 = vadd.f32 %v1125, %v1126
  %v1128 = vrot.slane %v1127, 1
  %v1129 = vadd.f32 %v1127, %v1128
  %v1130 = vsel %vm92, %v498, 0.0
  %v1131 = vrot.slane %v1130, 4
  %v1132 = vadd.f32 %v1130, %v1131
  %v1133 = vrot.slane %v1132, 2
  %v1134 = vadd.f32 %v1132, %v1133
  %v1135 = vrot.slane %v1134, 1
  %v1136 = vadd.f32 %v1134, %v1135
  %v1137 = vsel %vm92, %v499, 0.0
  %v1138 = vrot.slane %v1137, 4
  %v1139 = vadd.f32 %v1137, %v1138
  %v1140 = vrot.slane %v1139, 2
  %v1141 = vadd.f32 %v1139, %v1140
  %v1142 = vrot.slane %v1141, 1
  %v1143 = vadd.f32 %v1141, %v1142
  %v1144 = vsel %vm92, %v500, 0.0
  %v1145 = vrot.slane %v1144, 4
  %v1146 = vadd.f32 %v1144, %v1145
  %v1147 = vrot.slane %v1146, 2
  %v1148 = vadd.f32 %v1146, %v1147
  %v1149 = vrot.slane %v1148, 1
  %v1150 = vadd.f32 %v1148, %v1149
  %v1151 = vsel %vm92, %v501, 0.0
  %v1152 = vrot.slane %v1151, 4
  %v1153 = vadd.f32 %v1151, %v1152
  %v1154 = vrot.slane %v1153, 2
  %v1155 = vadd.f32 %v1153, %v1154
  %v1156 = vrot.slane %v1155, 1
  %v1157 = vadd.f32 %v1155, %v1156
  %v1158 = vsel %vm92, %v502, 0.0
  %v1159 = vrot.slane %v1158, 4
  %v1160 = vadd.f32 %v1158, %v1159
  %v1161 = vrot.slane %v1160, 2
  %v1162 = vadd.f32 %v1160, %v1161
  %v1163 = vrot.slane %v1162, 1
  %v1164 = vadd.f32 %v1162, %v1163
  %v1165 = vsel %vm92, %v503, 0.0
  %v1166 = vrot.slane %v1165, 4
  %v1167 = vadd.f32 %v1165, %v1166
  %v1168 = vrot.slane %v1167, 2
  %v1169 = vadd.f32 %v1167, %v1168
  %v1170 = vrot.slane %v1169, 1
  %v1171 = vadd.f32 %v1169, %v1170
  %v1172 = vsel %vm92, %v504, 0.0
  %v1173 = vrot.slane %v1172, 4
  %v1174 = vadd.f32 %v1172, %v1173
  %v1175 = vrot.slane %v1174, 2
  %v1176 = vadd.f32 %v1174, %v1175
  %v1177 = vrot.slane %v1176, 1
  %v1178 = vadd.f32 %v1176, %v1177
  %v1179 = vsel %vm92, %v505, 0.0
  %v1180 = vrot.slane %v1179, 4
  %v1181 = vadd.f32 %v1179, %v1180
  %v1182 = vrot.slane %v1181, 2
  %v1183 = vadd.f32 %v1181, %v1182
  %v1184 = vrot.slane %v1183, 1
  %v1185 = vadd.f32 %v1183, %v1184
  %v1186 = vsel %vm92, %v506, 0.0
  %v1187 = vrot.slane %v1186, 4
  %v1188 = vadd.f32 %v1186, %v1187
  %v1189 = vrot.slane %v1188, 2
  %v1190 = vadd.f32 %v1188, %v1189
  %v1191 = vrot.slane %v1190, 1
  %v1192 = vadd.f32 %v1190, %v1191
  %v1193 = vsel %vm92, %v507, 0.0
  %v1194 = vrot.slane %v1193, 4
  %v1195 = vadd.f32 %v1193, %v1194
  %v1196 = vrot.slane %v1195, 2
  %v1197 = vadd.f32 %v1195, %v1196
  %v1198 = vrot.slane %v1197, 1
  %v1199 = vadd.f32 %v1197, %v1198
  %v1200 = vsel %vm92, %v508, 0.0
  %v1201 = vrot.slane %v1200, 4
  %v1202 = vadd.f32 %v1200, %v1201
  %v1203 = vrot.slane %v1202, 2
  %v1204 = vadd.f32 %v1202, %v1203
  %v1205 = vrot.slane %v1204, 1
  %v1206 = vadd.f32 %v1204, %v1205
  %v1207 = vsel %vm92, %v509, 0.0
  %v1208 = vrot.slane %v1207, 4
  %v1209 = vadd.f32 %v1207, %v1208
  %v1210 = vrot.slane %v1209, 2
  %v1211 = vadd.f32 %v1209, %v1210
  %v1212 = vrot.slane %v1211, 1
  %v1213 = vadd.f32 %v1211, %v1212
  %v1214 = vsel %vm92, %v510, 0.0
  %v1215 = vrot.slane %v1214, 4
  %v1216 = vadd.f32 %v1214, %v1215
  %v1217 = vrot.slane %v1216, 2
  %v1218 = vadd.f32 %v1216, %v1217
  %v1219 = vrot.slane %v1218, 1
  %v1220 = vadd.f32 %v1218, %v1219
  %v1221 = vsel %vm92, %v511, 0.0
  %v1222 = vrot.slane %v1221, 4
  %v1223 = vadd.f32 %v1221, %v1222
  %v1224 = vrot.slane %v1223, 2
  %v1225 = vadd.f32 %v1223, %v1224
  %v1226 = vrot.slane %v1225, 1
  %v1227 = vadd.f32 %v1225, %v1226
  %v1228 = vsel %vm92, %v512, 0.0
  %v1229 = vrot.slane %v1228, 4
  %v1230 = vadd.f32 %v1228, %v1229
  %v1231 = vrot.slane %v1230, 2
  %v1232 = vadd.f32 %v1230, %v1231
  %v1233 = vrot.slane %v1232, 1
  %v1234 = vadd.f32 %v1232, %v1233
  %v1235 = vsel %vm92, %v513, 0.0
  %v1236 = vrot.slane %v1235, 4
  %v1237 = vadd.f32 %v1235, %v1236
  %v1238 = vrot.slane %v1237, 2
  %v1239 = vadd.f32 %v1237, %v1238
  %v1240 = vrot.slane %v1239, 1
  %v1241 = vadd.f32 %v1239, %v1240
  %v1242 = vsel %vm92, %v514, 0.0
  %v1243 = vrot.slane %v1242, 4
  %v1244 = vadd.f32 %v1242, %v1243
  %v1245 = vrot.slane %v1244, 2
  %v1246 = vadd.f32 %v1244, %v1245
  %v1247 = vrot.slane %v1246, 1
  %v1248 = vadd.f32 %v1246, %v1247
  %v1249 = vsel %vm92, %v515, 0.0
  %v1250 = vrot.slane %v1249, 4
  %v1251 = vadd.f32 %v1249, %v1250
  %v1252 = vrot.slane %v1251, 2
  %v1253 = vadd.f32 %v1251, %v1252
  %v1254 = vrot.slane %v1253, 1
  %v1255 = vadd.f32 %v1253, %v1254
  %v1256 = vsel %vm92, %v516, 0.0
  %v1257 = vrot.slane %v1256, 4
  %v1258 = vadd.f32 %v1256, %v1257
  %v1259 = vrot.slane %v1258, 2
  %v1260 = vadd.f32 %v1258, %v1259
  %v1261 = vrot.slane %v1260, 1
  %v1262 = vadd.f32 %v1260, %v1261
  %v1263 = vsel %vm92, %v517, 0.0
  %v1264 = vrot.slane %v1263, 4
  %v1265 = vadd.f32 %v1263, %v1264
  %v1266 = vrot.slane %v1265, 2
  %v1267 = vadd.f32 %v1265, %v1266
  %v1268 = vrot.slane %v1267, 1
  %v1269 = vadd.f32 %v1267, %v1268
  %v1270 = vsel %vm92, %v518, 0.0
  %v1271 = vrot.slane %v1270, 4
  %v1272 = vadd.f32 %v1270, %v1271
  %v1273 = vrot.slane %v1272, 2
  %v1274 = vadd.f32 %v1272, %v1273
  %v1275 = vrot.slane %v1274, 1
  %v1276 = vadd.f32 %v1274, %v1275
  %v1277 = vsel %vm92, %v519, 0.0
  %v1278 = vrot.slane %v1277, 4
  %v1279 = vadd.f32 %v1277, %v1278
  %v1280 = vrot.slane %v1279, 2
  %v1281 = vadd.f32 %v1279, %v1280
  %v1282 = vrot.slane %v1281, 1
  %v1283 = vadd.f32 %v1281, %v1282
  %v1284 = vsel %vm92, %v520, 0.0
  %v1285 = vrot.slane %v1284, 4
  %v1286 = vadd.f32 %v1284, %v1285
  %v1287 = vrot.slane %v1286, 2
  %v1288 = vadd.f32 %v1286, %v1287
  %v1289 = vrot.slane %v1288, 1
  %v1290 = vadd.f32 %v1288, %v1289
  %v1291 = vsel %vm92, %v521, 0.0
  %v1292 = vrot.slane %v1291, 4
  %v1293 = vadd.f32 %v1291, %v1292
  %v1294 = vrot.slane %v1293, 2
  %v1295 = vadd.f32 %v1293, %v1294
  %v1296 = vrot.slane %v1295, 1
  %v1297 = vadd.f32 %v1295, %v1296
  %v1298 = vsel %vm92, %v522, 0.0
  %v1299 = vrot.slane %v1298, 4
  %v1300 = vadd.f32 %v1298, %v1299
  %v1301 = vrot.slane %v1300, 2
  %v1302 = vadd.f32 %v1300, %v1301
  %v1303 = vrot.slane %v1302, 1
  %v1304 = vadd.f32 %v1302, %v1303
  %v1305 = vsel %vm92, %v523, 0.0
  %v1306 = vrot.slane %v1305, 4
  %v1307 = vadd.f32 %v1305, %v1306
  %v1308 = vrot.slane %v1307, 2
  %v1309 = vadd.f32 %v1307, %v1308
  %v1310 = vrot.slane %v1309, 1
  %v1311 = vadd.f32 %v1309, %v1310
  %v1312 = vsel %vm92, %v524, 0.0
  %v1313 = vrot.slane %v1312, 4
  %v1314 = vadd.f32 %v1312, %v1313
  %v1315 = vrot.slane %v1314, 2
  %v1316 = vadd.f32 %v1314, %v1315
  %v1317 = vrot.slane %v1316, 1
  %v1318 = vadd.f32 %v1316, %v1317
  %v1319 = vsel %vm92, %v525, 0.0
  %v1320 = vrot.slane %v1319, 4
  %v1321 = vadd.f32 %v1319, %v1320
  %v1322 = vrot.slane %v1321, 2
  %v1323 = vadd.f32 %v1321, %v1322
  %v1324 = vrot.slane %v1323, 1
  %v1325 = vadd.f32 %v1323, %v1324
  %v1326 = vsel %vm92, %v526, 0.0
  %v1327 = vrot.slane %v1326, 4
  %v1328 = vadd.f32 %v1326, %v1327
  %v1329 = vrot.slane %v1328, 2
  %v1330 = vadd.f32 %v1328, %v1329
  %v1331 = vrot.slane %v1330, 1
  %v1332 = vadd.f32 %v1330, %v1331
  %v1333 = vsel %vm92, %v527, 0.0
  %v1334 = vrot.slane %v1333, 4
  %v1335 = vadd.f32 %v1333, %v1334
  %v1336 = vrot.slane %v1335, 2
  %v1337 = vadd.f32 %v1335, %v1336
  %v1338 = vrot.slane %v1337, 1
  %v1339 = vadd.f32 %v1337, %v1338
  %v1340 = vsel %vm92, %v528, 0.0
  %v1341 = vrot.slane %v1340, 4
  %v1342 = vadd.f32 %v1340, %v1341
  %v1343 = vrot.slane %v1342, 2
  %v1344 = vadd.f32 %v1342, %v1343
  %v1345 = vrot.slane %v1344, 1
  %v1346 = vadd.f32 %v1344, %v1345
  %v1347 = vsel %vm92, %v529, 0.0
  %v1348 = vrot.slane %v1347, 4
  %v1349 = vadd.f32 %v1347, %v1348
  %v1350 = vrot.slane %v1349, 2
  %v1351 = vadd.f32 %v1349, %v1350
  %v1352 = vrot.slane %v1351, 1
  %v1353 = vadd.f32 %v1351, %v1352
  %v1354 = vsel %vm92, %v530, 0.0
  %v1355 = vrot.slane %v1354, 4
  %v1356 = vadd.f32 %v1354, %v1355
  %v1357 = vrot.slane %v1356, 2
  %v1358 = vadd.f32 %v1356, %v1357
  %v1359 = vrot.slane %v1358, 1
  %v1360 = vadd.f32 %v1358, %v1359
  %v1361 = vsel %vm92, %v531, 0.0
  %v1362 = vrot.slane %v1361, 4
  %v1363 = vadd.f32 %v1361, %v1362
  %v1364 = vrot.slane %v1363, 2
  %v1365 = vadd.f32 %v1363, %v1364
  %v1366 = vrot.slane %v1365, 1
  %v1367 = vadd.f32 %v1365, %v1366
  %v1368 = vsel %vm92, %v532, 0.0
  %v1369 = vrot.slane %v1368, 4
  %v1370 = vadd.f32 %v1368, %v1369
  %v1371 = vrot.slane %v1370, 2
  %v1372 = vadd.f32 %v1370, %v1371
  %v1373 = vrot.slane %v1372, 1
  %v1374 = vadd.f32 %v1372, %v1373
  %v1375 = vsel %vm92, %v533, 0.0
  %v1376 = vrot.slane %v1375, 4
  %v1377 = vadd.f32 %v1375, %v1376
  %v1378 = vrot.slane %v1377, 2
  %v1379 = vadd.f32 %v1377, %v1378
  %v1380 = vrot.slane %v1379, 1
  %v1381 = vadd.f32 %v1379, %v1380
  %v1382 = vsel %vm92, %v534, 0.0
  %v1383 = vrot.slane %v1382, 4
  %v1384 = vadd.f32 %v1382, %v1383
  %v1385 = vrot.slane %v1384, 2
  %v1386 = vadd.f32 %v1384, %v1385
  %v1387 = vrot.slane %v1386, 1
  %v1388 = vadd.f32 %v1386, %v1387
  %v1389 = vsel %vm92, %v535, 0.0
  %v1390 = vrot.slane %v1389, 4
  %v1391 = vadd.f32 %v1389, %v1390
  %v1392 = vrot.slane %v1391, 2
  %v1393 = vadd.f32 %v1391, %v1392
  %v1394 = vrot.slane %v1393, 1
  %v1395 = vadd.f32 %v1393, %v1394
  %v1396 = vsel %vm92, %v536, 0.0
  %v1397 = vrot.slane %v1396, 4
  %v1398 = vadd.f32 %v1396, %v1397
  %v1399 = vrot.slane %v1398, 2
  %v1400 = vadd.f32 %v1398, %v1399
  %v1401 = vrot.slane %v1400, 1
  %v1402 = vadd.f32 %v1400, %v1401
  %v1403 = vsel %vm92, %v537, 0.0
  %v1404 = vrot.slane %v1403, 4
  %v1405 = vadd.f32 %v1403, %v1404
  %v1406 = vrot.slane %v1405, 2
  %v1407 = vadd.f32 %v1405, %v1406
  %v1408 = vrot.slane %v1407, 1
  %v1409 = vadd.f32 %v1407, %v1408
  %v1410 = vsel %vm92, %v538, 0.0
  %v1411 = vrot.slane %v1410, 4
  %v1412 = vadd.f32 %v1410, %v1411
  %v1413 = vrot.slane %v1412, 2
  %v1414 = vadd.f32 %v1412, %v1413
  %v1415 = vrot.slane %v1414, 1
  %v1416 = vadd.f32 %v1414, %v1415
  %v1417 = vsel %vm92, %v539, 0.0
  %v1418 = vrot.slane %v1417, 4
  %v1419 = vadd.f32 %v1417, %v1418
  %v1420 = vrot.slane %v1419, 2
  %v1421 = vadd.f32 %v1419, %v1420
  %v1422 = vrot.slane %v1421, 1
  %v1423 = vadd.f32 %v1421, %v1422
  %v1424 = vsel %vm92, %v540, 0.0
  %v1425 = vrot.slane %v1424, 4
  %v1426 = vadd.f32 %v1424, %v1425
  %v1427 = vrot.slane %v1426, 2
  %v1428 = vadd.f32 %v1426, %v1427
  %v1429 = vrot.slane %v1428, 1
  %v1430 = vadd.f32 %v1428, %v1429
  %v1431 = vsel %vm92, %v541, 0.0
  %v1432 = vrot.slane %v1431, 4
  %v1433 = vadd.f32 %v1431, %v1432
  %v1434 = vrot.slane %v1433, 2
  %v1435 = vadd.f32 %v1433, %v1434
  %v1436 = vrot.slane %v1435, 1
  %v1437 = vadd.f32 %v1435, %v1436
  %1454 = vrot.lane.b32.xlu0 %v288, 112
  %v1455 = vpop.permute.xlu0 %1454
  %1456 = vrot.lane.b32.xlu0 %v291, 112
  %v1457 = vpop.permute.xlu0 %1456
  %1458 = vrot.lane.b32.xlu0 %v296, 112
  %v1459 = vpop.permute.xlu0 %1458
  %1460 = vrot.lane.b32.xlu0 %v299, 112
  %v1461 = vpop.permute.xlu0 %1460
  %1462 = vrot.lane.b32.xlu0 %v304, 112
  %v1463 = vpop.permute.xlu0 %1462
  %1464 = vrot.lane.b32.xlu0 %v307, 112
  %v1465 = vpop.permute.xlu0 %1464
  %1466 = vrot.lane.b32.xlu0 %v312, 112
  %v1467 = vpop.permute.xlu0 %1466
  %1468 = vrot.lane.b32.xlu0 %v315, 112
  %v1469 = vpop.permute.xlu0 %1468
  %1470 = vrot.lane.b32.xlu0 %v320, 112
  %v1471 = vpop.permute.xlu0 %1470
  %1472 = vrot.lane.b32.xlu0 %v323, 112
  %v1473 = vpop.permute.xlu0 %1472
  %1474 = vrot.lane.b32.xlu0 %v328, 112
  %v1475 = vpop.permute.xlu0 %1474
  %1476 = vrot.lane.b32.xlu0 %v331, 112
  %v1477 = vpop.permute.xlu0 %1476
  %1478 = vrot.lane.b32.xlu0 %v336, 112
  %v1479 = vpop.permute.xlu0 %1478
  %1480 = vrot.lane.b32.xlu0 %v339, 112
  %v1481 = vpop.permute.xlu0 %1480
  %1482 = vrot.lane.b32.xlu0 %v344, 112
  %v1483 = vpop.permute.xlu0 %1482
  %1484 = vrot.lane.b32.xlu0 %v347, 112
  %v1485 = vpop.permute.xlu0 %1484
  %v1502 = vmul.f32 %v288, %v1455
  %v1503 = vmul.f32 %v288, %v1457
  %v1504 = vmul.f32 %v288, %v1459
  %v1505 = vmul.f32 %v288, %v1461
  %v1506 = vmul.f32 %v288, %v1463
  %v1507 = vmul.f32 %v288, %v1465
  %v1508 = vmul.f32 %v288, %v1467
  %v1509 = vmul.f32 %v288, %v1469
  %v1510 = vmul.f32 %v291, %v1455
  %v1511 = vmul.f32 %v291, %v1457
  %v1512 = vmul.f32 %v291, %v1459
  %v1513 = vmul.f32 %v291, %v1461
  %v1514 = vmul.f32 %v291, %v1463
  %v1515 = vmul.f32 %v291, %v1465
  %v1516 = vmul.f32 %v291, %v1467
  %v1517 = vmul.f32 %v291, %v1469
  %v1518 = vmul.f32 %v296, %v1455
  %v1519 = vmul.f32 %v296, %v1457
  %v1520 = vmul.f32 %v296, %v1459
  %v1521 = vmul.f32 %v296, %v1461
  %v1522 = vmul.f32 %v296, %v1463
  %v1523 = vmul.f32 %v296, %v1465
  %v1524 = vmul.f32 %v296, %v1467
  %v1525 = vmul.f32 %v296, %v1469
  %v1526 = vmul.f32 %v299, %v1455
  %v1527 = vmul.f32 %v299, %v1457
  %v1528 = vmul.f32 %v299, %v1459
  %v1529 = vmul.f32 %v299, %v1461
  %v1530 = vmul.f32 %v299, %v1463
  %v1531 = vmul.f32 %v299, %v1465
  %v1532 = vmul.f32 %v299, %v1467
  %v1533 = vmul.f32 %v299, %v1469
  %v1534 = vmul.f32 %v304, %v1455
  %v1535 = vmul.f32 %v304, %v1457
  %v1536 = vmul.f32 %v304, %v1459
  %v1537 = vmul.f32 %v304, %v1461
  %v1538 = vmul.f32 %v304, %v1463
  %v1539 = vmul.f32 %v304, %v1465
  %v1540 = vmul.f32 %v304, %v1467
  %v1541 = vmul.f32 %v304, %v1469
  %v1542 = vmul.f32 %v307, %v1455
  %v1543 = vmul.f32 %v307, %v1457
  %v1544 = vmul.f32 %v307, %v1459
  %v1545 = vmul.f32 %v307, %v1461
  %v1546 = vmul.f32 %v307, %v1463
  %v1547 = vmul.f32 %v307, %v1465
  %v1548 = vmul.f32 %v307, %v1467
  %v1549 = vmul.f32 %v307, %v1469
  %v1550 = vmul.f32 %v312, %v1455
  %v1551 = vmul.f32 %v312, %v1457
  %v1552 = vmul.f32 %v312, %v1459
  %v1553 = vmul.f32 %v312, %v1461
  %v1554 = vmul.f32 %v312, %v1463
  %v1555 = vmul.f32 %v312, %v1465
  %v1556 = vmul.f32 %v312, %v1467
  %v1557 = vmul.f32 %v312, %v1469
  %v1558 = vmul.f32 %v315, %v1455
  %v1559 = vmul.f32 %v315, %v1457
  %v1560 = vmul.f32 %v315, %v1459
  %v1561 = vmul.f32 %v315, %v1461
  %v1562 = vmul.f32 %v315, %v1463
  %v1563 = vmul.f32 %v315, %v1465
  %v1564 = vmul.f32 %v315, %v1467
  %v1565 = vmul.f32 %v315, %v1469
  %v1566 = vmul.f32 %v320, %v1471
  %v1567 = vmul.f32 %v320, %v1473
  %v1568 = vmul.f32 %v320, %v1475
  %v1569 = vmul.f32 %v320, %v1477
  %v1570 = vmul.f32 %v320, %v1479
  %v1571 = vmul.f32 %v320, %v1481
  %v1572 = vmul.f32 %v320, %v1483
  %v1573 = vmul.f32 %v320, %v1485
  %v1574 = vmul.f32 %v323, %v1471
  %v1575 = vmul.f32 %v323, %v1473
  %v1576 = vmul.f32 %v323, %v1475
  %v1577 = vmul.f32 %v323, %v1477
  %v1578 = vmul.f32 %v323, %v1479
  %v1579 = vmul.f32 %v323, %v1481
  %v1580 = vmul.f32 %v323, %v1483
  %v1581 = vmul.f32 %v323, %v1485
  %v1582 = vmul.f32 %v328, %v1471
  %v1583 = vmul.f32 %v328, %v1473
  %v1584 = vmul.f32 %v328, %v1475
  %v1585 = vmul.f32 %v328, %v1477
  %v1586 = vmul.f32 %v328, %v1479
  %v1587 = vmul.f32 %v328, %v1481
  %v1588 = vmul.f32 %v328, %v1483
  %v1589 = vmul.f32 %v328, %v1485
  %v1590 = vmul.f32 %v331, %v1471
  %v1591 = vmul.f32 %v331, %v1473
  %v1592 = vmul.f32 %v331, %v1475
  %v1593 = vmul.f32 %v331, %v1477
  %v1594 = vmul.f32 %v331, %v1479
  %v1595 = vmul.f32 %v331, %v1481
  %v1596 = vmul.f32 %v331, %v1483
  %v1597 = vmul.f32 %v331, %v1485
  %v1598 = vmul.f32 %v336, %v1471
  %v1599 = vmul.f32 %v336, %v1473
  %v1600 = vmul.f32 %v336, %v1475
  %v1601 = vmul.f32 %v336, %v1477
  %v1602 = vmul.f32 %v336, %v1479
  %v1603 = vmul.f32 %v336, %v1481
  %v1604 = vmul.f32 %v336, %v1483
  %v1605 = vmul.f32 %v336, %v1485
  %v1606 = vmul.f32 %v339, %v1471
  %v1607 = vmul.f32 %v339, %v1473
  %v1608 = vmul.f32 %v339, %v1475
  %v1609 = vmul.f32 %v339, %v1477
  %v1610 = vmul.f32 %v339, %v1479
  %v1611 = vmul.f32 %v339, %v1481
  %v1612 = vmul.f32 %v339, %v1483
  %v1613 = vmul.f32 %v339, %v1485
  %v1614 = vmul.f32 %v344, %v1471
  %v1615 = vmul.f32 %v344, %v1473
  %v1616 = vmul.f32 %v344, %v1475
  %v1617 = vmul.f32 %v344, %v1477
  %v1618 = vmul.f32 %v344, %v1479
  %v1619 = vmul.f32 %v344, %v1481
  %v1620 = vmul.f32 %v344, %v1483
  %v1621 = vmul.f32 %v344, %v1485
  %v1622 = vmul.f32 %v347, %v1471
  %v1623 = vmul.f32 %v347, %v1473
  %v1624 = vmul.f32 %v347, %v1475
  %v1625 = vmul.f32 %v347, %v1477
  %v1626 = vmul.f32 %v347, %v1479
  %v1627 = vmul.f32 %v347, %v1481
  %v1628 = vmul.f32 %v347, %v1483
  %v1629 = vmul.f32 %v347, %v1485
  %v1630 = vsel %vm92, %v1502, 0.0
  %v1631 = vrot.slane %v1630, 4
  %v1632 = vadd.f32 %v1630, %v1631
  %v1633 = vrot.slane %v1632, 2
  %v1634 = vadd.f32 %v1632, %v1633
  %v1635 = vrot.slane %v1634, 1
  %v1636 = vadd.f32 %v1634, %v1635
  %v1637 = vsel %vm92, %v1503, 0.0
  %v1638 = vrot.slane %v1637, 4
  %v1639 = vadd.f32 %v1637, %v1638
  %v1640 = vrot.slane %v1639, 2
  %v1641 = vadd.f32 %v1639, %v1640
  %v1642 = vrot.slane %v1641, 1
  %v1643 = vadd.f32 %v1641, %v1642
  %v1644 = vsel %vm92, %v1504, 0.0
  %v1645 = vrot.slane %v1644, 4
  %v1646 = vadd.f32 %v1644, %v1645
  %v1647 = vrot.slane %v1646, 2
  %v1648 = vadd.f32 %v1646, %v1647
  %v1649 = vrot.slane %v1648, 1
  %v1650 = vadd.f32 %v1648, %v1649
  %v1651 = vsel %vm92, %v1505, 0.0
  %v1652 = vrot.slane %v1651, 4
  %v1653 = vadd.f32 %v1651, %v1652
  %v1654 = vrot.slane %v1653, 2
  %v1655 = vadd.f32 %v1653, %v1654
  %v1656 = vrot.slane %v1655, 1
  %v1657 = vadd.f32 %v1655, %v1656
  %v1658 = vsel %vm92, %v1506, 0.0
  %v1659 = vrot.slane %v1658, 4
  %v1660 = vadd.f32 %v1658, %v1659
  %v1661 = vrot.slane %v1660, 2
  %v1662 = vadd.f32 %v1660, %v1661
  %v1663 = vrot.slane %v1662, 1
  %v1664 = vadd.f32 %v1662, %v1663
  %v1665 = vsel %vm92, %v1507, 0.0
  %v1666 = vrot.slane %v1665, 4
  %v1667 = vadd.f32 %v1665, %v1666
  %v1668 = vrot.slane %v1667, 2
  %v1669 = vadd.f32 %v1667, %v1668
  %v1670 = vrot.slane %v1669, 1
  %v1671 = vadd.f32 %v1669, %v1670
  %v1672 = vsel %vm92, %v1508, 0.0
  %v1673 = vrot.slane %v1672, 4
  %v1674 = vadd.f32 %v1672, %v1673
  %v1675 = vrot.slane %v1674, 2
  %v1676 = vadd.f32 %v1674, %v1675
  %v1677 = vrot.slane %v1676, 1
  %v1678 = vadd.f32 %v1676, %v1677
  %v1679 = vsel %vm92, %v1509, 0.0
  %v1680 = vrot.slane %v1679, 4
  %v1681 = vadd.f32 %v1679, %v1680
  %v1682 = vrot.slane %v1681, 2
  %v1683 = vadd.f32 %v1681, %v1682
  %v1684 = vrot.slane %v1683, 1
  %v1685 = vadd.f32 %v1683, %v1684
  %v1686 = vsel %vm92, %v1510, 0.0
  %v1687 = vrot.slane %v1686, 4
  %v1688 = vadd.f32 %v1686, %v1687
  %v1689 = vrot.slane %v1688, 2
  %v1690 = vadd.f32 %v1688, %v1689
  %v1691 = vrot.slane %v1690, 1
  %v1692 = vadd.f32 %v1690, %v1691
  %v1693 = vsel %vm92, %v1511, 0.0
  %v1694 = vrot.slane %v1693, 4
  %v1695 = vadd.f32 %v1693, %v1694
  %v1696 = vrot.slane %v1695, 2
  %v1697 = vadd.f32 %v1695, %v1696
  %v1698 = vrot.slane %v1697, 1
  %v1699 = vadd.f32 %v1697, %v1698
  %v1700 = vsel %vm92, %v1512, 0.0
  %v1701 = vrot.slane %v1700, 4
  %v1702 = vadd.f32 %v1700, %v1701
  %v1703 = vrot.slane %v1702, 2
  %v1704 = vadd.f32 %v1702, %v1703
  %v1705 = vrot.slane %v1704, 1
  %v1706 = vadd.f32 %v1704, %v1705
  %v1707 = vsel %vm92, %v1513, 0.0
  %v1708 = vrot.slane %v1707, 4
  %v1709 = vadd.f32 %v1707, %v1708
  %v1710 = vrot.slane %v1709, 2
  %v1711 = vadd.f32 %v1709, %v1710
  %v1712 = vrot.slane %v1711, 1
  %v1713 = vadd.f32 %v1711, %v1712
  %v1714 = vsel %vm92, %v1514, 0.0
  %v1715 = vrot.slane %v1714, 4
  %v1716 = vadd.f32 %v1714, %v1715
  %v1717 = vrot.slane %v1716, 2
  %v1718 = vadd.f32 %v1716, %v1717
  %v1719 = vrot.slane %v1718, 1
  %v1720 = vadd.f32 %v1718, %v1719
  %v1721 = vsel %vm92, %v1515, 0.0
  %v1722 = vrot.slane %v1721, 4
  %v1723 = vadd.f32 %v1721, %v1722
  %v1724 = vrot.slane %v1723, 2
  %v1725 = vadd.f32 %v1723, %v1724
  %v1726 = vrot.slane %v1725, 1
  %v1727 = vadd.f32 %v1725, %v1726
  %v1728 = vsel %vm92, %v1516, 0.0
  %v1729 = vrot.slane %v1728, 4
  %v1730 = vadd.f32 %v1728, %v1729
  %v1731 = vrot.slane %v1730, 2
  %v1732 = vadd.f32 %v1730, %v1731
  %v1733 = vrot.slane %v1732, 1
  %v1734 = vadd.f32 %v1732, %v1733
  %v1735 = vsel %vm92, %v1517, 0.0
  %v1736 = vrot.slane %v1735, 4
  %v1737 = vadd.f32 %v1735, %v1736
  %v1738 = vrot.slane %v1737, 2
  %v1739 = vadd.f32 %v1737, %v1738
  %v1740 = vrot.slane %v1739, 1
  %v1741 = vadd.f32 %v1739, %v1740
  %v1742 = vsel %vm92, %v1518, 0.0
  %v1743 = vrot.slane %v1742, 4
  %v1744 = vadd.f32 %v1742, %v1743
  %v1745 = vrot.slane %v1744, 2
  %v1746 = vadd.f32 %v1744, %v1745
  %v1747 = vrot.slane %v1746, 1
  %v1748 = vadd.f32 %v1746, %v1747
  %v1749 = vsel %vm92, %v1519, 0.0
  %v1750 = vrot.slane %v1749, 4
  %v1751 = vadd.f32 %v1749, %v1750
  %v1752 = vrot.slane %v1751, 2
  %v1753 = vadd.f32 %v1751, %v1752
  %v1754 = vrot.slane %v1753, 1
  %v1755 = vadd.f32 %v1753, %v1754
  %v1756 = vsel %vm92, %v1520, 0.0
  %v1757 = vrot.slane %v1756, 4
  %v1758 = vadd.f32 %v1756, %v1757
  %v1759 = vrot.slane %v1758, 2
  %v1760 = vadd.f32 %v1758, %v1759
  %v1761 = vrot.slane %v1760, 1
  %v1762 = vadd.f32 %v1760, %v1761
  %v1763 = vsel %vm92, %v1521, 0.0
  %v1764 = vrot.slane %v1763, 4
  %v1765 = vadd.f32 %v1763, %v1764
  %v1766 = vrot.slane %v1765, 2
  %v1767 = vadd.f32 %v1765, %v1766
  %v1768 = vrot.slane %v1767, 1
  %v1769 = vadd.f32 %v1767, %v1768
  %v1770 = vsel %vm92, %v1522, 0.0
  %v1771 = vrot.slane %v1770, 4
  %v1772 = vadd.f32 %v1770, %v1771
  %v1773 = vrot.slane %v1772, 2
  %v1774 = vadd.f32 %v1772, %v1773
  %v1775 = vrot.slane %v1774, 1
  %v1776 = vadd.f32 %v1774, %v1775
  %v1777 = vsel %vm92, %v1523, 0.0
  %v1778 = vrot.slane %v1777, 4
  %v1779 = vadd.f32 %v1777, %v1778
  %v1780 = vrot.slane %v1779, 2
  %v1781 = vadd.f32 %v1779, %v1780
  %v1782 = vrot.slane %v1781, 1
  %v1783 = vadd.f32 %v1781, %v1782
  %v1784 = vsel %vm92, %v1524, 0.0
  %v1785 = vrot.slane %v1784, 4
  %v1786 = vadd.f32 %v1784, %v1785
  %v1787 = vrot.slane %v1786, 2
  %v1788 = vadd.f32 %v1786, %v1787
  %v1789 = vrot.slane %v1788, 1
  %v1790 = vadd.f32 %v1788, %v1789
  %v1791 = vsel %vm92, %v1525, 0.0
  %v1792 = vrot.slane %v1791, 4
  %v1793 = vadd.f32 %v1791, %v1792
  %v1794 = vrot.slane %v1793, 2
  %v1795 = vadd.f32 %v1793, %v1794
  %v1796 = vrot.slane %v1795, 1
  %v1797 = vadd.f32 %v1795, %v1796
  %v1798 = vsel %vm92, %v1526, 0.0
  %v1799 = vrot.slane %v1798, 4
  %v1800 = vadd.f32 %v1798, %v1799
  %v1801 = vrot.slane %v1800, 2
  %v1802 = vadd.f32 %v1800, %v1801
  %v1803 = vrot.slane %v1802, 1
  %v1804 = vadd.f32 %v1802, %v1803
  %v1805 = vsel %vm92, %v1527, 0.0
  %v1806 = vrot.slane %v1805, 4
  %v1807 = vadd.f32 %v1805, %v1806
  %v1808 = vrot.slane %v1807, 2
  %v1809 = vadd.f32 %v1807, %v1808
  %v1810 = vrot.slane %v1809, 1
  %v1811 = vadd.f32 %v1809, %v1810
  %v1812 = vsel %vm92, %v1528, 0.0
  %v1813 = vrot.slane %v1812, 4
  %v1814 = vadd.f32 %v1812, %v1813
  %v1815 = vrot.slane %v1814, 2
  %v1816 = vadd.f32 %v1814, %v1815
  %v1817 = vrot.slane %v1816, 1
  %v1818 = vadd.f32 %v1816, %v1817
  %v1819 = vsel %vm92, %v1529, 0.0
  %v1820 = vrot.slane %v1819, 4
  %v1821 = vadd.f32 %v1819, %v1820
  %v1822 = vrot.slane %v1821, 2
  %v1823 = vadd.f32 %v1821, %v1822
  %v1824 = vrot.slane %v1823, 1
  %v1825 = vadd.f32 %v1823, %v1824
  %v1826 = vsel %vm92, %v1530, 0.0
  %v1827 = vrot.slane %v1826, 4
  %v1828 = vadd.f32 %v1826, %v1827
  %v1829 = vrot.slane %v1828, 2
  %v1830 = vadd.f32 %v1828, %v1829
  %v1831 = vrot.slane %v1830, 1
  %v1832 = vadd.f32 %v1830, %v1831
  %v1833 = vsel %vm92, %v1531, 0.0
  %v1834 = vrot.slane %v1833, 4
  %v1835 = vadd.f32 %v1833, %v1834
  %v1836 = vrot.slane %v1835, 2
  %v1837 = vadd.f32 %v1835, %v1836
  %v1838 = vrot.slane %v1837, 1
  %v1839 = vadd.f32 %v1837, %v1838
  %v1840 = vsel %vm92, %v1532, 0.0
  %v1841 = vrot.slane %v1840, 4
  %v1842 = vadd.f32 %v1840, %v1841
  %v1843 = vrot.slane %v1842, 2
  %v1844 = vadd.f32 %v1842, %v1843
  %v1845 = vrot.slane %v1844, 1
  %v1846 = vadd.f32 %v1844, %v1845
  %v1847 = vsel %vm92, %v1533, 0.0
  %v1848 = vrot.slane %v1847, 4
  %v1849 = vadd.f32 %v1847, %v1848
  %v1850 = vrot.slane %v1849, 2
  %v1851 = vadd.f32 %v1849, %v1850
  %v1852 = vrot.slane %v1851, 1
  %v1853 = vadd.f32 %v1851, %v1852
  %v1854 = vsel %vm92, %v1534, 0.0
  %v1855 = vrot.slane %v1854, 4
  %v1856 = vadd.f32 %v1854, %v1855
  %v1857 = vrot.slane %v1856, 2
  %v1858 = vadd.f32 %v1856, %v1857
  %v1859 = vrot.slane %v1858, 1
  %v1860 = vadd.f32 %v1858, %v1859
  %v1861 = vsel %vm92, %v1535, 0.0
  %v1862 = vrot.slane %v1861, 4
  %v1863 = vadd.f32 %v1861, %v1862
  %v1864 = vrot.slane %v1863, 2
  %v1865 = vadd.f32 %v1863, %v1864
  %v1866 = vrot.slane %v1865, 1
  %v1867 = vadd.f32 %v1865, %v1866
  %v1868 = vsel %vm92, %v1536, 0.0
  %v1869 = vrot.slane %v1868, 4
  %v1870 = vadd.f32 %v1868, %v1869
  %v1871 = vrot.slane %v1870, 2
  %v1872 = vadd.f32 %v1870, %v1871
  %v1873 = vrot.slane %v1872, 1
  %v1874 = vadd.f32 %v1872, %v1873
  %v1875 = vsel %vm92, %v1537, 0.0
  %v1876 = vrot.slane %v1875, 4
  %v1877 = vadd.f32 %v1875, %v1876
  %v1878 = vrot.slane %v1877, 2
  %v1879 = vadd.f32 %v1877, %v1878
  %v1880 = vrot.slane %v1879, 1
  %v1881 = vadd.f32 %v1879, %v1880
  %v1882 = vsel %vm92, %v1538, 0.0
  %v1883 = vrot.slane %v1882, 4
  %v1884 = vadd.f32 %v1882, %v1883
  %v1885 = vrot.slane %v1884, 2
  %v1886 = vadd.f32 %v1884, %v1885
  %v1887 = vrot.slane %v1886, 1
  %v1888 = vadd.f32 %v1886, %v1887
  %v1889 = vsel %vm92, %v1539, 0.0
  %v1890 = vrot.slane %v1889, 4
  %v1891 = vadd.f32 %v1889, %v1890
  %v1892 = vrot.slane %v1891, 2
  %v1893 = vadd.f32 %v1891, %v1892
  %v1894 = vrot.slane %v1893, 1
  %v1895 = vadd.f32 %v1893, %v1894
  %v1896 = vsel %vm92, %v1540, 0.0
  %v1897 = vrot.slane %v1896, 4
  %v1898 = vadd.f32 %v1896, %v1897
  %v1899 = vrot.slane %v1898, 2
  %v1900 = vadd.f32 %v1898, %v1899
  %v1901 = vrot.slane %v1900, 1
  %v1902 = vadd.f32 %v1900, %v1901
  %v1903 = vsel %vm92, %v1541, 0.0
  %v1904 = vrot.slane %v1903, 4
  %v1905 = vadd.f32 %v1903, %v1904
  %v1906 = vrot.slane %v1905, 2
  %v1907 = vadd.f32 %v1905, %v1906
  %v1908 = vrot.slane %v1907, 1
  %v1909 = vadd.f32 %v1907, %v1908
  %v1910 = vsel %vm92, %v1542, 0.0
  %v1911 = vrot.slane %v1910, 4
  %v1912 = vadd.f32 %v1910, %v1911
  %v1913 = vrot.slane %v1912, 2
  %v1914 = vadd.f32 %v1912, %v1913
  %v1915 = vrot.slane %v1914, 1
  %v1916 = vadd.f32 %v1914, %v1915
  %v1917 = vsel %vm92, %v1543, 0.0
  %v1918 = vrot.slane %v1917, 4
  %v1919 = vadd.f32 %v1917, %v1918
  %v1920 = vrot.slane %v1919, 2
  %v1921 = vadd.f32 %v1919, %v1920
  %v1922 = vrot.slane %v1921, 1
  %v1923 = vadd.f32 %v1921, %v1922
  %v1924 = vsel %vm92, %v1544, 0.0
  %v1925 = vrot.slane %v1924, 4
  %v1926 = vadd.f32 %v1924, %v1925
  %v1927 = vrot.slane %v1926, 2
  %v1928 = vadd.f32 %v1926, %v1927
  %v1929 = vrot.slane %v1928, 1
  %v1930 = vadd.f32 %v1928, %v1929
  %v1931 = vsel %vm92, %v1545, 0.0
  %v1932 = vrot.slane %v1931, 4
  %v1933 = vadd.f32 %v1931, %v1932
  %v1934 = vrot.slane %v1933, 2
  %v1935 = vadd.f32 %v1933, %v1934
  %v1936 = vrot.slane %v1935, 1
  %v1937 = vadd.f32 %v1935, %v1936
  %v1938 = vsel %vm92, %v1546, 0.0
  %v1939 = vrot.slane %v1938, 4
  %v1940 = vadd.f32 %v1938, %v1939
  %v1941 = vrot.slane %v1940, 2
  %v1942 = vadd.f32 %v1940, %v1941
  %v1943 = vrot.slane %v1942, 1
  %v1944 = vadd.f32 %v1942, %v1943
  %v1945 = vsel %vm92, %v1547, 0.0
  %v1946 = vrot.slane %v1945, 4
  %v1947 = vadd.f32 %v1945, %v1946
  %v1948 = vrot.slane %v1947, 2
  %v1949 = vadd.f32 %v1947, %v1948
  %v1950 = vrot.slane %v1949, 1
  %v1951 = vadd.f32 %v1949, %v1950
  %v1952 = vsel %vm92, %v1548, 0.0
  %v1953 = vrot.slane %v1952, 4
  %v1954 = vadd.f32 %v1952, %v1953
  %v1955 = vrot.slane %v1954, 2
  %v1956 = vadd.f32 %v1954, %v1955
  %v1957 = vrot.slane %v1956, 1
  %v1958 = vadd.f32 %v1956, %v1957
  %v1959 = vsel %vm92, %v1549, 0.0
  %v1960 = vrot.slane %v1959, 4
  %v1961 = vadd.f32 %v1959, %v1960
  %v1962 = vrot.slane %v1961, 2
  %v1963 = vadd.f32 %v1961, %v1962
  %v1964 = vrot.slane %v1963, 1
  %v1965 = vadd.f32 %v1963, %v1964
  %v1966 = vsel %vm92, %v1550, 0.0
  %v1967 = vrot.slane %v1966, 4
  %v1968 = vadd.f32 %v1966, %v1967
  %v1969 = vrot.slane %v1968, 2
  %v1970 = vadd.f32 %v1968, %v1969
  %v1971 = vrot.slane %v1970, 1
  %v1972 = vadd.f32 %v1970, %v1971
  %v1973 = vsel %vm92, %v1551, 0.0
  %v1974 = vrot.slane %v1973, 4
  %v1975 = vadd.f32 %v1973, %v1974
  %v1976 = vrot.slane %v1975, 2
  %v1977 = vadd.f32 %v1975, %v1976
  %v1978 = vrot.slane %v1977, 1
  %v1979 = vadd.f32 %v1977, %v1978
  %v1980 = vsel %vm92, %v1552, 0.0
  %v1981 = vrot.slane %v1980, 4
  %v1982 = vadd.f32 %v1980, %v1981
  %v1983 = vrot.slane %v1982, 2
  %v1984 = vadd.f32 %v1982, %v1983
  %v1985 = vrot.slane %v1984, 1
  %v1986 = vadd.f32 %v1984, %v1985
  %v1987 = vsel %vm92, %v1553, 0.0
  %v1988 = vrot.slane %v1987, 4
  %v1989 = vadd.f32 %v1987, %v1988
  %v1990 = vrot.slane %v1989, 2
  %v1991 = vadd.f32 %v1989, %v1990
  %v1992 = vrot.slane %v1991, 1
  %v1993 = vadd.f32 %v1991, %v1992
  %v1994 = vsel %vm92, %v1554, 0.0
  %v1995 = vrot.slane %v1994, 4
  %v1996 = vadd.f32 %v1994, %v1995
  %v1997 = vrot.slane %v1996, 2
  %v1998 = vadd.f32 %v1996, %v1997
  %v1999 = vrot.slane %v1998, 1
  %v2000 = vadd.f32 %v1998, %v1999
  %v2001 = vsel %vm92, %v1555, 0.0
  %v2002 = vrot.slane %v2001, 4
  %v2003 = vadd.f32 %v2001, %v2002
  %v2004 = vrot.slane %v2003, 2
  %v2005 = vadd.f32 %v2003, %v2004
  %v2006 = vrot.slane %v2005, 1
  %v2007 = vadd.f32 %v2005, %v2006
  %v2008 = vsel %vm92, %v1556, 0.0
  %v2009 = vrot.slane %v2008, 4
  %v2010 = vadd.f32 %v2008, %v2009
  %v2011 = vrot.slane %v2010, 2
  %v2012 = vadd.f32 %v2010, %v2011
  %v2013 = vrot.slane %v2012, 1
  %v2014 = vadd.f32 %v2012, %v2013
  %v2015 = vsel %vm92, %v1557, 0.0
  %v2016 = vrot.slane %v2015, 4
  %v2017 = vadd.f32 %v2015, %v2016
  %v2018 = vrot.slane %v2017, 2
  %v2019 = vadd.f32 %v2017, %v2018
  %v2020 = vrot.slane %v2019, 1
  %v2021 = vadd.f32 %v2019, %v2020
  %v2022 = vsel %vm92, %v1558, 0.0
  %v2023 = vrot.slane %v2022, 4
  %v2024 = vadd.f32 %v2022, %v2023
  %v2025 = vrot.slane %v2024, 2
  %v2026 = vadd.f32 %v2024, %v2025
  %v2027 = vrot.slane %v2026, 1
  %v2028 = vadd.f32 %v2026, %v2027
  %v2029 = vsel %vm92, %v1559, 0.0
  %v2030 = vrot.slane %v2029, 4
  %v2031 = vadd.f32 %v2029, %v2030
  %v2032 = vrot.slane %v2031, 2
  %v2033 = vadd.f32 %v2031, %v2032
  %v2034 = vrot.slane %v2033, 1
  %v2035 = vadd.f32 %v2033, %v2034
  %v2036 = vsel %vm92, %v1560, 0.0
  %v2037 = vrot.slane %v2036, 4
  %v2038 = vadd.f32 %v2036, %v2037
  %v2039 = vrot.slane %v2038, 2
  %v2040 = vadd.f32 %v2038, %v2039
  %v2041 = vrot.slane %v2040, 1
  %v2042 = vadd.f32 %v2040, %v2041
  %v2043 = vsel %vm92, %v1561, 0.0
  %v2044 = vrot.slane %v2043, 4
  %v2045 = vadd.f32 %v2043, %v2044
  %v2046 = vrot.slane %v2045, 2
  %v2047 = vadd.f32 %v2045, %v2046
  %v2048 = vrot.slane %v2047, 1
  %v2049 = vadd.f32 %v2047, %v2048
  %v2050 = vsel %vm92, %v1562, 0.0
  %v2051 = vrot.slane %v2050, 4
  %v2052 = vadd.f32 %v2050, %v2051
  %v2053 = vrot.slane %v2052, 2
  %v2054 = vadd.f32 %v2052, %v2053
  %v2055 = vrot.slane %v2054, 1
  %v2056 = vadd.f32 %v2054, %v2055
  %v2057 = vsel %vm92, %v1563, 0.0
  %v2058 = vrot.slane %v2057, 4
  %v2059 = vadd.f32 %v2057, %v2058
  %v2060 = vrot.slane %v2059, 2
  %v2061 = vadd.f32 %v2059, %v2060
  %v2062 = vrot.slane %v2061, 1
  %v2063 = vadd.f32 %v2061, %v2062
  %v2064 = vsel %vm92, %v1564, 0.0
  %v2065 = vrot.slane %v2064, 4
  %v2066 = vadd.f32 %v2064, %v2065
  %v2067 = vrot.slane %v2066, 2
  %v2068 = vadd.f32 %v2066, %v2067
  %v2069 = vrot.slane %v2068, 1
  %v2070 = vadd.f32 %v2068, %v2069
  %v2071 = vsel %vm92, %v1565, 0.0
  %v2072 = vrot.slane %v2071, 4
  %v2073 = vadd.f32 %v2071, %v2072
  %v2074 = vrot.slane %v2073, 2
  %v2075 = vadd.f32 %v2073, %v2074
  %v2076 = vrot.slane %v2075, 1
  %v2077 = vadd.f32 %v2075, %v2076
  %v2078 = vsel %vm92, %v1566, 0.0
  %v2079 = vrot.slane %v2078, 4
  %v2080 = vadd.f32 %v2078, %v2079
  %v2081 = vrot.slane %v2080, 2
  %v2082 = vadd.f32 %v2080, %v2081
  %v2083 = vrot.slane %v2082, 1
  %v2084 = vadd.f32 %v2082, %v2083
  %v2085 = vsel %vm92, %v1567, 0.0
  %v2086 = vrot.slane %v2085, 4
  %v2087 = vadd.f32 %v2085, %v2086
  %v2088 = vrot.slane %v2087, 2
  %v2089 = vadd.f32 %v2087, %v2088
  %v2090 = vrot.slane %v2089, 1
  %v2091 = vadd.f32 %v2089, %v2090
  %v2092 = vsel %vm92, %v1568, 0.0
  %v2093 = vrot.slane %v2092, 4
  %v2094 = vadd.f32 %v2092, %v2093
  %v2095 = vrot.slane %v2094, 2
  %v2096 = vadd.f32 %v2094, %v2095
  %v2097 = vrot.slane %v2096, 1
  %v2098 = vadd.f32 %v2096, %v2097
  %v2099 = vsel %vm92, %v1569, 0.0
  %v2100 = vrot.slane %v2099, 4
  %v2101 = vadd.f32 %v2099, %v2100
  %v2102 = vrot.slane %v2101, 2
  %v2103 = vadd.f32 %v2101, %v2102
  %v2104 = vrot.slane %v2103, 1
  %v2105 = vadd.f32 %v2103, %v2104
  %v2106 = vsel %vm92, %v1570, 0.0
  %v2107 = vrot.slane %v2106, 4
  %v2108 = vadd.f32 %v2106, %v2107
  %v2109 = vrot.slane %v2108, 2
  %v2110 = vadd.f32 %v2108, %v2109
  %v2111 = vrot.slane %v2110, 1
  %v2112 = vadd.f32 %v2110, %v2111
  %v2113 = vsel %vm92, %v1571, 0.0
  %v2114 = vrot.slane %v2113, 4
  %v2115 = vadd.f32 %v2113, %v2114
  %v2116 = vrot.slane %v2115, 2
  %v2117 = vadd.f32 %v2115, %v2116
  %v2118 = vrot.slane %v2117, 1
  %v2119 = vadd.f32 %v2117, %v2118
  %v2120 = vsel %vm92, %v1572, 0.0
  %v2121 = vrot.slane %v2120, 4
  %v2122 = vadd.f32 %v2120, %v2121
  %v2123 = vrot.slane %v2122, 2
  %v2124 = vadd.f32 %v2122, %v2123
  %v2125 = vrot.slane %v2124, 1
  %v2126 = vadd.f32 %v2124, %v2125
  %v2127 = vsel %vm92, %v1573, 0.0
  %v2128 = vrot.slane %v2127, 4
  %v2129 = vadd.f32 %v2127, %v2128
  %v2130 = vrot.slane %v2129, 2
  %v2131 = vadd.f32 %v2129, %v2130
  %v2132 = vrot.slane %v2131, 1
  %v2133 = vadd.f32 %v2131, %v2132
  %v2134 = vsel %vm92, %v1574, 0.0
  %v2135 = vrot.slane %v2134, 4
  %v2136 = vadd.f32 %v2134, %v2135
  %v2137 = vrot.slane %v2136, 2
  %v2138 = vadd.f32 %v2136, %v2137
  %v2139 = vrot.slane %v2138, 1
  %v2140 = vadd.f32 %v2138, %v2139
  %v2141 = vsel %vm92, %v1575, 0.0
  %v2142 = vrot.slane %v2141, 4
  %v2143 = vadd.f32 %v2141, %v2142
  %v2144 = vrot.slane %v2143, 2
  %v2145 = vadd.f32 %v2143, %v2144
  %v2146 = vrot.slane %v2145, 1
  %v2147 = vadd.f32 %v2145, %v2146
  %v2148 = vsel %vm92, %v1576, 0.0
  %v2149 = vrot.slane %v2148, 4
  %v2150 = vadd.f32 %v2148, %v2149
  %v2151 = vrot.slane %v2150, 2
  %v2152 = vadd.f32 %v2150, %v2151
  %v2153 = vrot.slane %v2152, 1
  %v2154 = vadd.f32 %v2152, %v2153
  %v2155 = vsel %vm92, %v1577, 0.0
  %v2156 = vrot.slane %v2155, 4
  %v2157 = vadd.f32 %v2155, %v2156
  %v2158 = vrot.slane %v2157, 2
  %v2159 = vadd.f32 %v2157, %v2158
  %v2160 = vrot.slane %v2159, 1
  %v2161 = vadd.f32 %v2159, %v2160
  %v2162 = vsel %vm92, %v1578, 0.0
  %v2163 = vrot.slane %v2162, 4
  %v2164 = vadd.f32 %v2162, %v2163
  %v2165 = vrot.slane %v2164, 2
  %v2166 = vadd.f32 %v2164, %v2165
  %v2167 = vrot.slane %v2166, 1
  %v2168 = vadd.f32 %v2166, %v2167
  %v2169 = vsel %vm92, %v1579, 0.0
  %v2170 = vrot.slane %v2169, 4
  %v2171 = vadd.f32 %v2169, %v2170
  %v2172 = vrot.slane %v2171, 2
  %v2173 = vadd.f32 %v2171, %v2172
  %v2174 = vrot.slane %v2173, 1
  %v2175 = vadd.f32 %v2173, %v2174
  %v2176 = vsel %vm92, %v1580, 0.0
  %v2177 = vrot.slane %v2176, 4
  %v2178 = vadd.f32 %v2176, %v2177
  %v2179 = vrot.slane %v2178, 2
  %v2180 = vadd.f32 %v2178, %v2179
  %v2181 = vrot.slane %v2180, 1
  %v2182 = vadd.f32 %v2180, %v2181
  %v2183 = vsel %vm92, %v1581, 0.0
  %v2184 = vrot.slane %v2183, 4
  %v2185 = vadd.f32 %v2183, %v2184
  %v2186 = vrot.slane %v2185, 2
  %v2187 = vadd.f32 %v2185, %v2186
  %v2188 = vrot.slane %v2187, 1
  %v2189 = vadd.f32 %v2187, %v2188
  %v2190 = vsel %vm92, %v1582, 0.0
  %v2191 = vrot.slane %v2190, 4
  %v2192 = vadd.f32 %v2190, %v2191
  %v2193 = vrot.slane %v2192, 2
  %v2194 = vadd.f32 %v2192, %v2193
  %v2195 = vrot.slane %v2194, 1
  %v2196 = vadd.f32 %v2194, %v2195
  %v2197 = vsel %vm92, %v1583, 0.0
  %v2198 = vrot.slane %v2197, 4
  %v2199 = vadd.f32 %v2197, %v2198
  %v2200 = vrot.slane %v2199, 2
  %v2201 = vadd.f32 %v2199, %v2200
  %v2202 = vrot.slane %v2201, 1
  %v2203 = vadd.f32 %v2201, %v2202
  %v2204 = vsel %vm92, %v1584, 0.0
  %v2205 = vrot.slane %v2204, 4
  %v2206 = vadd.f32 %v2204, %v2205
  %v2207 = vrot.slane %v2206, 2
  %v2208 = vadd.f32 %v2206, %v2207
  %v2209 = vrot.slane %v2208, 1
  %v2210 = vadd.f32 %v2208, %v2209
  %v2211 = vsel %vm92, %v1585, 0.0
  %v2212 = vrot.slane %v2211, 4
  %v2213 = vadd.f32 %v2211, %v2212
  %v2214 = vrot.slane %v2213, 2
  %v2215 = vadd.f32 %v2213, %v2214
  %v2216 = vrot.slane %v2215, 1
  %v2217 = vadd.f32 %v2215, %v2216
  %v2218 = vsel %vm92, %v1586, 0.0
  %v2219 = vrot.slane %v2218, 4
  %v2220 = vadd.f32 %v2218, %v2219
  %v2221 = vrot.slane %v2220, 2
  %v2222 = vadd.f32 %v2220, %v2221
  %v2223 = vrot.slane %v2222, 1
  %v2224 = vadd.f32 %v2222, %v2223
  %v2225 = vsel %vm92, %v1587, 0.0
  %v2226 = vrot.slane %v2225, 4
  %v2227 = vadd.f32 %v2225, %v2226
  %v2228 = vrot.slane %v2227, 2
  %v2229 = vadd.f32 %v2227, %v2228
  %v2230 = vrot.slane %v2229, 1
  %v2231 = vadd.f32 %v2229, %v2230
  %v2232 = vsel %vm92, %v1588, 0.0
  %v2233 = vrot.slane %v2232, 4
  %v2234 = vadd.f32 %v2232, %v2233
  %v2235 = vrot.slane %v2234, 2
  %v2236 = vadd.f32 %v2234, %v2235
  %v2237 = vrot.slane %v2236, 1
  %v2238 = vadd.f32 %v2236, %v2237
  %v2239 = vsel %vm92, %v1589, 0.0
  %v2240 = vrot.slane %v2239, 4
  %v2241 = vadd.f32 %v2239, %v2240
  %v2242 = vrot.slane %v2241, 2
  %v2243 = vadd.f32 %v2241, %v2242
  %v2244 = vrot.slane %v2243, 1
  %v2245 = vadd.f32 %v2243, %v2244
  %v2246 = vsel %vm92, %v1590, 0.0
  %v2247 = vrot.slane %v2246, 4
  %v2248 = vadd.f32 %v2246, %v2247
  %v2249 = vrot.slane %v2248, 2
  %v2250 = vadd.f32 %v2248, %v2249
  %v2251 = vrot.slane %v2250, 1
  %v2252 = vadd.f32 %v2250, %v2251
  %v2253 = vsel %vm92, %v1591, 0.0
  %v2254 = vrot.slane %v2253, 4
  %v2255 = vadd.f32 %v2253, %v2254
  %v2256 = vrot.slane %v2255, 2
  %v2257 = vadd.f32 %v2255, %v2256
  %v2258 = vrot.slane %v2257, 1
  %v2259 = vadd.f32 %v2257, %v2258
  %v2260 = vsel %vm92, %v1592, 0.0
  %v2261 = vrot.slane %v2260, 4
  %v2262 = vadd.f32 %v2260, %v2261
  %v2263 = vrot.slane %v2262, 2
  %v2264 = vadd.f32 %v2262, %v2263
  %v2265 = vrot.slane %v2264, 1
  %v2266 = vadd.f32 %v2264, %v2265
  %v2267 = vsel %vm92, %v1593, 0.0
  %v2268 = vrot.slane %v2267, 4
  %v2269 = vadd.f32 %v2267, %v2268
  %v2270 = vrot.slane %v2269, 2
  %v2271 = vadd.f32 %v2269, %v2270
  %v2272 = vrot.slane %v2271, 1
  %v2273 = vadd.f32 %v2271, %v2272
  %v2274 = vsel %vm92, %v1594, 0.0
  %v2275 = vrot.slane %v2274, 4
  %v2276 = vadd.f32 %v2274, %v2275
  %v2277 = vrot.slane %v2276, 2
  %v2278 = vadd.f32 %v2276, %v2277
  %v2279 = vrot.slane %v2278, 1
  %v2280 = vadd.f32 %v2278, %v2279
  %v2281 = vsel %vm92, %v1595, 0.0
  %v2282 = vrot.slane %v2281, 4
  %v2283 = vadd.f32 %v2281, %v2282
  %v2284 = vrot.slane %v2283, 2
  %v2285 = vadd.f32 %v2283, %v2284
  %v2286 = vrot.slane %v2285, 1
  %v2287 = vadd.f32 %v2285, %v2286
  %v2288 = vsel %vm92, %v1596, 0.0
  %v2289 = vrot.slane %v2288, 4
  %v2290 = vadd.f32 %v2288, %v2289
  %v2291 = vrot.slane %v2290, 2
  %v2292 = vadd.f32 %v2290, %v2291
  %v2293 = vrot.slane %v2292, 1
  %v2294 = vadd.f32 %v2292, %v2293
  %v2295 = vsel %vm92, %v1597, 0.0
  %v2296 = vrot.slane %v2295, 4
  %v2297 = vadd.f32 %v2295, %v2296
  %v2298 = vrot.slane %v2297, 2
  %v2299 = vadd.f32 %v2297, %v2298
  %v2300 = vrot.slane %v2299, 1
  %v2301 = vadd.f32 %v2299, %v2300
  %v2302 = vsel %vm92, %v1598, 0.0
  %v2303 = vrot.slane %v2302, 4
  %v2304 = vadd.f32 %v2302, %v2303
  %v2305 = vrot.slane %v2304, 2
  %v2306 = vadd.f32 %v2304, %v2305
  %v2307 = vrot.slane %v2306, 1
  %v2308 = vadd.f32 %v2306, %v2307
  %v2309 = vsel %vm92, %v1599, 0.0
  %v2310 = vrot.slane %v2309, 4
  %v2311 = vadd.f32 %v2309, %v2310
  %v2312 = vrot.slane %v2311, 2
  %v2313 = vadd.f32 %v2311, %v2312
  %v2314 = vrot.slane %v2313, 1
  %v2315 = vadd.f32 %v2313, %v2314
  %v2316 = vsel %vm92, %v1600, 0.0
  %v2317 = vrot.slane %v2316, 4
  %v2318 = vadd.f32 %v2316, %v2317
  %v2319 = vrot.slane %v2318, 2
  %v2320 = vadd.f32 %v2318, %v2319
  %v2321 = vrot.slane %v2320, 1
  %v2322 = vadd.f32 %v2320, %v2321
  %v2323 = vsel %vm92, %v1601, 0.0
  %v2324 = vrot.slane %v2323, 4
  %v2325 = vadd.f32 %v2323, %v2324
  %v2326 = vrot.slane %v2325, 2
  %v2327 = vadd.f32 %v2325, %v2326
  %v2328 = vrot.slane %v2327, 1
  %v2329 = vadd.f32 %v2327, %v2328
  %v2330 = vsel %vm92, %v1602, 0.0
  %v2331 = vrot.slane %v2330, 4
  %v2332 = vadd.f32 %v2330, %v2331
  %v2333 = vrot.slane %v2332, 2
  %v2334 = vadd.f32 %v2332, %v2333
  %v2335 = vrot.slane %v2334, 1
  %v2336 = vadd.f32 %v2334, %v2335
  %v2337 = vsel %vm92, %v1603, 0.0
  %v2338 = vrot.slane %v2337, 4
  %v2339 = vadd.f32 %v2337, %v2338
  %v2340 = vrot.slane %v2339, 2
  %v2341 = vadd.f32 %v2339, %v2340
  %v2342 = vrot.slane %v2341, 1
  %v2343 = vadd.f32 %v2341, %v2342
  %v2344 = vsel %vm92, %v1604, 0.0
  %v2345 = vrot.slane %v2344, 4
  %v2346 = vadd.f32 %v2344, %v2345
  %v2347 = vrot.slane %v2346, 2
  %v2348 = vadd.f32 %v2346, %v2347
  %v2349 = vrot.slane %v2348, 1
  %v2350 = vadd.f32 %v2348, %v2349
  %v2351 = vsel %vm92, %v1605, 0.0
  %v2352 = vrot.slane %v2351, 4
  %v2353 = vadd.f32 %v2351, %v2352
  %v2354 = vrot.slane %v2353, 2
  %v2355 = vadd.f32 %v2353, %v2354
  %v2356 = vrot.slane %v2355, 1
  %v2357 = vadd.f32 %v2355, %v2356
  %v2358 = vsel %vm92, %v1606, 0.0
  %v2359 = vrot.slane %v2358, 4
  %v2360 = vadd.f32 %v2358, %v2359
  %v2361 = vrot.slane %v2360, 2
  %v2362 = vadd.f32 %v2360, %v2361
  %v2363 = vrot.slane %v2362, 1
  %v2364 = vadd.f32 %v2362, %v2363
  %v2365 = vsel %vm92, %v1607, 0.0
  %v2366 = vrot.slane %v2365, 4
  %v2367 = vadd.f32 %v2365, %v2366
  %v2368 = vrot.slane %v2367, 2
  %v2369 = vadd.f32 %v2367, %v2368
  %v2370 = vrot.slane %v2369, 1
  %v2371 = vadd.f32 %v2369, %v2370
  %v2372 = vsel %vm92, %v1608, 0.0
  %v2373 = vrot.slane %v2372, 4
  %v2374 = vadd.f32 %v2372, %v2373
  %v2375 = vrot.slane %v2374, 2
  %v2376 = vadd.f32 %v2374, %v2375
  %v2377 = vrot.slane %v2376, 1
  %v2378 = vadd.f32 %v2376, %v2377
  %v2379 = vsel %vm92, %v1609, 0.0
  %v2380 = vrot.slane %v2379, 4
  %v2381 = vadd.f32 %v2379, %v2380
  %v2382 = vrot.slane %v2381, 2
  %v2383 = vadd.f32 %v2381, %v2382
  %v2384 = vrot.slane %v2383, 1
  %v2385 = vadd.f32 %v2383, %v2384
  %v2386 = vsel %vm92, %v1610, 0.0
  %v2387 = vrot.slane %v2386, 4
  %v2388 = vadd.f32 %v2386, %v2387
  %v2389 = vrot.slane %v2388, 2
  %v2390 = vadd.f32 %v2388, %v2389
  %v2391 = vrot.slane %v2390, 1
  %v2392 = vadd.f32 %v2390, %v2391
  %v2393 = vsel %vm92, %v1611, 0.0
  %v2394 = vrot.slane %v2393, 4
  %v2395 = vadd.f32 %v2393, %v2394
  %v2396 = vrot.slane %v2395, 2
  %v2397 = vadd.f32 %v2395, %v2396
  %v2398 = vrot.slane %v2397, 1
  %v2399 = vadd.f32 %v2397, %v2398
  %v2400 = vsel %vm92, %v1612, 0.0
  %v2401 = vrot.slane %v2400, 4
  %v2402 = vadd.f32 %v2400, %v2401
  %v2403 = vrot.slane %v2402, 2
  %v2404 = vadd.f32 %v2402, %v2403
  %v2405 = vrot.slane %v2404, 1
  %v2406 = vadd.f32 %v2404, %v2405
  %v2407 = vsel %vm92, %v1613, 0.0
  %v2408 = vrot.slane %v2407, 4
  %v2409 = vadd.f32 %v2407, %v2408
  %v2410 = vrot.slane %v2409, 2
  %v2411 = vadd.f32 %v2409, %v2410
  %v2412 = vrot.slane %v2411, 1
  %v2413 = vadd.f32 %v2411, %v2412
  %v2414 = vsel %vm92, %v1614, 0.0
  %v2415 = vrot.slane %v2414, 4
  %v2416 = vadd.f32 %v2414, %v2415
  %v2417 = vrot.slane %v2416, 2
  %v2418 = vadd.f32 %v2416, %v2417
  %v2419 = vrot.slane %v2418, 1
  %v2420 = vadd.f32 %v2418, %v2419
  %v2421 = vsel %vm92, %v1615, 0.0
  %v2422 = vrot.slane %v2421, 4
  %v2423 = vadd.f32 %v2421, %v2422
  %v2424 = vrot.slane %v2423, 2
  %v2425 = vadd.f32 %v2423, %v2424
  %v2426 = vrot.slane %v2425, 1
  %v2427 = vadd.f32 %v2425, %v2426
  %v2428 = vsel %vm92, %v1616, 0.0
  %v2429 = vrot.slane %v2428, 4
  %v2430 = vadd.f32 %v2428, %v2429
  %v2431 = vrot.slane %v2430, 2
  %v2432 = vadd.f32 %v2430, %v2431
  %v2433 = vrot.slane %v2432, 1
  %v2434 = vadd.f32 %v2432, %v2433
  %v2435 = vsel %vm92, %v1617, 0.0
  %v2436 = vrot.slane %v2435, 4
  %v2437 = vadd.f32 %v2435, %v2436
  %v2438 = vrot.slane %v2437, 2
  %v2439 = vadd.f32 %v2437, %v2438
  %v2440 = vrot.slane %v2439, 1
  %v2441 = vadd.f32 %v2439, %v2440
  %v2442 = vsel %vm92, %v1618, 0.0
  %v2443 = vrot.slane %v2442, 4
  %v2444 = vadd.f32 %v2442, %v2443
  %v2445 = vrot.slane %v2444, 2
  %v2446 = vadd.f32 %v2444, %v2445
  %v2447 = vrot.slane %v2446, 1
  %v2448 = vadd.f32 %v2446, %v2447
  %v2449 = vsel %vm92, %v1619, 0.0
  %v2450 = vrot.slane %v2449, 4
  %v2451 = vadd.f32 %v2449, %v2450
  %v2452 = vrot.slane %v2451, 2
  %v2453 = vadd.f32 %v2451, %v2452
  %v2454 = vrot.slane %v2453, 1
  %v2455 = vadd.f32 %v2453, %v2454
  %v2456 = vsel %vm92, %v1620, 0.0
  %v2457 = vrot.slane %v2456, 4
  %v2458 = vadd.f32 %v2456, %v2457
  %v2459 = vrot.slane %v2458, 2
  %v2460 = vadd.f32 %v2458, %v2459
  %v2461 = vrot.slane %v2460, 1
  %v2462 = vadd.f32 %v2460, %v2461
  %v2463 = vsel %vm92, %v1621, 0.0
  %v2464 = vrot.slane %v2463, 4
  %v2465 = vadd.f32 %v2463, %v2464
  %v2466 = vrot.slane %v2465, 2
  %v2467 = vadd.f32 %v2465, %v2466
  %v2468 = vrot.slane %v2467, 1
  %v2469 = vadd.f32 %v2467, %v2468
  %v2470 = vsel %vm92, %v1622, 0.0
  %v2471 = vrot.slane %v2470, 4
  %v2472 = vadd.f32 %v2470, %v2471
  %v2473 = vrot.slane %v2472, 2
  %v2474 = vadd.f32 %v2472, %v2473
  %v2475 = vrot.slane %v2474, 1
  %v2476 = vadd.f32 %v2474, %v2475
  %v2477 = vsel %vm92, %v1623, 0.0
  %v2478 = vrot.slane %v2477, 4
  %v2479 = vadd.f32 %v2477, %v2478
  %v2480 = vrot.slane %v2479, 2
  %v2481 = vadd.f32 %v2479, %v2480
  %v2482 = vrot.slane %v2481, 1
  %v2483 = vadd.f32 %v2481, %v2482
  %v2484 = vsel %vm92, %v1624, 0.0
  %v2485 = vrot.slane %v2484, 4
  %v2486 = vadd.f32 %v2484, %v2485
  %v2487 = vrot.slane %v2486, 2
  %v2488 = vadd.f32 %v2486, %v2487
  %v2489 = vrot.slane %v2488, 1
  %v2490 = vadd.f32 %v2488, %v2489
  %v2491 = vsel %vm92, %v1625, 0.0
  %v2492 = vrot.slane %v2491, 4
  %v2493 = vadd.f32 %v2491, %v2492
  %v2494 = vrot.slane %v2493, 2
  %v2495 = vadd.f32 %v2493, %v2494
  %v2496 = vrot.slane %v2495, 1
  %v2497 = vadd.f32 %v2495, %v2496
  %v2498 = vsel %vm92, %v1626, 0.0
  %v2499 = vrot.slane %v2498, 4
  %v2500 = vadd.f32 %v2498, %v2499
  %v2501 = vrot.slane %v2500, 2
  %v2502 = vadd.f32 %v2500, %v2501
  %v2503 = vrot.slane %v2502, 1
  %v2504 = vadd.f32 %v2502, %v2503
  %v2505 = vsel %vm92, %v1627, 0.0
  %v2506 = vrot.slane %v2505, 4
  %v2507 = vadd.f32 %v2505, %v2506
  %v2508 = vrot.slane %v2507, 2
  %v2509 = vadd.f32 %v2507, %v2508
  %v2510 = vrot.slane %v2509, 1
  %v2511 = vadd.f32 %v2509, %v2510
  %v2512 = vsel %vm92, %v1628, 0.0
  %v2513 = vrot.slane %v2512, 4
  %v2514 = vadd.f32 %v2512, %v2513
  %v2515 = vrot.slane %v2514, 2
  %v2516 = vadd.f32 %v2514, %v2515
  %v2517 = vrot.slane %v2516, 1
  %v2518 = vadd.f32 %v2516, %v2517
  %v2519 = vsel %vm92, %v1629, 0.0
  %v2520 = vrot.slane %v2519, 4
  %v2521 = vadd.f32 %v2519, %v2520
  %v2522 = vrot.slane %v2521, 2
  %v2523 = vadd.f32 %v2521, %v2522
  %v2524 = vrot.slane %v2523, 1
  %v2525 = vadd.f32 %v2523, %v2524
  %v2526 = vadd.f32 %v548, %v1636
  %v2527 = vadd.f32 %v555, %v1643
  %v2528 = vadd.f32 %v562, %v1650
  %v2529 = vadd.f32 %v569, %v1657
  %v2530 = vadd.f32 %v576, %v1664
  %v2531 = vadd.f32 %v583, %v1671
  %v2532 = vadd.f32 %v590, %v1678
  %v2533 = vadd.f32 %v597, %v1685
  %v2534 = vadd.f32 %v604, %v1692
  %v2535 = vadd.f32 %v611, %v1699
  %v2536 = vadd.f32 %v618, %v1706
  %v2537 = vadd.f32 %v625, %v1713
  %v2538 = vadd.f32 %v632, %v1720
  %v2539 = vadd.f32 %v639, %v1727
  %v2540 = vadd.f32 %v646, %v1734
  %v2541 = vadd.f32 %v653, %v1741
  %v2542 = vadd.f32 %v660, %v1748
  %v2543 = vadd.f32 %v667, %v1755
  %v2544 = vadd.f32 %v674, %v1762
  %v2545 = vadd.f32 %v681, %v1769
  %v2546 = vadd.f32 %v688, %v1776
  %v2547 = vadd.f32 %v695, %v1783
  %v2548 = vadd.f32 %v702, %v1790
  %v2549 = vadd.f32 %v709, %v1797
  %v2550 = vadd.f32 %v716, %v1804
  %v2551 = vadd.f32 %v723, %v1811
  %v2552 = vadd.f32 %v730, %v1818
  %v2553 = vadd.f32 %v737, %v1825
  %v2554 = vadd.f32 %v744, %v1832
  %v2555 = vadd.f32 %v751, %v1839
  %v2556 = vadd.f32 %v758, %v1846
  %v2557 = vadd.f32 %v765, %v1853
  %v2558 = vadd.f32 %v772, %v1860
  %v2559 = vadd.f32 %v779, %v1867
  %v2560 = vadd.f32 %v786, %v1874
  %v2561 = vadd.f32 %v793, %v1881
  %v2562 = vadd.f32 %v800, %v1888
  %v2563 = vadd.f32 %v807, %v1895
  %v2564 = vadd.f32 %v814, %v1902
  %v2565 = vadd.f32 %v821, %v1909
  %v2566 = vadd.f32 %v828, %v1916
  %v2567 = vadd.f32 %v835, %v1923
  %v2568 = vadd.f32 %v842, %v1930
  %v2569 = vadd.f32 %v849, %v1937
  %v2570 = vadd.f32 %v856, %v1944
  %v2571 = vadd.f32 %v863, %v1951
  %v2572 = vadd.f32 %v870, %v1958
  %v2573 = vadd.f32 %v877, %v1965
  %v2574 = vadd.f32 %v884, %v1972
  %v2575 = vadd.f32 %v891, %v1979
  %v2576 = vadd.f32 %v898, %v1986
  %v2577 = vadd.f32 %v905, %v1993
  %v2578 = vadd.f32 %v912, %v2000
  %v2579 = vadd.f32 %v919, %v2007
  %v2580 = vadd.f32 %v926, %v2014
  %v2581 = vadd.f32 %v933, %v2021
  %v2582 = vadd.f32 %v940, %v2028
  %v2583 = vadd.f32 %v947, %v2035
  %v2584 = vadd.f32 %v954, %v2042
  %v2585 = vadd.f32 %v961, %v2049
  %v2586 = vadd.f32 %v968, %v2056
  %v2587 = vadd.f32 %v975, %v2063
  %v2588 = vadd.f32 %v982, %v2070
  %v2589 = vadd.f32 %v989, %v2077
  %v2590 = vadd.f32 %v996, %v2084
  %v2591 = vadd.f32 %v1003, %v2091
  %v2592 = vadd.f32 %v1010, %v2098
  %v2593 = vadd.f32 %v1017, %v2105
  %v2594 = vadd.f32 %v1024, %v2112
  %v2595 = vadd.f32 %v1031, %v2119
  %v2596 = vadd.f32 %v1038, %v2126
  %v2597 = vadd.f32 %v1045, %v2133
  %v2598 = vadd.f32 %v1052, %v2140
  %v2599 = vadd.f32 %v1059, %v2147
  %v2600 = vadd.f32 %v1066, %v2154
  %v2601 = vadd.f32 %v1073, %v2161
  %v2602 = vadd.f32 %v1080, %v2168
  %v2603 = vadd.f32 %v1087, %v2175
  %v2604 = vadd.f32 %v1094, %v2182
  %v2605 = vadd.f32 %v1101, %v2189
  %v2606 = vadd.f32 %v1108, %v2196
  %v2607 = vadd.f32 %v1115, %v2203
  %v2608 = vadd.f32 %v1122, %v2210
  %v2609 = vadd.f32 %v1129, %v2217
  %v2610 = vadd.f32 %v1136, %v2224
  %v2611 = vadd.f32 %v1143, %v2231
  %v2612 = vadd.f32 %v1150, %v2238
  %v2613 = vadd.f32 %v1157, %v2245
  %v2614 = vadd.f32 %v1164, %v2252
  %v2615 = vadd.f32 %v1171, %v2259
  %v2616 = vadd.f32 %v1178, %v2266
  %v2617 = vadd.f32 %v1185, %v2273
  %v2618 = vadd.f32 %v1192, %v2280
  %v2619 = vadd.f32 %v1199, %v2287
  %v2620 = vadd.f32 %v1206, %v2294
  %v2621 = vadd.f32 %v1213, %v2301
  %v2622 = vadd.f32 %v1220, %v2308
  %v2623 = vadd.f32 %v1227, %v2315
  %v2624 = vadd.f32 %v1234, %v2322
  %v2625 = vadd.f32 %v1241, %v2329
  %v2626 = vadd.f32 %v1248, %v2336
  %v2627 = vadd.f32 %v1255, %v2343
  %v2628 = vadd.f32 %v1262, %v2350
  %v2629 = vadd.f32 %v1269, %v2357
  %v2630 = vadd.f32 %v1276, %v2364
  %v2631 = vadd.f32 %v1283, %v2371
  %v2632 = vadd.f32 %v1290, %v2378
  %v2633 = vadd.f32 %v1297, %v2385
  %v2634 = vadd.f32 %v1304, %v2392
  %v2635 = vadd.f32 %v1311, %v2399
  %v2636 = vadd.f32 %v1318, %v2406
  %v2637 = vadd.f32 %v1325, %v2413
  %v2638 = vadd.f32 %v1332, %v2420
  %v2639 = vadd.f32 %v1339, %v2427
  %v2640 = vadd.f32 %v1346, %v2434
  %v2641 = vadd.f32 %v1353, %v2441
  %v2642 = vadd.f32 %v1360, %v2448
  %v2643 = vadd.f32 %v1367, %v2455
  %v2644 = vadd.f32 %v1374, %v2462
  %v2645 = vadd.f32 %v1381, %v2469
  %v2646 = vadd.f32 %v1388, %v2476
  %v2647 = vadd.f32 %v1395, %v2483
  %v2648 = vadd.f32 %v1402, %v2490
  %v2649 = vadd.f32 %v1409, %v2497
  %v2650 = vadd.f32 %v1416, %v2504
  %v2651 = vadd.f32 %v1423, %v2511
  %v2652 = vadd.f32 %v1430, %v2518
  %v2653 = vadd.f32 %v1437, %v2525
  %v2654 = vsel %vm92, %v2526, -inf
  %v2655 = vsel %vm92, %v2527, -inf
  %v2656 = vmax.f32 %v2654, %v2655
  %v2657 = vsel %vm92, %v2528, -inf
  %v2658 = vmax.f32 %v2656, %v2657
  %v2659 = vsel %vm92, %v2529, -inf
  %v2660 = vmax.f32 %v2658, %v2659
  %v2661 = vsel %vm92, %v2530, -inf
  %v2662 = vmax.f32 %v2660, %v2661
  %v2663 = vsel %vm92, %v2531, -inf
  %v2664 = vmax.f32 %v2662, %v2663
  %v2665 = vsel %vm92, %v2532, -inf
  %v2666 = vmax.f32 %v2664, %v2665
  %v2667 = vsel %vm92, %v2533, -inf
  %v2668 = vmax.f32 %v2666, %v2667
  %v2669 = vsel %vm92, %v2534, -inf
  %v2670 = vsel %vm92, %v2535, -inf
  %v2671 = vmax.f32 %v2669, %v2670
  %v2672 = vsel %vm92, %v2536, -inf
  %v2673 = vmax.f32 %v2671, %v2672
  %v2674 = vsel %vm92, %v2537, -inf
  %v2675 = vmax.f32 %v2673, %v2674
  %v2676 = vsel %vm92, %v2538, -inf
  %v2677 = vmax.f32 %v2675, %v2676
  %v2678 = vsel %vm92, %v2539, -inf
  %v2679 = vmax.f32 %v2677, %v2678
  %v2680 = vsel %vm92, %v2540, -inf
  %v2681 = vmax.f32 %v2679, %v2680
  %v2682 = vsel %vm92, %v2541, -inf
  %v2683 = vmax.f32 %v2681, %v2682
  %v2684 = vsel %vm92, %v2542, -inf
  %v2685 = vsel %vm92, %v2543, -inf
  %v2686 = vmax.f32 %v2684, %v2685
  %v2687 = vsel %vm92, %v2544, -inf
  %v2688 = vmax.f32 %v2686, %v2687
  %v2689 = vsel %vm92, %v2545, -inf
  %v2690 = vmax.f32 %v2688, %v2689
  %v2691 = vsel %vm92, %v2546, -inf
  %v2692 = vmax.f32 %v2690, %v2691
  %v2693 = vsel %vm92, %v2547, -inf
  %v2694 = vmax.f32 %v2692, %v2693
  %v2695 = vsel %vm92, %v2548, -inf
  %v2696 = vmax.f32 %v2694, %v2695
  %v2697 = vsel %vm92, %v2549, -inf
  %v2698 = vmax.f32 %v2696, %v2697
  %v2699 = vsel %vm92, %v2550, -inf
  %v2700 = vsel %vm92, %v2551, -inf
  %v2701 = vmax.f32 %v2699, %v2700
  %v2702 = vsel %vm92, %v2552, -inf
  %v2703 = vmax.f32 %v2701, %v2702
  %v2704 = vsel %vm92, %v2553, -inf
  %v2705 = vmax.f32 %v2703, %v2704
  %v2706 = vsel %vm92, %v2554, -inf
  %v2707 = vmax.f32 %v2705, %v2706
  %v2708 = vsel %vm92, %v2555, -inf
  %v2709 = vmax.f32 %v2707, %v2708
  %v2710 = vsel %vm92, %v2556, -inf
  %v2711 = vmax.f32 %v2709, %v2710
  %v2712 = vsel %vm92, %v2557, -inf
  %v2713 = vmax.f32 %v2711, %v2712
  %v2714 = vsel %vm92, %v2558, -inf
  %v2715 = vsel %vm92, %v2559, -inf
  %v2716 = vmax.f32 %v2714, %v2715
  %v2717 = vsel %vm92, %v2560, -inf
  %v2718 = vmax.f32 %v2716, %v2717
  %v2719 = vsel %vm92, %v2561, -inf
  %v2720 = vmax.f32 %v2718, %v2719
  %v2721 = vsel %vm92, %v2562, -inf
  %v2722 = vmax.f32 %v2720, %v2721
  %v2723 = vsel %vm92, %v2563, -inf
  %v2724 = vmax.f32 %v2722, %v2723
  %v2725 = vsel %vm92, %v2564, -inf
  %v2726 = vmax.f32 %v2724, %v2725
  %v2727 = vsel %vm92, %v2565, -inf
  %v2728 = vmax.f32 %v2726, %v2727
  %v2729 = vsel %vm92, %v2566, -inf
  %v2730 = vsel %vm92, %v2567, -inf
  %v2731 = vmax.f32 %v2729, %v2730
  %v2732 = vsel %vm92, %v2568, -inf
  %v2733 = vmax.f32 %v2731, %v2732
  %v2734 = vsel %vm92, %v2569, -inf
  %v2735 = vmax.f32 %v2733, %v2734
  %v2736 = vsel %vm92, %v2570, -inf
  %v2737 = vmax.f32 %v2735, %v2736
  %v2738 = vsel %vm92, %v2571, -inf
  %v2739 = vmax.f32 %v2737, %v2738
  %v2740 = vsel %vm92, %v2572, -inf
  %v2741 = vmax.f32 %v2739, %v2740
  %v2742 = vsel %vm92, %v2573, -inf
  %v2743 = vmax.f32 %v2741, %v2742
  %v2744 = vsel %vm92, %v2574, -inf
  %v2745 = vsel %vm92, %v2575, -inf
  %v2746 = vmax.f32 %v2744, %v2745
  %v2747 = vsel %vm92, %v2576, -inf
  %v2748 = vmax.f32 %v2746, %v2747
  %v2749 = vsel %vm92, %v2577, -inf
  %v2750 = vmax.f32 %v2748, %v2749
  %v2751 = vsel %vm92, %v2578, -inf
  %v2752 = vmax.f32 %v2750, %v2751
  %v2753 = vsel %vm92, %v2579, -inf
  %v2754 = vmax.f32 %v2752, %v2753
  %v2755 = vsel %vm92, %v2580, -inf
  %v2756 = vmax.f32 %v2754, %v2755
  %v2757 = vsel %vm92, %v2581, -inf
  %v2758 = vmax.f32 %v2756, %v2757
  %v2759 = vsel %vm92, %v2582, -inf
  %v2760 = vsel %vm92, %v2583, -inf
  %v2761 = vmax.f32 %v2759, %v2760
  %v2762 = vsel %vm92, %v2584, -inf
  %v2763 = vmax.f32 %v2761, %v2762
  %v2764 = vsel %vm92, %v2585, -inf
  %v2765 = vmax.f32 %v2763, %v2764
  %v2766 = vsel %vm92, %v2586, -inf
  %v2767 = vmax.f32 %v2765, %v2766
  %v2768 = vsel %vm92, %v2587, -inf
  %v2769 = vmax.f32 %v2767, %v2768
  %v2770 = vsel %vm92, %v2588, -inf
  %v2771 = vmax.f32 %v2769, %v2770
  %v2772 = vsel %vm92, %v2589, -inf
  %v2773 = vmax.f32 %v2771, %v2772
  %v2774 = vsel %vm92, %v2590, -inf
  %v2775 = vsel %vm92, %v2591, -inf
  %v2776 = vmax.f32 %v2774, %v2775
  %v2777 = vsel %vm92, %v2592, -inf
  %v2778 = vmax.f32 %v2776, %v2777
  %v2779 = vsel %vm92, %v2593, -inf
  %v2780 = vmax.f32 %v2778, %v2779
  %v2781 = vsel %vm92, %v2594, -inf
  %v2782 = vmax.f32 %v2780, %v2781
  %v2783 = vsel %vm92, %v2595, -inf
  %v2784 = vmax.f32 %v2782, %v2783
  %v2785 = vsel %vm92, %v2596, -inf
  %v2786 = vmax.f32 %v2784, %v2785
  %v2787 = vsel %vm92, %v2597, -inf
  %v2788 = vmax.f32 %v2786, %v2787
  %v2789 = vsel %vm92, %v2598, -inf
  %v2790 = vsel %vm92, %v2599, -inf
  %v2791 = vmax.f32 %v2789, %v2790
  %v2792 = vsel %vm92, %v2600, -inf
  %v2793 = vmax.f32 %v2791, %v2792
  %v2794 = vsel %vm92, %v2601, -inf
  %v2795 = vmax.f32 %v2793, %v2794
  %v2796 = vsel %vm92, %v2602, -inf
  %v2797 = vmax.f32 %v2795, %v2796
  %v2798 = vsel %vm92, %v2603, -inf
  %v2799 = vmax.f32 %v2797, %v2798
  %v2800 = vsel %vm92, %v2604, -inf
  %v2801 = vmax.f32 %v2799, %v2800
  %v2802 = vsel %vm92, %v2605, -inf
  %v2803 = vmax.f32 %v2801, %v2802
  %v2804 = vsel %vm92, %v2606, -inf
  %v2805 = vsel %vm92, %v2607, -inf
  %v2806 = vmax.f32 %v2804, %v2805
  %v2807 = vsel %vm92, %v2608, -inf
  %v2808 = vmax.f32 %v2806, %v2807
  %v2809 = vsel %vm92, %v2609, -inf
  %v2810 = vmax.f32 %v2808, %v2809
  %v2811 = vsel %vm92, %v2610, -inf
  %v2812 = vmax.f32 %v2810, %v2811
  %v2813 = vsel %vm92, %v2611, -inf
  %v2814 = vmax.f32 %v2812, %v2813
  %v2815 = vsel %vm92, %v2612, -inf
  %v2816 = vmax.f32 %v2814, %v2815
  %v2817 = vsel %vm92, %v2613, -inf
  %v2818 = vmax.f32 %v2816, %v2817
  %v2819 = vsel %vm92, %v2614, -inf
  %v2820 = vsel %vm92, %v2615, -inf
  %v2821 = vmax.f32 %v2819, %v2820
  %v2822 = vsel %vm92, %v2616, -inf
  %v2823 = vmax.f32 %v2821, %v2822
  %v2824 = vsel %vm92, %v2617, -inf
  %v2825 = vmax.f32 %v2823, %v2824
  %v2826 = vsel %vm92, %v2618, -inf
  %v2827 = vmax.f32 %v2825, %v2826
  %v2828 = vsel %vm92, %v2619, -inf
  %v2829 = vmax.f32 %v2827, %v2828
  %v2830 = vsel %vm92, %v2620, -inf
  %v2831 = vmax.f32 %v2829, %v2830
  %v2832 = vsel %vm92, %v2621, -inf
  %v2833 = vmax.f32 %v2831, %v2832
  %v2834 = vsel %vm92, %v2622, -inf
  %v2835 = vsel %vm92, %v2623, -inf
  %v2836 = vmax.f32 %v2834, %v2835
  %v2837 = vsel %vm92, %v2624, -inf
  %v2838 = vmax.f32 %v2836, %v2837
  %v2839 = vsel %vm92, %v2625, -inf
  %v2840 = vmax.f32 %v2838, %v2839
  %v2841 = vsel %vm92, %v2626, -inf
  %v2842 = vmax.f32 %v2840, %v2841
  %v2843 = vsel %vm92, %v2627, -inf
  %v2844 = vmax.f32 %v2842, %v2843
  %v2845 = vsel %vm92, %v2628, -inf
  %v2846 = vmax.f32 %v2844, %v2845
  %v2847 = vsel %vm92, %v2629, -inf
  %v2848 = vmax.f32 %v2846, %v2847
  %v2849 = vsel %vm92, %v2630, -inf
  %v2850 = vsel %vm92, %v2631, -inf
  %v2851 = vmax.f32 %v2849, %v2850
  %v2852 = vsel %vm92, %v2632, -inf
  %v2853 = vmax.f32 %v2851, %v2852
  %v2854 = vsel %vm92, %v2633, -inf
  %v2855 = vmax.f32 %v2853, %v2854
  %v2856 = vsel %vm92, %v2634, -inf
  %v2857 = vmax.f32 %v2855, %v2856
  %v2858 = vsel %vm92, %v2635, -inf
  %v2859 = vmax.f32 %v2857, %v2858
  %v2860 = vsel %vm92, %v2636, -inf
  %v2861 = vmax.f32 %v2859, %v2860
  %v2862 = vsel %vm92, %v2637, -inf
  %v2863 = vmax.f32 %v2861, %v2862
  %v2864 = vsel %vm92, %v2638, -inf
  %v2865 = vsel %vm92, %v2639, -inf
  %v2866 = vmax.f32 %v2864, %v2865
  %v2867 = vsel %vm92, %v2640, -inf
  %v2868 = vmax.f32 %v2866, %v2867
  %v2869 = vsel %vm92, %v2641, -inf
  %v2870 = vmax.f32 %v2868, %v2869
  %v2871 = vsel %vm92, %v2642, -inf
  %v2872 = vmax.f32 %v2870, %v2871
  %v2873 = vsel %vm92, %v2643, -inf
  %v2874 = vmax.f32 %v2872, %v2873
  %v2875 = vsel %vm92, %v2644, -inf
  %v2876 = vmax.f32 %v2874, %v2875
  %v2877 = vsel %vm92, %v2645, -inf
  %v2878 = vmax.f32 %v2876, %v2877
  %v2879 = vsel %vm92, %v2646, -inf
  %v2880 = vsel %vm92, %v2647, -inf
  %v2881 = vmax.f32 %v2879, %v2880
  %v2882 = vsel %vm92, %v2648, -inf
  %v2883 = vmax.f32 %v2881, %v2882
  %v2884 = vsel %vm92, %v2649, -inf
  %v2885 = vmax.f32 %v2883, %v2884
  %v2886 = vsel %vm92, %v2650, -inf
  %v2887 = vmax.f32 %v2885, %v2886
  %v2888 = vsel %vm92, %v2651, -inf
  %v2889 = vmax.f32 %v2887, %v2888
  %v2890 = vsel %vm92, %v2652, -inf
  %v2891 = vmax.f32 %v2889, %v2890
  %v2892 = vsel %vm92, %v2653, -inf
  %v2893 = vmax.f32 %v2891, %v2892
  %v2894 = vsub.f32 %v2526, %v2668
  %v2895 = vsub.f32 %v2527, %v2668
  %v2896 = vsub.f32 %v2528, %v2668
  %v2897 = vsub.f32 %v2529, %v2668
  %v2898 = vsub.f32 %v2530, %v2668
  %v2899 = vsub.f32 %v2531, %v2668
  %v2900 = vsub.f32 %v2532, %v2668
  %v2901 = vsub.f32 %v2533, %v2668
  %v2902 = vsub.f32 %v2534, %v2683
  %v2903 = vsub.f32 %v2535, %v2683
  %v2904 = vsub.f32 %v2536, %v2683
  %v2905 = vsub.f32 %v2537, %v2683
  %v2906 = vsub.f32 %v2538, %v2683
  %v2907 = vsub.f32 %v2539, %v2683
  %v2908 = vsub.f32 %v2540, %v2683
  %v2909 = vsub.f32 %v2541, %v2683
  %v2910 = vsub.f32 %v2542, %v2698
  %v2911 = vsub.f32 %v2543, %v2698
  %v2912 = vsub.f32 %v2544, %v2698
  %v2913 = vsub.f32 %v2545, %v2698
  %v2914 = vsub.f32 %v2546, %v2698
  %v2915 = vsub.f32 %v2547, %v2698
  %v2916 = vsub.f32 %v2548, %v2698
  %v2917 = vsub.f32 %v2549, %v2698
  %v2918 = vsub.f32 %v2550, %v2713
  %v2919 = vsub.f32 %v2551, %v2713
  %v2920 = vsub.f32 %v2552, %v2713
  %v2921 = vsub.f32 %v2553, %v2713
  %v2922 = vsub.f32 %v2554, %v2713
  %v2923 = vsub.f32 %v2555, %v2713
  %v2924 = vsub.f32 %v2556, %v2713
  %v2925 = vsub.f32 %v2557, %v2713
  %v2926 = vsub.f32 %v2558, %v2728
  %v2927 = vsub.f32 %v2559, %v2728
  %v2928 = vsub.f32 %v2560, %v2728
  %v2929 = vsub.f32 %v2561, %v2728
  %v2930 = vsub.f32 %v2562, %v2728
  %v2931 = vsub.f32 %v2563, %v2728
  %v2932 = vsub.f32 %v2564, %v2728
  %v2933 = vsub.f32 %v2565, %v2728
  %v2934 = vsub.f32 %v2566, %v2743
  %v2935 = vsub.f32 %v2567, %v2743
  %v2936 = vsub.f32 %v2568, %v2743
  %v2937 = vsub.f32 %v2569, %v2743
  %v2938 = vsub.f32 %v2570, %v2743
  %v2939 = vsub.f32 %v2571, %v2743
  %v2940 = vsub.f32 %v2572, %v2743
  %v2941 = vsub.f32 %v2573, %v2743
  %v2942 = vsub.f32 %v2574, %v2758
  %v2943 = vsub.f32 %v2575, %v2758
  %v2944 = vsub.f32 %v2576, %v2758
  %v2945 = vsub.f32 %v2577, %v2758
  %v2946 = vsub.f32 %v2578, %v2758
  %v2947 = vsub.f32 %v2579, %v2758
  %v2948 = vsub.f32 %v2580, %v2758
  %v2949 = vsub.f32 %v2581, %v2758
  %v2950 = vsub.f32 %v2582, %v2773
  %v2951 = vsub.f32 %v2583, %v2773
  %v2952 = vsub.f32 %v2584, %v2773
  %v2953 = vsub.f32 %v2585, %v2773
  %v2954 = vsub.f32 %v2586, %v2773
  %v2955 = vsub.f32 %v2587, %v2773
  %v2956 = vsub.f32 %v2588, %v2773
  %v2957 = vsub.f32 %v2589, %v2773
  %v2958 = vsub.f32 %v2590, %v2788
  %v2959 = vsub.f32 %v2591, %v2788
  %v2960 = vsub.f32 %v2592, %v2788
  %v2961 = vsub.f32 %v2593, %v2788
  %v2962 = vsub.f32 %v2594, %v2788
  %v2963 = vsub.f32 %v2595, %v2788
  %v2964 = vsub.f32 %v2596, %v2788
  %v2965 = vsub.f32 %v2597, %v2788
  %v2966 = vsub.f32 %v2598, %v2803
  %v2967 = vsub.f32 %v2599, %v2803
  %v2968 = vsub.f32 %v2600, %v2803
  %v2969 = vsub.f32 %v2601, %v2803
  %v2970 = vsub.f32 %v2602, %v2803
  %v2971 = vsub.f32 %v2603, %v2803
  %v2972 = vsub.f32 %v2604, %v2803
  %v2973 = vsub.f32 %v2605, %v2803
  %v2974 = vsub.f32 %v2606, %v2818
  %v2975 = vsub.f32 %v2607, %v2818
  %v2976 = vsub.f32 %v2608, %v2818
  %v2977 = vsub.f32 %v2609, %v2818
  %v2978 = vsub.f32 %v2610, %v2818
  %v2979 = vsub.f32 %v2611, %v2818
  %v2980 = vsub.f32 %v2612, %v2818
  %v2981 = vsub.f32 %v2613, %v2818
  %v2982 = vsub.f32 %v2614, %v2833
  %v2983 = vsub.f32 %v2615, %v2833
  %v2984 = vsub.f32 %v2616, %v2833
  %v2985 = vsub.f32 %v2617, %v2833
  %v2986 = vsub.f32 %v2618, %v2833
  %v2987 = vsub.f32 %v2619, %v2833
  %v2988 = vsub.f32 %v2620, %v2833
  %v2989 = vsub.f32 %v2621, %v2833
  %v2990 = vsub.f32 %v2622, %v2848
  %v2991 = vsub.f32 %v2623, %v2848
  %v2992 = vsub.f32 %v2624, %v2848
  %v2993 = vsub.f32 %v2625, %v2848
  %v2994 = vsub.f32 %v2626, %v2848
  %v2995 = vsub.f32 %v2627, %v2848
  %v2996 = vsub.f32 %v2628, %v2848
  %v2997 = vsub.f32 %v2629, %v2848
  %v2998 = vsub.f32 %v2630, %v2863
  %v2999 = vsub.f32 %v2631, %v2863
  %v3000 = vsub.f32 %v2632, %v2863
  %v3001 = vsub.f32 %v2633, %v2863
  %v3002 = vsub.f32 %v2634, %v2863
  %v3003 = vsub.f32 %v2635, %v2863
  %v3004 = vsub.f32 %v2636, %v2863
  %v3005 = vsub.f32 %v2637, %v2863
  %v3006 = vsub.f32 %v2638, %v2878
  %v3007 = vsub.f32 %v2639, %v2878
  %v3008 = vsub.f32 %v2640, %v2878
  %v3009 = vsub.f32 %v2641, %v2878
  %v3010 = vsub.f32 %v2642, %v2878
  %v3011 = vsub.f32 %v2643, %v2878
  %v3012 = vsub.f32 %v2644, %v2878
  %v3013 = vsub.f32 %v2645, %v2878
  %v3014 = vsub.f32 %v2646, %v2893
  %v3015 = vsub.f32 %v2647, %v2893
  %v3016 = vsub.f32 %v2648, %v2893
  %v3017 = vsub.f32 %v2649, %v2893
  %v3018 = vsub.f32 %v2650, %v2893
  %v3019 = vsub.f32 %v2651, %v2893
  %v3020 = vsub.f32 %v2652, %v2893
  %v3021 = vsub.f32 %v2653, %v2893
  %v3022 = vmul.f32 %v2894, 1.442695
  %v3023 = vpow.pop %v3022
  %v3024 = vmul.f32 %v2895, 1.442695
  %v3025 = vpow.pop %v3024
  %v3026 = vmul.f32 %v2896, 1.442695
  %v3027 = vpow.pop %v3026
  %v3028 = vmul.f32 %v2897, 1.442695
  %v3029 = vpow.pop %v3028
  %v3030 = vmul.f32 %v2898, 1.442695
  %v3031 = vpow.pop %v3030
  %v3032 = vmul.f32 %v2899, 1.442695
  %v3033 = vpow.pop %v3032
  %v3034 = vmul.f32 %v2900, 1.442695
  %v3035 = vpow.pop %v3034
  %v3036 = vmul.f32 %v2901, 1.442695
  %v3037 = vpow.pop %v3036
  %v3038 = vmul.f32 %v2902, 1.442695
  %v3039 = vpow.pop %v3038
  %v3040 = vmul.f32 %v2903, 1.442695
  %v3041 = vpow.pop %v3040
  %v3042 = vmul.f32 %v2904, 1.442695
  %v3043 = vpow.pop %v3042
  %v3044 = vmul.f32 %v2905, 1.442695
  %v3045 = vpow.pop %v3044
  %v3046 = vmul.f32 %v2906, 1.442695
  %v3047 = vpow.pop %v3046
  %v3048 = vmul.f32 %v2907, 1.442695
  %v3049 = vpow.pop %v3048
  %v3050 = vmul.f32 %v2908, 1.442695
  %v3051 = vpow.pop %v3050
  %v3052 = vmul.f32 %v2909, 1.442695
  %v3053 = vpow.pop %v3052
  %v3054 = vmul.f32 %v2910, 1.442695
  %v3055 = vpow.pop %v3054
  %v3056 = vmul.f32 %v2911, 1.442695
  %v3057 = vpow.pop %v3056
  %v3058 = vmul.f32 %v2912, 1.442695
  %v3059 = vpow.pop %v3058
  %v3060 = vmul.f32 %v2913, 1.442695
  %v3061 = vpow.pop %v3060
  %v3062 = vmul.f32 %v2914, 1.442695
  %v3063 = vpow.pop %v3062
  %v3064 = vmul.f32 %v2915, 1.442695
  %v3065 = vpow.pop %v3064
  %v3066 = vmul.f32 %v2916, 1.442695
  %v3067 = vpow.pop %v3066
  %v3068 = vmul.f32 %v2917, 1.442695
  %v3069 = vpow.pop %v3068
  %v3070 = vmul.f32 %v2918, 1.442695
  %v3071 = vpow.pop %v3070
  %v3072 = vmul.f32 %v2919, 1.442695
  %v3073 = vpow.pop %v3072
  %v3074 = vmul.f32 %v2920, 1.442695
  %v3075 = vpow.pop %v3074
  %v3076 = vmul.f32 %v2921, 1.442695
  %v3077 = vpow.pop %v3076
  %v3078 = vmul.f32 %v2922, 1.442695
  %v3079 = vpow.pop %v3078
  %v3080 = vmul.f32 %v2923, 1.442695
  %v3081 = vpow.pop %v3080
  %v3082 = vmul.f32 %v2924, 1.442695
  %v3083 = vpow.pop %v3082
  %v3084 = vmul.f32 %v2925, 1.442695
  %v3085 = vpow.pop %v3084
  %v3086 = vmul.f32 %v2926, 1.442695
  %v3087 = vpow.pop %v3086
  %v3088 = vmul.f32 %v2927, 1.442695
  %v3089 = vpow.pop %v3088
  %v3090 = vmul.f32 %v2928, 1.442695
  %v3091 = vpow.pop %v3090
  %v3092 = vmul.f32 %v2929, 1.442695
  %v3093 = vpow.pop %v3092
  %v3094 = vmul.f32 %v2930, 1.442695
  %v3095 = vpow.pop %v3094
  %v3096 = vmul.f32 %v2931, 1.442695
  %v3097 = vpow.pop %v3096
  %v3098 = vmul.f32 %v2932, 1.442695
  %v3099 = vpow.pop %v3098
  %v3100 = vmul.f32 %v2933, 1.442695
  %v3101 = vpow.pop %v3100
  %v3102 = vmul.f32 %v2934, 1.442695
  %v3103 = vpow.pop %v3102
  %v3104 = vmul.f32 %v2935, 1.442695
  %v3105 = vpow.pop %v3104
  %v3106 = vmul.f32 %v2936, 1.442695
  %v3107 = vpow.pop %v3106
  %v3108 = vmul.f32 %v2937, 1.442695
  %v3109 = vpow.pop %v3108
  %v3110 = vmul.f32 %v2938, 1.442695
  %v3111 = vpow.pop %v3110
  %v3112 = vmul.f32 %v2939, 1.442695
  %v3113 = vpow.pop %v3112
  %v3114 = vmul.f32 %v2940, 1.442695
  %v3115 = vpow.pop %v3114
  %v3116 = vmul.f32 %v2941, 1.442695
  %v3117 = vpow.pop %v3116
  %v3118 = vmul.f32 %v2942, 1.442695
  %v3119 = vpow.pop %v3118
  %v3120 = vmul.f32 %v2943, 1.442695
  %v3121 = vpow.pop %v3120
  %v3122 = vmul.f32 %v2944, 1.442695
  %v3123 = vpow.pop %v3122
  %v3124 = vmul.f32 %v2945, 1.442695
  %v3125 = vpow.pop %v3124
  %v3126 = vmul.f32 %v2946, 1.442695
  %v3127 = vpow.pop %v3126
  %v3128 = vmul.f32 %v2947, 1.442695
  %v3129 = vpow.pop %v3128
  %v3130 = vmul.f32 %v2948, 1.442695
  %v3131 = vpow.pop %v3130
  %v3132 = vmul.f32 %v2949, 1.442695
  %v3133 = vpow.pop %v3132
  %v3134 = vmul.f32 %v2950, 1.442695
  %v3135 = vpow.pop %v3134
  %v3136 = vmul.f32 %v2951, 1.442695
  %v3137 = vpow.pop %v3136
  %v3138 = vmul.f32 %v2952, 1.442695
  %v3139 = vpow.pop %v3138
  %v3140 = vmul.f32 %v2953, 1.442695
  %v3141 = vpow.pop %v3140
  %v3142 = vmul.f32 %v2954, 1.442695
  %v3143 = vpow.pop %v3142
  %v3144 = vmul.f32 %v2955, 1.442695
  %v3145 = vpow.pop %v3144
  %v3146 = vmul.f32 %v2956, 1.442695
  %v3147 = vpow.pop %v3146
  %v3148 = vmul.f32 %v2957, 1.442695
  %v3149 = vpow.pop %v3148
  %v3150 = vmul.f32 %v2958, 1.442695
  %v3151 = vpow.pop %v3150
  %v3152 = vmul.f32 %v2959, 1.442695
  %v3153 = vpow.pop %v3152
  %v3154 = vmul.f32 %v2960, 1.442695
  %v3155 = vpow.pop %v3154
  %v3156 = vmul.f32 %v2961, 1.442695
  %v3157 = vpow.pop %v3156
  %v3158 = vmul.f32 %v2962, 1.442695
  %v3159 = vpow.pop %v3158
  %v3160 = vmul.f32 %v2963, 1.442695
  %v3161 = vpow.pop %v3160
  %v3162 = vmul.f32 %v2964, 1.442695
  %v3163 = vpow.pop %v3162
  %v3164 = vmul.f32 %v2965, 1.442695
  %v3165 = vpow.pop %v3164
  %v3166 = vmul.f32 %v2966, 1.442695
  %v3167 = vpow.pop %v3166
  %v3168 = vmul.f32 %v2967, 1.442695
  %v3169 = vpow.pop %v3168
  %v3170 = vmul.f32 %v2968, 1.442695
  %v3171 = vpow.pop %v3170
  %v3172 = vmul.f32 %v2969, 1.442695
  %v3173 = vpow.pop %v3172
  %v3174 = vmul.f32 %v2970, 1.442695
  %v3175 = vpow.pop %v3174
  %v3176 = vmul.f32 %v2971, 1.442695
  %v3177 = vpow.pop %v3176
  %v3178 = vmul.f32 %v2972, 1.442695
  %v3179 = vpow.pop %v3178
  %v3180 = vmul.f32 %v2973, 1.442695
  %v3181 = vpow.pop %v3180
  %v3182 = vmul.f32 %v2974, 1.442695
  %v3183 = vpow.pop %v3182
  %v3184 = vmul.f32 %v2975, 1.442695
  %v3185 = vpow.pop %v3184
  %v3186 = vmul.f32 %v2976, 1.442695
  %v3187 = vpow.pop %v3186
  %v3188 = vmul.f32 %v2977, 1.442695
  %v3189 = vpow.pop %v3188
  %v3190 = vmul.f32 %v2978, 1.442695
  %v3191 = vpow.pop %v3190
  %v3192 = vmul.f32 %v2979, 1.442695
  %v3193 = vpow.pop %v3192
  %v3194 = vmul.f32 %v2980, 1.442695
  %v3195 = vpow.pop %v3194
  %v3196 = vmul.f32 %v2981, 1.442695
  %v3197 = vpow.pop %v3196
  %v3198 = vmul.f32 %v2982, 1.442695
  %v3199 = vpow.pop %v3198
  %v3200 = vmul.f32 %v2983, 1.442695
  %v3201 = vpow.pop %v3200
  %v3202 = vmul.f32 %v2984, 1.442695
  %v3203 = vpow.pop %v3202
  %v3204 = vmul.f32 %v2985, 1.442695
  %v3205 = vpow.pop %v3204
  %v3206 = vmul.f32 %v2986, 1.442695
  %v3207 = vpow.pop %v3206
  %v3208 = vmul.f32 %v2987, 1.442695
  %v3209 = vpow.pop %v3208
  %v3210 = vmul.f32 %v2988, 1.442695
  %v3211 = vpow.pop %v3210
  %v3212 = vmul.f32 %v2989, 1.442695
  %v3213 = vpow.pop %v3212
  %v3214 = vmul.f32 %v2990, 1.442695
  %v3215 = vpow.pop %v3214
  %v3216 = vmul.f32 %v2991, 1.442695
  %v3217 = vpow.pop %v3216
  %v3218 = vmul.f32 %v2992, 1.442695
  %v3219 = vpow.pop %v3218
  %v3220 = vmul.f32 %v2993, 1.442695
  %v3221 = vpow.pop %v3220
  %v3222 = vmul.f32 %v2994, 1.442695
  %v3223 = vpow.pop %v3222
  %v3224 = vmul.f32 %v2995, 1.442695
  %v3225 = vpow.pop %v3224
  %v3226 = vmul.f32 %v2996, 1.442695
  %v3227 = vpow.pop %v3226
  %v3228 = vmul.f32 %v2997, 1.442695
  %v3229 = vpow.pop %v3228
  %v3230 = vmul.f32 %v2998, 1.442695
  %v3231 = vpow.pop %v3230
  %v3232 = vmul.f32 %v2999, 1.442695
  %v3233 = vpow.pop %v3232
  %v3234 = vmul.f32 %v3000, 1.442695
  %v3235 = vpow.pop %v3234
  %v3236 = vmul.f32 %v3001, 1.442695
  %v3237 = vpow.pop %v3236
  %v3238 = vmul.f32 %v3002, 1.442695
  %v3239 = vpow.pop %v3238
  %v3240 = vmul.f32 %v3003, 1.442695
  %v3241 = vpow.pop %v3240
  %v3242 = vmul.f32 %v3004, 1.442695
  %v3243 = vpow.pop %v3242
  %v3244 = vmul.f32 %v3005, 1.442695
  %v3245 = vpow.pop %v3244
  %v3246 = vmul.f32 %v3006, 1.442695
  %v3247 = vpow.pop %v3246
  %v3248 = vmul.f32 %v3007, 1.442695
  %v3249 = vpow.pop %v3248
  %v3250 = vmul.f32 %v3008, 1.442695
  %v3251 = vpow.pop %v3250
  %v3252 = vmul.f32 %v3009, 1.442695
  %v3253 = vpow.pop %v3252
  %v3254 = vmul.f32 %v3010, 1.442695
  %v3255 = vpow.pop %v3254
  %v3256 = vmul.f32 %v3011, 1.442695
  %v3257 = vpow.pop %v3256
  %v3258 = vmul.f32 %v3012, 1.442695
  %v3259 = vpow.pop %v3258
  %v3260 = vmul.f32 %v3013, 1.442695
  %v3261 = vpow.pop %v3260
  %v3262 = vmul.f32 %v3014, 1.442695
  %v3263 = vpow.pop %v3262
  %v3264 = vmul.f32 %v3015, 1.442695
  %v3265 = vpow.pop %v3264
  %v3266 = vmul.f32 %v3016, 1.442695
  %v3267 = vpow.pop %v3266
  %v3268 = vmul.f32 %v3017, 1.442695
  %v3269 = vpow.pop %v3268
  %v3270 = vmul.f32 %v3018, 1.442695
  %v3271 = vpow.pop %v3270
  %v3272 = vmul.f32 %v3019, 1.442695
  %v3273 = vpow.pop %v3272
  %v3274 = vmul.f32 %v3020, 1.442695
  %v3275 = vpow.pop %v3274
  %v3276 = vmul.f32 %v3021, 1.442695
  %v3277 = vpow.pop %v3276
  %v3406 = vrot.slane %v3025, 7
  %vm3407 = vcmask 1041409
  %v3408 = vsel %vm3407, %v3406, %v3023
  %v3409 = vrot.slane %v3027, 6
  %vm3410 = vcmask 1042434
  %v3411 = vsel %vm3410, %v3409, %v3408
  %v3412 = vrot.slane %v3029, 5
  %vm3413 = vcmask 1043459
  %v3414 = vsel %vm3413, %v3412, %v3411
  %v3415 = vrot.slane %v3031, 4
  %vm3416 = vcmask 1044484
  %v3417 = vsel %vm3416, %v3415, %v3414
  %v3418 = vrot.slane %v3033, 3
  %vm3419 = vcmask 1045509
  %v3420 = vsel %vm3419, %v3418, %v3417
  %v3421 = vrot.slane %v3035, 2
  %vm3422 = vcmask 1046534
  %v3423 = vsel %vm3422, %v3421, %v3420
  %v3424 = vrot.slane %v3037, 1
  %vm3425 = vcmask 1047559
  %v3426 = vsel %vm3425, %v3424, %v3423
  %v3427 = vrot.slane %v3041, 7
  %v3428 = vsel %vm3407, %v3427, %v3039
  %v3429 = vrot.slane %v3043, 6
  %v3430 = vsel %vm3410, %v3429, %v3428
  %v3431 = vrot.slane %v3045, 5
  %v3432 = vsel %vm3413, %v3431, %v3430
  %v3433 = vrot.slane %v3047, 4
  %v3434 = vsel %vm3416, %v3433, %v3432
  %v3435 = vrot.slane %v3049, 3
  %v3436 = vsel %vm3419, %v3435, %v3434
  %v3437 = vrot.slane %v3051, 2
  %v3438 = vsel %vm3422, %v3437, %v3436
  %v3439 = vrot.slane %v3053, 1
  %v3440 = vsel %vm3425, %v3439, %v3438
  %v3441 = vrot.slane %v3057, 7
  %v3442 = vsel %vm3407, %v3441, %v3055
  %v3443 = vrot.slane %v3059, 6
  %v3444 = vsel %vm3410, %v3443, %v3442
  %v3445 = vrot.slane %v3061, 5
  %v3446 = vsel %vm3413, %v3445, %v3444
  %v3447 = vrot.slane %v3063, 4
  %v3448 = vsel %vm3416, %v3447, %v3446
  %v3449 = vrot.slane %v3065, 3
  %v3450 = vsel %vm3419, %v3449, %v3448
  %v3451 = vrot.slane %v3067, 2
  %v3452 = vsel %vm3422, %v3451, %v3450
  %v3453 = vrot.slane %v3069, 1
  %v3454 = vsel %vm3425, %v3453, %v3452
  %v3455 = vrot.slane %v3073, 7
  %v3456 = vsel %vm3407, %v3455, %v3071
  %v3457 = vrot.slane %v3075, 6
  %v3458 = vsel %vm3410, %v3457, %v3456
  %v3459 = vrot.slane %v3077, 5
  %v3460 = vsel %vm3413, %v3459, %v3458
  %v3461 = vrot.slane %v3079, 4
  %v3462 = vsel %vm3416, %v3461, %v3460
  %v3463 = vrot.slane %v3081, 3
  %v3464 = vsel %vm3419, %v3463, %v3462
  %v3465 = vrot.slane %v3083, 2
  %v3466 = vsel %vm3422, %v3465, %v3464
  %v3467 = vrot.slane %v3085, 1
  %v3468 = vsel %vm3425, %v3467, %v3466
  %v3469 = vrot.slane %v3089, 7
  %v3470 = vsel %vm3407, %v3469, %v3087
  %v3471 = vrot.slane %v3091, 6
  %v3472 = vsel %vm3410, %v3471, %v3470
  %v3473 = vrot.slane %v3093, 5
  %v3474 = vsel %vm3413, %v3473, %v3472
  %v3475 = vrot.slane %v3095, 4
  %v3476 = vsel %vm3416, %v3475, %v3474
  %v3477 = vrot.slane %v3097, 3
  %v3478 = vsel %vm3419, %v3477, %v3476
  %v3479 = vrot.slane %v3099, 2
  %v3480 = vsel %vm3422, %v3479, %v3478
  %v3481 = vrot.slane %v3101, 1
  %v3482 = vsel %vm3425, %v3481, %v3480
  %v3483 = vrot.slane %v3105, 7
  %v3484 = vsel %vm3407, %v3483, %v3103
  %v3485 = vrot.slane %v3107, 6
  %v3486 = vsel %vm3410, %v3485, %v3484
  %v3487 = vrot.slane %v3109, 5
  %v3488 = vsel %vm3413, %v3487, %v3486
  %v3489 = vrot.slane %v3111, 4
  %v3490 = vsel %vm3416, %v3489, %v3488
  %v3491 = vrot.slane %v3113, 3
  %v3492 = vsel %vm3419, %v3491, %v3490
  %v3493 = vrot.slane %v3115, 2
  %v3494 = vsel %vm3422, %v3493, %v3492
  %v3495 = vrot.slane %v3117, 1
  %v3496 = vsel %vm3425, %v3495, %v3494
  %v3497 = vrot.slane %v3121, 7
  %v3498 = vsel %vm3407, %v3497, %v3119
  %v3499 = vrot.slane %v3123, 6
  %v3500 = vsel %vm3410, %v3499, %v3498
  %v3501 = vrot.slane %v3125, 5
  %v3502 = vsel %vm3413, %v3501, %v3500
  %v3503 = vrot.slane %v3127, 4
  %v3504 = vsel %vm3416, %v3503, %v3502
  %v3505 = vrot.slane %v3129, 3
  %v3506 = vsel %vm3419, %v3505, %v3504
  %v3507 = vrot.slane %v3131, 2
  %v3508 = vsel %vm3422, %v3507, %v3506
  %v3509 = vrot.slane %v3133, 1
  %v3510 = vsel %vm3425, %v3509, %v3508
  %v3511 = vrot.slane %v3137, 7
  %v3512 = vsel %vm3407, %v3511, %v3135
  %v3513 = vrot.slane %v3139, 6
  %v3514 = vsel %vm3410, %v3513, %v3512
  %v3515 = vrot.slane %v3141, 5
  %v3516 = vsel %vm3413, %v3515, %v3514
  %v3517 = vrot.slane %v3143, 4
  %v3518 = vsel %vm3416, %v3517, %v3516
  %v3519 = vrot.slane %v3145, 3
  %v3520 = vsel %vm3419, %v3519, %v3518
  %v3521 = vrot.slane %v3147, 2
  %v3522 = vsel %vm3422, %v3521, %v3520
  %v3523 = vrot.slane %v3149, 1
  %v3524 = vsel %vm3425, %v3523, %v3522
  %v3525 = vrot.slane %v3153, 7
  %v3526 = vsel %vm3407, %v3525, %v3151
  %v3527 = vrot.slane %v3155, 6
  %v3528 = vsel %vm3410, %v3527, %v3526
  %v3529 = vrot.slane %v3157, 5
  %v3530 = vsel %vm3413, %v3529, %v3528
  %v3531 = vrot.slane %v3159, 4
  %v3532 = vsel %vm3416, %v3531, %v3530
  %v3533 = vrot.slane %v3161, 3
  %v3534 = vsel %vm3419, %v3533, %v3532
  %v3535 = vrot.slane %v3163, 2
  %v3536 = vsel %vm3422, %v3535, %v3534
  %v3537 = vrot.slane %v3165, 1
  %v3538 = vsel %vm3425, %v3537, %v3536
  %v3539 = vrot.slane %v3169, 7
  %v3540 = vsel %vm3407, %v3539, %v3167
  %v3541 = vrot.slane %v3171, 6
  %v3542 = vsel %vm3410, %v3541, %v3540
  %v3543 = vrot.slane %v3173, 5
  %v3544 = vsel %vm3413, %v3543, %v3542
  %v3545 = vrot.slane %v3175, 4
  %v3546 = vsel %vm3416, %v3545, %v3544
  %v3547 = vrot.slane %v3177, 3
  %v3548 = vsel %vm3419, %v3547, %v3546
  %v3549 = vrot.slane %v3179, 2
  %v3550 = vsel %vm3422, %v3549, %v3548
  %v3551 = vrot.slane %v3181, 1
  %v3552 = vsel %vm3425, %v3551, %v3550
  %v3553 = vrot.slane %v3185, 7
  %v3554 = vsel %vm3407, %v3553, %v3183
  %v3555 = vrot.slane %v3187, 6
  %v3556 = vsel %vm3410, %v3555, %v3554
  %v3557 = vrot.slane %v3189, 5
  %v3558 = vsel %vm3413, %v3557, %v3556
  %v3559 = vrot.slane %v3191, 4
  %v3560 = vsel %vm3416, %v3559, %v3558
  %v3561 = vrot.slane %v3193, 3
  %v3562 = vsel %vm3419, %v3561, %v3560
  %v3563 = vrot.slane %v3195, 2
  %v3564 = vsel %vm3422, %v3563, %v3562
  %v3565 = vrot.slane %v3197, 1
  %v3566 = vsel %vm3425, %v3565, %v3564
  %v3567 = vrot.slane %v3201, 7
  %v3568 = vsel %vm3407, %v3567, %v3199
  %v3569 = vrot.slane %v3203, 6
  %v3570 = vsel %vm3410, %v3569, %v3568
  %v3571 = vrot.slane %v3205, 5
  %v3572 = vsel %vm3413, %v3571, %v3570
  %v3573 = vrot.slane %v3207, 4
  %v3574 = vsel %vm3416, %v3573, %v3572
  %v3575 = vrot.slane %v3209, 3
  %v3576 = vsel %vm3419, %v3575, %v3574
  %v3577 = vrot.slane %v3211, 2
  %v3578 = vsel %vm3422, %v3577, %v3576
  %v3579 = vrot.slane %v3213, 1
  %v3580 = vsel %vm3425, %v3579, %v3578
  %v3581 = vrot.slane %v3217, 7
  %v3582 = vsel %vm3407, %v3581, %v3215
  %v3583 = vrot.slane %v3219, 6
  %v3584 = vsel %vm3410, %v3583, %v3582
  %v3585 = vrot.slane %v3221, 5
  %v3586 = vsel %vm3413, %v3585, %v3584
  %v3587 = vrot.slane %v3223, 4
  %v3588 = vsel %vm3416, %v3587, %v3586
  %v3589 = vrot.slane %v3225, 3
  %v3590 = vsel %vm3419, %v3589, %v3588
  %v3591 = vrot.slane %v3227, 2
  %v3592 = vsel %vm3422, %v3591, %v3590
  %v3593 = vrot.slane %v3229, 1
  %v3594 = vsel %vm3425, %v3593, %v3592
  %v3595 = vrot.slane %v3233, 7
  %v3596 = vsel %vm3407, %v3595, %v3231
  %v3597 = vrot.slane %v3235, 6
  %v3598 = vsel %vm3410, %v3597, %v3596
  %v3599 = vrot.slane %v3237, 5
  %v3600 = vsel %vm3413, %v3599, %v3598
  %v3601 = vrot.slane %v3239, 4
  %v3602 = vsel %vm3416, %v3601, %v3600
  %v3603 = vrot.slane %v3241, 3
  %v3604 = vsel %vm3419, %v3603, %v3602
  %v3605 = vrot.slane %v3243, 2
  %v3606 = vsel %vm3422, %v3605, %v3604
  %v3607 = vrot.slane %v3245, 1
  %v3608 = vsel %vm3425, %v3607, %v3606
  %v3609 = vrot.slane %v3249, 7
  %v3610 = vsel %vm3407, %v3609, %v3247
  %v3611 = vrot.slane %v3251, 6
  %v3612 = vsel %vm3410, %v3611, %v3610
  %v3613 = vrot.slane %v3253, 5
  %v3614 = vsel %vm3413, %v3613, %v3612
  %v3615 = vrot.slane %v3255, 4
  %v3616 = vsel %vm3416, %v3615, %v3614
  %v3617 = vrot.slane %v3257, 3
  %v3618 = vsel %vm3419, %v3617, %v3616
  %v3619 = vrot.slane %v3259, 2
  %v3620 = vsel %vm3422, %v3619, %v3618
  %v3621 = vrot.slane %v3261, 1
  %v3622 = vsel %vm3425, %v3621, %v3620
  %v3623 = vrot.slane %v3265, 7
  %v3624 = vsel %vm3407, %v3623, %v3263
  %v3625 = vrot.slane %v3267, 6
  %v3626 = vsel %vm3410, %v3625, %v3624
  %v3627 = vrot.slane %v3269, 5
  %v3628 = vsel %vm3413, %v3627, %v3626
  %v3629 = vrot.slane %v3271, 4
  %v3630 = vsel %vm3416, %v3629, %v3628
  %v3631 = vrot.slane %v3273, 3
  %v3632 = vsel %vm3419, %v3631, %v3630
  %v3633 = vrot.slane %v3275, 2
  %v3634 = vsel %vm3422, %v3633, %v3632
  %v3635 = vrot.slane %v3277, 1
  %v3636 = vsel %vm3425, %v3635, %v3634
  %v3653 = vsel %vm92, %v3426, 0.0
  %v3654 = vrot.slane %v3653, 4
  %v3655 = vadd.f32 %v3653, %v3654
  %v3656 = vrot.slane %v3655, 2
  %v3657 = vadd.f32 %v3655, %v3656
  %v3658 = vrot.slane %v3657, 1
  %v3659 = vadd.f32 %v3657, %v3658
  %v3660 = vsel %vm92, %v3440, 0.0
  %v3661 = vrot.slane %v3660, 4
  %v3662 = vadd.f32 %v3660, %v3661
  %v3663 = vrot.slane %v3662, 2
  %v3664 = vadd.f32 %v3662, %v3663
  %v3665 = vrot.slane %v3664, 1
  %v3666 = vadd.f32 %v3664, %v3665
  %v3667 = vsel %vm92, %v3454, 0.0
  %v3668 = vrot.slane %v3667, 4
  %v3669 = vadd.f32 %v3667, %v3668
  %v3670 = vrot.slane %v3669, 2
  %v3671 = vadd.f32 %v3669, %v3670
  %v3672 = vrot.slane %v3671, 1
  %v3673 = vadd.f32 %v3671, %v3672
  %v3674 = vsel %vm92, %v3468, 0.0
  %v3675 = vrot.slane %v3674, 4
  %v3676 = vadd.f32 %v3674, %v3675
  %v3677 = vrot.slane %v3676, 2
  %v3678 = vadd.f32 %v3676, %v3677
  %v3679 = vrot.slane %v3678, 1
  %v3680 = vadd.f32 %v3678, %v3679
  %v3681 = vsel %vm92, %v3482, 0.0
  %v3682 = vrot.slane %v3681, 4
  %v3683 = vadd.f32 %v3681, %v3682
  %v3684 = vrot.slane %v3683, 2
  %v3685 = vadd.f32 %v3683, %v3684
  %v3686 = vrot.slane %v3685, 1
  %v3687 = vadd.f32 %v3685, %v3686
  %v3688 = vsel %vm92, %v3496, 0.0
  %v3689 = vrot.slane %v3688, 4
  %v3690 = vadd.f32 %v3688, %v3689
  %v3691 = vrot.slane %v3690, 2
  %v3692 = vadd.f32 %v3690, %v3691
  %v3693 = vrot.slane %v3692, 1
  %v3694 = vadd.f32 %v3692, %v3693
  %v3695 = vsel %vm92, %v3510, 0.0
  %v3696 = vrot.slane %v3695, 4
  %v3697 = vadd.f32 %v3695, %v3696
  %v3698 = vrot.slane %v3697, 2
  %v3699 = vadd.f32 %v3697, %v3698
  %v3700 = vrot.slane %v3699, 1
  %v3701 = vadd.f32 %v3699, %v3700
  %v3702 = vsel %vm92, %v3524, 0.0
  %v3703 = vrot.slane %v3702, 4
  %v3704 = vadd.f32 %v3702, %v3703
  %v3705 = vrot.slane %v3704, 2
  %v3706 = vadd.f32 %v3704, %v3705
  %v3707 = vrot.slane %v3706, 1
  %v3708 = vadd.f32 %v3706, %v3707
  %v3709 = vsel %vm92, %v3538, 0.0
  %v3710 = vrot.slane %v3709, 4
  %v3711 = vadd.f32 %v3709, %v3710
  %v3712 = vrot.slane %v3711, 2
  %v3713 = vadd.f32 %v3711, %v3712
  %v3714 = vrot.slane %v3713, 1
  %v3715 = vadd.f32 %v3713, %v3714
  %v3716 = vsel %vm92, %v3552, 0.0
  %v3717 = vrot.slane %v3716, 4
  %v3718 = vadd.f32 %v3716, %v3717
  %v3719 = vrot.slane %v3718, 2
  %v3720 = vadd.f32 %v3718, %v3719
  %v3721 = vrot.slane %v3720, 1
  %v3722 = vadd.f32 %v3720, %v3721
  %v3723 = vsel %vm92, %v3566, 0.0
  %v3724 = vrot.slane %v3723, 4
  %v3725 = vadd.f32 %v3723, %v3724
  %v3726 = vrot.slane %v3725, 2
  %v3727 = vadd.f32 %v3725, %v3726
  %v3728 = vrot.slane %v3727, 1
  %v3729 = vadd.f32 %v3727, %v3728
  %v3730 = vsel %vm92, %v3580, 0.0
  %v3731 = vrot.slane %v3730, 4
  %v3732 = vadd.f32 %v3730, %v3731
  %v3733 = vrot.slane %v3732, 2
  %v3734 = vadd.f32 %v3732, %v3733
  %v3735 = vrot.slane %v3734, 1
  %v3736 = vadd.f32 %v3734, %v3735
  %v3737 = vsel %vm92, %v3594, 0.0
  %v3738 = vrot.slane %v3737, 4
  %v3739 = vadd.f32 %v3737, %v3738
  %v3740 = vrot.slane %v3739, 2
  %v3741 = vadd.f32 %v3739, %v3740
  %v3742 = vrot.slane %v3741, 1
  %v3743 = vadd.f32 %v3741, %v3742
  %v3744 = vsel %vm92, %v3608, 0.0
  %v3745 = vrot.slane %v3744, 4
  %v3746 = vadd.f32 %v3744, %v3745
  %v3747 = vrot.slane %v3746, 2
  %v3748 = vadd.f32 %v3746, %v3747
  %v3749 = vrot.slane %v3748, 1
  %v3750 = vadd.f32 %v3748, %v3749
  %v3751 = vsel %vm92, %v3622, 0.0
  %v3752 = vrot.slane %v3751, 4
  %v3753 = vadd.f32 %v3751, %v3752
  %v3754 = vrot.slane %v3753, 2
  %v3755 = vadd.f32 %v3753, %v3754
  %v3756 = vrot.slane %v3755, 1
  %v3757 = vadd.f32 %v3755, %v3756
  %v3758 = vsel %vm92, %v3636, 0.0
  %v3759 = vrot.slane %v3758, 4
  %v3760 = vadd.f32 %v3758, %v3759
  %v3761 = vrot.slane %v3760, 2
  %v3762 = vadd.f32 %v3760, %v3761
  %v3763 = vrot.slane %v3762, 1
  %v3764 = vadd.f32 %v3762, %v3763
  %v3765 = vrcp.pop %v3659
  %v3766 = vrcp.pop %v3666
  %v3767 = vrcp.pop %v3673
  %v3768 = vrcp.pop %v3680
  %v3769 = vrcp.pop %v3687
  %v3770 = vrcp.pop %v3694
  %v3771 = vrcp.pop %v3701
  %v3772 = vrcp.pop %v3708
  %v3773 = vrcp.pop %v3715
  %v3774 = vrcp.pop %v3722
  %v3775 = vrcp.pop %v3729
  %v3776 = vrcp.pop %v3736
  %v3777 = vrcp.pop %v3743
  %v3778 = vrcp.pop %v3750
  %v3779 = vrcp.pop %v3757
  %v3780 = vrcp.pop %v3764
  %v3781 = vlaneseq
  %v3782 = vshrl.u32 %v3781, 7
  %v3783 = vsub.s32 0, %v3782
  %v3784 = vrot.slane %v3765, %v3783
  %v3785 = vlaneseq
  %v3786 = vshrl.u32 %v3785, 7
  %v3787 = vsub.s32 0, %v3786
  %v3788 = vrot.slane %v3766, %v3787
  %v3789 = vlaneseq
  %v3790 = vshrl.u32 %v3789, 7
  %v3791 = vsub.s32 0, %v3790
  %v3792 = vrot.slane %v3767, %v3791
  %v3793 = vlaneseq
  %v3794 = vshrl.u32 %v3793, 7
  %v3795 = vsub.s32 0, %v3794
  %v3796 = vrot.slane %v3768, %v3795
  %v3797 = vlaneseq
  %v3798 = vshrl.u32 %v3797, 7
  %v3799 = vsub.s32 0, %v3798
  %v3800 = vrot.slane %v3769, %v3799
  %v3801 = vlaneseq
  %v3802 = vshrl.u32 %v3801, 7
  %v3803 = vsub.s32 0, %v3802
  %v3804 = vrot.slane %v3770, %v3803
  %v3805 = vlaneseq
  %v3806 = vshrl.u32 %v3805, 7
  %v3807 = vsub.s32 0, %v3806
  %v3808 = vrot.slane %v3771, %v3807
  %v3809 = vlaneseq
  %v3810 = vshrl.u32 %v3809, 7
  %v3811 = vsub.s32 0, %v3810
  %v3812 = vrot.slane %v3772, %v3811
  %v3813 = vlaneseq
  %v3814 = vshrl.u32 %v3813, 7
  %v3815 = vsub.s32 0, %v3814
  %v3816 = vrot.slane %v3773, %v3815
  %v3817 = vlaneseq
  %v3818 = vshrl.u32 %v3817, 7
  %v3819 = vsub.s32 0, %v3818
  %v3820 = vrot.slane %v3774, %v3819
  %v3821 = vlaneseq
  %v3822 = vshrl.u32 %v3821, 7
  %v3823 = vsub.s32 0, %v3822
  %v3824 = vrot.slane %v3775, %v3823
  %v3825 = vlaneseq
  %v3826 = vshrl.u32 %v3825, 7
  %v3827 = vsub.s32 0, %v3826
  %v3828 = vrot.slane %v3776, %v3827
  %v3829 = vlaneseq
  %v3830 = vshrl.u32 %v3829, 7
  %v3831 = vsub.s32 0, %v3830
  %v3832 = vrot.slane %v3777, %v3831
  %v3833 = vlaneseq
  %v3834 = vshrl.u32 %v3833, 7
  %v3835 = vsub.s32 0, %v3834
  %v3836 = vrot.slane %v3778, %v3835
  %v3837 = vlaneseq
  %v3838 = vshrl.u32 %v3837, 7
  %v3839 = vsub.s32 0, %v3838
  %v3840 = vrot.slane %v3779, %v3839
  %v3841 = vlaneseq
  %v3842 = vshrl.u32 %v3841, 7
  %v3843 = vsub.s32 0, %v3842
  %v3844 = vrot.slane %v3780, %v3843
  %v3845 = vmul.f32 %v3023, %v3784
  %v3846 = vmul.f32 %v3025, %v3784
  %v3847 = vmul.f32 %v3027, %v3784
  %v3848 = vmul.f32 %v3029, %v3784
  %v3849 = vmul.f32 %v3031, %v3784
  %v3850 = vmul.f32 %v3033, %v3784
  %v3851 = vmul.f32 %v3035, %v3784
  %v3852 = vmul.f32 %v3037, %v3784
  %v3853 = vmul.f32 %v3039, %v3788
  %v3854 = vmul.f32 %v3041, %v3788
  %v3855 = vmul.f32 %v3043, %v3788
  %v3856 = vmul.f32 %v3045, %v3788
  %v3857 = vmul.f32 %v3047, %v3788
  %v3858 = vmul.f32 %v3049, %v3788
  %v3859 = vmul.f32 %v3051, %v3788
  %v3860 = vmul.f32 %v3053, %v3788
  %v3861 = vmul.f32 %v3055, %v3792
  %v3862 = vmul.f32 %v3057, %v3792
  %v3863 = vmul.f32 %v3059, %v3792
  %v3864 = vmul.f32 %v3061, %v3792
  %v3865 = vmul.f32 %v3063, %v3792
  %v3866 = vmul.f32 %v3065, %v3792
  %v3867 = vmul.f32 %v3067, %v3792
  %v3868 = vmul.f32 %v3069, %v3792
  %v3869 = vmul.f32 %v3071, %v3796
  %v3870 = vmul.f32 %v3073, %v3796
  %v3871 = vmul.f32 %v3075, %v3796
  %v3872 = vmul.f32 %v3077, %v3796
  %v3873 = vmul.f32 %v3079, %v3796
  %v3874 = vmul.f32 %v3081, %v3796
  %v3875 = vmul.f32 %v3083, %v3796
  %v3876 = vmul.f32 %v3085, %v3796
  %v3877 = vmul.f32 %v3087, %v3800
  %v3878 = vmul.f32 %v3089, %v3800
  %v3879 = vmul.f32 %v3091, %v3800
  %v3880 = vmul.f32 %v3093, %v3800
  %v3881 = vmul.f32 %v3095, %v3800
  %v3882 = vmul.f32 %v3097, %v3800
  %v3883 = vmul.f32 %v3099, %v3800
  %v3884 = vmul.f32 %v3101, %v3800
  %v3885 = vmul.f32 %v3103, %v3804
  %v3886 = vmul.f32 %v3105, %v3804
  %v3887 = vmul.f32 %v3107, %v3804
  %v3888 = vmul.f32 %v3109, %v3804
  %v3889 = vmul.f32 %v3111, %v3804
  %v3890 = vmul.f32 %v3113, %v3804
  %v3891 = vmul.f32 %v3115, %v3804
  %v3892 = vmul.f32 %v3117, %v3804
  %v3893 = vmul.f32 %v3119, %v3808
  %v3894 = vmul.f32 %v3121, %v3808
  %v3895 = vmul.f32 %v3123, %v3808
  %v3896 = vmul.f32 %v3125, %v3808
  %v3897 = vmul.f32 %v3127, %v3808
  %v3898 = vmul.f32 %v3129, %v3808
  %v3899 = vmul.f32 %v3131, %v3808
  %v3900 = vmul.f32 %v3133, %v3808
  %v3901 = vmul.f32 %v3135, %v3812
  %v3902 = vmul.f32 %v3137, %v3812
  %v3903 = vmul.f32 %v3139, %v3812
  %v3904 = vmul.f32 %v3141, %v3812
  %v3905 = vmul.f32 %v3143, %v3812
  %v3906 = vmul.f32 %v3145, %v3812
  %v3907 = vmul.f32 %v3147, %v3812
  %v3908 = vmul.f32 %v3149, %v3812
  %v3909 = vmul.f32 %v3151, %v3816
  %v3910 = vmul.f32 %v3153, %v3816
  %v3911 = vmul.f32 %v3155, %v3816
  %v3912 = vmul.f32 %v3157, %v3816
  %v3913 = vmul.f32 %v3159, %v3816
  %v3914 = vmul.f32 %v3161, %v3816
  %v3915 = vmul.f32 %v3163, %v3816
  %v3916 = vmul.f32 %v3165, %v3816
  %v3917 = vmul.f32 %v3167, %v3820
  %v3918 = vmul.f32 %v3169, %v3820
  %v3919 = vmul.f32 %v3171, %v3820
  %v3920 = vmul.f32 %v3173, %v3820
  %v3921 = vmul.f32 %v3175, %v3820
  %v3922 = vmul.f32 %v3177, %v3820
  %v3923 = vmul.f32 %v3179, %v3820
  %v3924 = vmul.f32 %v3181, %v3820
  %v3925 = vmul.f32 %v3183, %v3824
  %v3926 = vmul.f32 %v3185, %v3824
  %v3927 = vmul.f32 %v3187, %v3824
  %v3928 = vmul.f32 %v3189, %v3824
  %v3929 = vmul.f32 %v3191, %v3824
  %v3930 = vmul.f32 %v3193, %v3824
  %v3931 = vmul.f32 %v3195, %v3824
  %v3932 = vmul.f32 %v3197, %v3824
  %v3933 = vmul.f32 %v3199, %v3828
  %v3934 = vmul.f32 %v3201, %v3828
  %v3935 = vmul.f32 %v3203, %v3828
  %v3936 = vmul.f32 %v3205, %v3828
  %v3937 = vmul.f32 %v3207, %v3828
  %v3938 = vmul.f32 %v3209, %v3828
  %v3939 = vmul.f32 %v3211, %v3828
  %v3940 = vmul.f32 %v3213, %v3828
  %v3941 = vmul.f32 %v3215, %v3832
  %v3942 = vmul.f32 %v3217, %v3832
  %v3943 = vmul.f32 %v3219, %v3832
  %v3944 = vmul.f32 %v3221, %v3832
  %v3945 = vmul.f32 %v3223, %v3832
  %v3946 = vmul.f32 %v3225, %v3832
  %v3947 = vmul.f32 %v3227, %v3832
  %v3948 = vmul.f32 %v3229, %v3832
  %v3949 = vmul.f32 %v3231, %v3836
  %v3950 = vmul.f32 %v3233, %v3836
  %v3951 = vmul.f32 %v3235, %v3836
  %v3952 = vmul.f32 %v3237, %v3836
  %v3953 = vmul.f32 %v3239, %v3836
  %v3954 = vmul.f32 %v3241, %v3836
  %v3955 = vmul.f32 %v3243, %v3836
  %v3956 = vmul.f32 %v3245, %v3836
  %v3957 = vmul.f32 %v3247, %v3840
  %v3958 = vmul.f32 %v3249, %v3840
  %v3959 = vmul.f32 %v3251, %v3840
  %v3960 = vmul.f32 %v3253, %v3840
  %v3961 = vmul.f32 %v3255, %v3840
  %v3962 = vmul.f32 %v3257, %v3840
  %v3963 = vmul.f32 %v3259, %v3840
  %v3964 = vmul.f32 %v3261, %v3840
  %v3965 = vmul.f32 %v3263, %v3844
  %v3966 = vmul.f32 %v3265, %v3844
  %v3967 = vmul.f32 %v3267, %v3844
  %v3968 = vmul.f32 %v3269, %v3844
  %v3969 = vmul.f32 %v3271, %v3844
  %v3970 = vmul.f32 %v3273, %v3844
  %v3971 = vmul.f32 %v3275, %v3844
  %v3972 = vmul.f32 %v3277, %v3844
  %v3973 = vld [vmem:[%s6] sm:$0xf]
  %v4102 = vrot.slane %v3846, 7
  %v4103 = vsel %vm3407, %v4102, %v3845
  %v4104 = vrot.slane %v3847, 6
  %v4105 = vsel %vm3410, %v4104, %v4103
  %v4106 = vrot.slane %v3848, 5
  %v4107 = vsel %vm3413, %v4106, %v4105
  %v4108 = vrot.slane %v3849, 4
  %v4109 = vsel %vm3416, %v4108, %v4107
  %v4110 = vrot.slane %v3850, 3
  %v4111 = vsel %vm3419, %v4110, %v4109
  %v4112 = vrot.slane %v3851, 2
  %v4113 = vsel %vm3422, %v4112, %v4111
  %v4114 = vrot.slane %v3852, 1
  %v4115 = vsel %vm3425, %v4114, %v4113
  %v4116 = vrot.slane %v3854, 7
  %v4117 = vsel %vm3407, %v4116, %v3853
  %v4118 = vrot.slane %v3855, 6
  %v4119 = vsel %vm3410, %v4118, %v4117
  %v4120 = vrot.slane %v3856, 5
  %v4121 = vsel %vm3413, %v4120, %v4119
  %v4122 = vrot.slane %v3857, 4
  %v4123 = vsel %vm3416, %v4122, %v4121
  %v4124 = vrot.slane %v3858, 3
  %v4125 = vsel %vm3419, %v4124, %v4123
  %v4126 = vrot.slane %v3859, 2
  %v4127 = vsel %vm3422, %v4126, %v4125
  %v4128 = vrot.slane %v3860, 1
  %v4129 = vsel %vm3425, %v4128, %v4127
  %v4130 = vrot.slane %v3862, 7
  %v4131 = vsel %vm3407, %v4130, %v3861
  %v4132 = vrot.slane %v3863, 6
  %v4133 = vsel %vm3410, %v4132, %v4131
  %v4134 = vrot.slane %v3864, 5
  %v4135 = vsel %vm3413, %v4134, %v4133
  %v4136 = vrot.slane %v3865, 4
  %v4137 = vsel %vm3416, %v4136, %v4135
  %v4138 = vrot.slane %v3866, 3
  %v4139 = vsel %vm3419, %v4138, %v4137
  %v4140 = vrot.slane %v3867, 2
  %v4141 = vsel %vm3422, %v4140, %v4139
  %v4142 = vrot.slane %v3868, 1
  %v4143 = vsel %vm3425, %v4142, %v4141
  %v4144 = vrot.slane %v3870, 7
  %v4145 = vsel %vm3407, %v4144, %v3869
  %v4146 = vrot.slane %v3871, 6
  %v4147 = vsel %vm3410, %v4146, %v4145
  %v4148 = vrot.slane %v3872, 5
  %v4149 = vsel %vm3413, %v4148, %v4147
  %v4150 = vrot.slane %v3873, 4
  %v4151 = vsel %vm3416, %v4150, %v4149
  %v4152 = vrot.slane %v3874, 3
  %v4153 = vsel %vm3419, %v4152, %v4151
  %v4154 = vrot.slane %v3875, 2
  %v4155 = vsel %vm3422, %v4154, %v4153
  %v4156 = vrot.slane %v3876, 1
  %v4157 = vsel %vm3425, %v4156, %v4155
  %v4158 = vrot.slane %v3878, 7
  %v4159 = vsel %vm3407, %v4158, %v3877
  %v4160 = vrot.slane %v3879, 6
  %v4161 = vsel %vm3410, %v4160, %v4159
  %v4162 = vrot.slane %v3880, 5
  %v4163 = vsel %vm3413, %v4162, %v4161
  %v4164 = vrot.slane %v3881, 4
  %v4165 = vsel %vm3416, %v4164, %v4163
  %v4166 = vrot.slane %v3882, 3
  %v4167 = vsel %vm3419, %v4166, %v4165
  %v4168 = vrot.slane %v3883, 2
  %v4169 = vsel %vm3422, %v4168, %v4167
  %v4170 = vrot.slane %v3884, 1
  %v4171 = vsel %vm3425, %v4170, %v4169
  %v4172 = vrot.slane %v3886, 7
  %v4173 = vsel %vm3407, %v4172, %v3885
  %v4174 = vrot.slane %v3887, 6
  %v4175 = vsel %vm3410, %v4174, %v4173
  %v4176 = vrot.slane %v3888, 5
  %v4177 = vsel %vm3413, %v4176, %v4175
  %v4178 = vrot.slane %v3889, 4
  %v4179 = vsel %vm3416, %v4178, %v4177
  %v4180 = vrot.slane %v3890, 3
  %v4181 = vsel %vm3419, %v4180, %v4179
  %v4182 = vrot.slane %v3891, 2
  %v4183 = vsel %vm3422, %v4182, %v4181
  %v4184 = vrot.slane %v3892, 1
  %v4185 = vsel %vm3425, %v4184, %v4183
  %v4186 = vrot.slane %v3894, 7
  %v4187 = vsel %vm3407, %v4186, %v3893
  %v4188 = vrot.slane %v3895, 6
  %v4189 = vsel %vm3410, %v4188, %v4187
  %v4190 = vrot.slane %v3896, 5
  %v4191 = vsel %vm3413, %v4190, %v4189
  %v4192 = vrot.slane %v3897, 4
  %v4193 = vsel %vm3416, %v4192, %v4191
  %v4194 = vrot.slane %v3898, 3
  %v4195 = vsel %vm3419, %v4194, %v4193
  %v4196 = vrot.slane %v3899, 2
  %v4197 = vsel %vm3422, %v4196, %v4195
  %v4198 = vrot.slane %v3900, 1
  %v4199 = vsel %vm3425, %v4198, %v4197
  %v4200 = vrot.slane %v3902, 7
  %v4201 = vsel %vm3407, %v4200, %v3901
  %v4202 = vrot.slane %v3903, 6
  %v4203 = vsel %vm3410, %v4202, %v4201
  %v4204 = vrot.slane %v3904, 5
  %v4205 = vsel %vm3413, %v4204, %v4203
  %v4206 = vrot.slane %v3905, 4
  %v4207 = vsel %vm3416, %v4206, %v4205
  %v4208 = vrot.slane %v3906, 3
  %v4209 = vsel %vm3419, %v4208, %v4207
  %v4210 = vrot.slane %v3907, 2
  %v4211 = vsel %vm3422, %v4210, %v4209
  %v4212 = vrot.slane %v3908, 1
  %v4213 = vsel %vm3425, %v4212, %v4211
  %v4214 = vrot.slane %v3910, 7
  %v4215 = vsel %vm3407, %v4214, %v3909
  %v4216 = vrot.slane %v3911, 6
  %v4217 = vsel %vm3410, %v4216, %v4215
  %v4218 = vrot.slane %v3912, 5
  %v4219 = vsel %vm3413, %v4218, %v4217
  %v4220 = vrot.slane %v3913, 4
  %v4221 = vsel %vm3416, %v4220, %v4219
  %v4222 = vrot.slane %v3914, 3
  %v4223 = vsel %vm3419, %v4222, %v4221
  %v4224 = vrot.slane %v3915, 2
  %v4225 = vsel %vm3422, %v4224, %v4223
  %v4226 = vrot.slane %v3916, 1
  %v4227 = vsel %vm3425, %v4226, %v4225
  %v4228 = vrot.slane %v3918, 7
  %v4229 = vsel %vm3407, %v4228, %v3917
  %v4230 = vrot.slane %v3919, 6
  %v4231 = vsel %vm3410, %v4230, %v4229
  %v4232 = vrot.slane %v3920, 5
  %v4233 = vsel %vm3413, %v4232, %v4231
  %v4234 = vrot.slane %v3921, 4
  %v4235 = vsel %vm3416, %v4234, %v4233
  %v4236 = vrot.slane %v3922, 3
  %v4237 = vsel %vm3419, %v4236, %v4235
  %v4238 = vrot.slane %v3923, 2
  %v4239 = vsel %vm3422, %v4238, %v4237
  %v4240 = vrot.slane %v3924, 1
  %v4241 = vsel %vm3425, %v4240, %v4239
  %v4242 = vrot.slane %v3926, 7
  %v4243 = vsel %vm3407, %v4242, %v3925
  %v4244 = vrot.slane %v3927, 6
  %v4245 = vsel %vm3410, %v4244, %v4243
  %v4246 = vrot.slane %v3928, 5
  %v4247 = vsel %vm3413, %v4246, %v4245
  %v4248 = vrot.slane %v3929, 4
  %v4249 = vsel %vm3416, %v4248, %v4247
  %v4250 = vrot.slane %v3930, 3
  %v4251 = vsel %vm3419, %v4250, %v4249
  %v4252 = vrot.slane %v3931, 2
  %v4253 = vsel %vm3422, %v4252, %v4251
  %v4254 = vrot.slane %v3932, 1
  %v4255 = vsel %vm3425, %v4254, %v4253
  %v4256 = vrot.slane %v3934, 7
  %v4257 = vsel %vm3407, %v4256, %v3933
  %v4258 = vrot.slane %v3935, 6
  %v4259 = vsel %vm3410, %v4258, %v4257
  %v4260 = vrot.slane %v3936, 5
  %v4261 = vsel %vm3413, %v4260, %v4259
  %v4262 = vrot.slane %v3937, 4
  %v4263 = vsel %vm3416, %v4262, %v4261
  %v4264 = vrot.slane %v3938, 3
  %v4265 = vsel %vm3419, %v4264, %v4263
  %v4266 = vrot.slane %v3939, 2
  %v4267 = vsel %vm3422, %v4266, %v4265
  %v4268 = vrot.slane %v3940, 1
  %v4269 = vsel %vm3425, %v4268, %v4267
  %v4270 = vrot.slane %v3942, 7
  %v4271 = vsel %vm3407, %v4270, %v3941
  %v4272 = vrot.slane %v3943, 6
  %v4273 = vsel %vm3410, %v4272, %v4271
  %v4274 = vrot.slane %v3944, 5
  %v4275 = vsel %vm3413, %v4274, %v4273
  %v4276 = vrot.slane %v3945, 4
  %v4277 = vsel %vm3416, %v4276, %v4275
  %v4278 = vrot.slane %v3946, 3
  %v4279 = vsel %vm3419, %v4278, %v4277
  %v4280 = vrot.slane %v3947, 2
  %v4281 = vsel %vm3422, %v4280, %v4279
  %v4282 = vrot.slane %v3948, 1
  %v4283 = vsel %vm3425, %v4282, %v4281
  %v4284 = vrot.slane %v3950, 7
  %v4285 = vsel %vm3407, %v4284, %v3949
  %v4286 = vrot.slane %v3951, 6
  %v4287 = vsel %vm3410, %v4286, %v4285
  %v4288 = vrot.slane %v3952, 5
  %v4289 = vsel %vm3413, %v4288, %v4287
  %v4290 = vrot.slane %v3953, 4
  %v4291 = vsel %vm3416, %v4290, %v4289
  %v4292 = vrot.slane %v3954, 3
  %v4293 = vsel %vm3419, %v4292, %v4291
  %v4294 = vrot.slane %v3955, 2
  %v4295 = vsel %vm3422, %v4294, %v4293
  %v4296 = vrot.slane %v3956, 1
  %v4297 = vsel %vm3425, %v4296, %v4295
  %v4298 = vrot.slane %v3958, 7
  %v4299 = vsel %vm3407, %v4298, %v3957
  %v4300 = vrot.slane %v3959, 6
  %v4301 = vsel %vm3410, %v4300, %v4299
  %v4302 = vrot.slane %v3960, 5
  %v4303 = vsel %vm3413, %v4302, %v4301
  %v4304 = vrot.slane %v3961, 4
  %v4305 = vsel %vm3416, %v4304, %v4303
  %v4306 = vrot.slane %v3962, 3
  %v4307 = vsel %vm3419, %v4306, %v4305
  %v4308 = vrot.slane %v3963, 2
  %v4309 = vsel %vm3422, %v4308, %v4307
  %v4310 = vrot.slane %v3964, 1
  %v4311 = vsel %vm3425, %v4310, %v4309
  %v4312 = vrot.slane %v3966, 7
  %v4313 = vsel %vm3407, %v4312, %v3965
  %v4314 = vrot.slane %v3967, 6
  %v4315 = vsel %vm3410, %v4314, %v4313
  %v4316 = vrot.slane %v3968, 5
  %v4317 = vsel %vm3413, %v4316, %v4315
  %v4318 = vrot.slane %v3969, 4
  %v4319 = vsel %vm3416, %v4318, %v4317
  %v4320 = vrot.slane %v3970, 3
  %v4321 = vsel %vm3419, %v4320, %v4319
  %v4322 = vrot.slane %v3971, 2
  %v4323 = vsel %vm3422, %v4322, %v4321
  %v4324 = vrot.slane %v3972, 1
  %v4325 = vsel %vm3425, %v4324, %v4323
  %v4342 = vmul.f32 %v45, %v4115
  %v4343 = vmul.f32 %v46, %v4129
  %v4344 = vmul.f32 %v47, %v4143
  %v4345 = vmul.f32 %v48, %v4157
  %v4346 = vmul.f32 %v49, %v4171
  %v4347 = vmul.f32 %v50, %v4185
  %v4348 = vmul.f32 %v51, %v4199
  %v4349 = vmul.f32 %v52, %v4213
  %v4350 = vmul.f32 %v53, %v4227
  %v4351 = vmul.f32 %v54, %v4241
  %v4352 = vmul.f32 %v55, %v4255
  %v4353 = vmul.f32 %v56, %v4269
  %v4354 = vmul.f32 %v57, %v4283
  %v4355 = vmul.f32 %v58, %v4297
  %v4356 = vmul.f32 %v59, %v4311
  %v4357 = vmul.f32 %v60, %v4325
  %v4358 = vlaneseq
  %v4359 = vshrl.u32 %v4358, 7
  %v4360 = vsub.s32 0, %v4359
  %v4361 = vrot.slane %v3973, %v4360
  %v4362 = vmul.f32 %v4342, %v4361
  %v4363 = vmul.f32 %v4343, %v4361
  %v4364 = vmul.f32 %v4344, %v4361
  %v4365 = vmul.f32 %v4345, %v4361
  %v4366 = vmul.f32 %v4346, %v4361
  %v4367 = vmul.f32 %v4347, %v4361
  %v4368 = vmul.f32 %v4348, %v4361
  %v4369 = vmul.f32 %v4349, %v4361
  %v4370 = vmul.f32 %v4350, %v4361
  %v4371 = vmul.f32 %v4351, %v4361
  %v4372 = vmul.f32 %v4352, %v4361
  %v4373 = vmul.f32 %v4353, %v4361
  %v4374 = vmul.f32 %v4354, %v4361
  %v4375 = vmul.f32 %v4355, %v4361
  %v4376 = vmul.f32 %v4356, %v4361
  %v4377 = vmul.f32 %v4357, %v4361
  %v4378 = vadd.f32 %v29, %v4362
  %v4379 = vadd.f32 %v30, %v4363
  %v4380 = vadd.f32 %v31, %v4364
  %v4381 = vadd.f32 %v32, %v4365
  %v4382 = vadd.f32 %v33, %v4366
  %v4383 = vadd.f32 %v34, %v4367
  %v4384 = vadd.f32 %v35, %v4368
  %v4385 = vadd.f32 %v36, %v4369
  %v4386 = vadd.f32 %v37, %v4370
  %v4387 = vadd.f32 %v38, %v4371
  %v4388 = vadd.f32 %v39, %v4372
  %v4389 = vadd.f32 %v40, %v4373
  %v4390 = vadd.f32 %v41, %v4374
  %v4391 = vadd.f32 %v42, %v4375
  %v4392 = vadd.f32 %v43, %v4376
  %v4393 = vadd.f32 %v44, %v4377
  %v4394 = vlaneseq
  %v4395 = vshrl.u32 %v4394, 7
  %v4396 = vsub.s32 1, %v4395
  %v4397 = vrot.slane %v3973, %v4396
  %v4398 = vadd.f32 %v4378, %v4397
  %v4399 = vadd.f32 %v4379, %v4397
  %v4400 = vadd.f32 %v4380, %v4397
  %v4401 = vadd.f32 %v4381, %v4397
  %v4402 = vadd.f32 %v4382, %v4397
  %v4403 = vadd.f32 %v4383, %v4397
  %v4404 = vadd.f32 %v4384, %v4397
  %v4405 = vadd.f32 %v4385, %v4397
  %v4406 = vadd.f32 %v4386, %v4397
  %v4407 = vadd.f32 %v4387, %v4397
  %v4408 = vadd.f32 %v4388, %v4397
  %v4409 = vadd.f32 %v4389, %v4397
  %v4410 = vadd.f32 %v4390, %v4397
  %v4411 = vadd.f32 %v4391, %v4397
  %v4412 = vadd.f32 %v4392, %v4397
  %v4413 = vadd.f32 %v4393, %v4397
  %v4414 = vmul.f32 %v29, %v4115
  %v4415 = vmul.f32 %v30, %v4129
  %v4416 = vmul.f32 %v31, %v4143
  %v4417 = vmul.f32 %v32, %v4157
  %v4418 = vmul.f32 %v33, %v4171
  %v4419 = vmul.f32 %v34, %v4185
  %v4420 = vmul.f32 %v35, %v4199
  %v4421 = vmul.f32 %v36, %v4213
  %v4422 = vmul.f32 %v37, %v4227
  %v4423 = vmul.f32 %v38, %v4241
  %v4424 = vmul.f32 %v39, %v4255
  %v4425 = vmul.f32 %v40, %v4269
  %v4426 = vmul.f32 %v41, %v4283
  %v4427 = vmul.f32 %v42, %v4297
  %v4428 = vmul.f32 %v43, %v4311
  %v4429 = vmul.f32 %v44, %v4325
  %v4430 = vlaneseq
  %v4431 = vshrl.u32 %v4430, 7
  %v4432 = vsub.s32 2, %v4431
  %v4433 = vrot.slane %v3973, %v4432
  %v4434 = vmul.f32 %v4414, %v4433
  %v4435 = vmul.f32 %v4415, %v4433
  %v4436 = vmul.f32 %v4416, %v4433
  %v4437 = vmul.f32 %v4417, %v4433
  %v4438 = vmul.f32 %v4418, %v4433
  %v4439 = vmul.f32 %v4419, %v4433
  %v4440 = vmul.f32 %v4420, %v4433
  %v4441 = vmul.f32 %v4421, %v4433
  %v4442 = vmul.f32 %v4422, %v4433
  %v4443 = vmul.f32 %v4423, %v4433
  %v4444 = vmul.f32 %v4424, %v4433
  %v4445 = vmul.f32 %v4425, %v4433
  %v4446 = vmul.f32 %v4426, %v4433
  %v4447 = vmul.f32 %v4427, %v4433
  %v4448 = vmul.f32 %v4428, %v4433
  %v4449 = vmul.f32 %v4429, %v4433
  %v4450 = vadd.f32 %v45, %v4434
  %v4451 = vadd.f32 %v46, %v4435
  %v4452 = vadd.f32 %v47, %v4436
  %v4453 = vadd.f32 %v48, %v4437
  %v4454 = vadd.f32 %v49, %v4438
  %v4455 = vadd.f32 %v50, %v4439
  %v4456 = vadd.f32 %v51, %v4440
  %v4457 = vadd.f32 %v52, %v4441
  %v4458 = vadd.f32 %v53, %v4442
  %v4459 = vadd.f32 %v54, %v4443
  %v4460 = vadd.f32 %v55, %v4444
  %v4461 = vadd.f32 %v56, %v4445
  %v4462 = vadd.f32 %v57, %v4446
  %v4463 = vadd.f32 %v58, %v4447
  %v4464 = vadd.f32 %v59, %v4448
  %v4465 = vadd.f32 %v60, %v4449
  %v4466 = vlaneseq
  %v4467 = vshrl.u32 %v4466, 7
  %v4468 = vsub.s32 3, %v4467
  %v4469 = vrot.slane %v3973, %v4468
  %v4470 = vadd.f32 %v4450, %v4469
  %v4471 = vadd.f32 %v4451, %v4469
  %v4472 = vadd.f32 %v4452, %v4469
  %v4473 = vadd.f32 %v4453, %v4469
  %v4474 = vadd.f32 %v4454, %v4469
  %v4475 = vadd.f32 %v4455, %v4469
  %v4476 = vadd.f32 %v4456, %v4469
  %v4477 = vadd.f32 %v4457, %v4469
  %v4478 = vadd.f32 %v4458, %v4469
  %v4479 = vadd.f32 %v4459, %v4469
  %v4480 = vadd.f32 %v4460, %v4469
  %v4481 = vadd.f32 %v4461, %v4469
  %v4482 = vadd.f32 %v4462, %v4469
  %v4483 = vadd.f32 %v4463, %v4469
  %v4484 = vadd.f32 %v4464, %v4469
  %v4485 = vadd.f32 %v4465, %v4469
  %4486 = vst.msk [vmem:[%s7] sm:$0xff] %vm92, %v4398
  %4487 = vst.msk [vmem:[%s7 + $0x8] sm:$0xff] %vm92, %v4399
  %4488 = vst.msk [vmem:[%s7 + $0x10] sm:$0xff] %vm92, %v4400
  %4489 = vst.msk [vmem:[%s7 + $0x18] sm:$0xff] %vm92, %v4401
  %4490 = vst.msk [vmem:[%s7 + $0x20] sm:$0xff] %vm92, %v4402
  %4491 = vst.msk [vmem:[%s7 + $0x28] sm:$0xff] %vm92, %v4403
  %4492 = vst.msk [vmem:[%s7 + $0x30] sm:$0xff] %vm92, %v4404
  %4493 = vst.msk [vmem:[%s7 + $0x38] sm:$0xff] %vm92, %v4405
  %4494 = vst.msk [vmem:[%s7 + $0x40] sm:$0xff] %vm92, %v4406
  %4495 = vst.msk [vmem:[%s7 + $0x48] sm:$0xff] %vm92, %v4407
  %4496 = vst.msk [vmem:[%s7 + $0x50] sm:$0xff] %vm92, %v4408
  %4497 = vst.msk [vmem:[%s7 + $0x58] sm:$0xff] %vm92, %v4409
  %4498 = vst.msk [vmem:[%s7 + $0x60] sm:$0xff] %vm92, %v4410
  %4499 = vst.msk [vmem:[%s7 + $0x68] sm:$0xff] %vm92, %v4411
  %4500 = vst.msk [vmem:[%s7 + $0x70] sm:$0xff] %vm92, %v4412
  %4501 = vst.msk [vmem:[%s7 + $0x78] sm:$0xff] %vm92, %v4413
  %4502 = vst.msk [vmem:[%s8] sm:$0xff] %vm92, %v4470
  %4503 = vst.msk [vmem:[%s8 + $0x8] sm:$0xff] %vm92, %v4471
  %4504 = vst.msk [vmem:[%s8 + $0x10] sm:$0xff] %vm92, %v4472
  %4505 = vst.msk [vmem:[%s8 + $0x18] sm:$0xff] %vm92, %v4473
  %4506 = vst.msk [vmem:[%s8 + $0x20] sm:$0xff] %vm92, %v4474
  %4507 = vst.msk [vmem:[%s8 + $0x28] sm:$0xff] %vm92, %v4475
  %4508 = vst.msk [vmem:[%s8 + $0x30] sm:$0xff] %vm92, %v4476
  %4509 = vst.msk [vmem:[%s8 + $0x38] sm:$0xff] %vm92, %v4477
  %4510 = vst.msk [vmem:[%s8 + $0x40] sm:$0xff] %vm92, %v4478
  %4511 = vst.msk [vmem:[%s8 + $0x48] sm:$0xff] %vm92, %v4479
  %4512 = vst.msk [vmem:[%s8 + $0x50] sm:$0xff] %vm92, %v4480
  %4513 = vst.msk [vmem:[%s8 + $0x58] sm:$0xff] %vm92, %v4481
  %4514 = vst.msk [vmem:[%s8 + $0x60] sm:$0xff] %vm92, %v4482
  %4515 = vst.msk [vmem:[%s8 + $0x68] sm:$0xff] %vm92, %v4483
  %4516 = vst.msk [vmem:[%s8 + $0x70] sm:$0xff] %vm92, %v4484
  %4517 = vst.msk [vmem:[%s8 + $0x78] sm:$0xff] %vm92, %v4485
  // Predicated region
  $region30: #{f3net_forward.12} parent=0 // pred_check
    _
  $region31: #{f3net_forward.12} parent=0 // pred_check_branch
    %4519 = sbr.rel (0) target = $region33
  $region32: #{f3net_forward.12} parent=0 // pred_region
    _
  $region33: #{f3net_forward.12} parent=0 // pred_fallthru
    _
  // Predicated region
  $region34: #{f3net_forward.12} parent=0 // pred_check
    _
  $region35: #{f3net_forward.12} parent=0 // pred_check_branch
    %4521 = sbr.rel (0) target = $region37
  $region36: #{f3net_forward.12} parent=0 // pred_region
    _
  $region37: #{f3net_forward.12} parent=0 // pred_fallthru
    _
  // Predicated region
  $region38: #{f3net_forward.12} parent=0 // pred_check
    _
  $region39: #{f3net_forward.12} parent=0 // pred_check_branch
    %4523 = sbr.rel (0) target = $region41
  $region40: #{f3net_forward.12} parent=0 // pred_region
    _
  $region41: #{f3net_forward.12} parent=0 // pred_fallthru
    _
  // Predicated region
  $region42: #{f3net_forward.12} parent=0 // pred_check
    _
  $region43: #{f3net_forward.12} parent=0 // pred_check_branch
    %4525 = sbr.rel (0) target = $region45
  $region44: #{f3net_forward.12} parent=0 // pred_region
    _
  $region45: #{f3net_forward.12} parent=0 // pred_fallthru
    _

</llo_original>
